<compile_context>
chip_gen: v7x
topology: tpu7x:2x2x1
jax: 0.10.0
libtpu: 0.0.40
codegen_flags: <defaults>
</compile_context>

<pallas_src>
import functools

import numpy as np

import jax
import jax.numpy as jnp
from jax import lax
from jax.experimental import pallas as pl
from jax.experimental.pallas import tpu as pltpu


def _round_up(a, m):
    return ((a + m - 1) // m) * m


# --------------------------------------------------------------------------- #
# Fused kernel: one block of G images per grid step.
# --------------------------------------------------------------------------- #
def _net_kernel(x1_ref, w1_ref, b1_ref, w2_ref, b2_ref, wf1_ref, bf1_ref,
                wf2_ref, bf2_ref, out_ref, *, G):
    """Per grid step (rows of all activation slabs are (j, g) -> j*G + g):

      x1_ref  : (4, 7G, 128) bf16  phase-gathered padded input rows
                                   x1[p, j*G+g, dy*30+col] = xpad[g, 4j+p+dy, col]
      w1_ref  : (128, 1024)  bf16  conv1 banded weight, col = parity*512 + w2*32 + co
      b1_ref  : (1, 512)     f32   conv1 bias tiled over pooled column (lane = w2*32+co)
      w2_ref  : (3, 512,1024)bf16  conv2 banded weight per dy, col = parity*512+w3*64+co
      b2_ref  : (1, 512)     f32   conv2 bias tiled (lane = w3*64+co)
      wf1_ref : (7, 512, 128)bf16  fc1 weight, torch NCHW flatten folded in, lane-padded
      bf1_ref : (1, 128)     f32
      wf2_ref : (128, 128)   f32   fc2 weight, cols 10..127 zero
      bf2_ref : (1, 128)     f32   fc2 bias, cols 10..127 = -1e30 (masks log_softmax)
      out_ref : (G, 128)     f32   lane-dense log_softmax(logits); lanes 0..9 valid
    """
    f32, bf16 = jnp.float32, jnp.bfloat16

    # ---- conv1 (bf16 banded matmul, f32 acc) fused with 2x2 max-pool + ReLU --- #
    # Phase p covers conv1 output rows {4j+p}; row-pooling pairs phases (0,1) and
    # (2,3); column-pooling is the max of the two 512-lane parity halves.
    w1 = w1_ref[...]

    def conv1_pair(pa, pb):
        g = jnp.maximum(
            jnp.dot(x1_ref[pa], w1, preferred_element_type=f32),
            jnp.dot(x1_ref[pb], w1, preferred_element_type=f32))     # (7G, 1024)
        g = jnp.maximum(g[:, :512], g[:, 512:])                      # column-parity pool
        return jnp.maximum(g + b1_ref[...], 0.0)                     # (7G, 512)

    p_even = conv1_pair(0, 1)        # pool1 rows 0,2,...,12
    p_odd = conv1_pair(2, 3)         # pool1 rows 1,3,...,13

    # ---- conv2 (bf16 banded matmul, f32 acc) fused with 2x2 max-pool + ReLU --- #
    # Height-padded conv2 input rows, by parity (zero blocks = SAME padding).
    # All shifts are whole G-row blocks -> tile-aligned sublane concats (G % 8 == 0).
    zblk = jnp.zeros((G, 512), f32)
    slab_a = jnp.concatenate([zblk, p_odd[:6 * G]], axis=0).astype(bf16)   # padded 2r
    slab_c = p_even.astype(bf16)                                           # padded 2r+1
    slab_b = p_odd.astype(bf16)                                            # padded 2r+2
    slab_d = jnp.concatenate([p_even[G:], zblk], axis=0).astype(bf16)      # padded 2r+3

    def conv2_rows(s0, s1, s2):
        return (jnp.dot(s0, w2_ref[0], preferred_element_type=f32)
                + jnp.dot(s1, w2_ref[1], preferred_element_type=f32)
                + jnp.dot(s2, w2_ref[2], preferred_element_type=f32))  # (7G, 1024)

    m = jnp.maximum(conv2_rows(slab_a, slab_c, slab_b),     # conv2 rows 2r
                    conv2_rows(slab_c, slab_b, slab_d))     # conv2 rows 2r+1
    m = jnp.maximum(m[:, :512], m[:, 512:])                 # column-parity pool
    p2 = jnp.maximum(m + b2_ref[...], 0.0)                  # (7G, 512): lane = w3*64+co

    # ---- fc1: 7-term K-accumulation with batched (G, 512) LHS ----------------- #
    # p2[h3*G:(h3+1)*G] is a tile-aligned sublane slice; NCHW flatten is baked
    # into wf1_ref at prep time.  No per-image flatten / relayout.
    acc = jnp.zeros((G, 128), f32)
    for h3 in range(7):
        lhs = p2[h3 * G:(h3 + 1) * G].astype(bf16)          # (G, 512)
        acc = acc + jnp.dot(lhs, wf1_ref[h3], preferred_element_type=f32)
    z1 = acc + bf1_ref[...]                                 # (G, 128) -- no activation

    # ---- fc2 + log_softmax (f32, lane-dense output) --------------------------- #
    z2 = jnp.dot(z1, wf2_ref[...], preferred_element_type=f32) + bf2_ref[...]
    zmax = jnp.max(z2, axis=-1, keepdims=True)              # pad lanes are -1e30
    zs = z2 - zmax
    lse = jnp.log(jnp.sum(jnp.exp(zs), axis=-1, keepdims=True))
    out_ref[...] = (zs - lse).astype(out_ref.dtype)


# --------------------------------------------------------------------------- #
# One-time weight preparation (banded conv matrices, lane padding, parity merge,
# NCHW-flatten folding, bf16 casts).
# --------------------------------------------------------------------------- #
def prepare_params(params):
    w1, b1, w2, b2, wf1, bf1, wf2, bf2 = [np.asarray(p, np.float32) for p in params]

    # conv1: row k = dy*30 + padded_col (k < 90, rest zero-pad),
    #        col n = parity*512 + w2*32 + co   (w2 = pooled column 0..13)
    W1m = np.zeros((128, 1024), np.float32)
    for wpar in range(2):
        for dy in range(3):
            for dx in range(3):
                for wo in range(14):
                    k = dy * 30 + 2 * wo + wpar + dx
                    n = wpar * 512 + wo * 32
                    W1m[k, n:n + 32] = w1[dy, dx, 0, :]
    b1r = np.zeros((1, 512), np.float32)
    b1r[0, :448] = np.tile(b1, 14)

    # conv2: per dy, row = win*32 + ci (win = pool1 column, <14 valid),
    #        col = parity*512 + w3*64 + co.  SAME width padding = omitted taps.
    W2m = np.zeros((3, 512, 1024), np.float32)
    for dy in range(3):
        for wpar in range(2):
            for dx in range(3):
                for wo in range(7):
                    win = 2 * wo + wpar + dx - 1
                    if 0 <= win < 14:
                        n = wpar * 512 + wo * 64
                        W2m[dy, win * 32:(win + 1) * 32, n:n + 64] = w2[dy, dx]
    b2r = np.zeros((1, 512), np.float32)
    b2r[0, :448] = np.tile(b2, 7)

    # fc1: fold torch's x.view(-1, 64*7*7) on NCHW into the weight, lane-pad to 512:
    #   Wf1p[h3, w3*64+co, n] = wf1[co*49 + h3*7 + w3, n]
    Wf1p = np.zeros((7, 512, 128), np.float32)
    Wf1p[:, :448, :] = wf1.reshape(64, 7, 7, 128).transpose(1, 2, 0, 3).reshape(7, 448, 128)

    # fc2: lane-dense (128 cols); pad logits are forced to -1e30 via the bias so the
    # in-kernel log_softmax over 128 lanes equals log_softmax over the valid 10.
    Wf2p = np.zeros((128, 128), np.float32)
    Wf2p[:, :10] = wf2
    bf2r = np.full((1, 128), -1e30, np.float32)
    bf2r[0, :10] = bf2

    return (jnp.asarray(W1m, jnp.bfloat16),
            jnp.asarray(b1r, jnp.float32),
            jnp.asarray(W2m, jnp.bfloat16),
            jnp.asarray(b2r, jnp.float32),
            jnp.asarray(Wf1p, jnp.bfloat16),
            jnp.asarray(bf1[None, :], jnp.float32),
            jnp.asarray(Wf2p, jnp.float32),
            jnp.asarray(bf2r, jnp.float32))


# --------------------------------------------------------------------------- #
# Probe: single-buffered resident weights (pipeline_mode=pl.Buffered(1)).
# Falls back to default double buffering if this Pallas build rejects it.
# --------------------------------------------------------------------------- #
_SINGLE_BUFFER_OK = None


def _single_buffer_weights_supported():
    global _SINGLE_BUFFER_OK
    if _SINGLE_BUFFER_OK is not None:
        return _SINGLE_BUFFER_OK

    def _probe_kernel(w_ref, o_ref):
        o_ref[...] = w_ref[...] + 1.0

    try:
        spec = pl.BlockSpec((8, 128), lambda i: (0, 0), pipeline_mode=pl.Buffered(1))
        fn = pl.pallas_call(
            _probe_kernel,
            grid=(2,),
            in_specs=[spec],
            out_specs=pl.BlockSpec((8, 128), lambda i: (0, 0)),
            out_shape=jax.ShapeDtypeStruct((8, 128), jnp.float32))
        jax.block_until_ready(fn(jnp.zeros((8, 128), jnp.float32)))
        _SINGLE_BUFFER_OK = True
    except Exception:
        _SINGLE_BUFFER_OK = False
    return _SINGLE_BUFFER_OK


def _choose_group(B, block_images):
    """Images per grid step: multiple of 8 (tile-aligned f32 sublanes); multiple of
    16 when there is more than one block so the bf16 input block stays tile-aligned."""
    G = _round_up(min(max(8, block_images), _round_up(max(B, 1), 8)), 8)
    if _round_up(B, G) > G:          # more than one grid block
        G = _round_up(G, 16)
    return G


# --------------------------------------------------------------------------- #
# Forward pass.
# --------------------------------------------------------------------------- #
def net_forward(x_nchw, prep, block_images=64):
    """x_nchw: (B, 1, 28, 28)  ->  (B, 10) log-probabilities.

    block_images: images per grid step (sweep 32/64/128; 64 fits v7x's 64 MiB VMEM
    comfortably, v5e/v6e can go larger)."""
    W1m, b1r, W2m, b2r, Wf1p, bf1r, Wf2p, bf2r = prep
    B = x_nchw.shape[0]
    assert x_nchw.shape[1:] == (1, 28, 28), "Net expects (B, 1, 28, 28) input"

    G = _choose_group(B, block_images)
    Bp = _round_up(B, G)
    nb = Bp // G                      # grid length; >=2 blocks lets v7x use both TCs

    # -- XLA glue (tiny, ~7 KB/image): pad + phase-gather the network input. ---- #
    x = x_nchw.reshape(B, 28, 28).astype(jnp.float32)
    if Bp != B:
        x = jnp.concatenate([x, jnp.zeros((Bp - B, 28, 28), jnp.float32)], axis=0)
    xp = jnp.pad(x, ((0, 0), (1, 1), (1, 1)))                          # (Bp, 30, 30)
    phases = [jnp.concatenate([xp[:, p + dy: p + dy + 25: 4, :] for dy in range(3)],
                              axis=-1)                                  # (Bp, 7, 90)
              for p in range(4)]
    x1 = jnp.stack(phases, axis=0)                                      # (4, Bp, 7, 90)
    x1 = jnp.pad(x1, ((0, 0), (0, 0), (0, 0), (0, 38)))                 # lane pad -> 128
    x1 = (x1.reshape(4, nb, G, 7, 128)
             .transpose(0, 1, 3, 2, 4)                                  # row = (blk, j, g)
             .reshape(4, nb * 7 * G, 128)
             .astype(jnp.bfloat16))

    single_buf = _single_buffer_weights_supported()

    def wspec(shape):
        n = len(shape)
        imap = lambda b: (0,) * n
        if single_buf:
            return pl.BlockSpec(shape, imap, pipeline_mode=pl.Buffered(1))
        return pl.BlockSpec(shape, imap)

    out = pl.pallas_call(
        functools.partial(_net_kernel, G=G),
        grid=(nb,),
        in_specs=[
            pl.BlockSpec((4, 7 * G, 128), lambda b: (0, b, 0)),   # per-block images
            wspec((128, 1024)),        # conv1 banded weight (resident)
            wspec((1, 512)),           # conv1 bias
            wspec((3, 512, 1024)),     # conv2 banded weight
            wspec((1, 512)),           # conv2 bias
            wspec((7, 512, 128)),      # fc1 weight
            wspec((1, 128)),           # fc1 bias
            wspec((128, 128)),         # fc2 weight
            wspec((1, 128)),           # fc2 bias
        ],
        out_specs=pl.BlockSpec((G, 128), lambda b: (b, 0)),       # lane-dense logits
        out_shape=jax.ShapeDtypeStruct((nb * G, 128), jnp.float32),
        compiler_params=pltpu.CompilerParams(
            dimension_semantics=("parallel",),
            vmem_limit_bytes=48 * 1024 * 1024),
    )(x1, W1m, b1r, W2m, b2r, Wf1p, bf1r, Wf2p, bf2r)

    return out[:B, :10]


# --------------------------------------------------------------------------- #
# Init & pure-JAX references.
# --------------------------------------------------------------------------- #
def init_params(key):
    ks = jax.random.split(key, 8)

    def uinit(k, shape, fan_in):
        bound = 1.0 / jnp.sqrt(jnp.float32(fan_in))
        return jax.random.uniform(k, shape, jnp.float32, -bound, bound)

    w1 = uinit(ks[0], (3, 3, 1, 32), 9)
    b1 = uinit(ks[1], (32,), 9)
    w2 = uinit(ks[2], (3, 3, 32, 64), 288)
    b2 = uinit(ks[3], (64,), 288)
    wf1 = uinit(ks[4], (64 * 7 * 7, 128), 64 * 7 * 7)
    bf1 = uinit(ks[5], (128,), 64 * 7 * 7)
    wf2 = uinit(ks[6], (128, 10), 128)
    bf2 = uinit(ks[7], (10,), 128)
    return (w1, b1, w2, b2, wf1, bf1, wf2, bf2)


def _conv_pool_relu(x, w, b, cast_bf16):
    dn = ("NHWC", "HWIO", "NHWC")
    if cast_bf16:
        y = lax.conv_general_dilated(x.astype(jnp.bfloat16), w.astype(jnp.bfloat16),
                                     (1, 1), "SAME", dimension_numbers=dn,
                                     preferred_element_type=jnp.float32)
    else:
        y = lax.conv_general_dilated(x, w, (1, 1), "SAME", dimension_numbers=dn)
    y = y + b
    y = lax.reduce_window(y, -jnp.inf, lax.max, (1, 2, 2, 1), (1, 2, 2, 1), "VALID")
    return jnp.maximum(y, 0.0)


def net_reference(x_nchw, params, emulate_kernel_bf16):
    """Pure-JAX reference.  With emulate_kernel_bf16=True it applies the same bf16
    operand rounding (conv1/conv2/fc1, f32 accumulation) as the Pallas kernel."""
    w1, b1, w2, b2, wf1, bf1, wf2, bf2 = params
    x = jnp.transpose(x_nchw, (0, 2, 3, 1)).astype(jnp.float32)
    y = _conv_pool_relu(x, w1, b1, cast_bf16=emulate_kernel_bf16)
    y = _conv_pool_relu(y, w2, b2, cast_bf16=emulate_kernel_bf16)
    B = y.shape[0]
    y = jnp.transpose(y, (0, 3, 1, 2)).reshape(B, 64 * 7 * 7)     # torch NCHW flatten
    if emulate_kernel_bf16:
        y = jnp.dot(y.astype(jnp.bfloat16), wf1.astype(jnp.bfloat16),
                    preferred_element_type=jnp.float32) + bf1
    else:
        y = y @ wf1 + bf1
    y = y @ wf2 + bf2
    return jax.nn.log_softmax(y, axis=1)


if __name__ == "__main__":
    key = jax.random.PRNGKey(0)
    pkey, xkey, xkey2 = jax.random.split(key, 3)
    params = init_params(pkey)
    prep = prepare_params(params)          # one-time weight transformation

    fwd = jax.jit(lambda a: net_forward(a, prep))
    ref_bf16 = jax.jit(lambda a: net_reference(a, params, True))
    ref_f32 = jax.jit(lambda a: net_reference(a, params, False))

    # --- small test: batch=2 (28x28 is required by fc1 = 64*7*7) ---------------- #
    x = jax.random.normal(xkey, (2, 1, 28, 28), jnp.float32)
    out = jax.block_until_ready(fwd(x))
    assert out.shape == (2, 10) and out.dtype == jnp.float32
    assert jnp.allclose(out, ref_bf16(x), rtol=5e-3, atol=5e-3), \
        "mismatch vs bf16-emulating JAX reference (B=2)"
    assert jnp.allclose(out, ref_f32(x), rtol=5e-2, atol=5e-2), \
        "mismatch vs f32 JAX reference (B=2)"

    # --- multi-block test: exercises G=64 blocks, batch padding, parallel grid --- #
    x2 = jax.random.normal(xkey2, (96, 1, 28, 28), jnp.float32)
    out2 = jax.block_until_ready(fwd(x2))
    assert out2.shape == (96, 10)
    assert jnp.allclose(out2, ref_bf16(x2), rtol=5e-3, atol=5e-3), \
        "mismatch vs bf16-emulating JAX reference (B=96)"
    assert jnp.allclose(out2, ref_f32(x2), rtol=5e-2, atol=5e-2), \
        "mismatch vs f32 JAX reference (B=96)"

    print("KERNEL_OK")
</pallas_src>

<mosaic_0001>
module attributes {stable_mosaic.version = 11 : i64} {
  func.func @_net_kernel(%arg0: i32, %arg1: memref<4x56x128xbf16, #tpu.memory_space<vmem>>, %arg2: memref<128x1024xbf16, #tpu.memory_space<vmem>>, %arg3: memref<1x512xf32, #tpu.memory_space<vmem>>, %arg4: memref<3x512x1024xbf16, #tpu.memory_space<vmem>>, %arg5: memref<1x512xf32, #tpu.memory_space<vmem>>, %arg6: memref<7x512x128xbf16, #tpu.memory_space<vmem>>, %arg7: memref<1x128xf32, #tpu.memory_space<vmem>>, %arg8: memref<128x128xf32, #tpu.memory_space<vmem>>, %arg9: memref<1x128xf32, #tpu.memory_space<vmem>>, %arg10: memref<8x128xf32, #tpu.memory_space<vmem>>) attributes {dimension_semantics = [#tpu.dimension_semantics<parallel>], iteration_bounds = array<i64: 1>, scalar_prefetch = 0 : i64, scratch_operands = 0 : i64, tpu.core_type = #tpu.core_type<tc>, window_params = [{transform_indices = @transform_0, window_bounds = array<i64: 4, 56, 128>}, {pipeline_mode = #tpu.pipeline_mode<synchronous>, transform_indices = @transform_1, window_bounds = array<i64: 128, 1024>}, {pipeline_mode = #tpu.pipeline_mode<synchronous>, transform_indices = @transform_2, window_bounds = array<i64: 1, 512>}, {pipeline_mode = #tpu.pipeline_mode<synchronous>, transform_indices = @transform_3, window_bounds = array<i64: 3, 512, 1024>}, {pipeline_mode = #tpu.pipeline_mode<synchronous>, transform_indices = @transform_4, window_bounds = array<i64: 1, 512>}, {pipeline_mode = #tpu.pipeline_mode<synchronous>, transform_indices = @transform_5, window_bounds = array<i64: 7, 512, 128>}, {pipeline_mode = #tpu.pipeline_mode<synchronous>, transform_indices = @transform_6, window_bounds = array<i64: 1, 128>}, {pipeline_mode = #tpu.pipeline_mode<synchronous>, transform_indices = @transform_7, window_bounds = array<i64: 128, 128>}, {pipeline_mode = #tpu.pipeline_mode<synchronous>, transform_indices = @transform_8, window_bounds = array<i64: 1, 128>}, {transform_indices = @transform_9, window_bounds = array<i64: 8, 128>}]} {
    %c0 = arith.constant 0 : index
    %c0_0 = arith.constant 0 : index
    %0 = vector.load %arg2[%c0, %c0_0] : memref<128x1024xbf16, #tpu.memory_space<vmem>>, vector<128x1024xbf16>
    %c0_1 = arith.constant 0 : index
    %c0_2 = arith.constant 0 : index
    %c0_3 = arith.constant 0 : index
    %1 = vector.load %arg1[%c0_1, %c0_2, %c0_3] : memref<4x56x128xbf16, #tpu.memory_space<vmem>>, vector<1x56x128xbf16>
    %2 = vector.shape_cast %1 : vector<1x56x128xbf16> to vector<56x128xbf16>
    %cst = arith.constant dense<0.000000e+00> : vector<56x1024xf32>
    %3 = tpu.matmul %2, %0, %cst {dimension_numbers = #tpu.dot_dimension_numbers<[1], [0], [0], [1], [0, 0, 1, 1], [], []>} : vector<56x128xbf16>, vector<128x1024xbf16>, vector<56x1024xf32> -> vector<56x1024xf32>
    %c1 = arith.constant 1 : index
    %c0_4 = arith.constant 0 : index
    %c0_5 = arith.constant 0 : index
    %4 = vector.load %arg1[%c1, %c0_4, %c0_5] : memref<4x56x128xbf16, #tpu.memory_space<vmem>>, vector<1x56x128xbf16>
    %5 = vector.shape_cast %4 : vector<1x56x128xbf16> to vector<56x128xbf16>
    %cst_6 = arith.constant dense<0.000000e+00> : vector<56x1024xf32>
    %6 = tpu.matmul %5, %0, %cst_6 {dimension_numbers = #tpu.dot_dimension_numbers<[1], [0], [0], [1], [0, 0, 1, 1], [], []>} : vector<56x128xbf16>, vector<128x1024xbf16>, vector<56x1024xf32> -> vector<56x1024xf32>
    %7 = arith.maximumf %3, %6 : vector<56x1024xf32>
    %8 = vector.extract_strided_slice %7 {offsets = [0, 0], sizes = [56, 512], strides = [1, 1]} : vector<56x1024xf32> to vector<56x512xf32>
    %9 = vector.extract_strided_slice %7 {offsets = [0, 512], sizes = [56, 512], strides = [1, 1]} : vector<56x1024xf32> to vector<56x512xf32>
    %10 = arith.maximumf %8, %9 : vector<56x512xf32>
    %c0_7 = arith.constant 0 : index
    %c0_8 = arith.constant 0 : index
    %11 = vector.load %arg3[%c0_7, %c0_8] : memref<1x512xf32, #tpu.memory_space<vmem>>, vector<1x512xf32>
    %12 = vector.broadcast %11 : vector<1x512xf32> to vector<56x512xf32>
    %13 = arith.addf %10, %12 : vector<56x512xf32>
    %cst_9 = arith.constant 0.000000e+00 : f32
    %14 = vector.broadcast %cst_9 : f32 to vector<56x512xf32>
    %15 = arith.maximumf %13, %14 : vector<56x512xf32>
    %c2 = arith.constant 2 : index
    %c0_10 = arith.constant 0 : index
    %c0_11 = arith.constant 0 : index
    %16 = vector.load %arg1[%c2, %c0_10, %c0_11] : memref<4x56x128xbf16, #tpu.memory_space<vmem>>, vector<1x56x128xbf16>
    %17 = vector.shape_cast %16 : vector<1x56x128xbf16> to vector<56x128xbf16>
    %cst_12 = arith.constant dense<0.000000e+00> : vector<56x1024xf32>
    %18 = tpu.matmul %17, %0, %cst_12 {dimension_numbers = #tpu.dot_dimension_numbers<[1], [0], [0], [1], [0, 0, 1, 1], [], []>} : vector<56x128xbf16>, vector<128x1024xbf16>, vector<56x1024xf32> -> vector<56x1024xf32>
    %c3 = arith.constant 3 : index
    %c0_13 = arith.constant 0 : index
    %c0_14 = arith.constant 0 : index
    %19 = vector.load %arg1[%c3, %c0_13, %c0_14] : memref<4x56x128xbf16, #tpu.memory_space<vmem>>, vector<1x56x128xbf16>
    %20 = vector.shape_cast %19 : vector<1x56x128xbf16> to vector<56x128xbf16>
    %cst_15 = arith.constant dense<0.000000e+00> : vector<56x1024xf32>
    %21 = tpu.matmul %20, %0, %cst_15 {dimension_numbers = #tpu.dot_dimension_numbers<[1], [0], [0], [1], [0, 0, 1, 1], [], []>} : vector<56x128xbf16>, vector<128x1024xbf16>, vector<56x1024xf32> -> vector<56x1024xf32>
    %22 = arith.maximumf %18, %21 : vector<56x1024xf32>
    %23 = vector.extract_strided_slice %22 {offsets = [0, 0], sizes = [56, 512], strides = [1, 1]} : vector<56x1024xf32> to vector<56x512xf32>
    %24 = vector.extract_strided_slice %22 {offsets = [0, 512], sizes = [56, 512], strides = [1, 1]} : vector<56x1024xf32> to vector<56x512xf32>
    %25 = arith.maximumf %23, %24 : vector<56x512xf32>
    %c0_16 = arith.constant 0 : index
    %c0_17 = arith.constant 0 : index
    %26 = vector.load %arg3[%c0_16, %c0_17] : memref<1x512xf32, #tpu.memory_space<vmem>>, vector<1x512xf32>
    %27 = vector.broadcast %26 : vector<1x512xf32> to vector<56x512xf32>
    %28 = arith.addf %25, %27 : vector<56x512xf32>
    %cst_18 = arith.constant 0.000000e+00 : f32
    %29 = vector.broadcast %cst_18 : f32 to vector<56x512xf32>
    %30 = arith.maximumf %28, %29 : vector<56x512xf32>
    %cst_19 = arith.constant 0.000000e+00 : f32
    %31 = vector.broadcast %cst_19 : f32 to vector<8x512xf32>
    %32 = vector.extract_strided_slice %30 {offsets = [0, 0], sizes = [48, 512], strides = [1, 1]} : vector<56x512xf32> to vector<48x512xf32>
    %33 = tpu.concatenate %31, %32 in 0 : vector<8x512xf32>, vector<48x512xf32> -> vector<56x512xf32>
    %34 = arith.truncf %33 : vector<56x512xf32> to vector<56x512xbf16>
    %35 = arith.truncf %15 : vector<56x512xf32> to vector<56x512xbf16>
    %36 = arith.truncf %30 : vector<56x512xf32> to vector<56x512xbf16>
    %37 = vector.extract_strided_slice %15 {offsets = [8, 0], sizes = [48, 512], strides = [1, 1]} : vector<56x512xf32> to vector<48x512xf32>
    %38 = tpu.concatenate %37, %31 in 0 : vector<48x512xf32>, vector<8x512xf32> -> vector<56x512xf32>
    %39 = arith.truncf %38 : vector<56x512xf32> to vector<56x512xbf16>
    %c0_20 = arith.constant 0 : index
    %c0_21 = arith.constant 0 : index
    %c0_22 = arith.constant 0 : index
    %40 = vector.load %arg4[%c0_20, %c0_21, %c0_22] : memref<3x512x1024xbf16, #tpu.memory_space<vmem>>, vector<1x512x1024xbf16>
    %41 = vector.shape_cast %40 : vector<1x512x1024xbf16> to vector<512x1024xbf16>
    %cst_23 = arith.constant dense<0.000000e+00> : vector<56x1024xf32>
    %42 = tpu.matmul %34, %41, %cst_23 {dimension_numbers = #tpu.dot_dimension_numbers<[1], [0], [0], [1], [0, 0, 1, 1], [], []>} : vector<56x512xbf16>, vector<512x1024xbf16>, vector<56x1024xf32> -> vector<56x1024xf32>
    %c1_24 = arith.constant 1 : index
    %c0_25 = arith.constant 0 : index
    %c0_26 = arith.constant 0 : index
    %43 = vector.load %arg4[%c1_24, %c0_25, %c0_26] : memref<3x512x1024xbf16, #tpu.memory_space<vmem>>, vector<1x512x1024xbf16>
    %44 = vector.shape_cast %43 : vector<1x512x1024xbf16> to vector<512x1024xbf16>
    %cst_27 = arith.constant dense<0.000000e+00> : vector<56x1024xf32>
    %45 = tpu.matmul %35, %44, %cst_27 {dimension_numbers = #tpu.dot_dimension_numbers<[1], [0], [0], [1], [0, 0, 1, 1], [], []>} : vector<56x512xbf16>, vector<512x1024xbf16>, vector<56x1024xf32> -> vector<56x1024xf32>
    %46 = arith.addf %42, %45 : vector<56x1024xf32>
    %c2_28 = arith.constant 2 : index
    %c0_29 = arith.constant 0 : index
    %c0_30 = arith.constant 0 : index
    %47 = vector.load %arg4[%c2_28, %c0_29, %c0_30] : memref<3x512x1024xbf16, #tpu.memory_space<vmem>>, vector<1x512x1024xbf16>
    %48 = vector.shape_cast %47 : vector<1x512x1024xbf16> to vector<512x1024xbf16>
    %cst_31 = arith.constant dense<0.000000e+00> : vector<56x1024xf32>
    %49 = tpu.matmul %36, %48, %cst_31 {dimension_numbers = #tpu.dot_dimension_numbers<[1], [0], [0], [1], [0, 0, 1, 1], [], []>} : vector<56x512xbf16>, vector<512x1024xbf16>, vector<56x1024xf32> -> vector<56x1024xf32>
    %50 = arith.addf %46, %49 : vector<56x1024xf32>
    %c0_32 = arith.constant 0 : index
    %c0_33 = arith.constant 0 : index
    %c0_34 = arith.constant 0 : index
    %51 = vector.load %arg4[%c0_32, %c0_33, %c0_34] : memref<3x512x1024xbf16, #tpu.memory_space<vmem>>, vector<1x512x1024xbf16>
    %52 = vector.shape_cast %51 : vector<1x512x1024xbf16> to vector<512x1024xbf16>
    %cst_35 = arith.constant dense<0.000000e+00> : vector<56x1024xf32>
    %53 = tpu.matmul %35, %52, %cst_35 {dimension_numbers = #tpu.dot_dimension_numbers<[1], [0], [0], [1], [0, 0, 1, 1], [], []>} : vector<56x512xbf16>, vector<512x1024xbf16>, vector<56x1024xf32> -> vector<56x1024xf32>
    %c1_36 = arith.constant 1 : index
    %c0_37 = arith.constant 0 : index
    %c0_38 = arith.constant 0 : index
    %54 = vector.load %arg4[%c1_36, %c0_37, %c0_38] : memref<3x512x1024xbf16, #tpu.memory_space<vmem>>, vector<1x512x1024xbf16>
    %55 = vector.shape_cast %54 : vector<1x512x1024xbf16> to vector<512x1024xbf16>
    %cst_39 = arith.constant dense<0.000000e+00> : vector<56x1024xf32>
    %56 = tpu.matmul %36, %55, %cst_39 {dimension_numbers = #tpu.dot_dimension_numbers<[1], [0], [0], [1], [0, 0, 1, 1], [], []>} : vector<56x512xbf16>, vector<512x1024xbf16>, vector<56x1024xf32> -> vector<56x1024xf32>
    %57 = arith.addf %53, %56 : vector<56x1024xf32>
    %c2_40 = arith.constant 2 : index
    %c0_41 = arith.constant 0 : index
    %c0_42 = arith.constant 0 : index
    %58 = vector.load %arg4[%c2_40, %c0_41, %c0_42] : memref<3x512x1024xbf16, #tpu.memory_space<vmem>>, vector<1x512x1024xbf16>
    %59 = vector.shape_cast %58 : vector<1x512x1024xbf16> to vector<512x1024xbf16>
    %cst_43 = arith.constant dense<0.000000e+00> : vector<56x1024xf32>
    %60 = tpu.matmul %39, %59, %cst_43 {dimension_numbers = #tpu.dot_dimension_numbers<[1], [0], [0], [1], [0, 0, 1, 1], [], []>} : vector<56x512xbf16>, vector<512x1024xbf16>, vector<56x1024xf32> -> vector<56x1024xf32>
    %61 = arith.addf %57, %60 : vector<56x1024xf32>
    %62 = arith.maximumf %50, %61 : vector<56x1024xf32>
    %63 = vector.extract_strided_slice %62 {offsets = [0, 0], sizes = [56, 512], strides = [1, 1]} : vector<56x1024xf32> to vector<56x512xf32>
    %64 = vector.extract_strided_slice %62 {offsets = [0, 512], sizes = [56, 512], strides = [1, 1]} : vector<56x1024xf32> to vector<56x512xf32>
    %65 = arith.maximumf %63, %64 : vector<56x512xf32>
    %c0_44 = arith.constant 0 : index
    %c0_45 = arith.constant 0 : index
    %66 = vector.load %arg5[%c0_44, %c0_45] : memref<1x512xf32, #tpu.memory_space<vmem>>, vector<1x512xf32>
    %67 = vector.broadcast %66 : vector<1x512xf32> to vector<56x512xf32>
    %68 = arith.addf %65, %67 : vector<56x512xf32>
    %cst_46 = arith.constant 0.000000e+00 : f32
    %69 = vector.broadcast %cst_46 : f32 to vector<56x512xf32>
    %70 = arith.maximumf %68, %69 : vector<56x512xf32>
    %cst_47 = arith.constant 0.000000e+00 : f32
    %71 = vector.broadcast %cst_47 : f32 to vector<8x128xf32>
    %72 = vector.extract_strided_slice %70 {offsets = [0, 0], sizes = [8, 512], strides = [1, 1]} : vector<56x512xf32> to vector<8x512xf32>
    %73 = arith.truncf %72 : vector<8x512xf32> to vector<8x512xbf16>
    %c0_48 = arith.constant 0 : index
    %c0_49 = arith.constant 0 : index
    %c0_50 = arith.constant 0 : index
    %74 = vector.load %arg6[%c0_48, %c0_49, %c0_50] : memref<7x512x128xbf16, #tpu.memory_space<vmem>>, vector<1x512x128xbf16>
    %75 = vector.shape_cast %74 : vector<1x512x128xbf16> to vector<512x128xbf16>
    %cst_51 = arith.constant dense<0.000000e+00> : vector<8x128xf32>
    %76 = tpu.matmul %73, %75, %cst_51 {dimension_numbers = #tpu.dot_dimension_numbers<[1], [0], [0], [1], [0, 0, 1, 1], [], []>} : vector<8x512xbf16>, vector<512x128xbf16>, vector<8x128xf32> -> vector<8x128xf32>
    %77 = arith.addf %71, %76 : vector<8x128xf32>
    %78 = vector.extract_strided_slice %70 {offsets = [8, 0], sizes = [8, 512], strides = [1, 1]} : vector<56x512xf32> to vector<8x512xf32>
    %79 = arith.truncf %78 : vector<8x512xf32> to vector<8x512xbf16>
    %c1_52 = arith.constant 1 : index
    %c0_53 = arith.constant 0 : index
    %c0_54 = arith.constant 0 : index
    %80 = vector.load %arg6[%c1_52, %c0_53, %c0_54] : memref<7x512x128xbf16, #tpu.memory_space<vmem>>, vector<1x512x128xbf16>
    %81 = vector.shape_cast %80 : vector<1x512x128xbf16> to vector<512x128xbf16>
    %cst_55 = arith.constant dense<0.000000e+00> : vector<8x128xf32>
    %82 = tpu.matmul %79, %81, %cst_55 {dimension_numbers = #tpu.dot_dimension_numbers<[1], [0], [0], [1], [0, 0, 1, 1], [], []>} : vector<8x512xbf16>, vector<512x128xbf16>, vector<8x128xf32> -> vector<8x128xf32>
    %83 = arith.addf %77, %82 : vector<8x128xf32>
    %84 = vector.extract_strided_slice %70 {offsets = [16, 0], sizes = [8, 512], strides = [1, 1]} : vector<56x512xf32> to vector<8x512xf32>
    %85 = arith.truncf %84 : vector<8x512xf32> to vector<8x512xbf16>
    %c2_56 = arith.constant 2 : index
    %c0_57 = arith.constant 0 : index
    %c0_58 = arith.constant 0 : index
    %86 = vector.load %arg6[%c2_56, %c0_57, %c0_58] : memref<7x512x128xbf16, #tpu.memory_space<vmem>>, vector<1x512x128xbf16>
    %87 = vector.shape_cast %86 : vector<1x512x128xbf16> to vector<512x128xbf16>
    %cst_59 = arith.constant dense<0.000000e+00> : vector<8x128xf32>
    %88 = tpu.matmul %85, %87, %cst_59 {dimension_numbers = #tpu.dot_dimension_numbers<[1], [0], [0], [1], [0, 0, 1, 1], [], []>} : vector<8x512xbf16>, vector<512x128xbf16>, vector<8x128xf32> -> vector<8x128xf32>
    %89 = arith.addf %83, %88 : vector<8x128xf32>
    %90 = vector.extract_strided_slice %70 {offsets = [24, 0], sizes = [8, 512], strides = [1, 1]} : vector<56x512xf32> to vector<8x512xf32>
    %91 = arith.truncf %90 : vector<8x512xf32> to vector<8x512xbf16>
    %c3_60 = arith.constant 3 : index
    %c0_61 = arith.constant 0 : index
    %c0_62 = arith.constant 0 : index
    %92 = vector.load %arg6[%c3_60, %c0_61, %c0_62] : memref<7x512x128xbf16, #tpu.memory_space<vmem>>, vector<1x512x128xbf16>
    %93 = vector.shape_cast %92 : vector<1x512x128xbf16> to vector<512x128xbf16>
    %cst_63 = arith.constant dense<0.000000e+00> : vector<8x128xf32>
    %94 = tpu.matmul %91, %93, %cst_63 {dimension_numbers = #tpu.dot_dimension_numbers<[1], [0], [0], [1], [0, 0, 1, 1], [], []>} : vector<8x512xbf16>, vector<512x128xbf16>, vector<8x128xf32> -> vector<8x128xf32>
    %95 = arith.addf %89, %94 : vector<8x128xf32>
    %96 = vector.extract_strided_slice %70 {offsets = [32, 0], sizes = [8, 512], strides = [1, 1]} : vector<56x512xf32> to vector<8x512xf32>
    %97 = arith.truncf %96 : vector<8x512xf32> to vector<8x512xbf16>
    %c4 = arith.constant 4 : index
    %c0_64 = arith.constant 0 : index
    %c0_65 = arith.constant 0 : index
    %98 = vector.load %arg6[%c4, %c0_64, %c0_65] : memref<7x512x128xbf16, #tpu.memory_space<vmem>>, vector<1x512x128xbf16>
    %99 = vector.shape_cast %98 : vector<1x512x128xbf16> to vector<512x128xbf16>
    %cst_66 = arith.constant dense<0.000000e+00> : vector<8x128xf32>
    %100 = tpu.matmul %97, %99, %cst_66 {dimension_numbers = #tpu.dot_dimension_numbers<[1], [0], [0], [1], [0, 0, 1, 1], [], []>} : vector<8x512xbf16>, vector<512x128xbf16>, vector<8x128xf32> -> vector<8x128xf32>
    %101 = arith.addf %95, %100 : vector<8x128xf32>
    %102 = vector.extract_strided_slice %70 {offsets = [40, 0], sizes = [8, 512], strides = [1, 1]} : vector<56x512xf32> to vector<8x512xf32>
    %103 = arith.truncf %102 : vector<8x512xf32> to vector<8x512xbf16>
    %c5 = arith.constant 5 : index
    %c0_67 = arith.constant 0 : index
    %c0_68 = arith.constant 0 : index
    %104 = vector.load %arg6[%c5, %c0_67, %c0_68] : memref<7x512x128xbf16, #tpu.memory_space<vmem>>, vector<1x512x128xbf16>
    %105 = vector.shape_cast %104 : vector<1x512x128xbf16> to vector<512x128xbf16>
    %cst_69 = arith.constant dense<0.000000e+00> : vector<8x128xf32>
    %106 = tpu.matmul %103, %105, %cst_69 {dimension_numbers = #tpu.dot_dimension_numbers<[1], [0], [0], [1], [0, 0, 1, 1], [], []>} : vector<8x512xbf16>, vector<512x128xbf16>, vector<8x128xf32> -> vector<8x128xf32>
    %107 = arith.addf %101, %106 : vector<8x128xf32>
    %108 = vector.extract_strided_slice %70 {offsets = [48, 0], sizes = [8, 512], strides = [1, 1]} : vector<56x512xf32> to vector<8x512xf32>
    %109 = arith.truncf %108 : vector<8x512xf32> to vector<8x512xbf16>
    %c6 = arith.constant 6 : index
    %c0_70 = arith.constant 0 : index
    %c0_71 = arith.constant 0 : index
    %110 = vector.load %arg6[%c6, %c0_70, %c0_71] : memref<7x512x128xbf16, #tpu.memory_space<vmem>>, vector<1x512x128xbf16>
    %111 = vector.shape_cast %110 : vector<1x512x128xbf16> to vector<512x128xbf16>
    %cst_72 = arith.constant dense<0.000000e+00> : vector<8x128xf32>
    %112 = tpu.matmul %109, %111, %cst_72 {dimension_numbers = #tpu.dot_dimension_numbers<[1], [0], [0], [1], [0, 0, 1, 1], [], []>} : vector<8x512xbf16>, vector<512x128xbf16>, vector<8x128xf32> -> vector<8x128xf32>
    %113 = arith.addf %107, %112 : vector<8x128xf32>
    %c0_73 = arith.constant 0 : index
    %c0_74 = arith.constant 0 : index
    %114 = vector.load %arg7[%c0_73, %c0_74] : memref<1x128xf32, #tpu.memory_space<vmem>>, vector<1x128xf32>
    %115 = vector.broadcast %114 : vector<1x128xf32> to vector<8x128xf32>
    %116 = arith.addf %113, %115 : vector<8x128xf32>
    %c0_75 = arith.constant 0 : index
    %c0_76 = arith.constant 0 : index
    %117 = vector.load %arg8[%c0_75, %c0_76] : memref<128x128xf32, #tpu.memory_space<vmem>>, vector<128x128xf32>
    %cst_77 = arith.constant dense<0.000000e+00> : vector<8x128xf32>
    %118 = tpu.matmul %116, %117, %cst_77 {dimension_numbers = #tpu.dot_dimension_numbers<[1], [0], [0], [1], [0, 0, 1, 1], [], []>} : vector<8x128xf32>, vector<128x128xf32>, vector<8x128xf32> -> vector<8x128xf32>
    %c0_78 = arith.constant 0 : index
    %c0_79 = arith.constant 0 : index
    %119 = vector.load %arg9[%c0_78, %c0_79] : memref<1x128xf32, #tpu.memory_space<vmem>>, vector<1x128xf32>
    %120 = vector.broadcast %119 : vector<1x128xf32> to vector<8x128xf32>
    %121 = arith.addf %118, %120 : vector<8x128xf32>
    %cst_80 = arith.constant dense<0xFF800000> : vector<8xf32>
    %122 = vector.multi_reduction <maximumf>, %121, %cst_80 [1] : vector<8x128xf32> to vector<8xf32>
    %123 = vector.shape_cast %122 : vector<8xf32> to vector<8x1xf32>
    %124 = vector.broadcast %123 : vector<8x1xf32> to vector<8x128xf32>
    %125 = arith.subf %121, %124 : vector<8x128xf32>
    %126 = math.exp %125 : vector<8x128xf32>
    %cst_81 = arith.constant dense<0.000000e+00> : vector<8xf32>
    %127 = vector.multi_reduction <add>, %126, %cst_81 [1] : vector<8x128xf32> to vector<8xf32>
    %128 = vector.shape_cast %127 : vector<8xf32> to vector<8x1xf32>
    %129 = math.log %128 : vector<8x1xf32>
    %130 = vector.broadcast %129 : vector<8x1xf32> to vector<8x128xf32>
    %131 = arith.subf %125, %130 : vector<8x128xf32>
    %c0_82 = arith.constant 0 : index
    %c0_83 = arith.constant 0 : index
    %132 = vector.load %arg10[%c0_82, %c0_83] : memref<8x128xf32, #tpu.memory_space<vmem>>, vector<8x128xf32>
    tpu.vector_store %arg10[%c0_82, %c0_83], %131 {strides = array<i32>} : memref<8x128xf32, #tpu.memory_space<vmem>>, vector<8x128xf32>,
    return
  }
  func.func @transform_0(%arg0: i32) -> (i32, i32, i32) {
    %c0_i32 = arith.constant 0 : i32
    %c0_i32_0 = arith.constant 0 : i32
    %c0_i32_1 = arith.constant 0 : i32
    return %c0_i32, %arg0, %c0_i32_0 : i32, i32, i32
  }
  func.func @transform_1(%arg0: i32) -> (i32, i32) {
    %c0_i32 = arith.constant 0 : i32
    %c0_i32_0 = arith.constant 0 : i32
    %c0_i32_1 = arith.constant 0 : i32
    return %c0_i32, %c0_i32_0 : i32, i32
  }
  func.func @transform_2(%arg0: i32) -> (i32, i32) {
    %c0_i32 = arith.constant 0 : i32
    %c0_i32_0 = arith.constant 0 : i32
    %c0_i32_1 = arith.constant 0 : i32
    return %c0_i32, %c0_i32_0 : i32, i32
  }
  func.func @transform_3(%arg0: i32) -> (i32, i32, i32) {
    %c0_i32 = arith.constant 0 : i32
    %c0_i32_0 = arith.constant 0 : i32
    %c0_i32_1 = arith.constant 0 : i32
    %c0_i32_2 = arith.constant 0 : i32
    return %c0_i32, %c0_i32_0, %c0_i32_1 : i32, i32, i32
  }
  func.func @transform_4(%arg0: i32) -> (i32, i32) {
    %c0_i32 = arith.constant 0 : i32
    %c0_i32_0 = arith.constant 0 : i32
    %c0_i32_1 = arith.constant 0 : i32
    return %c0_i32, %c0_i32_0 : i32, i32
  }
  func.func @transform_5(%arg0: i32) -> (i32, i32, i32) {
    %c0_i32 = arith.constant 0 : i32
    %c0_i32_0 = arith.constant 0 : i32
    %c0_i32_1 = arith.constant 0 : i32
    %c0_i32_2 = arith.constant 0 : i32
    return %c0_i32, %c0_i32_0, %c0_i32_1 : i32, i32, i32
  }
  func.func @transform_6(%arg0: i32) -> (i32, i32) {
    %c0_i32 = arith.constant 0 : i32
    %c0_i32_0 = arith.constant 0 : i32
    %c0_i32_1 = arith.constant 0 : i32
    return %c0_i32, %c0_i32_0 : i32, i32
  }
  func.func @transform_7(%arg0: i32) -> (i32, i32) {
    %c0_i32 = arith.constant 0 : i32
    %c0_i32_0 = arith.constant 0 : i32
    %c0_i32_1 = arith.constant 0 : i32
    return %c0_i32, %c0_i32_0 : i32, i32
  }
  func.func @transform_8(%arg0: i32) -> (i32, i32) {
    %c0_i32 = arith.constant 0 : i32
    %c0_i32_0 = arith.constant 0 : i32
    %c0_i32_1 = arith.constant 0 : i32
    return %c0_i32, %c0_i32_0 : i32, i32
  }
  func.func @transform_9(%arg0: i32) -> (i32, i32) {
    %c0_i32 = arith.constant 0 : i32
    %c0_i32_0 = arith.constant 0 : i32
    return %arg0, %c0_i32 : i32, i32
  }
}

</mosaic_0001>

<llo_original>
// kernel: _lambda_.1
$region0: #{_lambda_.1}
  #allocation0 [shape = 'u32[]', space=smem, size = 0x4, offset = 0x4, fixed_abs, tag = 'smem constant byte address 0x4 - core index']
  #allocation1 [shape = 'u32[144,128]{1,0:T(1,128)}', space=vmem, size = 0x12000, scoped, tag = 'internal scratch']
  %s0 = inlined_call_operand.vmem [shape: bf16[4,56,128], index: 0, kind: input, shape index: {}]
  %s1 = inlined_call_operand.vmem [shape: bf16[128,1024], index: 1, kind: input, shape index: {}]
  %s2 = inlined_call_operand.vmem [shape: f32[1,512], index: 2, kind: input, shape index: {}]
  %s3 = inlined_call_operand.vmem [shape: bf16[3,512,1024], index: 3, kind: input, shape index: {}]
  %s4 = inlined_call_operand.vmem [shape: f32[1,512], index: 4, kind: input, shape index: {}]
  %s5 = inlined_call_operand.vmem [shape: bf16[7,512,128], index: 5, kind: input, shape index: {}]
  %s6 = inlined_call_operand.vmem [shape: f32[1,128], index: 6, kind: input, shape index: {}]
  %s7 = inlined_call_operand.vmem [shape: f32[128,128], index: 7, kind: input, shape index: {}]
  %s8 = inlined_call_operand.vmem [shape: f32[1,128], index: 8, kind: input, shape index: {}]
  %s9 = inlined_call_operand.vmem [shape: f32[8,128], index: 9, kind: output, shape index: {}]
  %s10 = sld [smem:[#allocation0]]
  $region46: #{_lambda_.1} parent=0
    _
  %s12 = ssub.s32 1, %s10
  %s13 = scalar_select 0, %s12, %s10
  // Predicated region
  $region2: #{_lambda_.1} parent=0 // pred_check
    _
  $region3: #{_lambda_.1} parent=0 // pred_check_branch
    %15 = sbr.rel (0) target = $region5
  $region4: #{_lambda_.1} parent=0 // pred_region
    _
  $region5: #{_lambda_.1} parent=0 // pred_fallthru
    _
  // Predicated region
  $region6: #{_lambda_.1} parent=0 // pred_check
    _
  $region7: #{_lambda_.1} parent=0 // pred_check_branch
    %17 = sbr.rel (0) target = $region9
  $region8: #{_lambda_.1} parent=0 // pred_region
    _
  $region9: #{_lambda_.1} parent=0 // pred_fallthru
    _
  // Predicated region
  $region10: #{_lambda_.1} parent=0 // pred_check
    _
  $region11: #{_lambda_.1} parent=0 // pred_check_branch
    %19 = sbr.rel (0) target = $region13
  $region12: #{_lambda_.1} parent=0 // pred_region
    _
  $region13: #{_lambda_.1} parent=0 // pred_fallthru
    _
  // Predicated region
  $region14: #{_lambda_.1} parent=0 // pred_check
    _
  $region15: #{_lambda_.1} parent=0 // pred_check_branch
    %21 = sbr.rel (0) target = $region17
  $region16: #{_lambda_.1} parent=0 // pred_region
    _
  $region17: #{_lambda_.1} parent=0 // pred_fallthru
    _
  // Predicated region
  $region18: #{_lambda_.1} parent=0 // pred_check
    _
  $region19: #{_lambda_.1} parent=0 // pred_check_branch
    %23 = sbr.rel (0) target = $region21
  $region20: #{_lambda_.1} parent=0 // pred_region
    _
  $region21: #{_lambda_.1} parent=0 // pred_fallthru
    _
  // Predicated region
  $region22: #{_lambda_.1} parent=0 // pred_check
    _
  $region23: #{_lambda_.1} parent=0 // pred_check_branch
    %25 = sbr.rel (0) target = $region25
  $region24: #{_lambda_.1} parent=0 // pred_region
    _
  $region25: #{_lambda_.1} parent=0 // pred_fallthru
    _
  // Predicated region
  $region26: #{_lambda_.1} parent=0 // pred_check
    _
  $region27: #{_lambda_.1} parent=0 // pred_check_branch
    %27 = sbr.rel (0) target = $region29
  $region28: #{_lambda_.1} parent=0 // pred_region
    _
  $region29: #{_lambda_.1} parent=0 // pred_fallthru
    _
  // Predicated region
  $region30: #{_lambda_.1} parent=0 // pred_check
    _
  $region31: #{_lambda_.1} parent=0 // pred_check_branch
    %29 = sbr.rel (0) target = $region33
  $region32: #{_lambda_.1} parent=0 // pred_region
    _
  $region33: #{_lambda_.1} parent=0 // pred_fallthru
    _
  // Predicated region
  $region34: #{_lambda_.1} parent=0 // pred_check
    _
  $region35: #{_lambda_.1} parent=0 // pred_check_branch
    %31 = sbr.rel (0) target = $region37
  $region36: #{_lambda_.1} parent=0 // pred_region
    _
  $region37: #{_lambda_.1} parent=0 // pred_fallthru
    _
  %v33 = vld [vmem:[%s1] sm:$0xff]
  %v34 = vld [vmem:[%s1 + $0x8] sm:$0xff]
  %v35 = vld [vmem:[%s1 + $0x10] sm:$0xff]
  %v36 = vld [vmem:[%s1 + $0x18] sm:$0xff]
  %v37 = vld [vmem:[%s1 + $0x20] sm:$0xff]
  %v38 = vld [vmem:[%s1 + $0x28] sm:$0xff]
  %v39 = vld [vmem:[%s1 + $0x30] sm:$0xff]
  %v40 = vld [vmem:[%s1 + $0x38] sm:$0xff]
  %v41 = vld [vmem:[%s1 + $0x40] sm:$0xff]
  %v42 = vld [vmem:[%s1 + $0x48] sm:$0xff]
  %v43 = vld [vmem:[%s1 + $0x50] sm:$0xff]
  %v44 = vld [vmem:[%s1 + $0x58] sm:$0xff]
  %v45 = vld [vmem:[%s1 + $0x60] sm:$0xff]
  %v46 = vld [vmem:[%s1 + $0x68] sm:$0xff]
  %v47 = vld [vmem:[%s1 + $0x70] sm:$0xff]
  %v48 = vld [vmem:[%s1 + $0x78] sm:$0xff]
  %v49 = vld [vmem:[%s1 + $0x80] sm:$0xff]
  %v50 = vld [vmem:[%s1 + $0x88] sm:$0xff]
  %v51 = vld [vmem:[%s1 + $0x90] sm:$0xff]
  %v52 = vld [vmem:[%s1 + $0x98] sm:$0xff]
  %v53 = vld [vmem:[%s1 + $0xa0] sm:$0xff]
  %v54 = vld [vmem:[%s1 + $0xa8] sm:$0xff]
  %v55 = vld [vmem:[%s1 + $0xb0] sm:$0xff]
  %v56 = vld [vmem:[%s1 + $0xb8] sm:$0xff]
  %v57 = vld [vmem:[%s1 + $0xc0] sm:$0xff]
  %v58 = vld [vmem:[%s1 + $0xc8] sm:$0xff]
  %v59 = vld [vmem:[%s1 + $0xd0] sm:$0xff]
  %v60 = vld [vmem:[%s1 + $0xd8] sm:$0xff]
  %v61 = vld [vmem:[%s1 + $0xe0] sm:$0xff]
  %v62 = vld [vmem:[%s1 + $0xe8] sm:$0xff]
  %v63 = vld [vmem:[%s1 + $0xf0] sm:$0xff]
  %v64 = vld [vmem:[%s1 + $0xf8] sm:$0xff]
  %v65 = vld [vmem:[%s1 + $0x100] sm:$0xff]
  %v66 = vld [vmem:[%s1 + $0x108] sm:$0xff]
  %v67 = vld [vmem:[%s1 + $0x110] sm:$0xff]
  %v68 = vld [vmem:[%s1 + $0x118] sm:$0xff]
  %v69 = vld [vmem:[%s1 + $0x120] sm:$0xff]
  %v70 = vld [vmem:[%s1 + $0x128] sm:$0xff]
  %v71 = vld [vmem:[%s1 + $0x130] sm:$0xff]
  %v72 = vld [vmem:[%s1 + $0x138] sm:$0xff]
  %v73 = vld [vmem:[%s1 + $0x140] sm:$0xff]
  %v74 = vld [vmem:[%s1 + $0x148] sm:$0xff]
  %v75 = vld [vmem:[%s1 + $0x150] sm:$0xff]
  %v76 = vld [vmem:[%s1 + $0x158] sm:$0xff]
  %v77 = vld [vmem:[%s1 + $0x160] sm:$0xff]
  %v78 = vld [vmem:[%s1 + $0x168] sm:$0xff]
  %v79 = vld [vmem:[%s1 + $0x170] sm:$0xff]
  %v80 = vld [vmem:[%s1 + $0x178] sm:$0xff]
  %v81 = vld [vmem:[%s1 + $0x180] sm:$0xff]
  %v82 = vld [vmem:[%s1 + $0x188] sm:$0xff]
  %v83 = vld [vmem:[%s1 + $0x190] sm:$0xff]
  %v84 = vld [vmem:[%s1 + $0x198] sm:$0xff]
  %v85 = vld [vmem:[%s1 + $0x1a0] sm:$0xff]
  %v86 = vld [vmem:[%s1 + $0x1a8] sm:$0xff]
  %v87 = vld [vmem:[%s1 + $0x1b0] sm:$0xff]
  %v88 = vld [vmem:[%s1 + $0x1b8] sm:$0xff]
  %v89 = vld [vmem:[%s1 + $0x1c0] sm:$0xff]
  %v90 = vld [vmem:[%s1 + $0x1c8] sm:$0xff]
  %v91 = vld [vmem:[%s1 + $0x1d0] sm:$0xff]
  %v92 = vld [vmem:[%s1 + $0x1d8] sm:$0xff]
  %v93 = vld [vmem:[%s1 + $0x1e0] sm:$0xff]
  %v94 = vld [vmem:[%s1 + $0x1e8] sm:$0xff]
  %v95 = vld [vmem:[%s1 + $0x1f0] sm:$0xff]
  %v96 = vld [vmem:[%s1 + $0x1f8] sm:$0xff]
  %v97 = vld [vmem:[%s0] sm:$0xf]
  %v98 = vld [vmem:[%s0 + $0x4] sm:$0xf]
  %v99 = vld [vmem:[%s0 + $0x8] sm:$0xf]
  %v100 = vld [vmem:[%s0 + $0xc] sm:$0xf]
  %v101 = vld [vmem:[%s0 + $0x10] sm:$0xf]
  %v102 = vld [vmem:[%s0 + $0x14] sm:$0xf]
  %v103 = vld [vmem:[%s0 + $0x18] sm:$0xf]
  %v111 = vunpack.c.l.b16 %v97
  %v112 = vunpack.c.l.b16 %v98
  %v113 = vunpack.c.l.b16 %v99
  %v114 = vunpack.c.l.b16 %v100
  %v115 = vunpack.c.l.b16 %v101
  %v116 = vunpack.c.l.b16 %v102
  %v117 = vunpack.c.l.b16 %v103
  %v118 = vpack.c.b16 %v112, %v111
  %v119 = vpack.c.b16 %v114, %v113
  %v120 = vpack.c.b16 %v116, %v115
  %v121 = vpack.c.b16 %v117, %v117
  %v190 = vunpack.c.l.b16 %v33
  %v191 = vunpack.c.h.b16 %v33
  %v192 = vunpack.c.l.b16 %v34
  %v193 = vunpack.c.h.b16 %v34
  %v194 = vunpack.c.l.b16 %v35
  %v195 = vunpack.c.h.b16 %v35
  %v196 = vunpack.c.l.b16 %v36
  %v197 = vunpack.c.h.b16 %v36
  %v198 = vunpack.c.l.b16 %v37
  %v199 = vunpack.c.h.b16 %v37
  %v200 = vunpack.c.l.b16 %v38
  %v201 = vunpack.c.h.b16 %v38
  %v202 = vunpack.c.l.b16 %v39
  %v203 = vunpack.c.h.b16 %v39
  %v204 = vunpack.c.l.b16 %v40
  %v205 = vunpack.c.h.b16 %v40
  %v206 = vunpack.c.l.b16 %v41
  %v207 = vunpack.c.h.b16 %v41
  %v208 = vunpack.c.l.b16 %v42
  %v209 = vunpack.c.h.b16 %v42
  %v210 = vunpack.c.l.b16 %v43
  %v211 = vunpack.c.h.b16 %v43
  %v212 = vunpack.c.l.b16 %v44
  %v213 = vunpack.c.h.b16 %v44
  %v214 = vunpack.c.l.b16 %v45
  %v215 = vunpack.c.h.b16 %v45
  %v216 = vunpack.c.l.b16 %v46
  %v217 = vunpack.c.h.b16 %v46
  %v218 = vunpack.c.l.b16 %v47
  %v219 = vunpack.c.h.b16 %v47
  %v220 = vunpack.c.l.b16 %v48
  %v221 = vunpack.c.h.b16 %v48
  %v222 = vunpack.c.l.b16 %v49
  %v223 = vunpack.c.h.b16 %v49
  %v224 = vunpack.c.l.b16 %v50
  %v225 = vunpack.c.h.b16 %v50
  %v226 = vunpack.c.l.b16 %v51
  %v227 = vunpack.c.h.b16 %v51
  %v228 = vunpack.c.l.b16 %v52
  %v229 = vunpack.c.h.b16 %v52
  %v230 = vunpack.c.l.b16 %v53
  %v231 = vunpack.c.h.b16 %v53
  %v232 = vunpack.c.l.b16 %v54
  %v233 = vunpack.c.h.b16 %v54
  %v234 = vunpack.c.l.b16 %v55
  %v235 = vunpack.c.h.b16 %v55
  %v236 = vunpack.c.l.b16 %v56
  %v237 = vunpack.c.h.b16 %v56
  %v238 = vunpack.c.l.b16 %v57
  %v239 = vunpack.c.h.b16 %v57
  %v240 = vunpack.c.l.b16 %v58
  %v241 = vunpack.c.h.b16 %v58
  %v242 = vunpack.c.l.b16 %v59
  %v243 = vunpack.c.h.b16 %v59
  %v244 = vunpack.c.l.b16 %v60
  %v245 = vunpack.c.h.b16 %v60
  %v246 = vunpack.c.l.b16 %v61
  %v247 = vunpack.c.h.b16 %v61
  %v248 = vunpack.c.l.b16 %v62
  %v249 = vunpack.c.h.b16 %v62
  %v250 = vunpack.c.l.b16 %v63
  %v251 = vunpack.c.h.b16 %v63
  %v252 = vunpack.c.l.b16 %v64
  %v253 = vunpack.c.h.b16 %v64
  %v254 = vunpack.c.l.b16 %v65
  %v255 = vunpack.c.h.b16 %v65
  %v256 = vunpack.c.l.b16 %v66
  %v257 = vunpack.c.h.b16 %v66
  %v258 = vunpack.c.l.b16 %v67
  %v259 = vunpack.c.h.b16 %v67
  %v260 = vunpack.c.l.b16 %v68
  %v261 = vunpack.c.h.b16 %v68
  %v262 = vunpack.c.l.b16 %v69
  %v263 = vunpack.c.h.b16 %v69
  %v264 = vunpack.c.l.b16 %v70
  %v265 = vunpack.c.h.b16 %v70
  %v266 = vunpack.c.l.b16 %v71
  %v267 = vunpack.c.h.b16 %v71
  %v268 = vunpack.c.l.b16 %v72
  %v269 = vunpack.c.h.b16 %v72
  %v270 = vunpack.c.l.b16 %v73
  %v271 = vunpack.c.h.b16 %v73
  %v272 = vunpack.c.l.b16 %v74
  %v273 = vunpack.c.h.b16 %v74
  %v274 = vunpack.c.l.b16 %v75
  %v275 = vunpack.c.h.b16 %v75
  %v276 = vunpack.c.l.b16 %v76
  %v277 = vunpack.c.h.b16 %v76
  %v278 = vunpack.c.l.b16 %v77
  %v279 = vunpack.c.h.b16 %v77
  %v280 = vunpack.c.l.b16 %v78
  %v281 = vunpack.c.h.b16 %v78
  %v282 = vunpack.c.l.b16 %v79
  %v283 = vunpack.c.h.b16 %v79
  %v284 = vunpack.c.l.b16 %v80
  %v285 = vunpack.c.h.b16 %v80
  %v286 = vunpack.c.l.b16 %v81
  %v287 = vunpack.c.h.b16 %v81
  %v288 = vunpack.c.l.b16 %v82
  %v289 = vunpack.c.h.b16 %v82
  %v290 = vunpack.c.l.b16 %v83
  %v291 = vunpack.c.h.b16 %v83
  %v292 = vunpack.c.l.b16 %v84
  %v293 = vunpack.c.h.b16 %v84
  %v294 = vunpack.c.l.b16 %v85
  %v295 = vunpack.c.h.b16 %v85
  %v296 = vunpack.c.l.b16 %v86
  %v297 = vunpack.c.h.b16 %v86
  %v298 = vunpack.c.l.b16 %v87
  %v299 = vunpack.c.h.b16 %v87
  %v300 = vunpack.c.l.b16 %v88
  %v301 = vunpack.c.h.b16 %v88
  %v302 = vunpack.c.l.b16 %v89
  %v303 = vunpack.c.h.b16 %v89
  %v304 = vunpack.c.l.b16 %v90
  %v305 = vunpack.c.h.b16 %v90
  %v306 = vunpack.c.l.b16 %v91
  %v307 = vunpack.c.h.b16 %v91
  %v308 = vunpack.c.l.b16 %v92
  %v309 = vunpack.c.h.b16 %v92
  %v310 = vunpack.c.l.b16 %v93
  %v311 = vunpack.c.h.b16 %v93
  %v312 = vunpack.c.l.b16 %v94
  %v313 = vunpack.c.h.b16 %v94
  %v314 = vunpack.c.l.b16 %v95
  %v315 = vunpack.c.h.b16 %v95
  %v316 = vunpack.c.l.b16 %v96
  %v317 = vunpack.c.h.b16 %v96
  %v318 = vpack.c.b16 %v198, %v190
  %v319 = vpack.c.b16 %v199, %v191
  %v320 = vpack.c.b16 %v200, %v192
  %v321 = vpack.c.b16 %v201, %v193
  %v322 = vpack.c.b16 %v202, %v194
  %v323 = vpack.c.b16 %v203, %v195
  %v324 = vpack.c.b16 %v204, %v196
  %v325 = vpack.c.b16 %v205, %v197
  %v326 = vpack.c.b16 %v214, %v206
  %v327 = vpack.c.b16 %v215, %v207
  %v328 = vpack.c.b16 %v216, %v208
  %v329 = vpack.c.b16 %v217, %v209
  %v330 = vpack.c.b16 %v218, %v210
  %v331 = vpack.c.b16 %v219, %v211
  %v332 = vpack.c.b16 %v220, %v212
  %v333 = vpack.c.b16 %v221, %v213
  %v334 = vpack.c.b16 %v230, %v222
  %v335 = vpack.c.b16 %v231, %v223
  %v336 = vpack.c.b16 %v232, %v224
  %v337 = vpack.c.b16 %v233, %v225
  %v338 = vpack.c.b16 %v234, %v226
  %v339 = vpack.c.b16 %v235, %v227
  %v340 = vpack.c.b16 %v236, %v228
  %v341 = vpack.c.b16 %v237, %v229
  %v342 = vpack.c.b16 %v246, %v238
  %v343 = vpack.c.b16 %v247, %v239
  %v344 = vpack.c.b16 %v248, %v240
  %v345 = vpack.c.b16 %v249, %v241
  %v346 = vpack.c.b16 %v250, %v242
  %v347 = vpack.c.b16 %v251, %v243
  %v348 = vpack.c.b16 %v252, %v244
  %v349 = vpack.c.b16 %v253, %v245
  %v350 = vpack.c.b16 %v262, %v254
  %v351 = vpack.c.b16 %v263, %v255
  %v352 = vpack.c.b16 %v264, %v256
  %v353 = vpack.c.b16 %v265, %v257
  %v354 = vpack.c.b16 %v266, %v258
  %v355 = vpack.c.b16 %v267, %v259
  %v356 = vpack.c.b16 %v268, %v260
  %v357 = vpack.c.b16 %v269, %v261
  %v358 = vpack.c.b16 %v278, %v270
  %v359 = vpack.c.b16 %v279, %v271
  %v360 = vpack.c.b16 %v280, %v272
  %v361 = vpack.c.b16 %v281, %v273
  %v362 = vpack.c.b16 %v282, %v274
  %v363 = vpack.c.b16 %v283, %v275
  %v364 = vpack.c.b16 %v284, %v276
  %v365 = vpack.c.b16 %v285, %v277
  %v366 = vpack.c.b16 %v294, %v286
  %v367 = vpack.c.b16 %v295, %v287
  %v368 = vpack.c.b16 %v296, %v288
  %v369 = vpack.c.b16 %v297, %v289
  %v370 = vpack.c.b16 %v298, %v290
  %v371 = vpack.c.b16 %v299, %v291
  %v372 = vpack.c.b16 %v300, %v292
  %v373 = vpack.c.b16 %v301, %v293
  %v374 = vpack.c.b16 %v310, %v302
  %v375 = vpack.c.b16 %v311, %v303
  %v376 = vpack.c.b16 %v312, %v304
  %v377 = vpack.c.b16 %v313, %v305
  %v378 = vpack.c.b16 %v314, %v306
  %v379 = vpack.c.b16 %v315, %v307
  %v380 = vpack.c.b16 %v316, %v308
  %v381 = vpack.c.b16 %v317, %v309
  %446 = vmatprep.subr.bf16.mxu0 %v319
  %447 = vmatpush1.bf16.msra.mxu0 %v318
  %448 = vmatprep.subr.bf16.mxu0 %v327
  %449 = vmatpush1.bf16.msra.mxu0 %v326
  %450 = vmatprep.subr.bf16.mxu0 %v335
  %451 = vmatpush1.bf16.msra.mxu0 %v334
  %452 = vmatprep.subr.bf16.mxu0 %v343
  %453 = vmatpush1.bf16.msra.mxu0 %v342
  %454 = vmatprep.subr.bf16.mxu0 %v351
  %455 = vmatpush1.bf16.msra.mxu0 %v350
  %456 = vmatprep.subr.bf16.mxu0 %v359
  %457 = vmatpush1.bf16.msra.mxu0 %v358
  %458 = vmatprep.subr.bf16.mxu0 %v367
  %459 = vmatpush1.bf16.msra.mxu0 %v366
  %460 = vmatprep.subr.bf16.mxu0 %v375
  %461 = vmatpush1.bf16.msra.mxu0 %v374
  %462 = vmatprep.subr.bf16.mxu0 0
  %463 = vmatpush1.bf16.msra.mxu0 0
  %464 = vmatprep.subr.bf16.mxu0 0
  %465 = vmatpush1.bf16.msra.mxu0 0
  %466 = vmatprep.subr.bf16.mxu0 0
  %467 = vmatpush1.bf16.msra.mxu0 0
  %468 = vmatprep.subr.bf16.mxu0 0
  %469 = vmatpush1.bf16.msra.mxu0 0
  %470 = vmatprep.subr.bf16.mxu0 0
  %471 = vmatpush1.bf16.msra.mxu0 0
  %472 = vmatprep.subr.bf16.mxu0 0
  %473 = vmatpush1.bf16.msra.mxu0 0
  %474 = vmatprep.subr.bf16.mxu0 0
  %475 = vmatpush1.bf16.msra.mxu0 0
  %476 = vmatprep.subr.bf16.mxu0 0
  %477 = vmatpush1.bf16.msra.mxu0 0
  %478 = vmatprep.mubr.bf16.mxu0 0
  %479 = vmatmul.mubr.bf16.gmra.mrb[0].mxu0 %v118
  %v480 = vpop.f32.mrb[0].mxu0
  %v481 = vadd.f32 0.0, %v480
  %v482 = vpop.f32.mrb[0].mxu0
  %v483 = vadd.f32 0.0, %v482
  %v484 = vpop.f32.mrb[0].mxu0
  %v485 = vadd.f32 0.0, %v484
  %v486 = vpop.f32.mrb[0].mxu0
  %v487 = vadd.f32 0.0, %v486
  %488 = vmatprep.mubr.bf16.mxu0 0
  %489 = vmatmul.mubr.bf16.gmra.mrb[0].mxu0 %v119
  %v490 = vpop.f32.mrb[0].mxu0
  %v491 = vadd.f32 0.0, %v490
  %v492 = vpop.f32.mrb[0].mxu0
  %v493 = vadd.f32 0.0, %v492
  %v494 = vpop.f32.mrb[0].mxu0
  %v495 = vadd.f32 0.0, %v494
  %v496 = vpop.f32.mrb[0].mxu0
  %v497 = vadd.f32 0.0, %v496
  %498 = vmatprep.mubr.bf16.mxu0 0
  %499 = vmatmul.mubr.bf16.gmra.mrb[0].mxu0 %v120
  %v500 = vpop.f32.mrb[0].mxu0
  %v501 = vadd.f32 0.0, %v500
  %v502 = vpop.f32.mrb[0].mxu0
  %v503 = vadd.f32 0.0, %v502
  %v504 = vpop.f32.mrb[0].mxu0
  %v505 = vadd.f32 0.0, %v504
  %v506 = vpop.f32.mrb[0].mxu0
  %v507 = vadd.f32 0.0, %v506
  %508 = vmatprep.mubr.bf16.mxu0 0
  %509 = vmatmul.mubr.bf16.gmra.mrb[0].mxu0 %v121
  %v510 = vpop.f32.mrb[0].mxu0
  %v511 = vadd.f32 0.0, %v510
  %v512 = vpop.f32.mrb[0].mxu0
  %v513 = vadd.f32 0.0, %v512
  %v514 = vpop.f32.mrb[0].mxu0
  %v515 = vpop.f32.mrb[0].mxu0
  %516 = vdwg.mxu0
  %517 = vmatprep.subr.bf16.mxu0 %v321
  %518 = vmatpush1.bf16.msra.mxu0 %v320
  %519 = vmatprep.subr.bf16.mxu0 %v329
  %520 = vmatpush1.bf16.msra.mxu0 %v328
  %521 = vmatprep.subr.bf16.mxu0 %v337
  %522 = vmatpush1.bf16.msra.mxu0 %v336
  %523 = vmatprep.subr.bf16.mxu0 %v345
  %524 = vmatpush1.bf16.msra.mxu0 %v344
  %525 = vmatprep.subr.bf16.mxu0 %v353
  %526 = vmatpush1.bf16.msra.mxu0 %v352
  %527 = vmatprep.subr.bf16.mxu0 %v361
  %528 = vmatpush1.bf16.msra.mxu0 %v360
  %529 = vmatprep.subr.bf16.mxu0 %v369
  %530 = vmatpush1.bf16.msra.mxu0 %v368
  %531 = vmatprep.subr.bf16.mxu0 %v377
  %532 = vmatpush1.bf16.msra.mxu0 %v376
  %533 = vmatprep.subr.bf16.mxu0 0
  %534 = vmatpush1.bf16.msra.mxu0 0
  %535 = vmatprep.subr.bf16.mxu0 0
  %536 = vmatpush1.bf16.msra.mxu0 0
  %537 = vmatprep.subr.bf16.mxu0 0
  %538 = vmatpush1.bf16.msra.mxu0 0
  %539 = vmatprep.subr.bf16.mxu0 0
  %540 = vmatpush1.bf16.msra.mxu0 0
  %541 = vmatprep.subr.bf16.mxu0 0
  %542 = vmatpush1.bf16.msra.mxu0 0
  %543 = vmatprep.subr.bf16.mxu0 0
  %544 = vmatpush1.bf16.msra.mxu0 0
  %545 = vmatprep.subr.bf16.mxu0 0
  %546 = vmatpush1.bf16.msra.mxu0 0
  %547 = vmatprep.subr.bf16.mxu0 0
  %548 = vmatpush1.bf16.msra.mxu0 0
  %549 = vmatprep.mubr.bf16.mxu0 0
  %550 = vmatmul.mubr.bf16.gmra.mrb[0].mxu0 %v118
  %v551 = vpop.f32.mrb[0].mxu0
  %v552 = vadd.f32 0.0, %v551
  %v553 = vpop.f32.mrb[0].mxu0
  %v554 = vadd.f32 0.0, %v553
  %v555 = vpop.f32.mrb[0].mxu0
  %v556 = vadd.f32 0.0, %v555
  %v557 = vpop.f32.mrb[0].mxu0
  %v558 = vadd.f32 0.0, %v557
  %559 = vmatprep.mubr.bf16.mxu0 0
  %560 = vmatmul.mubr.bf16.gmra.mrb[0].mxu0 %v119
  %v561 = vpop.f32.mrb[0].mxu0
  %v562 = vadd.f32 0.0, %v561
  %v563 = vpop.f32.mrb[0].mxu0
  %v564 = vadd.f32 0.0, %v563
  %v565 = vpop.f32.mrb[0].mxu0
  %v566 = vadd.f32 0.0, %v565
  %v567 = vpop.f32.mrb[0].mxu0
  %v568 = vadd.f32 0.0, %v567
  %569 = vmatprep.mubr.bf16.mxu0 0
  %570 = vmatmul.mubr.bf16.gmra.mrb[0].mxu0 %v120
  %v571 = vpop.f32.mrb[0].mxu0
  %v572 = vadd.f32 0.0, %v571
  %v573 = vpop.f32.mrb[0].mxu0
  %v574 = vadd.f32 0.0, %v573
  %v575 = vpop.f32.mrb[0].mxu0
  %v576 = vadd.f32 0.0, %v575
  %v577 = vpop.f32.mrb[0].mxu0
  %v578 = vadd.f32 0.0, %v577
  %579 = vmatprep.mubr.bf16.mxu0 0
  %580 = vmatmul.mubr.bf16.gmra.mrb[0].mxu0 %v121
  %v581 = vpop.f32.mrb[0].mxu0
  %v582 = vadd.f32 0.0, %v581
  %v583 = vpop.f32.mrb[0].mxu0
  %v584 = vadd.f32 0.0, %v583
  %v585 = vpop.f32.mrb[0].mxu0
  %v586 = vpop.f32.mrb[0].mxu0
  %587 = vdwg.mxu0
  %588 = vmatprep.subr.bf16.mxu0 %v323
  %589 = vmatpush1.bf16.msra.mxu0 %v322
  %590 = vmatprep.subr.bf16.mxu0 %v331
  %591 = vmatpush1.bf16.msra.mxu0 %v330
  %592 = vmatprep.subr.bf16.mxu0 %v339
  %593 = vmatpush1.bf16.msra.mxu0 %v338
  %594 = vmatprep.subr.bf16.mxu0 %v347
  %595 = vmatpush1.bf16.msra.mxu0 %v346
  %596 = vmatprep.subr.bf16.mxu0 %v355
  %597 = vmatpush1.bf16.msra.mxu0 %v354
  %598 = vmatprep.subr.bf16.mxu0 %v363
  %599 = vmatpush1.bf16.msra.mxu0 %v362
  %600 = vmatprep.subr.bf16.mxu0 %v371
  %601 = vmatpush1.bf16.msra.mxu0 %v370
  %602 = vmatprep.subr.bf16.mxu0 %v379
  %603 = vmatpush1.bf16.msra.mxu0 %v378
  %604 = vmatprep.subr.bf16.mxu0 0
  %605 = vmatpush1.bf16.msra.mxu0 0
  %606 = vmatprep.subr.bf16.mxu0 0
  %607 = vmatpush1.bf16.msra.mxu0 0
  %608 = vmatprep.subr.bf16.mxu0 0
  %609 = vmatpush1.bf16.msra.mxu0 0
  %610 = vmatprep.subr.bf16.mxu0 0
  %611 = vmatpush1.bf16.msra.mxu0 0
  %612 = vmatprep.subr.bf16.mxu0 0
  %613 = vmatpush1.bf16.msra.mxu0 0
  %614 = vmatprep.subr.bf16.mxu0 0
  %615 = vmatpush1.bf16.msra.mxu0 0
  %616 = vmatprep.subr.bf16.mxu0 0
  %617 = vmatpush1.bf16.msra.mxu0 0
  %618 = vmatprep.subr.bf16.mxu0 0
  %619 = vmatpush1.bf16.msra.mxu0 0
  %620 = vmatprep.mubr.bf16.mxu0 0
  %621 = vmatmul.mubr.bf16.gmra.mrb[0].mxu0 %v118
  %v622 = vpop.f32.mrb[0].mxu0
  %v623 = vadd.f32 0.0, %v622
  %v624 = vpop.f32.mrb[0].mxu0
  %v625 = vadd.f32 0.0, %v624
  %v626 = vpop.f32.mrb[0].mxu0
  %v627 = vadd.f32 0.0, %v626
  %v628 = vpop.f32.mrb[0].mxu0
  %v629 = vadd.f32 0.0, %v628
  %630 = vmatprep.mubr.bf16.mxu0 0
  %631 = vmatmul.mubr.bf16.gmra.mrb[0].mxu0 %v119
  %v632 = vpop.f32.mrb[0].mxu0
  %v633 = vadd.f32 0.0, %v632
  %v634 = vpop.f32.mrb[0].mxu0
  %v635 = vadd.f32 0.0, %v634
  %v636 = vpop.f32.mrb[0].mxu0
  %v637 = vadd.f32 0.0, %v636
  %v638 = vpop.f32.mrb[0].mxu0
  %v639 = vadd.f32 0.0, %v638
  %640 = vmatprep.mubr.bf16.mxu0 0
  %641 = vmatmul.mubr.bf16.gmra.mrb[0].mxu0 %v120
  %v642 = vpop.f32.mrb[0].mxu0
  %v643 = vadd.f32 0.0, %v642
  %v644 = vpop.f32.mrb[0].mxu0
  %v645 = vadd.f32 0.0, %v644
  %v646 = vpop.f32.mrb[0].mxu0
  %v647 = vadd.f32 0.0, %v646
  %v648 = vpop.f32.mrb[0].mxu0
  %v649 = vadd.f32 0.0, %v648
  %650 = vmatprep.mubr.bf16.mxu0 0
  %651 = vmatmul.mubr.bf16.gmra.mrb[0].mxu0 %v121
  %v652 = vpop.f32.mrb[0].mxu0
  %v653 = vadd.f32 0.0, %v652
  %v654 = vpop.f32.mrb[0].mxu0
  %v655 = vadd.f32 0.0, %v654
  %v656 = vpop.f32.mrb[0].mxu0
  %v657 = vpop.f32.mrb[0].mxu0
  %658 = vdwg.mxu0
  %659 = vmatprep.subr.bf16.mxu0 %v325
  %660 = vmatpush1.bf16.msra.mxu0 %v324
  %661 = vmatprep.subr.bf16.mxu0 %v333
  %662 = vmatpush1.bf16.msra.mxu0 %v332
  %663 = vmatprep.subr.bf16.mxu0 %v341
  %664 = vmatpush1.bf16.msra.mxu0 %v340
  %665 = vmatprep.subr.bf16.mxu0 %v349
  %666 = vmatpush1.bf16.msra.mxu0 %v348
  %667 = vmatprep.subr.bf16.mxu0 %v357
  %668 = vmatpush1.bf16.msra.mxu0 %v356
  %669 = vmatprep.subr.bf16.mxu0 %v365
  %670 = vmatpush1.bf16.msra.mxu0 %v364
  %671 = vmatprep.subr.bf16.mxu0 %v373
  %672 = vmatpush1.bf16.msra.mxu0 %v372
  %673 = vmatprep.subr.bf16.mxu0 %v381
  %674 = vmatpush1.bf16.msra.mxu0 %v380
  %675 = vmatprep.subr.bf16.mxu0 0
  %676 = vmatpush1.bf16.msra.mxu0 0
  %677 = vmatprep.subr.bf16.mxu0 0
  %678 = vmatpush1.bf16.msra.mxu0 0
  %679 = vmatprep.subr.bf16.mxu0 0
  %680 = vmatpush1.bf16.msra.mxu0 0
  %681 = vmatprep.subr.bf16.mxu0 0
  %682 = vmatpush1.bf16.msra.mxu0 0
  %683 = vmatprep.subr.bf16.mxu0 0
  %684 = vmatpush1.bf16.msra.mxu0 0
  %685 = vmatprep.subr.bf16.mxu0 0
  %686 = vmatpush1.bf16.msra.mxu0 0
  %687 = vmatprep.subr.bf16.mxu0 0
  %688 = vmatpush1.bf16.msra.mxu0 0
  %689 = vmatprep.subr.bf16.mxu0 0
  %690 = vmatpush1.bf16.msra.mxu0 0
  %691 = vmatprep.mubr.bf16.mxu0 0
  %692 = vmatmul.mubr.bf16.gmra.mrb[0].mxu0 %v118
  %v693 = vpop.f32.mrb[0].mxu0
  %v694 = vadd.f32 0.0, %v693
  %v695 = vpop.f32.mrb[0].mxu0
  %v696 = vadd.f32 0.0, %v695
  %v697 = vpop.f32.mrb[0].mxu0
  %v698 = vadd.f32 0.0, %v697
  %v699 = vpop.f32.mrb[0].mxu0
  %v700 = vadd.f32 0.0, %v699
  %701 = vmatprep.mubr.bf16.mxu0 0
  %702 = vmatmul.mubr.bf16.gmra.mrb[0].mxu0 %v119
  %v703 = vpop.f32.mrb[0].mxu0
  %v704 = vadd.f32 0.0, %v703
  %v705 = vpop.f32.mrb[0].mxu0
  %v706 = vadd.f32 0.0, %v705
  %v707 = vpop.f32.mrb[0].mxu0
  %v708 = vadd.f32 0.0, %v707
  %v709 = vpop.f32.mrb[0].mxu0
  %v710 = vadd.f32 0.0, %v709
  %711 = vmatprep.mubr.bf16.mxu0 0
  %712 = vmatmul.mubr.bf16.gmra.mrb[0].mxu0 %v120
  %v713 = vpop.f32.mrb[0].mxu0
  %v714 = vadd.f32 0.0, %v713
  %v715 = vpop.f32.mrb[0].mxu0
  %v716 = vadd.f32 0.0, %v715
  %v717 = vpop.f32.mrb[0].mxu0
  %v718 = vadd.f32 0.0, %v717
  %v719 = vpop.f32.mrb[0].mxu0
  %v720 = vadd.f32 0.0, %v719
  %721 = vmatprep.mubr.bf16.mxu0 0
  %722 = vmatmul.mubr.bf16.gmra.mrb[0].mxu0 %v121
  %v723 = vpop.f32.mrb[0].mxu0
  %v724 = vadd.f32 0.0, %v723
  %v725 = vpop.f32.mrb[0].mxu0
  %v726 = vadd.f32 0.0, %v725
  %v727 = vpop.f32.mrb[0].mxu0
  %v728 = vpop.f32.mrb[0].mxu0
  %729 = vdwg.mxu0
  %s730 = scalar_lea.vmem %s0, 28
  %v731 = vld [vmem:[%s730] sm:$0xf]
  %v732 = vld [vmem:[%s730 + $0x4] sm:$0xf]
  %v733 = vld [vmem:[%s730 + $0x8] sm:$0xf]
  %v734 = vld [vmem:[%s730 + $0xc] sm:$0xf]
  %v735 = vld [vmem:[%s730 + $0x10] sm:$0xf]
  %v736 = vld [vmem:[%s730 + $0x14] sm:$0xf]
  %v737 = vld [vmem:[%s730 + $0x18] sm:$0xf]
  %v745 = vunpack.c.l.b16 %v731
  %v746 = vunpack.c.l.b16 %v732
  %v747 = vunpack.c.l.b16 %v733
  %v748 = vunpack.c.l.b16 %v734
  %v749 = vunpack.c.l.b16 %v735
  %v750 = vunpack.c.l.b16 %v736
  %v751 = vunpack.c.l.b16 %v737
  %v752 = vpack.c.b16 %v746, %v745
  %v753 = vpack.c.b16 %v748, %v747
  %v754 = vpack.c.b16 %v750, %v749
  %v755 = vpack.c.b16 %v751, %v751
  %760 = vmatprep.subr.bf16.mxu0 %v319
  %761 = vmatpush1.bf16.msra.mxu0 %v318
  %762 = vmatprep.subr.bf16.mxu0 %v327
  %763 = vmatpush1.bf16.msra.mxu0 %v326
  %764 = vmatprep.subr.bf16.mxu0 %v335
  %765 = vmatpush1.bf16.msra.mxu0 %v334
  %766 = vmatprep.subr.bf16.mxu0 %v343
  %767 = vmatpush1.bf16.msra.mxu0 %v342
  %768 = vmatprep.subr.bf16.mxu0 %v351
  %769 = vmatpush1.bf16.msra.mxu0 %v350
  %770 = vmatprep.subr.bf16.mxu0 %v359
  %771 = vmatpush1.bf16.msra.mxu0 %v358
  %772 = vmatprep.subr.bf16.mxu0 %v367
  %773 = vmatpush1.bf16.msra.mxu0 %v366
  %774 = vmatprep.subr.bf16.mxu0 %v375
  %775 = vmatpush1.bf16.msra.mxu0 %v374
  %776 = vmatprep.subr.bf16.mxu0 0
  %777 = vmatpush1.bf16.msra.mxu0 0
  %778 = vmatprep.subr.bf16.mxu0 0
  %779 = vmatpush1.bf16.msra.mxu0 0
  %780 = vmatprep.subr.bf16.mxu0 0
  %781 = vmatpush1.bf16.msra.mxu0 0
  %782 = vmatprep.subr.bf16.mxu0 0
  %783 = vmatpush1.bf16.msra.mxu0 0
  %784 = vmatprep.subr.bf16.mxu0 0
  %785 = vmatpush1.bf16.msra.mxu0 0
  %786 = vmatprep.subr.bf16.mxu0 0
  %787 = vmatpush1.bf16.msra.mxu0 0
  %788 = vmatprep.subr.bf16.mxu0 0
  %789 = vmatpush1.bf16.msra.mxu0 0
  %790 = vmatprep.subr.bf16.mxu0 0
  %791 = vmatpush1.bf16.msra.mxu0 0
  %792 = vmatprep.mubr.bf16.mxu0 0
  %793 = vmatmul.mubr.bf16.gmra.mrb[0].mxu0 %v752
  %v794 = vpop.f32.mrb[0].mxu0
  %v795 = vadd.f32 0.0, %v794
  %v796 = vpop.f32.mrb[0].mxu0
  %v797 = vadd.f32 0.0, %v796
  %v798 = vpop.f32.mrb[0].mxu0
  %v799 = vadd.f32 0.0, %v798
  %v800 = vpop.f32.mrb[0].mxu0
  %v801 = vadd.f32 0.0, %v800
  %802 = vmatprep.mubr.bf16.mxu0 0
  %803 = vmatmul.mubr.bf16.gmra.mrb[0].mxu0 %v753
  %v804 = vpop.f32.mrb[0].mxu0
  %v805 = vadd.f32 0.0, %v804
  %v806 = vpop.f32.mrb[0].mxu0
  %v807 = vadd.f32 0.0, %v806
  %v808 = vpop.f32.mrb[0].mxu0
  %v809 = vadd.f32 0.0, %v808
  %v810 = vpop.f32.mrb[0].mxu0
  %v811 = vadd.f32 0.0, %v810
  %812 = vmatprep.mubr.bf16.mxu0 0
  %813 = vmatmul.mubr.bf16.gmra.mrb[0].mxu0 %v754
  %v814 = vpop.f32.mrb[0].mxu0
  %v815 = vadd.f32 0.0, %v814
  %v816 = vpop.f32.mrb[0].mxu0
  %v817 = vadd.f32 0.0, %v816
  %v818 = vpop.f32.mrb[0].mxu0
  %v819 = vadd.f32 0.0, %v818
  %v820 = vpop.f32.mrb[0].mxu0
  %v821 = vadd.f32 0.0, %v820
  %822 = vmatprep.mubr.bf16.mxu0 0
  %823 = vmatmul.mubr.bf16.gmra.mrb[0].mxu0 %v755
  %v824 = vpop.f32.mrb[0].mxu0
  %v825 = vadd.f32 0.0, %v824
  %v826 = vpop.f32.mrb[0].mxu0
  %v827 = vadd.f32 0.0, %v826
  %v828 = vpop.f32.mrb[0].mxu0
  %v829 = vpop.f32.mrb[0].mxu0
  %830 = vdwg.mxu0
  %831 = vmatprep.subr.bf16.mxu0 %v321
  %832 = vmatpush1.bf16.msra.mxu0 %v320
  %833 = vmatprep.subr.bf16.mxu0 %v329
  %834 = vmatpush1.bf16.msra.mxu0 %v328
  %835 = vmatprep.subr.bf16.mxu0 %v337
  %836 = vmatpush1.bf16.msra.mxu0 %v336
  %837 = vmatprep.subr.bf16.mxu0 %v345
  %838 = vmatpush1.bf16.msra.mxu0 %v344
  %839 = vmatprep.subr.bf16.mxu0 %v353
  %840 = vmatpush1.bf16.msra.mxu0 %v352
  %841 = vmatprep.subr.bf16.mxu0 %v361
  %842 = vmatpush1.bf16.msra.mxu0 %v360
  %843 = vmatprep.subr.bf16.mxu0 %v369
  %844 = vmatpush1.bf16.msra.mxu0 %v368
  %845 = vmatprep.subr.bf16.mxu0 %v377
  %846 = vmatpush1.bf16.msra.mxu0 %v376
  %847 = vmatprep.subr.bf16.mxu0 0
  %848 = vmatpush1.bf16.msra.mxu0 0
  %849 = vmatprep.subr.bf16.mxu0 0
  %850 = vmatpush1.bf16.msra.mxu0 0
  %851 = vmatprep.subr.bf16.mxu0 0
  %852 = vmatpush1.bf16.msra.mxu0 0
  %853 = vmatprep.subr.bf16.mxu0 0
  %854 = vmatpush1.bf16.msra.mxu0 0
  %855 = vmatprep.subr.bf16.mxu0 0
  %856 = vmatpush1.bf16.msra.mxu0 0
  %857 = vmatprep.subr.bf16.mxu0 0
  %858 = vmatpush1.bf16.msra.mxu0 0
  %859 = vmatprep.subr.bf16.mxu0 0
  %860 = vmatpush1.bf16.msra.mxu0 0
  %861 = vmatprep.subr.bf16.mxu0 0
  %862 = vmatpush1.bf16.msra.mxu0 0
  %863 = vmatprep.mubr.bf16.mxu0 0
  %864 = vmatmul.mubr.bf16.gmra.mrb[0].mxu0 %v752
  %v865 = vpop.f32.mrb[0].mxu0
  %v866 = vadd.f32 0.0, %v865
  %v867 = vpop.f32.mrb[0].mxu0
  %v868 = vadd.f32 0.0, %v867
  %v869 = vpop.f32.mrb[0].mxu0
  %v870 = vadd.f32 0.0, %v869
  %v871 = vpop.f32.mrb[0].mxu0
  %v872 = vadd.f32 0.0, %v871
  %873 = vmatprep.mubr.bf16.mxu0 0
  %874 = vmatmul.mubr.bf16.gmra.mrb[0].mxu0 %v753
  %v875 = vpop.f32.mrb[0].mxu0
  %v876 = vadd.f32 0.0, %v875
  %v877 = vpop.f32.mrb[0].mxu0
  %v878 = vadd.f32 0.0, %v877
  %v879 = vpop.f32.mrb[0].mxu0
  %v880 = vadd.f32 0.0, %v879
  %v881 = vpop.f32.mrb[0].mxu0
  %v882 = vadd.f32 0.0, %v881
  %883 = vmatprep.mubr.bf16.mxu0 0
  %884 = vmatmul.mubr.bf16.gmra.mrb[0].mxu0 %v754
  %v885 = vpop.f32.mrb[0].mxu0
  %v886 = vadd.f32 0.0, %v885
  %v887 = vpop.f32.mrb[0].mxu0
  %v888 = vadd.f32 0.0, %v887
  %v889 = vpop.f32.mrb[0].mxu0
  %v890 = vadd.f32 0.0, %v889
  %v891 = vpop.f32.mrb[0].mxu0
  %v892 = vadd.f32 0.0, %v891
  %893 = vmatprep.mubr.bf16.mxu0 0
  %894 = vmatmul.mubr.bf16.gmra.mrb[0].mxu0 %v755
  %v895 = vpop.f32.mrb[0].mxu0
  %v896 = vadd.f32 0.0, %v895
  %v897 = vpop.f32.mrb[0].mxu0
  %v898 = vadd.f32 0.0, %v897
  %v899 = vpop.f32.mrb[0].mxu0
  %v900 = vpop.f32.mrb[0].mxu0
  %901 = vdwg.mxu0
  %902 = vmatprep.subr.bf16.mxu0 %v323
  %903 = vmatpush1.bf16.msra.mxu0 %v322
  %904 = vmatprep.subr.bf16.mxu0 %v331
  %905 = vmatpush1.bf16.msra.mxu0 %v330
  %906 = vmatprep.subr.bf16.mxu0 %v339
  %907 = vmatpush1.bf16.msra.mxu0 %v338
  %908 = vmatprep.subr.bf16.mxu0 %v347
  %909 = vmatpush1.bf16.msra.mxu0 %v346
  %910 = vmatprep.subr.bf16.mxu0 %v355
  %911 = vmatpush1.bf16.msra.mxu0 %v354
  %912 = vmatprep.subr.bf16.mxu0 %v363
  %913 = vmatpush1.bf16.msra.mxu0 %v362
  %914 = vmatprep.subr.bf16.mxu0 %v371
  %915 = vmatpush1.bf16.msra.mxu0 %v370
  %916 = vmatprep.subr.bf16.mxu0 %v379
  %917 = vmatpush1.bf16.msra.mxu0 %v378
  %918 = vmatprep.subr.bf16.mxu0 0
  %919 = vmatpush1.bf16.msra.mxu0 0
  %920 = vmatprep.subr.bf16.mxu0 0
  %921 = vmatpush1.bf16.msra.mxu0 0
  %922 = vmatprep.subr.bf16.mxu0 0
  %923 = vmatpush1.bf16.msra.mxu0 0
  %924 = vmatprep.subr.bf16.mxu0 0
  %925 = vmatpush1.bf16.msra.mxu0 0
  %926 = vmatprep.subr.bf16.mxu0 0
  %927 = vmatpush1.bf16.msra.mxu0 0
  %928 = vmatprep.subr.bf16.mxu0 0
  %929 = vmatpush1.bf16.msra.mxu0 0
  %930 = vmatprep.subr.bf16.mxu0 0
  %931 = vmatpush1.bf16.msra.mxu0 0
  %932 = vmatprep.subr.bf16.mxu0 0
  %933 = vmatpush1.bf16.msra.mxu0 0
  %934 = vmatprep.mubr.bf16.mxu0 0
  %935 = vmatmul.mubr.bf16.gmra.mrb[0].mxu0 %v752
  %v936 = vpop.f32.mrb[0].mxu0
  %v937 = vadd.f32 0.0, %v936
  %v938 = vpop.f32.mrb[0].mxu0
  %v939 = vadd.f32 0.0, %v938
  %v940 = vpop.f32.mrb[0].mxu0
  %v941 = vadd.f32 0.0, %v940
  %v942 = vpop.f32.mrb[0].mxu0
  %v943 = vadd.f32 0.0, %v942
  %944 = vmatprep.mubr.bf16.mxu0 0
  %945 = vmatmul.mubr.bf16.gmra.mrb[0].mxu0 %v753
  %v946 = vpop.f32.mrb[0].mxu0
  %v947 = vadd.f32 0.0, %v946
  %v948 = vpop.f32.mrb[0].mxu0
  %v949 = vadd.f32 0.0, %v948
  %v950 = vpop.f32.mrb[0].mxu0
  %v951 = vadd.f32 0.0, %v950
  %v952 = vpop.f32.mrb[0].mxu0
  %v953 = vadd.f32 0.0, %v952
  %954 = vmatprep.mubr.bf16.mxu0 0
  %955 = vmatmul.mubr.bf16.gmra.mrb[0].mxu0 %v754
  %v956 = vpop.f32.mrb[0].mxu0
  %v957 = vadd.f32 0.0, %v956
  %v958 = vpop.f32.mrb[0].mxu0
  %v959 = vadd.f32 0.0, %v958
  %v960 = vpop.f32.mrb[0].mxu0
  %v961 = vadd.f32 0.0, %v960
  %v962 = vpop.f32.mrb[0].mxu0
  %v963 = vadd.f32 0.0, %v962
  %964 = vmatprep.mubr.bf16.mxu0 0
  %965 = vmatmul.mubr.bf16.gmra.mrb[0].mxu0 %v755
  %v966 = vpop.f32.mrb[0].mxu0
  %v967 = vadd.f32 0.0, %v966
  %v968 = vpop.f32.mrb[0].mxu0
  %v969 = vadd.f32 0.0, %v968
  %v970 = vpop.f32.mrb[0].mxu0
  %v971 = vpop.f32.mrb[0].mxu0
  %972 = vdwg.mxu0
  %973 = vmatprep.subr.bf16.mxu0 %v325
  %974 = vmatpush1.bf16.msra.mxu0 %v324
  %975 = vmatprep.subr.bf16.mxu0 %v333
  %976 = vmatpush1.bf16.msra.mxu0 %v332
  %977 = vmatprep.subr.bf16.mxu0 %v341
  %978 = vmatpush1.bf16.msra.mxu0 %v340
  %979 = vmatprep.subr.bf16.mxu0 %v349
  %980 = vmatpush1.bf16.msra.mxu0 %v348
  %981 = vmatprep.subr.bf16.mxu0 %v357
  %982 = vmatpush1.bf16.msra.mxu0 %v356
  %983 = vmatprep.subr.bf16.mxu0 %v365
  %984 = vmatpush1.bf16.msra.mxu0 %v364
  %985 = vmatprep.subr.bf16.mxu0 %v373
  %986 = vmatpush1.bf16.msra.mxu0 %v372
  %987 = vmatprep.subr.bf16.mxu0 %v381
  %988 = vmatpush1.bf16.msra.mxu0 %v380
  %989 = vmatprep.subr.bf16.mxu0 0
  %990 = vmatpush1.bf16.msra.mxu0 0
  %991 = vmatprep.subr.bf16.mxu0 0
  %992 = vmatpush1.bf16.msra.mxu0 0
  %993 = vmatprep.subr.bf16.mxu0 0
  %994 = vmatpush1.bf16.msra.mxu0 0
  %995 = vmatprep.subr.bf16.mxu0 0
  %996 = vmatpush1.bf16.msra.mxu0 0
  %997 = vmatprep.subr.bf16.mxu0 0
  %998 = vmatpush1.bf16.msra.mxu0 0
  %999 = vmatprep.subr.bf16.mxu0 0
  %1000 = vmatpush1.bf16.msra.mxu0 0
  %1001 = vmatprep.subr.bf16.mxu0 0
  %1002 = vmatpush1.bf16.msra.mxu0 0
  %1003 = vmatprep.subr.bf16.mxu0 0
  %1004 = vmatpush1.bf16.msra.mxu0 0
  %1005 = vmatprep.mubr.bf16.mxu0 0
  %1006 = vmatmul.mubr.bf16.gmra.mrb[0].mxu0 %v752
  %v1007 = vpop.f32.mrb[0].mxu0
  %v1008 = vadd.f32 0.0, %v1007
  %v1009 = vpop.f32.mrb[0].mxu0
  %v1010 = vadd.f32 0.0, %v1009
  %v1011 = vpop.f32.mrb[0].mxu0
  %v1012 = vadd.f32 0.0, %v1011
  %v1013 = vpop.f32.mrb[0].mxu0
  %v1014 = vadd.f32 0.0, %v1013
  %1015 = vmatprep.mubr.bf16.mxu0 0
  %1016 = vmatmul.mubr.bf16.gmra.mrb[0].mxu0 %v753
  %v1017 = vpop.f32.mrb[0].mxu0
  %v1018 = vadd.f32 0.0, %v1017
  %v1019 = vpop.f32.mrb[0].mxu0
  %v1020 = vadd.f32 0.0, %v1019
  %v1021 = vpop.f32.mrb[0].mxu0
  %v1022 = vadd.f32 0.0, %v1021
  %v1023 = vpop.f32.mrb[0].mxu0
  %v1024 = vadd.f32 0.0, %v1023
  %1025 = vmatprep.mubr.bf16.mxu0 0
  %1026 = vmatmul.mubr.bf16.gmra.mrb[0].mxu0 %v754
  %v1027 = vpop.f32.mrb[0].mxu0
  %v1028 = vadd.f32 0.0, %v1027
  %v1029 = vpop.f32.mrb[0].mxu0
  %v1030 = vadd.f32 0.0, %v1029
  %v1031 = vpop.f32.mrb[0].mxu0
  %v1032 = vadd.f32 0.0, %v1031
  %v1033 = vpop.f32.mrb[0].mxu0
  %v1034 = vadd.f32 0.0, %v1033
  %1035 = vmatprep.mubr.bf16.mxu0 0
  %1036 = vmatmul.mubr.bf16.gmra.mrb[0].mxu0 %v755
  %v1037 = vpop.f32.mrb[0].mxu0
  %v1038 = vadd.f32 0.0, %v1037
  %v1039 = vpop.f32.mrb[0].mxu0
  %v1040 = vadd.f32 0.0, %v1039
  %v1041 = vpop.f32.mrb[0].mxu0
  %v1042 = vpop.f32.mrb[0].mxu0
  %1043 = vdwg.mxu0
  %v1044 = vmax.f32 %v481, %v795
  %v1045 = vmax.f32 %v483, %v797
  %v1046 = vmax.f32 %v552, %v866
  %v1047 = vmax.f32 %v554, %v868
  %v1048 = vmax.f32 %v623, %v937
  %v1049 = vmax.f32 %v625, %v939
  %v1050 = vmax.f32 %v694, %v1008
  %v1051 = vmax.f32 %v696, %v1010
  %v1052 = vmax.f32 %v485, %v799
  %v1053 = vmax.f32 %v487, %v801
  %v1054 = vmax.f32 %v556, %v870
  %v1055 = vmax.f32 %v558, %v872
  %v1056 = vmax.f32 %v627, %v941
  %v1057 = vmax.f32 %v629, %v943
  %v1058 = vmax.f32 %v698, %v1012
  %v1059 = vmax.f32 %v700, %v1014
  %v1060 = vmax.f32 %v491, %v805
  %v1061 = vmax.f32 %v493, %v807
  %v1062 = vmax.f32 %v562, %v876
  %v1063 = vmax.f32 %v564, %v878
  %v1064 = vmax.f32 %v633, %v947
  %v1065 = vmax.f32 %v635, %v949
  %v1066 = vmax.f32 %v704, %v1018
  %v1067 = vmax.f32 %v706, %v1020
  %v1068 = vmax.f32 %v495, %v809
  %v1069 = vmax.f32 %v497, %v811
  %v1070 = vmax.f32 %v566, %v880
  %v1071 = vmax.f32 %v568, %v882
  %v1072 = vmax.f32 %v637, %v951
  %v1073 = vmax.f32 %v639, %v953
  %v1074 = vmax.f32 %v708, %v1022
  %v1075 = vmax.f32 %v710, %v1024
  %v1076 = vmax.f32 %v501, %v815
  %v1077 = vmax.f32 %v503, %v817
  %v1078 = vmax.f32 %v572, %v886
  %v1079 = vmax.f32 %v574, %v888
  %v1080 = vmax.f32 %v643, %v957
  %v1081 = vmax.f32 %v645, %v959
  %v1082 = vmax.f32 %v714, %v1028
  %v1083 = vmax.f32 %v716, %v1030
  %v1084 = vmax.f32 %v505, %v819
  %v1085 = vmax.f32 %v507, %v821
  %v1086 = vmax.f32 %v576, %v890
  %v1087 = vmax.f32 %v578, %v892
  %v1088 = vmax.f32 %v647, %v961
  %v1089 = vmax.f32 %v649, %v963
  %v1090 = vmax.f32 %v718, %v1032
  %v1091 = vmax.f32 %v720, %v1034
  %v1092 = vmax.f32 %v511, %v825
  %v1093 = vmax.f32 %v513, %v827
  %v1094 = vmax.f32 %v582, %v896
  %v1095 = vmax.f32 %v584, %v898
  %v1096 = vmax.f32 %v653, %v967
  %v1097 = vmax.f32 %v655, %v969
  %v1098 = vmax.f32 %v724, %v1038
  %v1099 = vmax.f32 %v726, %v1040
  %v1100 = vmax.f32 %v1044, %v1048
  %v1101 = vmax.f32 %v1045, %v1049
  %v1102 = vmax.f32 %v1046, %v1050
  %v1103 = vmax.f32 %v1047, %v1051
  %v1104 = vmax.f32 %v1052, %v1056
  %v1105 = vmax.f32 %v1053, %v1057
  %v1106 = vmax.f32 %v1054, %v1058
  %v1107 = vmax.f32 %v1055, %v1059
  %v1108 = vmax.f32 %v1060, %v1064
  %v1109 = vmax.f32 %v1061, %v1065
  %v1110 = vmax.f32 %v1062, %v1066
  %v1111 = vmax.f32 %v1063, %v1067
  %v1112 = vmax.f32 %v1068, %v1072
  %v1113 = vmax.f32 %v1069, %v1073
  %v1114 = vmax.f32 %v1070, %v1074
  %v1115 = vmax.f32 %v1071, %v1075
  %v1116 = vmax.f32 %v1076, %v1080
  %v1117 = vmax.f32 %v1077, %v1081
  %v1118 = vmax.f32 %v1078, %v1082
  %v1119 = vmax.f32 %v1079, %v1083
  %v1120 = vmax.f32 %v1084, %v1088
  %v1121 = vmax.f32 %v1085, %v1089
  %v1122 = vmax.f32 %v1086, %v1090
  %v1123 = vmax.f32 %v1087, %v1091
  %v1124 = vmax.f32 %v1092, %v1096
  %v1125 = vmax.f32 %v1093, %v1097
  %v1126 = vmax.f32 %v1094, %v1098
  %v1127 = vmax.f32 %v1095, %v1099
  %v1128 = vld [vmem:[%s2] sm:$0xf]
  %v1130 = vlaneseq
  %v1131 = vshrl.u32 %v1130, 7
  %v1132 = vsub.s32 0, %v1131
  %v1133 = vrot.slane %v1128, %v1132
  %v1134 = vlaneseq
  %v1135 = vshrl.u32 %v1134, 7
  %v1136 = vsub.s32 1, %v1135
  %v1137 = vrot.slane %v1128, %v1136
  %v1138 = vlaneseq
  %v1139 = vshrl.u32 %v1138, 7
  %v1140 = vsub.s32 2, %v1139
  %v1141 = vrot.slane %v1128, %v1140
  %v1142 = vlaneseq
  %v1143 = vshrl.u32 %v1142, 7
  %v1144 = vsub.s32 3, %v1143
  %v1145 = vrot.slane %v1128, %v1144
  %v1150 = vadd.f32 %v1100, %v1133
  %v1151 = vadd.f32 %v1101, %v1137
  %v1152 = vadd.f32 %v1102, %v1141
  %v1153 = vadd.f32 %v1103, %v1145
  %v1154 = vadd.f32 %v1104, %v1133
  %v1155 = vadd.f32 %v1105, %v1137
  %v1156 = vadd.f32 %v1106, %v1141
  %v1157 = vadd.f32 %v1107, %v1145
  %v1158 = vadd.f32 %v1108, %v1133
  %v1159 = vadd.f32 %v1109, %v1137
  %v1160 = vadd.f32 %v1110, %v1141
  %v1161 = vadd.f32 %v1111, %v1145
  %v1162 = vadd.f32 %v1112, %v1133
  %v1163 = vadd.f32 %v1113, %v1137
  %v1164 = vadd.f32 %v1114, %v1141
  %v1165 = vadd.f32 %v1115, %v1145
  %v1166 = vadd.f32 %v1116, %v1133
  %v1167 = vadd.f32 %v1117, %v1137
  %v1168 = vadd.f32 %v1118, %v1141
  %v1169 = vadd.f32 %v1119, %v1145
  %v1170 = vadd.f32 %v1120, %v1133
  %v1171 = vadd.f32 %v1121, %v1137
  %v1172 = vadd.f32 %v1122, %v1141
  %v1173 = vadd.f32 %v1123, %v1145
  %v1174 = vadd.f32 %v1124, %v1133
  %v1175 = vadd.f32 %v1125, %v1137
  %v1176 = vadd.f32 %v1126, %v1141
  %v1177 = vadd.f32 %v1127, %v1145
  %v1178 = vmax.f32 %v1150, 0.0
  %v1179 = vmax.f32 %v1151, 0.0
  %v1180 = vmax.f32 %v1152, 0.0
  %v1181 = vmax.f32 %v1153, 0.0
  %v1182 = vmax.f32 %v1154, 0.0
  %v1183 = vmax.f32 %v1155, 0.0
  %v1184 = vmax.f32 %v1156, 0.0
  %v1185 = vmax.f32 %v1157, 0.0
  %v1186 = vmax.f32 %v1158, 0.0
  %v1187 = vmax.f32 %v1159, 0.0
  %v1188 = vmax.f32 %v1160, 0.0
  %v1189 = vmax.f32 %v1161, 0.0
  %v1190 = vmax.f32 %v1162, 0.0
  %v1191 = vmax.f32 %v1163, 0.0
  %v1192 = vmax.f32 %v1164, 0.0
  %v1193 = vmax.f32 %v1165, 0.0
  %v1194 = vmax.f32 %v1166, 0.0
  %v1195 = vmax.f32 %v1167, 0.0
  %v1196 = vmax.f32 %v1168, 0.0
  %v1197 = vmax.f32 %v1169, 0.0
  %v1198 = vmax.f32 %v1170, 0.0
  %v1199 = vmax.f32 %v1171, 0.0
  %v1200 = vmax.f32 %v1172, 0.0
  %v1201 = vmax.f32 %v1173, 0.0
  %v1202 = vmax.f32 %v1174, 0.0
  %v1203 = vmax.f32 %v1175, 0.0
  %v1204 = vmax.f32 %v1176, 0.0
  %v1205 = vmax.f32 %v1177, 0.0
  %s1206 = scalar_lea.vmem %s0, 56
  %v1207 = vld [vmem:[%s1206] sm:$0xf]
  %v1208 = vld [vmem:[%s1206 + $0x4] sm:$0xf]
  %v1209 = vld [vmem:[%s1206 + $0x8] sm:$0xf]
  %v1210 = vld [vmem:[%s1206 + $0xc] sm:$0xf]
  %v1211 = vld [vmem:[%s1206 + $0x10] sm:$0xf]
  %v1212 = vld [vmem:[%s1206 + $0x14] sm:$0xf]
  %v1213 = vld [vmem:[%s1206 + $0x18] sm:$0xf]
  %v1221 = vunpack.c.l.b16 %v1207
  %v1222 = vunpack.c.l.b16 %v1208
  %v1223 = vunpack.c.l.b16 %v1209
  %v1224 = vunpack.c.l.b16 %v1210
  %v1225 = vunpack.c.l.b16 %v1211
  %v1226 = vunpack.c.l.b16 %v1212
  %v1227 = vunpack.c.l.b16 %v1213
  %v1228 = vpack.c.b16 %v1222, %v1221
  %v1229 = vpack.c.b16 %v1224, %v1223
  %v1230 = vpack.c.b16 %v1226, %v1225
  %v1231 = vpack.c.b16 %v1227, %v1227
  %1236 = vmatprep.subr.bf16.mxu0 %v319
  %1237 = vmatpush1.bf16.msra.mxu0 %v318
  %1238 = vmatprep.subr.bf16.mxu0 %v327
  %1239 = vmatpush1.bf16.msra.mxu0 %v326
  %1240 = vmatprep.subr.bf16.mxu0 %v335
  %1241 = vmatpush1.bf16.msra.mxu0 %v334
  %1242 = vmatprep.subr.bf16.mxu0 %v343
  %1243 = vmatpush1.bf16.msra.mxu0 %v342
  %1244 = vmatprep.subr.bf16.mxu0 %v351
  %1245 = vmatpush1.bf16.msra.mxu0 %v350
  %1246 = vmatprep.subr.bf16.mxu0 %v359
  %1247 = vmatpush1.bf16.msra.mxu0 %v358
  %1248 = vmatprep.subr.bf16.mxu0 %v367
  %1249 = vmatpush1.bf16.msra.mxu0 %v366
  %1250 = vmatprep.subr.bf16.mxu0 %v375
  %1251 = vmatpush1.bf16.msra.mxu0 %v374
  %1252 = vmatprep.subr.bf16.mxu0 0
  %1253 = vmatpush1.bf16.msra.mxu0 0
  %1254 = vmatprep.subr.bf16.mxu0 0
  %1255 = vmatpush1.bf16.msra.mxu0 0
  %1256 = vmatprep.subr.bf16.mxu0 0
  %1257 = vmatpush1.bf16.msra.mxu0 0
  %1258 = vmatprep.subr.bf16.mxu0 0
  %1259 = vmatpush1.bf16.msra.mxu0 0
  %1260 = vmatprep.subr.bf16.mxu0 0
  %1261 = vmatpush1.bf16.msra.mxu0 0
  %1262 = vmatprep.subr.bf16.mxu0 0
  %1263 = vmatpush1.bf16.msra.mxu0 0
  %1264 = vmatprep.subr.bf16.mxu0 0
  %1265 = vmatpush1.bf16.msra.mxu0 0
  %1266 = vmatprep.subr.bf16.mxu0 0
  %1267 = vmatpush1.bf16.msra.mxu0 0
  %1268 = vmatprep.mubr.bf16.mxu0 0
  %1269 = vmatmul.mubr.bf16.gmra.mrb[0].mxu0 %v1228
  %v1270 = vpop.f32.mrb[0].mxu0
  %v1271 = vadd.f32 0.0, %v1270
  %v1272 = vpop.f32.mrb[0].mxu0
  %v1273 = vadd.f32 0.0, %v1272
  %v1274 = vpop.f32.mrb[0].mxu0
  %v1275 = vadd.f32 0.0, %v1274
  %v1276 = vpop.f32.mrb[0].mxu0
  %v1277 = vadd.f32 0.0, %v1276
  %1278 = vmatprep.mubr.bf16.mxu0 0
  %1279 = vmatmul.mubr.bf16.gmra.mrb[0].mxu0 %v1229
  %v1280 = vpop.f32.mrb[0].mxu0
  %v1281 = vadd.f32 0.0, %v1280
  %v1282 = vpop.f32.mrb[0].mxu0
  %v1283 = vadd.f32 0.0, %v1282
  %v1284 = vpop.f32.mrb[0].mxu0
  %v1285 = vadd.f32 0.0, %v1284
  %v1286 = vpop.f32.mrb[0].mxu0
  %v1287 = vadd.f32 0.0, %v1286
  %1288 = vmatprep.mubr.bf16.mxu0 0
  %1289 = vmatmul.mubr.bf16.gmra.mrb[0].mxu0 %v1230
  %v1290 = vpop.f32.mrb[0].mxu0
  %v1291 = vadd.f32 0.0, %v1290
  %v1292 = vpop.f32.mrb[0].mxu0
  %v1293 = vadd.f32 0.0, %v1292
  %v1294 = vpop.f32.mrb[0].mxu0
  %v1295 = vadd.f32 0.0, %v1294
  %v1296 = vpop.f32.mrb[0].mxu0
  %v1297 = vadd.f32 0.0, %v1296
  %1298 = vmatprep.mubr.bf16.mxu0 0
  %1299 = vmatmul.mubr.bf16.gmra.mrb[0].mxu0 %v1231
  %v1300 = vpop.f32.mrb[0].mxu0
  %v1301 = vadd.f32 0.0, %v1300
  %v1302 = vpop.f32.mrb[0].mxu0
  %v1303 = vadd.f32 0.0, %v1302
  %v1304 = vpop.f32.mrb[0].mxu0
  %v1305 = vpop.f32.mrb[0].mxu0
  %1306 = vdwg.mxu0
  %1307 = vmatprep.subr.bf16.mxu0 %v321
  %1308 = vmatpush1.bf16.msra.mxu0 %v320
  %1309 = vmatprep.subr.bf16.mxu0 %v329
  %1310 = vmatpush1.bf16.msra.mxu0 %v328
  %1311 = vmatprep.subr.bf16.mxu0 %v337
  %1312 = vmatpush1.bf16.msra.mxu0 %v336
  %1313 = vmatprep.subr.bf16.mxu0 %v345
  %1314 = vmatpush1.bf16.msra.mxu0 %v344
  %1315 = vmatprep.subr.bf16.mxu0 %v353
  %1316 = vmatpush1.bf16.msra.mxu0 %v352
  %1317 = vmatprep.subr.bf16.mxu0 %v361
  %1318 = vmatpush1.bf16.msra.mxu0 %v360
  %1319 = vmatprep.subr.bf16.mxu0 %v369
  %1320 = vmatpush1.bf16.msra.mxu0 %v368
  %1321 = vmatprep.subr.bf16.mxu0 %v377
  %1322 = vmatpush1.bf16.msra.mxu0 %v376
  %1323 = vmatprep.subr.bf16.mxu0 0
  %1324 = vmatpush1.bf16.msra.mxu0 0
  %1325 = vmatprep.subr.bf16.mxu0 0
  %1326 = vmatpush1.bf16.msra.mxu0 0
  %1327 = vmatprep.subr.bf16.mxu0 0
  %1328 = vmatpush1.bf16.msra.mxu0 0
  %1329 = vmatprep.subr.bf16.mxu0 0
  %1330 = vmatpush1.bf16.msra.mxu0 0
  %1331 = vmatprep.subr.bf16.mxu0 0
  %1332 = vmatpush1.bf16.msra.mxu0 0
  %1333 = vmatprep.subr.bf16.mxu0 0
  %1334 = vmatpush1.bf16.msra.mxu0 0
  %1335 = vmatprep.subr.bf16.mxu0 0
  %1336 = vmatpush1.bf16.msra.mxu0 0
  %1337 = vmatprep.subr.bf16.mxu0 0
  %1338 = vmatpush1.bf16.msra.mxu0 0
  %1339 = vmatprep.mubr.bf16.mxu0 0
  %1340 = vmatmul.mubr.bf16.gmra.mrb[0].mxu0 %v1228
  %v1341 = vpop.f32.mrb[0].mxu0
  %v1342 = vadd.f32 0.0, %v1341
  %v1343 = vpop.f32.mrb[0].mxu0
  %v1344 = vadd.f32 0.0, %v1343
  %v1345 = vpop.f32.mrb[0].mxu0
  %v1346 = vadd.f32 0.0, %v1345
  %v1347 = vpop.f32.mrb[0].mxu0
  %v1348 = vadd.f32 0.0, %v1347
  %1349 = vmatprep.mubr.bf16.mxu0 0
  %1350 = vmatmul.mubr.bf16.gmra.mrb[0].mxu0 %v1229
  %v1351 = vpop.f32.mrb[0].mxu0
  %v1352 = vadd.f32 0.0, %v1351
  %v1353 = vpop.f32.mrb[0].mxu0
  %v1354 = vadd.f32 0.0, %v1353
  %v1355 = vpop.f32.mrb[0].mxu0
  %v1356 = vadd.f32 0.0, %v1355
  %v1357 = vpop.f32.mrb[0].mxu0
  %v1358 = vadd.f32 0.0, %v1357
  %1359 = vmatprep.mubr.bf16.mxu0 0
  %1360 = vmatmul.mubr.bf16.gmra.mrb[0].mxu0 %v1230
  %v1361 = vpop.f32.mrb[0].mxu0
  %v1362 = vadd.f32 0.0, %v1361
  %v1363 = vpop.f32.mrb[0].mxu0
  %v1364 = vadd.f32 0.0, %v1363
  %v1365 = vpop.f32.mrb[0].mxu0
  %v1366 = vadd.f32 0.0, %v1365
  %v1367 = vpop.f32.mrb[0].mxu0
  %v1368 = vadd.f32 0.0, %v1367
  %1369 = vmatprep.mubr.bf16.mxu0 0
  %1370 = vmatmul.mubr.bf16.gmra.mrb[0].mxu0 %v1231
  %v1371 = vpop.f32.mrb[0].mxu0
  %v1372 = vadd.f32 0.0, %v1371
  %v1373 = vpop.f32.mrb[0].mxu0
  %v1374 = vadd.f32 0.0, %v1373
  %v1375 = vpop.f32.mrb[0].mxu0
  %v1376 = vpop.f32.mrb[0].mxu0
  %1377 = vdwg.mxu0
  %1378 = vmatprep.subr.bf16.mxu0 %v323
  %1379 = vmatpush1.bf16.msra.mxu0 %v322
  %1380 = vmatprep.subr.bf16.mxu0 %v331
  %1381 = vmatpush1.bf16.msra.mxu0 %v330
  %1382 = vmatprep.subr.bf16.mxu0 %v339
  %1383 = vmatpush1.bf16.msra.mxu0 %v338
  %1384 = vmatprep.subr.bf16.mxu0 %v347
  %1385 = vmatpush1.bf16.msra.mxu0 %v346
  %1386 = vmatprep.subr.bf16.mxu0 %v355
  %1387 = vmatpush1.bf16.msra.mxu0 %v354
  %1388 = vmatprep.subr.bf16.mxu0 %v363
  %1389 = vmatpush1.bf16.msra.mxu0 %v362
  %1390 = vmatprep.subr.bf16.mxu0 %v371
  %1391 = vmatpush1.bf16.msra.mxu0 %v370
  %1392 = vmatprep.subr.bf16.mxu0 %v379
  %1393 = vmatpush1.bf16.msra.mxu0 %v378
  %1394 = vmatprep.subr.bf16.mxu0 0
  %1395 = vmatpush1.bf16.msra.mxu0 0
  %1396 = vmatprep.subr.bf16.mxu0 0
  %1397 = vmatpush1.bf16.msra.mxu0 0
  %1398 = vmatprep.subr.bf16.mxu0 0
  %1399 = vmatpush1.bf16.msra.mxu0 0
  %1400 = vmatprep.subr.bf16.mxu0 0
  %1401 = vmatpush1.bf16.msra.mxu0 0
  %1402 = vmatprep.subr.bf16.mxu0 0
  %1403 = vmatpush1.bf16.msra.mxu0 0
  %1404 = vmatprep.subr.bf16.mxu0 0
  %1405 = vmatpush1.bf16.msra.mxu0 0
  %1406 = vmatprep.subr.bf16.mxu0 0
  %1407 = vmatpush1.bf16.msra.mxu0 0
  %1408 = vmatprep.subr.bf16.mxu0 0
  %1409 = vmatpush1.bf16.msra.mxu0 0
  %1410 = vmatprep.mubr.bf16.mxu0 0
  %1411 = vmatmul.mubr.bf16.gmra.mrb[0].mxu0 %v1228
  %v1412 = vpop.f32.mrb[0].mxu0
  %v1413 = vadd.f32 0.0, %v1412
  %v1414 = vpop.f32.mrb[0].mxu0
  %v1415 = vadd.f32 0.0, %v1414
  %v1416 = vpop.f32.mrb[0].mxu0
  %v1417 = vadd.f32 0.0, %v1416
  %v1418 = vpop.f32.mrb[0].mxu0
  %v1419 = vadd.f32 0.0, %v1418
  %1420 = vmatprep.mubr.bf16.mxu0 0
  %1421 = vmatmul.mubr.bf16.gmra.mrb[0].mxu0 %v1229
  %v1422 = vpop.f32.mrb[0].mxu0
  %v1423 = vadd.f32 0.0, %v1422
  %v1424 = vpop.f32.mrb[0].mxu0
  %v1425 = vadd.f32 0.0, %v1424
  %v1426 = vpop.f32.mrb[0].mxu0
  %v1427 = vadd.f32 0.0, %v1426
  %v1428 = vpop.f32.mrb[0].mxu0
  %v1429 = vadd.f32 0.0, %v1428
  %1430 = vmatprep.mubr.bf16.mxu0 0
  %1431 = vmatmul.mubr.bf16.gmra.mrb[0].mxu0 %v1230
  %v1432 = vpop.f32.mrb[0].mxu0
  %v1433 = vadd.f32 0.0, %v1432
  %v1434 = vpop.f32.mrb[0].mxu0
  %v1435 = vadd.f32 0.0, %v1434
  %v1436 = vpop.f32.mrb[0].mxu0
  %v1437 = vadd.f32 0.0, %v1436
  %v1438 = vpop.f32.mrb[0].mxu0
  %v1439 = vadd.f32 0.0, %v1438
  %1440 = vmatprep.mubr.bf16.mxu0 0
  %1441 = vmatmul.mubr.bf16.gmra.mrb[0].mxu0 %v1231
  %v1442 = vpop.f32.mrb[0].mxu0
  %v1443 = vadd.f32 0.0, %v1442
  %v1444 = vpop.f32.mrb[0].mxu0
  %v1445 = vadd.f32 0.0, %v1444
  %v1446 = vpop.f32.mrb[0].mxu0
  %v1447 = vpop.f32.mrb[0].mxu0
  %1448 = vdwg.mxu0
  %1449 = vmatprep.subr.bf16.mxu0 %v325
  %1450 = vmatpush1.bf16.msra.mxu0 %v324
  %1451 = vmatprep.subr.bf16.mxu0 %v333
  %1452 = vmatpush1.bf16.msra.mxu0 %v332
  %1453 = vmatprep.subr.bf16.mxu0 %v341
  %1454 = vmatpush1.bf16.msra.mxu0 %v340
  %1455 = vmatprep.subr.bf16.mxu0 %v349
  %1456 = vmatpush1.bf16.msra.mxu0 %v348
  %1457 = vmatprep.subr.bf16.mxu0 %v357
  %1458 = vmatpush1.bf16.msra.mxu0 %v356
  %1459 = vmatprep.subr.bf16.mxu0 %v365
  %1460 = vmatpush1.bf16.msra.mxu0 %v364
  %1461 = vmatprep.subr.bf16.mxu0 %v373
  %1462 = vmatpush1.bf16.msra.mxu0 %v372
  %1463 = vmatprep.subr.bf16.mxu0 %v381
  %1464 = vmatpush1.bf16.msra.mxu0 %v380
  %1465 = vmatprep.subr.bf16.mxu0 0
  %1466 = vmatpush1.bf16.msra.mxu0 0
  %1467 = vmatprep.subr.bf16.mxu0 0
  %1468 = vmatpush1.bf16.msra.mxu0 0
  %1469 = vmatprep.subr.bf16.mxu0 0
  %1470 = vmatpush1.bf16.msra.mxu0 0
  %1471 = vmatprep.subr.bf16.mxu0 0
  %1472 = vmatpush1.bf16.msra.mxu0 0
  %1473 = vmatprep.subr.bf16.mxu0 0
  %1474 = vmatpush1.bf16.msra.mxu0 0
  %1475 = vmatprep.subr.bf16.mxu0 0
  %1476 = vmatpush1.bf16.msra.mxu0 0
  %1477 = vmatprep.subr.bf16.mxu0 0
  %1478 = vmatpush1.bf16.msra.mxu0 0
  %1479 = vmatprep.subr.bf16.mxu0 0
  %1480 = vmatpush1.bf16.msra.mxu0 0
  %1481 = vmatprep.mubr.bf16.mxu0 0
  %1482 = vmatmul.mubr.bf16.gmra.mrb[0].mxu0 %v1228
  %v1483 = vpop.f32.mrb[0].mxu0
  %v1484 = vadd.f32 0.0, %v1483
  %v1485 = vpop.f32.mrb[0].mxu0
  %v1486 = vadd.f32 0.0, %v1485
  %v1487 = vpop.f32.mrb[0].mxu0
  %v1488 = vadd.f32 0.0, %v1487
  %v1489 = vpop.f32.mrb[0].mxu0
  %v1490 = vadd.f32 0.0, %v1489
  %1491 = vmatprep.mubr.bf16.mxu0 0
  %1492 = vmatmul.mubr.bf16.gmra.mrb[0].mxu0 %v1229
  %v1493 = vpop.f32.mrb[0].mxu0
  %v1494 = vadd.f32 0.0, %v1493
  %v1495 = vpop.f32.mrb[0].mxu0
  %v1496 = vadd.f32 0.0, %v1495
  %v1497 = vpop.f32.mrb[0].mxu0
  %v1498 = vadd.f32 0.0, %v1497
  %v1499 = vpop.f32.mrb[0].mxu0
  %v1500 = vadd.f32 0.0, %v1499
  %1501 = vmatprep.mubr.bf16.mxu0 0
  %1502 = vmatmul.mubr.bf16.gmra.mrb[0].mxu0 %v1230
  %v1503 = vpop.f32.mrb[0].mxu0
  %v1504 = vadd.f32 0.0, %v1503
  %v1505 = vpop.f32.mrb[0].mxu0
  %v1506 = vadd.f32 0.0, %v1505
  %v1507 = vpop.f32.mrb[0].mxu0
  %v1508 = vadd.f32 0.0, %v1507
  %v1509 = vpop.f32.mrb[0].mxu0
  %v1510 = vadd.f32 0.0, %v1509
  %1511 = vmatprep.mubr.bf16.mxu0 0
  %1512 = vmatmul.mubr.bf16.gmra.mrb[0].mxu0 %v1231
  %v1513 = vpop.f32.mrb[0].mxu0
  %v1514 = vadd.f32 0.0, %v1513
  %v1515 = vpop.f32.mrb[0].mxu0
  %v1516 = vadd.f32 0.0, %v1515
  %v1517 = vpop.f32.mrb[0].mxu0
  %v1518 = vpop.f32.mrb[0].mxu0
  %1519 = vdwg.mxu0
  %s1520 = scalar_lea.vmem %s0, 84
  %v1521 = vld [vmem:[%s1520] sm:$0xf]
  %v1522 = vld [vmem:[%s1520 + $0x4] sm:$0xf]
  %v1523 = vld [vmem:[%s1520 + $0x8] sm:$0xf]
  %v1524 = vld [vmem:[%s1520 + $0xc] sm:$0xf]
  %v1525 = vld [vmem:[%s1520 + $0x10] sm:$0xf]
  %v1526 = vld [vmem:[%s1520 + $0x14] sm:$0xf]
  %v1527 = vld [vmem:[%s1520 + $0x18] sm:$0xf]
  %v1535 = vunpack.c.l.b16 %v1521
  %v1536 = vunpack.c.l.b16 %v1522
  %v1537 = vunpack.c.l.b16 %v1523
  %v1538 = vunpack.c.l.b16 %v1524
  %v1539 = vunpack.c.l.b16 %v1525
  %v1540 = vunpack.c.l.b16 %v1526
  %v1541 = vunpack.c.l.b16 %v1527
  %v1542 = vpack.c.b16 %v1536, %v1535
  %v1543 = vpack.c.b16 %v1538, %v1537
  %v1544 = vpack.c.b16 %v1540, %v1539
  %v1545 = vpack.c.b16 %v1541, %v1541
  %1550 = vmatprep.subr.bf16.mxu0 %v319
  %1551 = vmatpush1.bf16.msra.mxu0 %v318
  %1552 = vmatprep.subr.bf16.mxu0 %v327
  %1553 = vmatpush1.bf16.msra.mxu0 %v326
  %1554 = vmatprep.subr.bf16.mxu0 %v335
  %1555 = vmatpush1.bf16.msra.mxu0 %v334
  %1556 = vmatprep.subr.bf16.mxu0 %v343
  %1557 = vmatpush1.bf16.msra.mxu0 %v342
  %1558 = vmatprep.subr.bf16.mxu0 %v351
  %1559 = vmatpush1.bf16.msra.mxu0 %v350
  %1560 = vmatprep.subr.bf16.mxu0 %v359
  %1561 = vmatpush1.bf16.msra.mxu0 %v358
  %1562 = vmatprep.subr.bf16.mxu0 %v367
  %1563 = vmatpush1.bf16.msra.mxu0 %v366
  %1564 = vmatprep.subr.bf16.mxu0 %v375
  %1565 = vmatpush1.bf16.msra.mxu0 %v374
  %1566 = vmatprep.subr.bf16.mxu0 0
  %1567 = vmatpush1.bf16.msra.mxu0 0
  %1568 = vmatprep.subr.bf16.mxu0 0
  %1569 = vmatpush1.bf16.msra.mxu0 0
  %1570 = vmatprep.subr.bf16.mxu0 0
  %1571 = vmatpush1.bf16.msra.mxu0 0
  %1572 = vmatprep.subr.bf16.mxu0 0
  %1573 = vmatpush1.bf16.msra.mxu0 0
  %1574 = vmatprep.subr.bf16.mxu0 0
  %1575 = vmatpush1.bf16.msra.mxu0 0
  %1576 = vmatprep.subr.bf16.mxu0 0
  %1577 = vmatpush1.bf16.msra.mxu0 0
  %1578 = vmatprep.subr.bf16.mxu0 0
  %1579 = vmatpush1.bf16.msra.mxu0 0
  %1580 = vmatprep.subr.bf16.mxu0 0
  %1581 = vmatpush1.bf16.msra.mxu0 0
  %1582 = vmatprep.mubr.bf16.mxu0 0
  %1583 = vmatmul.mubr.bf16.gmra.mrb[0].mxu0 %v1542
  %v1584 = vpop.f32.mrb[0].mxu0
  %v1585 = vadd.f32 0.0, %v1584
  %v1586 = vpop.f32.mrb[0].mxu0
  %v1587 = vadd.f32 0.0, %v1586
  %v1588 = vpop.f32.mrb[0].mxu0
  %v1589 = vadd.f32 0.0, %v1588
  %v1590 = vpop.f32.mrb[0].mxu0
  %v1591 = vadd.f32 0.0, %v1590
  %1592 = vmatprep.mubr.bf16.mxu0 0
  %1593 = vmatmul.mubr.bf16.gmra.mrb[0].mxu0 %v1543
  %v1594 = vpop.f32.mrb[0].mxu0
  %v1595 = vadd.f32 0.0, %v1594
  %v1596 = vpop.f32.mrb[0].mxu0
  %v1597 = vadd.f32 0.0, %v1596
  %v1598 = vpop.f32.mrb[0].mxu0
  %v1599 = vadd.f32 0.0, %v1598
  %v1600 = vpop.f32.mrb[0].mxu0
  %v1601 = vadd.f32 0.0, %v1600
  %1602 = vmatprep.mubr.bf16.mxu0 0
  %1603 = vmatmul.mubr.bf16.gmra.mrb[0].mxu0 %v1544
  %v1604 = vpop.f32.mrb[0].mxu0
  %v1605 = vadd.f32 0.0, %v1604
  %v1606 = vpop.f32.mrb[0].mxu0
  %v1607 = vadd.f32 0.0, %v1606
  %v1608 = vpop.f32.mrb[0].mxu0
  %v1609 = vadd.f32 0.0, %v1608
  %v1610 = vpop.f32.mrb[0].mxu0
  %v1611 = vadd.f32 0.0, %v1610
  %1612 = vmatprep.mubr.bf16.mxu0 0
  %1613 = vmatmul.mubr.bf16.gmra.mrb[0].mxu0 %v1545
  %v1614 = vpop.f32.mrb[0].mxu0
  %v1615 = vadd.f32 0.0, %v1614
  %v1616 = vpop.f32.mrb[0].mxu0
  %v1617 = vadd.f32 0.0, %v1616
  %v1618 = vpop.f32.mrb[0].mxu0
  %v1619 = vpop.f32.mrb[0].mxu0
  %1620 = vdwg.mxu0
  %1621 = vmatprep.subr.bf16.mxu0 %v321
  %1622 = vmatpush1.bf16.msra.mxu0 %v320
  %1623 = vmatprep.subr.bf16.mxu0 %v329
  %1624 = vmatpush1.bf16.msra.mxu0 %v328
  %1625 = vmatprep.subr.bf16.mxu0 %v337
  %1626 = vmatpush1.bf16.msra.mxu0 %v336
  %1627 = vmatprep.subr.bf16.mxu0 %v345
  %1628 = vmatpush1.bf16.msra.mxu0 %v344
  %1629 = vmatprep.subr.bf16.mxu0 %v353
  %1630 = vmatpush1.bf16.msra.mxu0 %v352
  %1631 = vmatprep.subr.bf16.mxu0 %v361
  %1632 = vmatpush1.bf16.msra.mxu0 %v360
  %1633 = vmatprep.subr.bf16.mxu0 %v369
  %1634 = vmatpush1.bf16.msra.mxu0 %v368
  %1635 = vmatprep.subr.bf16.mxu0 %v377
  %1636 = vmatpush1.bf16.msra.mxu0 %v376
  %1637 = vmatprep.subr.bf16.mxu0 0
  %1638 = vmatpush1.bf16.msra.mxu0 0
  %1639 = vmatprep.subr.bf16.mxu0 0
  %1640 = vmatpush1.bf16.msra.mxu0 0
  %1641 = vmatprep.subr.bf16.mxu0 0
  %1642 = vmatpush1.bf16.msra.mxu0 0
  %1643 = vmatprep.subr.bf16.mxu0 0
  %1644 = vmatpush1.bf16.msra.mxu0 0
  %1645 = vmatprep.subr.bf16.mxu0 0
  %1646 = vmatpush1.bf16.msra.mxu0 0
  %1647 = vmatprep.subr.bf16.mxu0 0
  %1648 = vmatpush1.bf16.msra.mxu0 0
  %1649 = vmatprep.subr.bf16.mxu0 0
  %1650 = vmatpush1.bf16.msra.mxu0 0
  %1651 = vmatprep.subr.bf16.mxu0 0
  %1652 = vmatpush1.bf16.msra.mxu0 0
  %1653 = vmatprep.mubr.bf16.mxu0 0
  %1654 = vmatmul.mubr.bf16.gmra.mrb[0].mxu0 %v1542
  %v1655 = vpop.f32.mrb[0].mxu0
  %v1656 = vadd.f32 0.0, %v1655
  %v1657 = vpop.f32.mrb[0].mxu0
  %v1658 = vadd.f32 0.0, %v1657
  %v1659 = vpop.f32.mrb[0].mxu0
  %v1660 = vadd.f32 0.0, %v1659
  %v1661 = vpop.f32.mrb[0].mxu0
  %v1662 = vadd.f32 0.0, %v1661
  %1663 = vmatprep.mubr.bf16.mxu0 0
  %1664 = vmatmul.mubr.bf16.gmra.mrb[0].mxu0 %v1543
  %v1665 = vpop.f32.mrb[0].mxu0
  %v1666 = vadd.f32 0.0, %v1665
  %v1667 = vpop.f32.mrb[0].mxu0
  %v1668 = vadd.f32 0.0, %v1667
  %v1669 = vpop.f32.mrb[0].mxu0
  %v1670 = vadd.f32 0.0, %v1669
  %v1671 = vpop.f32.mrb[0].mxu0
  %v1672 = vadd.f32 0.0, %v1671
  %1673 = vmatprep.mubr.bf16.mxu0 0
  %1674 = vmatmul.mubr.bf16.gmra.mrb[0].mxu0 %v1544
  %v1675 = vpop.f32.mrb[0].mxu0
  %v1676 = vadd.f32 0.0, %v1675
  %v1677 = vpop.f32.mrb[0].mxu0
  %v1678 = vadd.f32 0.0, %v1677
  %v1679 = vpop.f32.mrb[0].mxu0
  %v1680 = vadd.f32 0.0, %v1679
  %v1681 = vpop.f32.mrb[0].mxu0
  %v1682 = vadd.f32 0.0, %v1681
  %1683 = vmatprep.mubr.bf16.mxu0 0
  %1684 = vmatmul.mubr.bf16.gmra.mrb[0].mxu0 %v1545
  %v1685 = vpop.f32.mrb[0].mxu0
  %v1686 = vadd.f32 0.0, %v1685
  %v1687 = vpop.f32.mrb[0].mxu0
  %v1688 = vadd.f32 0.0, %v1687
  %v1689 = vpop.f32.mrb[0].mxu0
  %v1690 = vpop.f32.mrb[0].mxu0
  %1691 = vdwg.mxu0
  %1692 = vmatprep.subr.bf16.mxu0 %v323
  %1693 = vmatpush1.bf16.msra.mxu0 %v322
  %1694 = vmatprep.subr.bf16.mxu0 %v331
  %1695 = vmatpush1.bf16.msra.mxu0 %v330
  %1696 = vmatprep.subr.bf16.mxu0 %v339
  %1697 = vmatpush1.bf16.msra.mxu0 %v338
  %1698 = vmatprep.subr.bf16.mxu0 %v347
  %1699 = vmatpush1.bf16.msra.mxu0 %v346
  %1700 = vmatprep.subr.bf16.mxu0 %v355
  %1701 = vmatpush1.bf16.msra.mxu0 %v354
  %1702 = vmatprep.subr.bf16.mxu0 %v363
  %1703 = vmatpush1.bf16.msra.mxu0 %v362
  %1704 = vmatprep.subr.bf16.mxu0 %v371
  %1705 = vmatpush1.bf16.msra.mxu0 %v370
  %1706 = vmatprep.subr.bf16.mxu0 %v379
  %1707 = vmatpush1.bf16.msra.mxu0 %v378
  %1708 = vmatprep.subr.bf16.mxu0 0
  %1709 = vmatpush1.bf16.msra.mxu0 0
  %1710 = vmatprep.subr.bf16.mxu0 0
  %1711 = vmatpush1.bf16.msra.mxu0 0
  %1712 = vmatprep.subr.bf16.mxu0 0
  %1713 = vmatpush1.bf16.msra.mxu0 0
  %1714 = vmatprep.subr.bf16.mxu0 0
  %1715 = vmatpush1.bf16.msra.mxu0 0
  %1716 = vmatprep.subr.bf16.mxu0 0
  %1717 = vmatpush1.bf16.msra.mxu0 0
  %1718 = vmatprep.subr.bf16.mxu0 0
  %1719 = vmatpush1.bf16.msra.mxu0 0
  %1720 = vmatprep.subr.bf16.mxu0 0
  %1721 = vmatpush1.bf16.msra.mxu0 0
  %1722 = vmatprep.subr.bf16.mxu0 0
  %1723 = vmatpush1.bf16.msra.mxu0 0
  %1724 = vmatprep.mubr.bf16.mxu0 0
  %1725 = vmatmul.mubr.bf16.gmra.mrb[0].mxu0 %v1542
  %v1726 = vpop.f32.mrb[0].mxu0
  %v1727 = vadd.f32 0.0, %v1726
  %v1728 = vpop.f32.mrb[0].mxu0
  %v1729 = vadd.f32 0.0, %v1728
  %v1730 = vpop.f32.mrb[0].mxu0
  %v1731 = vadd.f32 0.0, %v1730
  %v1732 = vpop.f32.mrb[0].mxu0
  %v1733 = vadd.f32 0.0, %v1732
  %1734 = vmatprep.mubr.bf16.mxu0 0
  %1735 = vmatmul.mubr.bf16.gmra.mrb[0].mxu0 %v1543
  %v1736 = vpop.f32.mrb[0].mxu0
  %v1737 = vadd.f32 0.0, %v1736
  %v1738 = vpop.f32.mrb[0].mxu0
  %v1739 = vadd.f32 0.0, %v1738
  %v1740 = vpop.f32.mrb[0].mxu0
  %v1741 = vadd.f32 0.0, %v1740
  %v1742 = vpop.f32.mrb[0].mxu0
  %v1743 = vadd.f32 0.0, %v1742
  %1744 = vmatprep.mubr.bf16.mxu0 0
  %1745 = vmatmul.mubr.bf16.gmra.mrb[0].mxu0 %v1544
  %v1746 = vpop.f32.mrb[0].mxu0
  %v1747 = vadd.f32 0.0, %v1746
  %v1748 = vpop.f32.mrb[0].mxu0
  %v1749 = vadd.f32 0.0, %v1748
  %v1750 = vpop.f32.mrb[0].mxu0
  %v1751 = vadd.f32 0.0, %v1750
  %v1752 = vpop.f32.mrb[0].mxu0
  %v1753 = vadd.f32 0.0, %v1752
  %1754 = vmatprep.mubr.bf16.mxu0 0
  %1755 = vmatmul.mubr.bf16.gmra.mrb[0].mxu0 %v1545
  %v1756 = vpop.f32.mrb[0].mxu0
  %v1757 = vadd.f32 0.0, %v1756
  %v1758 = vpop.f32.mrb[0].mxu0
  %v1759 = vadd.f32 0.0, %v1758
  %v1760 = vpop.f32.mrb[0].mxu0
  %v1761 = vpop.f32.mrb[0].mxu0
  %1762 = vdwg.mxu0
  %1763 = vmatprep.subr.bf16.mxu0 %v325
  %1764 = vmatpush1.bf16.msra.mxu0 %v324
  %1765 = vmatprep.subr.bf16.mxu0 %v333
  %1766 = vmatpush1.bf16.msra.mxu0 %v332
  %1767 = vmatprep.subr.bf16.mxu0 %v341
  %1768 = vmatpush1.bf16.msra.mxu0 %v340
  %1769 = vmatprep.subr.bf16.mxu0 %v349
  %1770 = vmatpush1.bf16.msra.mxu0 %v348
  %1771 = vmatprep.subr.bf16.mxu0 %v357
  %1772 = vmatpush1.bf16.msra.mxu0 %v356
  %1773 = vmatprep.subr.bf16.mxu0 %v365
  %1774 = vmatpush1.bf16.msra.mxu0 %v364
  %1775 = vmatprep.subr.bf16.mxu0 %v373
  %1776 = vmatpush1.bf16.msra.mxu0 %v372
  %1777 = vmatprep.subr.bf16.mxu0 %v381
  %1778 = vmatpush1.bf16.msra.mxu0 %v380
  %1779 = vmatprep.subr.bf16.mxu0 0
  %1780 = vmatpush1.bf16.msra.mxu0 0
  %1781 = vmatprep.subr.bf16.mxu0 0
  %1782 = vmatpush1.bf16.msra.mxu0 0
  %1783 = vmatprep.subr.bf16.mxu0 0
  %1784 = vmatpush1.bf16.msra.mxu0 0
  %1785 = vmatprep.subr.bf16.mxu0 0
  %1786 = vmatpush1.bf16.msra.mxu0 0
  %1787 = vmatprep.subr.bf16.mxu0 0
  %1788 = vmatpush1.bf16.msra.mxu0 0
  %1789 = vmatprep.subr.bf16.mxu0 0
  %1790 = vmatpush1.bf16.msra.mxu0 0
  %1791 = vmatprep.subr.bf16.mxu0 0
  %1792 = vmatpush1.bf16.msra.mxu0 0
  %1793 = vmatprep.subr.bf16.mxu0 0
  %1794 = vmatpush1.bf16.msra.mxu0 0
  %1795 = vmatprep.mubr.bf16.mxu0 0
  %1796 = vmatmul.mubr.bf16.gmra.mrb[0].mxu0 %v1542
  %v1797 = vpop.f32.mrb[0].mxu0
  %v1798 = vadd.f32 0.0, %v1797
  %v1799 = vpop.f32.mrb[0].mxu0
  %v1800 = vadd.f32 0.0, %v1799
  %v1801 = vpop.f32.mrb[0].mxu0
  %v1802 = vadd.f32 0.0, %v1801
  %v1803 = vpop.f32.mrb[0].mxu0
  %v1804 = vadd.f32 0.0, %v1803
  %1805 = vmatprep.mubr.bf16.mxu0 0
  %1806 = vmatmul.mubr.bf16.gmra.mrb[0].mxu0 %v1543
  %v1807 = vpop.f32.mrb[0].mxu0
  %v1808 = vadd.f32 0.0, %v1807
  %v1809 = vpop.f32.mrb[0].mxu0
  %v1810 = vadd.f32 0.0, %v1809
  %v1811 = vpop.f32.mrb[0].mxu0
  %v1812 = vadd.f32 0.0, %v1811
  %v1813 = vpop.f32.mrb[0].mxu0
  %v1814 = vadd.f32 0.0, %v1813
  %1815 = vmatprep.mubr.bf16.mxu0 0
  %1816 = vmatmul.mubr.bf16.gmra.mrb[0].mxu0 %v1544
  %v1817 = vpop.f32.mrb[0].mxu0
  %v1818 = vadd.f32 0.0, %v1817
  %v1819 = vpop.f32.mrb[0].mxu0
  %v1820 = vadd.f32 0.0, %v1819
  %v1821 = vpop.f32.mrb[0].mxu0
  %v1822 = vadd.f32 0.0, %v1821
  %v1823 = vpop.f32.mrb[0].mxu0
  %v1824 = vadd.f32 0.0, %v1823
  %1825 = vmatprep.mubr.bf16.mxu0 0
  %1826 = vmatmul.mubr.bf16.gmra.mrb[0].mxu0 %v1545
  %v1827 = vpop.f32.mrb[0].mxu0
  %v1828 = vadd.f32 0.0, %v1827
  %v1829 = vpop.f32.mrb[0].mxu0
  %v1830 = vadd.f32 0.0, %v1829
  %v1831 = vpop.f32.mrb[0].mxu0
  %v1832 = vpop.f32.mrb[0].mxu0
  %1833 = vdwg.mxu0
  %v1834 = vmax.f32 %v1271, %v1585
  %v1835 = vmax.f32 %v1273, %v1587
  %v1836 = vmax.f32 %v1342, %v1656
  %v1837 = vmax.f32 %v1344, %v1658
  %v1838 = vmax.f32 %v1413, %v1727
  %v1839 = vmax.f32 %v1415, %v1729
  %v1840 = vmax.f32 %v1484, %v1798
  %v1841 = vmax.f32 %v1486, %v1800
  %v1842 = vmax.f32 %v1275, %v1589
  %v1843 = vmax.f32 %v1277, %v1591
  %v1844 = vmax.f32 %v1346, %v1660
  %v1845 = vmax.f32 %v1348, %v1662
  %v1846 = vmax.f32 %v1417, %v1731
  %v1847 = vmax.f32 %v1419, %v1733
  %v1848 = vmax.f32 %v1488, %v1802
  %v1849 = vmax.f32 %v1490, %v1804
  %v1850 = vmax.f32 %v1281, %v1595
  %v1851 = vmax.f32 %v1283, %v1597
  %v1852 = vmax.f32 %v1352, %v1666
  %v1853 = vmax.f32 %v1354, %v1668
  %v1854 = vmax.f32 %v1423, %v1737
  %v1855 = vmax.f32 %v1425, %v1739
  %v1856 = vmax.f32 %v1494, %v1808
  %v1857 = vmax.f32 %v1496, %v1810
  %v1858 = vmax.f32 %v1285, %v1599
  %v1859 = vmax.f32 %v1287, %v1601
  %v1860 = vmax.f32 %v1356, %v1670
  %v1861 = vmax.f32 %v1358, %v1672
  %v1862 = vmax.f32 %v1427, %v1741
  %v1863 = vmax.f32 %v1429, %v1743
  %v1864 = vmax.f32 %v1498, %v1812
  %v1865 = vmax.f32 %v1500, %v1814
  %v1866 = vmax.f32 %v1291, %v1605
  %v1867 = vmax.f32 %v1293, %v1607
  %v1868 = vmax.f32 %v1362, %v1676
  %v1869 = vmax.f32 %v1364, %v1678
  %v1870 = vmax.f32 %v1433, %v1747
  %v1871 = vmax.f32 %v1435, %v1749
  %v1872 = vmax.f32 %v1504, %v1818
  %v1873 = vmax.f32 %v1506, %v1820
  %v1874 = vmax.f32 %v1295, %v1609
  %v1875 = vmax.f32 %v1297, %v1611
  %v1876 = vmax.f32 %v1366, %v1680
  %v1877 = vmax.f32 %v1368, %v1682
  %v1878 = vmax.f32 %v1437, %v1751
  %v1879 = vmax.f32 %v1439, %v1753
  %v1880 = vmax.f32 %v1508, %v1822
  %v1881 = vmax.f32 %v1510, %v1824
  %v1882 = vmax.f32 %v1301, %v1615
  %v1883 = vmax.f32 %v1303, %v1617
  %v1884 = vmax.f32 %v1372, %v1686
  %v1885 = vmax.f32 %v1374, %v1688
  %v1886 = vmax.f32 %v1443, %v1757
  %v1887 = vmax.f32 %v1445, %v1759
  %v1888 = vmax.f32 %v1514, %v1828
  %v1889 = vmax.f32 %v1516, %v1830
  %v1890 = vmax.f32 %v1834, %v1838
  %v1891 = vmax.f32 %v1835, %v1839
  %v1892 = vmax.f32 %v1836, %v1840
  %v1893 = vmax.f32 %v1837, %v1841
  %v1894 = vmax.f32 %v1842, %v1846
  %v1895 = vmax.f32 %v1843, %v1847
  %v1896 = vmax.f32 %v1844, %v1848
  %v1897 = vmax.f32 %v1845, %v1849
  %v1898 = vmax.f32 %v1850, %v1854
  %v1899 = vmax.f32 %v1851, %v1855
  %v1900 = vmax.f32 %v1852, %v1856
  %v1901 = vmax.f32 %v1853, %v1857
  %v1902 = vmax.f32 %v1858, %v1862
  %v1903 = vmax.f32 %v1859, %v1863
  %v1904 = vmax.f32 %v1860, %v1864
  %v1905 = vmax.f32 %v1861, %v1865
  %v1906 = vmax.f32 %v1866, %v1870
  %v1907 = vmax.f32 %v1867, %v1871
  %v1908 = vmax.f32 %v1868, %v1872
  %v1909 = vmax.f32 %v1869, %v1873
  %v1910 = vmax.f32 %v1874, %v1878
  %v1911 = vmax.f32 %v1875, %v1879
  %v1912 = vmax.f32 %v1876, %v1880
  %v1913 = vmax.f32 %v1877, %v1881
  %v1914 = vmax.f32 %v1882, %v1886
  %v1915 = vmax.f32 %v1883, %v1887
  %v1916 = vmax.f32 %v1884, %v1888
  %v1917 = vmax.f32 %v1885, %v1889
  %v1918 = vadd.f32 %v1890, %v1133
  %v1919 = vadd.f32 %v1891, %v1137
  %v1920 = vadd.f32 %v1892, %v1141
  %v1921 = vadd.f32 %v1893, %v1145
  %v1922 = vadd.f32 %v1894, %v1133
  %v1923 = vadd.f32 %v1895, %v1137
  %v1924 = vadd.f32 %v1896, %v1141
  %v1925 = vadd.f32 %v1897, %v1145
  %v1926 = vadd.f32 %v1898, %v1133
  %v1927 = vadd.f32 %v1899, %v1137
  %v1928 = vadd.f32 %v1900, %v1141
  %v1929 = vadd.f32 %v1901, %v1145
  %v1930 = vadd.f32 %v1902, %v1133
  %v1931 = vadd.f32 %v1903, %v1137
  %v1932 = vadd.f32 %v1904, %v1141
  %v1933 = vadd.f32 %v1905, %v1145
  %v1934 = vadd.f32 %v1906, %v1133
  %v1935 = vadd.f32 %v1907, %v1137
  %v1936 = vadd.f32 %v1908, %v1141
  %v1937 = vadd.f32 %v1909, %v1145
  %v1938 = vadd.f32 %v1910, %v1133
  %v1939 = vadd.f32 %v1911, %v1137
  %v1940 = vadd.f32 %v1912, %v1141
  %v1941 = vadd.f32 %v1913, %v1145
  %v1942 = vadd.f32 %v1914, %v1133
  %v1943 = vadd.f32 %v1915, %v1137
  %v1944 = vadd.f32 %v1916, %v1141
  %v1945 = vadd.f32 %v1917, %v1145
  %v1946 = vmax.f32 %v1918, 0.0
  %v1947 = vmax.f32 %v1919, 0.0
  %v1948 = vmax.f32 %v1920, 0.0
  %v1949 = vmax.f32 %v1921, 0.0
  %v1950 = vmax.f32 %v1922, 0.0
  %v1951 = vmax.f32 %v1923, 0.0
  %v1952 = vmax.f32 %v1924, 0.0
  %v1953 = vmax.f32 %v1925, 0.0
  %v1954 = vmax.f32 %v1926, 0.0
  %v1955 = vmax.f32 %v1927, 0.0
  %v1956 = vmax.f32 %v1928, 0.0
  %v1957 = vmax.f32 %v1929, 0.0
  %v1958 = vmax.f32 %v1930, 0.0
  %v1959 = vmax.f32 %v1931, 0.0
  %v1960 = vmax.f32 %v1932, 0.0
  %v1961 = vmax.f32 %v1933, 0.0
  %v1962 = vmax.f32 %v1934, 0.0
  %v1963 = vmax.f32 %v1935, 0.0
  %v1964 = vmax.f32 %v1936, 0.0
  %v1965 = vmax.f32 %v1937, 0.0
  %v1966 = vmax.f32 %v1938, 0.0
  %v1967 = vmax.f32 %v1939, 0.0
  %v1968 = vmax.f32 %v1940, 0.0
  %v1969 = vmax.f32 %v1941, 0.0
  %v1970 = vmax.f32 %v1942, 0.0
  %v1971 = vmax.f32 %v1943, 0.0
  %v1972 = vmax.f32 %v1944, 0.0
  %v1973 = vmax.f32 %v1945, 0.0
  %v1974 = vpack.c.bf16 %v1946, 0.0
  %v1975 = vpack.c.bf16 %v1947, 0.0
  %v1976 = vpack.c.bf16 %v1948, 0.0
  %v1977 = vpack.c.bf16 %v1949, 0.0
  %v1978 = vpack.c.bf16 %v1954, %v1950
  %v1979 = vpack.c.bf16 %v1955, %v1951
  %v1980 = vpack.c.bf16 %v1956, %v1952
  %v1981 = vpack.c.bf16 %v1957, %v1953
  %v1982 = vpack.c.bf16 %v1962, %v1958
  %v1983 = vpack.c.bf16 %v1963, %v1959
  %v1984 = vpack.c.bf16 %v1964, %v1960
  %v1985 = vpack.c.bf16 %v1965, %v1961
  %v1986 = vpack.c.bf16 %v1966, %v1966
  %v1987 = vpack.c.bf16 %v1967, %v1967
  %v1988 = vpack.c.bf16 %v1968, %v1968
  %v1989 = vpack.c.bf16 %v1969, %v1969
  %v1990 = vpack.c.bf16 %v1182, %v1178
  %v1991 = vpack.c.bf16 %v1183, %v1179
  %v1992 = vpack.c.bf16 %v1184, %v1180
  %v1993 = vpack.c.bf16 %v1185, %v1181
  %v1994 = vpack.c.bf16 %v1190, %v1186
  %v1995 = vpack.c.bf16 %v1191, %v1187
  %v1996 = vpack.c.bf16 %v1192, %v1188
  %v1997 = vpack.c.bf16 %v1193, %v1189
  %v1998 = vpack.c.bf16 %v1198, %v1194
  %v1999 = vpack.c.bf16 %v1199, %v1195
  %v2000 = vpack.c.bf16 %v1200, %v1196
  %v2001 = vpack.c.bf16 %v1201, %v1197
  %v2002 = vpack.c.bf16 %v1202, %v1202
  %v2003 = vpack.c.bf16 %v1203, %v1203
  %v2004 = vpack.c.bf16 %v1204, %v1204
  %v2005 = vpack.c.bf16 %v1205, %v1205
  %v2006 = vpack.c.bf16 %v1950, %v1946
  %v2007 = vpack.c.bf16 %v1951, %v1947
  %v2008 = vpack.c.bf16 %v1952, %v1948
  %v2009 = vpack.c.bf16 %v1953, %v1949
  %v2010 = vpack.c.bf16 %v1958, %v1954
  %v2011 = vpack.c.bf16 %v1959, %v1955
  %v2012 = vpack.c.bf16 %v1960, %v1956
  %v2013 = vpack.c.bf16 %v1961, %v1957
  %v2014 = vpack.c.bf16 %v1966, %v1962
  %v2015 = vpack.c.bf16 %v1967, %v1963
  %v2016 = vpack.c.bf16 %v1968, %v1964
  %v2017 = vpack.c.bf16 %v1969, %v1965
  %v2018 = vpack.c.bf16 %v1970, %v1970
  %v2019 = vpack.c.bf16 %v1971, %v1971
  %v2020 = vpack.c.bf16 %v1972, %v1972
  %v2021 = vpack.c.bf16 %v1973, %v1973
  %v2022 = vpack.c.bf16 %v1186, %v1182
  %v2023 = vpack.c.bf16 %v1187, %v1183
  %v2024 = vpack.c.bf16 %v1188, %v1184
  %v2025 = vpack.c.bf16 %v1189, %v1185
  %v2026 = vpack.c.bf16 %v1194, %v1190
  %v2027 = vpack.c.bf16 %v1195, %v1191
  %v2028 = vpack.c.bf16 %v1196, %v1192
  %v2029 = vpack.c.bf16 %v1197, %v1193
  %v2030 = vpack.c.bf16 %v1202, %v1198
  %v2031 = vpack.c.bf16 %v1203, %v1199
  %v2032 = vpack.c.bf16 %v1204, %v1200
  %v2033 = vpack.c.bf16 %v1205, %v1201
  %v2034 = vpack.c.bf16 0.0, 0.0
  %v2035 = vld [vmem:[%s3] sm:$0xff]
  %v2036 = vld [vmem:[%s3 + $0x8] sm:$0xff]
  %v2037 = vld [vmem:[%s3 + $0x10] sm:$0xff]
  %v2038 = vld [vmem:[%s3 + $0x18] sm:$0xff]
  %v2039 = vld [vmem:[%s3 + $0x20] sm:$0xff]
  %v2040 = vld [vmem:[%s3 + $0x28] sm:$0xff]
  %v2041 = vld [vmem:[%s3 + $0x30] sm:$0xff]
  %v2042 = vld [vmem:[%s3 + $0x38] sm:$0xff]
  %v2043 = vld [vmem:[%s3 + $0x40] sm:$0xff]
  %v2044 = vld [vmem:[%s3 + $0x48] sm:$0xff]
  %v2045 = vld [vmem:[%s3 + $0x50] sm:$0xff]
  %v2046 = vld [vmem:[%s3 + $0x58] sm:$0xff]
  %v2047 = vld [vmem:[%s3 + $0x60] sm:$0xff]
  %v2048 = vld [vmem:[%s3 + $0x68] sm:$0xff]
  %v2049 = vld [vmem:[%s3 + $0x70] sm:$0xff]
  %v2050 = vld [vmem:[%s3 + $0x78] sm:$0xff]
  %v2051 = vld [vmem:[%s3 + $0x80] sm:$0xff]
  %v2052 = vld [vmem:[%s3 + $0x88] sm:$0xff]
  %v2053 = vld [vmem:[%s3 + $0x90] sm:$0xff]
  %v2054 = vld [vmem:[%s3 + $0x98] sm:$0xff]
  %v2055 = vld [vmem:[%s3 + $0xa0] sm:$0xff]
  %v2056 = vld [vmem:[%s3 + $0xa8] sm:$0xff]
  %v2057 = vld [vmem:[%s3 + $0xb0] sm:$0xff]
  %v2058 = vld [vmem:[%s3 + $0xb8] sm:$0xff]
  %v2059 = vld [vmem:[%s3 + $0xc0] sm:$0xff]
  %v2060 = vld [vmem:[%s3 + $0xc8] sm:$0xff]
  %v2061 = vld [vmem:[%s3 + $0xd0] sm:$0xff]
  %v2062 = vld [vmem:[%s3 + $0xd8] sm:$0xff]
  %v2063 = vld [vmem:[%s3 + $0xe0] sm:$0xff]
  %v2064 = vld [vmem:[%s3 + $0xe8] sm:$0xff]
  %v2065 = vld [vmem:[%s3 + $0xf0] sm:$0xff]
  %v2066 = vld [vmem:[%s3 + $0xf8] sm:$0xff]
  %v2067 = vld [vmem:[%s3 + $0x100] sm:$0xff]
  %v2068 = vld [vmem:[%s3 + $0x108] sm:$0xff]
  %v2069 = vld [vmem:[%s3 + $0x110] sm:$0xff]
  %v2070 = vld [vmem:[%s3 + $0x118] sm:$0xff]
  %v2071 = vld [vmem:[%s3 + $0x120] sm:$0xff]
  %v2072 = vld [vmem:[%s3 + $0x128] sm:$0xff]
  %v2073 = vld [vmem:[%s3 + $0x130] sm:$0xff]
  %v2074 = vld [vmem:[%s3 + $0x138] sm:$0xff]
  %v2075 = vld [vmem:[%s3 + $0x140] sm:$0xff]
  %v2076 = vld [vmem:[%s3 + $0x148] sm:$0xff]
  %v2077 = vld [vmem:[%s3 + $0x150] sm:$0xff]
  %v2078 = vld [vmem:[%s3 + $0x158] sm:$0xff]
  %v2079 = vld [vmem:[%s3 + $0x160] sm:$0xff]
  %v2080 = vld [vmem:[%s3 + $0x168] sm:$0xff]
  %v2081 = vld [vmem:[%s3 + $0x170] sm:$0xff]
  %v2082 = vld [vmem:[%s3 + $0x178] sm:$0xff]
  %v2083 = vld [vmem:[%s3 + $0x180] sm:$0xff]
  %v2084 = vld [vmem:[%s3 + $0x188] sm:$0xff]
  %v2085 = vld [vmem:[%s3 + $0x190] sm:$0xff]
  %v2086 = vld [vmem:[%s3 + $0x198] sm:$0xff]
  %v2087 = vld [vmem:[%s3 + $0x1a0] sm:$0xff]
  %v2088 = vld [vmem:[%s3 + $0x1a8] sm:$0xff]
  %v2089 = vld [vmem:[%s3 + $0x1b0] sm:$0xff]
  %v2090 = vld [vmem:[%s3 + $0x1b8] sm:$0xff]
  %v2091 = vld [vmem:[%s3 + $0x1c0] sm:$0xff]
  %v2092 = vld [vmem:[%s3 + $0x1c8] sm:$0xff]
  %v2093 = vld [vmem:[%s3 + $0x1d0] sm:$0xff]
  %v2094 = vld [vmem:[%s3 + $0x1d8] sm:$0xff]
  %v2095 = vld [vmem:[%s3 + $0x1e0] sm:$0xff]
  %v2096 = vld [vmem:[%s3 + $0x1e8] sm:$0xff]
  %v2097 = vld [vmem:[%s3 + $0x1f0] sm:$0xff]
  %v2098 = vld [vmem:[%s3 + $0x1f8] sm:$0xff]
  %v2099 = vld [vmem:[%s3 + $0x200] sm:$0xff]
  %v2100 = vld [vmem:[%s3 + $0x208] sm:$0xff]
  %v2101 = vld [vmem:[%s3 + $0x210] sm:$0xff]
  %v2102 = vld [vmem:[%s3 + $0x218] sm:$0xff]
  %v2103 = vld [vmem:[%s3 + $0x220] sm:$0xff]
  %v2104 = vld [vmem:[%s3 + $0x228] sm:$0xff]
  %v2105 = vld [vmem:[%s3 + $0x230] sm:$0xff]
  %v2106 = vld [vmem:[%s3 + $0x238] sm:$0xff]
  %v2107 = vld [vmem:[%s3 + $0x240] sm:$0xff]
  %v2108 = vld [vmem:[%s3 + $0x248] sm:$0xff]
  %v2109 = vld [vmem:[%s3 + $0x250] sm:$0xff]
  %v2110 = vld [vmem:[%s3 + $0x258] sm:$0xff]
  %v2111 = vld [vmem:[%s3 + $0x260] sm:$0xff]
  %v2112 = vld [vmem:[%s3 + $0x268] sm:$0xff]
  %v2113 = vld [vmem:[%s3 + $0x270] sm:$0xff]
  %v2114 = vld [vmem:[%s3 + $0x278] sm:$0xff]
  %v2115 = vld [vmem:[%s3 + $0x280] sm:$0xff]
  %v2116 = vld [vmem:[%s3 + $0x288] sm:$0xff]
  %v2117 = vld [vmem:[%s3 + $0x290] sm:$0xff]
  %v2118 = vld [vmem:[%s3 + $0x298] sm:$0xff]
  %v2119 = vld [vmem:[%s3 + $0x2a0] sm:$0xff]
  %v2120 = vld [vmem:[%s3 + $0x2a8] sm:$0xff]
  %v2121 = vld [vmem:[%s3 + $0x2b0] sm:$0xff]
  %v2122 = vld [vmem:[%s3 + $0x2b8] sm:$0xff]
  %v2123 = vld [vmem:[%s3 + $0x2c0] sm:$0xff]
  %v2124 = vld [vmem:[%s3 + $0x2c8] sm:$0xff]
  %v2125 = vld [vmem:[%s3 + $0x2d0] sm:$0xff]
  %v2126 = vld [vmem:[%s3 + $0x2d8] sm:$0xff]
  %v2127 = vld [vmem:[%s3 + $0x2e0] sm:$0xff]
  %v2128 = vld [vmem:[%s3 + $0x2e8] sm:$0xff]
  %v2129 = vld [vmem:[%s3 + $0x2f0] sm:$0xff]
  %v2130 = vld [vmem:[%s3 + $0x2f8] sm:$0xff]
  %v2131 = vld [vmem:[%s3 + $0x300] sm:$0xff]
  %v2132 = vld [vmem:[%s3 + $0x308] sm:$0xff]
  %v2133 = vld [vmem:[%s3 + $0x310] sm:$0xff]
  %v2134 = vld [vmem:[%s3 + $0x318] sm:$0xff]
  %v2135 = vld [vmem:[%s3 + $0x320] sm:$0xff]
  %v2136 = vld [vmem:[%s3 + $0x328] sm:$0xff]
  %v2137 = vld [vmem:[%s3 + $0x330] sm:$0xff]
  %v2138 = vld [vmem:[%s3 + $0x338] sm:$0xff]
  %v2139 = vld [vmem:[%s3 + $0x340] sm:$0xff]
  %v2140 = vld [vmem:[%s3 + $0x348] sm:$0xff]
  %v2141 = vld [vmem:[%s3 + $0x350] sm:$0xff]
  %v2142 = vld [vmem:[%s3 + $0x358] sm:$0xff]
  %v2143 = vld [vmem:[%s3 + $0x360] sm:$0xff]
  %v2144 = vld [vmem:[%s3 + $0x368] sm:$0xff]
  %v2145 = vld [vmem:[%s3 + $0x370] sm:$0xff]
  %v2146 = vld [vmem:[%s3 + $0x378] sm:$0xff]
  %v2147 = vld [vmem:[%s3 + $0x380] sm:$0xff]
  %v2148 = vld [vmem:[%s3 + $0x388] sm:$0xff]
  %v2149 = vld [vmem:[%s3 + $0x390] sm:$0xff]
  %v2150 = vld [vmem:[%s3 + $0x398] sm:$0xff]
  %v2151 = vld [vmem:[%s3 + $0x3a0] sm:$0xff]
  %v2152 = vld [vmem:[%s3 + $0x3a8] sm:$0xff]
  %v2153 = vld [vmem:[%s3 + $0x3b0] sm:$0xff]
  %v2154 = vld [vmem:[%s3 + $0x3b8] sm:$0xff]
  %v2155 = vld [vmem:[%s3 + $0x3c0] sm:$0xff]
  %v2156 = vld [vmem:[%s3 + $0x3c8] sm:$0xff]
  %v2157 = vld [vmem:[%s3 + $0x3d0] sm:$0xff]
  %v2158 = vld [vmem:[%s3 + $0x3d8] sm:$0xff]
  %v2159 = vld [vmem:[%s3 + $0x3e0] sm:$0xff]
  %v2160 = vld [vmem:[%s3 + $0x3e8] sm:$0xff]
  %v2161 = vld [vmem:[%s3 + $0x3f0] sm:$0xff]
  %v2162 = vld [vmem:[%s3 + $0x3f8] sm:$0xff]
  %v2163 = vld [vmem:[%s3 + $0x400] sm:$0xff]
  %v2164 = vld [vmem:[%s3 + $0x408] sm:$0xff]
  %v2165 = vld [vmem:[%s3 + $0x410] sm:$0xff]
  %v2166 = vld [vmem:[%s3 + $0x418] sm:$0xff]
  %v2167 = vld [vmem:[%s3 + $0x420] sm:$0xff]
  %v2168 = vld [vmem:[%s3 + $0x428] sm:$0xff]
  %v2169 = vld [vmem:[%s3 + $0x430] sm:$0xff]
  %v2170 = vld [vmem:[%s3 + $0x438] sm:$0xff]
  %v2171 = vld [vmem:[%s3 + $0x440] sm:$0xff]
  %v2172 = vld [vmem:[%s3 + $0x448] sm:$0xff]
  %v2173 = vld [vmem:[%s3 + $0x450] sm:$0xff]
  %v2174 = vld [vmem:[%s3 + $0x458] sm:$0xff]
  %v2175 = vld [vmem:[%s3 + $0x460] sm:$0xff]
  %v2176 = vld [vmem:[%s3 + $0x468] sm:$0xff]
  %v2177 = vld [vmem:[%s3 + $0x470] sm:$0xff]
  %v2178 = vld [vmem:[%s3 + $0x478] sm:$0xff]
  %v2179 = vld [vmem:[%s3 + $0x480] sm:$0xff]
  %v2180 = vld [vmem:[%s3 + $0x488] sm:$0xff]
  %v2181 = vld [vmem:[%s3 + $0x490] sm:$0xff]
  %v2182 = vld [vmem:[%s3 + $0x498] sm:$0xff]
  %v2183 = vld [vmem:[%s3 + $0x4a0] sm:$0xff]
  %v2184 = vld [vmem:[%s3 + $0x4a8] sm:$0xff]
  %v2185 = vld [vmem:[%s3 + $0x4b0] sm:$0xff]
  %v2186 = vld [vmem:[%s3 + $0x4b8] sm:$0xff]
  %v2187 = vld [vmem:[%s3 + $0x4c0] sm:$0xff]
  %v2188 = vld [vmem:[%s3 + $0x4c8] sm:$0xff]
  %v2189 = vld [vmem:[%s3 + $0x4d0] sm:$0xff]
  %v2190 = vld [vmem:[%s3 + $0x4d8] sm:$0xff]
  %v2191 = vld [vmem:[%s3 + $0x4e0] sm:$0xff]
  %v2192 = vld [vmem:[%s3 + $0x4e8] sm:$0xff]
  %v2193 = vld [vmem:[%s3 + $0x4f0] sm:$0xff]
  %v2194 = vld [vmem:[%s3 + $0x4f8] sm:$0xff]
  %v2195 = vld [vmem:[%s3 + $0x500] sm:$0xff]
  %v2196 = vld [vmem:[%s3 + $0x508] sm:$0xff]
  %v2197 = vld [vmem:[%s3 + $0x510] sm:$0xff]
  %v2198 = vld [vmem:[%s3 + $0x518] sm:$0xff]
  %v2199 = vld [vmem:[%s3 + $0x520] sm:$0xff]
  %v2200 = vld [vmem:[%s3 + $0x528] sm:$0xff]
  %v2201 = vld [vmem:[%s3 + $0x530] sm:$0xff]
  %v2202 = vld [vmem:[%s3 + $0x538] sm:$0xff]
  %v2203 = vld [vmem:[%s3 + $0x540] sm:$0xff]
  %v2204 = vld [vmem:[%s3 + $0x548] sm:$0xff]
  %v2205 = vld [vmem:[%s3 + $0x550] sm:$0xff]
  %v2206 = vld [vmem:[%s3 + $0x558] sm:$0xff]
  %v2207 = vld [vmem:[%s3 + $0x560] sm:$0xff]
  %v2208 = vld [vmem:[%s3 + $0x568] sm:$0xff]
  %v2209 = vld [vmem:[%s3 + $0x570] sm:$0xff]
  %v2210 = vld [vmem:[%s3 + $0x578] sm:$0xff]
  %v2211 = vld [vmem:[%s3 + $0x580] sm:$0xff]
  %v2212 = vld [vmem:[%s3 + $0x588] sm:$0xff]
  %v2213 = vld [vmem:[%s3 + $0x590] sm:$0xff]
  %v2214 = vld [vmem:[%s3 + $0x598] sm:$0xff]
  %v2215 = vld [vmem:[%s3 + $0x5a0] sm:$0xff]
  %v2216 = vld [vmem:[%s3 + $0x5a8] sm:$0xff]
  %v2217 = vld [vmem:[%s3 + $0x5b0] sm:$0xff]
  %v2218 = vld [vmem:[%s3 + $0x5b8] sm:$0xff]
  %v2219 = vld [vmem:[%s3 + $0x5c0] sm:$0xff]
  %v2220 = vld [vmem:[%s3 + $0x5c8] sm:$0xff]
  %v2221 = vld [vmem:[%s3 + $0x5d0] sm:$0xff]
  %v2222 = vld [vmem:[%s3 + $0x5d8] sm:$0xff]
  %v2223 = vld [vmem:[%s3 + $0x5e0] sm:$0xff]
  %v2224 = vld [vmem:[%s3 + $0x5e8] sm:$0xff]
  %v2225 = vld [vmem:[%s3 + $0x5f0] sm:$0xff]
  %v2226 = vld [vmem:[%s3 + $0x5f8] sm:$0xff]
  %v2227 = vld [vmem:[%s3 + $0x600] sm:$0xff]
  %v2228 = vld [vmem:[%s3 + $0x608] sm:$0xff]
  %v2229 = vld [vmem:[%s3 + $0x610] sm:$0xff]
  %v2230 = vld [vmem:[%s3 + $0x618] sm:$0xff]
  %v2231 = vld [vmem:[%s3 + $0x620] sm:$0xff]
  %v2232 = vld [vmem:[%s3 + $0x628] sm:$0xff]
  %v2233 = vld [vmem:[%s3 + $0x630] sm:$0xff]
  %v2234 = vld [vmem:[%s3 + $0x638] sm:$0xff]
  %v2235 = vld [vmem:[%s3 + $0x640] sm:$0xff]
  %v2236 = vld [vmem:[%s3 + $0x648] sm:$0xff]
  %v2237 = vld [vmem:[%s3 + $0x650] sm:$0xff]
  %v2238 = vld [vmem:[%s3 + $0x658] sm:$0xff]
  %v2239 = vld [vmem:[%s3 + $0x660] sm:$0xff]
  %v2240 = vld [vmem:[%s3 + $0x668] sm:$0xff]
  %v2241 = vld [vmem:[%s3 + $0x670] sm:$0xff]
  %v2242 = vld [vmem:[%s3 + $0x678] sm:$0xff]
  %v2243 = vld [vmem:[%s3 + $0x680] sm:$0xff]
  %v2244 = vld [vmem:[%s3 + $0x688] sm:$0xff]
  %v2245 = vld [vmem:[%s3 + $0x690] sm:$0xff]
  %v2246 = vld [vmem:[%s3 + $0x698] sm:$0xff]
  %v2247 = vld [vmem:[%s3 + $0x6a0] sm:$0xff]
  %v2248 = vld [vmem:[%s3 + $0x6a8] sm:$0xff]
  %v2249 = vld [vmem:[%s3 + $0x6b0] sm:$0xff]
  %v2250 = vld [vmem:[%s3 + $0x6b8] sm:$0xff]
  %v2251 = vld [vmem:[%s3 + $0x6c0] sm:$0xff]
  %v2252 = vld [vmem:[%s3 + $0x6c8] sm:$0xff]
  %v2253 = vld [vmem:[%s3 + $0x6d0] sm:$0xff]
  %v2254 = vld [vmem:[%s3 + $0x6d8] sm:$0xff]
  %v2255 = vld [vmem:[%s3 + $0x6e0] sm:$0xff]
  %v2256 = vld [vmem:[%s3 + $0x6e8] sm:$0xff]
  %v2257 = vld [vmem:[%s3 + $0x6f0] sm:$0xff]
  %v2258 = vld [vmem:[%s3 + $0x6f8] sm:$0xff]
  %v2259 = vld [vmem:[%s3 + $0x700] sm:$0xff]
  %v2260 = vld [vmem:[%s3 + $0x708] sm:$0xff]
  %v2261 = vld [vmem:[%s3 + $0x710] sm:$0xff]
  %v2262 = vld [vmem:[%s3 + $0x718] sm:$0xff]
  %v2263 = vld [vmem:[%s3 + $0x720] sm:$0xff]
  %v2264 = vld [vmem:[%s3 + $0x728] sm:$0xff]
  %v2265 = vld [vmem:[%s3 + $0x730] sm:$0xff]
  %v2266 = vld [vmem:[%s3 + $0x738] sm:$0xff]
  %v2267 = vld [vmem:[%s3 + $0x740] sm:$0xff]
  %v2268 = vld [vmem:[%s3 + $0x748] sm:$0xff]
  %v2269 = vld [vmem:[%s3 + $0x750] sm:$0xff]
  %v2270 = vld [vmem:[%s3 + $0x758] sm:$0xff]
  %v2271 = vld [vmem:[%s3 + $0x760] sm:$0xff]
  %v2272 = vld [vmem:[%s3 + $0x768] sm:$0xff]
  %v2273 = vld [vmem:[%s3 + $0x770] sm:$0xff]
  %v2274 = vld [vmem:[%s3 + $0x778] sm:$0xff]
  %v2275 = vld [vmem:[%s3 + $0x780] sm:$0xff]
  %v2276 = vld [vmem:[%s3 + $0x788] sm:$0xff]
  %v2277 = vld [vmem:[%s3 + $0x790] sm:$0xff]
  %v2278 = vld [vmem:[%s3 + $0x798] sm:$0xff]
  %v2279 = vld [vmem:[%s3 + $0x7a0] sm:$0xff]
  %v2280 = vld [vmem:[%s3 + $0x7a8] sm:$0xff]
  %v2281 = vld [vmem:[%s3 + $0x7b0] sm:$0xff]
  %v2282 = vld [vmem:[%s3 + $0x7b8] sm:$0xff]
  %v2283 = vld [vmem:[%s3 + $0x7c0] sm:$0xff]
  %v2284 = vld [vmem:[%s3 + $0x7c8] sm:$0xff]
  %v2285 = vld [vmem:[%s3 + $0x7d0] sm:$0xff]
  %v2286 = vld [vmem:[%s3 + $0x7d8] sm:$0xff]
  %v2287 = vld [vmem:[%s3 + $0x7e0] sm:$0xff]
  %v2288 = vld [vmem:[%s3 + $0x7e8] sm:$0xff]
  %v2289 = vld [vmem:[%s3 + $0x7f0] sm:$0xff]
  %v2290 = vld [vmem:[%s3 + $0x7f8] sm:$0xff]
  %s2291 = scalar_lea.vmem %s3, 2048
  %v2292 = vld [vmem:[%s2291] sm:$0xff]
  %v2293 = vld [vmem:[%s2291 + $0x8] sm:$0xff]
  %v2294 = vld [vmem:[%s2291 + $0x10] sm:$0xff]
  %v2295 = vld [vmem:[%s2291 + $0x18] sm:$0xff]
  %v2296 = vld [vmem:[%s2291 + $0x20] sm:$0xff]
  %v2297 = vld [vmem:[%s2291 + $0x28] sm:$0xff]
  %v2298 = vld [vmem:[%s2291 + $0x30] sm:$0xff]
  %v2299 = vld [vmem:[%s2291 + $0x38] sm:$0xff]
  %v2300 = vld [vmem:[%s2291 + $0x40] sm:$0xff]
  %v2301 = vld [vmem:[%s2291 + $0x48] sm:$0xff]
  %v2302 = vld [vmem:[%s2291 + $0x50] sm:$0xff]
  %v2303 = vld [vmem:[%s2291 + $0x58] sm:$0xff]
  %v2304 = vld [vmem:[%s2291 + $0x60] sm:$0xff]
  %v2305 = vld [vmem:[%s2291 + $0x68] sm:$0xff]
  %v2306 = vld [vmem:[%s2291 + $0x70] sm:$0xff]
  %v2307 = vld [vmem:[%s2291 + $0x78] sm:$0xff]
  %v2308 = vld [vmem:[%s2291 + $0x80] sm:$0xff]
  %v2309 = vld [vmem:[%s2291 + $0x88] sm:$0xff]
  %v2310 = vld [vmem:[%s2291 + $0x90] sm:$0xff]
  %v2311 = vld [vmem:[%s2291 + $0x98] sm:$0xff]
  %v2312 = vld [vmem:[%s2291 + $0xa0] sm:$0xff]
  %v2313 = vld [vmem:[%s2291 + $0xa8] sm:$0xff]
  %v2314 = vld [vmem:[%s2291 + $0xb0] sm:$0xff]
  %v2315 = vld [vmem:[%s2291 + $0xb8] sm:$0xff]
  %v2316 = vld [vmem:[%s2291 + $0xc0] sm:$0xff]
  %v2317 = vld [vmem:[%s2291 + $0xc8] sm:$0xff]
  %v2318 = vld [vmem:[%s2291 + $0xd0] sm:$0xff]
  %v2319 = vld [vmem:[%s2291 + $0xd8] sm:$0xff]
  %v2320 = vld [vmem:[%s2291 + $0xe0] sm:$0xff]
  %v2321 = vld [vmem:[%s2291 + $0xe8] sm:$0xff]
  %v2322 = vld [vmem:[%s2291 + $0xf0] sm:$0xff]
  %v2323 = vld [vmem:[%s2291 + $0xf8] sm:$0xff]
  %v2324 = vld [vmem:[%s2291 + $0x100] sm:$0xff]
  %v2325 = vld [vmem:[%s2291 + $0x108] sm:$0xff]
  %v2326 = vld [vmem:[%s2291 + $0x110] sm:$0xff]
  %v2327 = vld [vmem:[%s2291 + $0x118] sm:$0xff]
  %v2328 = vld [vmem:[%s2291 + $0x120] sm:$0xff]
  %v2329 = vld [vmem:[%s2291 + $0x128] sm:$0xff]
  %v2330 = vld [vmem:[%s2291 + $0x130] sm:$0xff]
  %v2331 = vld [vmem:[%s2291 + $0x138] sm:$0xff]
  %v2332 = vld [vmem:[%s2291 + $0x140] sm:$0xff]
  %v2333 = vld [vmem:[%s2291 + $0x148] sm:$0xff]
  %v2334 = vld [vmem:[%s2291 + $0x150] sm:$0xff]
  %v2335 = vld [vmem:[%s2291 + $0x158] sm:$0xff]
  %v2336 = vld [vmem:[%s2291 + $0x160] sm:$0xff]
  %v2337 = vld [vmem:[%s2291 + $0x168] sm:$0xff]
  %v2338 = vld [vmem:[%s2291 + $0x170] sm:$0xff]
  %v2339 = vld [vmem:[%s2291 + $0x178] sm:$0xff]
  %v2340 = vld [vmem:[%s2291 + $0x180] sm:$0xff]
  %v2341 = vld [vmem:[%s2291 + $0x188] sm:$0xff]
  %v2342 = vld [vmem:[%s2291 + $0x190] sm:$0xff]
  %v2343 = vld [vmem:[%s2291 + $0x198] sm:$0xff]
  %v2344 = vld [vmem:[%s2291 + $0x1a0] sm:$0xff]
  %v2345 = vld [vmem:[%s2291 + $0x1a8] sm:$0xff]
  %v2346 = vld [vmem:[%s2291 + $0x1b0] sm:$0xff]
  %v2347 = vld [vmem:[%s2291 + $0x1b8] sm:$0xff]
  %v2348 = vld [vmem:[%s2291 + $0x1c0] sm:$0xff]
  %v2349 = vld [vmem:[%s2291 + $0x1c8] sm:$0xff]
  %v2350 = vld [vmem:[%s2291 + $0x1d0] sm:$0xff]
  %v2351 = vld [vmem:[%s2291 + $0x1d8] sm:$0xff]
  %v2352 = vld [vmem:[%s2291 + $0x1e0] sm:$0xff]
  %v2353 = vld [vmem:[%s2291 + $0x1e8] sm:$0xff]
  %v2354 = vld [vmem:[%s2291 + $0x1f0] sm:$0xff]
  %v2355 = vld [vmem:[%s2291 + $0x1f8] sm:$0xff]
  %v2356 = vld [vmem:[%s2291 + $0x200] sm:$0xff]
  %v2357 = vld [vmem:[%s2291 + $0x208] sm:$0xff]
  %v2358 = vld [vmem:[%s2291 + $0x210] sm:$0xff]
  %v2359 = vld [vmem:[%s2291 + $0x218] sm:$0xff]
  %v2360 = vld [vmem:[%s2291 + $0x220] sm:$0xff]
  %v2361 = vld [vmem:[%s2291 + $0x228] sm:$0xff]
  %v2362 = vld [vmem:[%s2291 + $0x230] sm:$0xff]
  %v2363 = vld [vmem:[%s2291 + $0x238] sm:$0xff]
  %v2364 = vld [vmem:[%s2291 + $0x240] sm:$0xff]
  %v2365 = vld [vmem:[%s2291 + $0x248] sm:$0xff]
  %v2366 = vld [vmem:[%s2291 + $0x250] sm:$0xff]
  %v2367 = vld [vmem:[%s2291 + $0x258] sm:$0xff]
  %v2368 = vld [vmem:[%s2291 + $0x260] sm:$0xff]
  %v2369 = vld [vmem:[%s2291 + $0x268] sm:$0xff]
  %v2370 = vld [vmem:[%s2291 + $0x270] sm:$0xff]
  %v2371 = vld [vmem:[%s2291 + $0x278] sm:$0xff]
  %v2372 = vld [vmem:[%s2291 + $0x280] sm:$0xff]
  %v2373 = vld [vmem:[%s2291 + $0x288] sm:$0xff]
  %v2374 = vld [vmem:[%s2291 + $0x290] sm:$0xff]
  %v2375 = vld [vmem:[%s2291 + $0x298] sm:$0xff]
  %v2376 = vld [vmem:[%s2291 + $0x2a0] sm:$0xff]
  %v2377 = vld [vmem:[%s2291 + $0x2a8] sm:$0xff]
  %v2378 = vld [vmem:[%s2291 + $0x2b0] sm:$0xff]
  %v2379 = vld [vmem:[%s2291 + $0x2b8] sm:$0xff]
  %v2380 = vld [vmem:[%s2291 + $0x2c0] sm:$0xff]
  %v2381 = vld [vmem:[%s2291 + $0x2c8] sm:$0xff]
  %v2382 = vld [vmem:[%s2291 + $0x2d0] sm:$0xff]
  %v2383 = vld [vmem:[%s2291 + $0x2d8] sm:$0xff]
  %v2384 = vld [vmem:[%s2291 + $0x2e0] sm:$0xff]
  %v2385 = vld [vmem:[%s2291 + $0x2e8] sm:$0xff]
  %v2386 = vld [vmem:[%s2291 + $0x2f0] sm:$0xff]
  %v2387 = vld [vmem:[%s2291 + $0x2f8] sm:$0xff]
  %v2388 = vld [vmem:[%s2291 + $0x300] sm:$0xff]
  %v2389 = vld [vmem:[%s2291 + $0x308] sm:$0xff]
  %v2390 = vld [vmem:[%s2291 + $0x310] sm:$0xff]
  %v2391 = vld [vmem:[%s2291 + $0x318] sm:$0xff]
  %v2392 = vld [vmem:[%s2291 + $0x320] sm:$0xff]
  %v2393 = vld [vmem:[%s2291 + $0x328] sm:$0xff]
  %v2394 = vld [vmem:[%s2291 + $0x330] sm:$0xff]
  %v2395 = vld [vmem:[%s2291 + $0x338] sm:$0xff]
  %v2396 = vld [vmem:[%s2291 + $0x340] sm:$0xff]
  %v2397 = vld [vmem:[%s2291 + $0x348] sm:$0xff]
  %v2398 = vld [vmem:[%s2291 + $0x350] sm:$0xff]
  %v2399 = vld [vmem:[%s2291 + $0x358] sm:$0xff]
  %v2400 = vld [vmem:[%s2291 + $0x360] sm:$0xff]
  %v2401 = vld [vmem:[%s2291 + $0x368] sm:$0xff]
  %v2402 = vld [vmem:[%s2291 + $0x370] sm:$0xff]
  %v2403 = vld [vmem:[%s2291 + $0x378] sm:$0xff]
  %v2404 = vld [vmem:[%s2291 + $0x380] sm:$0xff]
  %v2405 = vld [vmem:[%s2291 + $0x388] sm:$0xff]
  %v2406 = vld [vmem:[%s2291 + $0x390] sm:$0xff]
  %v2407 = vld [vmem:[%s2291 + $0x398] sm:$0xff]
  %v2408 = vld [vmem:[%s2291 + $0x3a0] sm:$0xff]
  %v2409 = vld [vmem:[%s2291 + $0x3a8] sm:$0xff]
  %v2410 = vld [vmem:[%s2291 + $0x3b0] sm:$0xff]
  %v2411 = vld [vmem:[%s2291 + $0x3b8] sm:$0xff]
  %v2412 = vld [vmem:[%s2291 + $0x3c0] sm:$0xff]
  %v2413 = vld [vmem:[%s2291 + $0x3c8] sm:$0xff]
  %v2414 = vld [vmem:[%s2291 + $0x3d0] sm:$0xff]
  %v2415 = vld [vmem:[%s2291 + $0x3d8] sm:$0xff]
  %v2416 = vld [vmem:[%s2291 + $0x3e0] sm:$0xff]
  %v2417 = vld [vmem:[%s2291 + $0x3e8] sm:$0xff]
  %v2418 = vld [vmem:[%s2291 + $0x3f0] sm:$0xff]
  %v2419 = vld [vmem:[%s2291 + $0x3f8] sm:$0xff]
  %v2420 = vld [vmem:[%s2291 + $0x400] sm:$0xff]
  %v2421 = vld [vmem:[%s2291 + $0x408] sm:$0xff]
  %v2422 = vld [vmem:[%s2291 + $0x410] sm:$0xff]
  %v2423 = vld [vmem:[%s2291 + $0x418] sm:$0xff]
  %v2424 = vld [vmem:[%s2291 + $0x420] sm:$0xff]
  %v2425 = vld [vmem:[%s2291 + $0x428] sm:$0xff]
  %v2426 = vld [vmem:[%s2291 + $0x430] sm:$0xff]
  %v2427 = vld [vmem:[%s2291 + $0x438] sm:$0xff]
  %v2428 = vld [vmem:[%s2291 + $0x440] sm:$0xff]
  %v2429 = vld [vmem:[%s2291 + $0x448] sm:$0xff]
  %v2430 = vld [vmem:[%s2291 + $0x450] sm:$0xff]
  %v2431 = vld [vmem:[%s2291 + $0x458] sm:$0xff]
  %v2432 = vld [vmem:[%s2291 + $0x460] sm:$0xff]
  %v2433 = vld [vmem:[%s2291 + $0x468] sm:$0xff]
  %v2434 = vld [vmem:[%s2291 + $0x470] sm:$0xff]
  %v2435 = vld [vmem:[%s2291 + $0x478] sm:$0xff]
  %v2436 = vld [vmem:[%s2291 + $0x480] sm:$0xff]
  %v2437 = vld [vmem:[%s2291 + $0x488] sm:$0xff]
  %v2438 = vld [vmem:[%s2291 + $0x490] sm:$0xff]
  %v2439 = vld [vmem:[%s2291 + $0x498] sm:$0xff]
  %v2440 = vld [vmem:[%s2291 + $0x4a0] sm:$0xff]
  %v2441 = vld [vmem:[%s2291 + $0x4a8] sm:$0xff]
  %v2442 = vld [vmem:[%s2291 + $0x4b0] sm:$0xff]
  %v2443 = vld [vmem:[%s2291 + $0x4b8] sm:$0xff]
  %v2444 = vld [vmem:[%s2291 + $0x4c0] sm:$0xff]
  %v2445 = vld [vmem:[%s2291 + $0x4c8] sm:$0xff]
  %v2446 = vld [vmem:[%s2291 + $0x4d0] sm:$0xff]
  %v2447 = vld [vmem:[%s2291 + $0x4d8] sm:$0xff]
  %v2448 = vld [vmem:[%s2291 + $0x4e0] sm:$0xff]
  %v2449 = vld [vmem:[%s2291 + $0x4e8] sm:$0xff]
  %v2450 = vld [vmem:[%s2291 + $0x4f0] sm:$0xff]
  %v2451 = vld [vmem:[%s2291 + $0x4f8] sm:$0xff]
  %v2452 = vld [vmem:[%s2291 + $0x500] sm:$0xff]
  %v2453 = vld [vmem:[%s2291 + $0x508] sm:$0xff]
  %v2454 = vld [vmem:[%s2291 + $0x510] sm:$0xff]
  %v2455 = vld [vmem:[%s2291 + $0x518] sm:$0xff]
  %v2456 = vld [vmem:[%s2291 + $0x520] sm:$0xff]
  %v2457 = vld [vmem:[%s2291 + $0x528] sm:$0xff]
  %v2458 = vld [vmem:[%s2291 + $0x530] sm:$0xff]
  %v2459 = vld [vmem:[%s2291 + $0x538] sm:$0xff]
  %v2460 = vld [vmem:[%s2291 + $0x540] sm:$0xff]
  %v2461 = vld [vmem:[%s2291 + $0x548] sm:$0xff]
  %v2462 = vld [vmem:[%s2291 + $0x550] sm:$0xff]
  %v2463 = vld [vmem:[%s2291 + $0x558] sm:$0xff]
  %v2464 = vld [vmem:[%s2291 + $0x560] sm:$0xff]
  %v2465 = vld [vmem:[%s2291 + $0x568] sm:$0xff]
  %v2466 = vld [vmem:[%s2291 + $0x570] sm:$0xff]
  %v2467 = vld [vmem:[%s2291 + $0x578] sm:$0xff]
  %v2468 = vld [vmem:[%s2291 + $0x580] sm:$0xff]
  %v2469 = vld [vmem:[%s2291 + $0x588] sm:$0xff]
  %v2470 = vld [vmem:[%s2291 + $0x590] sm:$0xff]
  %v2471 = vld [vmem:[%s2291 + $0x598] sm:$0xff]
  %v2472 = vld [vmem:[%s2291 + $0x5a0] sm:$0xff]
  %v2473 = vld [vmem:[%s2291 + $0x5a8] sm:$0xff]
  %v2474 = vld [vmem:[%s2291 + $0x5b0] sm:$0xff]
  %v2475 = vld [vmem:[%s2291 + $0x5b8] sm:$0xff]
  %v2476 = vld [vmem:[%s2291 + $0x5c0] sm:$0xff]
  %v2477 = vld [vmem:[%s2291 + $0x5c8] sm:$0xff]
  %v2478 = vld [vmem:[%s2291 + $0x5d0] sm:$0xff]
  %v2479 = vld [vmem:[%s2291 + $0x5d8] sm:$0xff]
  %v2480 = vld [vmem:[%s2291 + $0x5e0] sm:$0xff]
  %v2481 = vld [vmem:[%s2291 + $0x5e8] sm:$0xff]
  %v2482 = vld [vmem:[%s2291 + $0x5f0] sm:$0xff]
  %v2483 = vld [vmem:[%s2291 + $0x5f8] sm:$0xff]
  %v2484 = vld [vmem:[%s2291 + $0x600] sm:$0xff]
  %v2485 = vld [vmem:[%s2291 + $0x608] sm:$0xff]
  %v2486 = vld [vmem:[%s2291 + $0x610] sm:$0xff]
  %v2487 = vld [vmem:[%s2291 + $0x618] sm:$0xff]
  %v2488 = vld [vmem:[%s2291 + $0x620] sm:$0xff]
  %v2489 = vld [vmem:[%s2291 + $0x628] sm:$0xff]
  %v2490 = vld [vmem:[%s2291 + $0x630] sm:$0xff]
  %v2491 = vld [vmem:[%s2291 + $0x638] sm:$0xff]
  %v2492 = vld [vmem:[%s2291 + $0x640] sm:$0xff]
  %v2493 = vld [vmem:[%s2291 + $0x648] sm:$0xff]
  %v2494 = vld [vmem:[%s2291 + $0x650] sm:$0xff]
  %v2495 = vld [vmem:[%s2291 + $0x658] sm:$0xff]
  %v2496 = vld [vmem:[%s2291 + $0x660] sm:$0xff]
  %v2497 = vld [vmem:[%s2291 + $0x668] sm:$0xff]
  %v2498 = vld [vmem:[%s2291 + $0x670] sm:$0xff]
  %v2499 = vld [vmem:[%s2291 + $0x678] sm:$0xff]
  %v2500 = vld [vmem:[%s2291 + $0x680] sm:$0xff]
  %v2501 = vld [vmem:[%s2291 + $0x688] sm:$0xff]
  %v2502 = vld [vmem:[%s2291 + $0x690] sm:$0xff]
  %v2503 = vld [vmem:[%s2291 + $0x698] sm:$0xff]
  %v2504 = vld [vmem:[%s2291 + $0x6a0] sm:$0xff]
  %v2505 = vld [vmem:[%s2291 + $0x6a8] sm:$0xff]
  %v2506 = vld [vmem:[%s2291 + $0x6b0] sm:$0xff]
  %v2507 = vld [vmem:[%s2291 + $0x6b8] sm:$0xff]
  %v2508 = vld [vmem:[%s2291 + $0x6c0] sm:$0xff]
  %v2509 = vld [vmem:[%s2291 + $0x6c8] sm:$0xff]
  %v2510 = vld [vmem:[%s2291 + $0x6d0] sm:$0xff]
  %v2511 = vld [vmem:[%s2291 + $0x6d8] sm:$0xff]
  %v2512 = vld [vmem:[%s2291 + $0x6e0] sm:$0xff]
  %v2513 = vld [vmem:[%s2291 + $0x6e8] sm:$0xff]
  %v2514 = vld [vmem:[%s2291 + $0x6f0] sm:$0xff]
  %v2515 = vld [vmem:[%s2291 + $0x6f8] sm:$0xff]
  %v2516 = vld [vmem:[%s2291 + $0x700] sm:$0xff]
  %v2517 = vld [vmem:[%s2291 + $0x708] sm:$0xff]
  %v2518 = vld [vmem:[%s2291 + $0x710] sm:$0xff]
  %v2519 = vld [vmem:[%s2291 + $0x718] sm:$0xff]
  %v2520 = vld [vmem:[%s2291 + $0x720] sm:$0xff]
  %v2521 = vld [vmem:[%s2291 + $0x728] sm:$0xff]
  %v2522 = vld [vmem:[%s2291 + $0x730] sm:$0xff]
  %v2523 = vld [vmem:[%s2291 + $0x738] sm:$0xff]
  %v2524 = vld [vmem:[%s2291 + $0x740] sm:$0xff]
  %v2525 = vld [vmem:[%s2291 + $0x748] sm:$0xff]
  %v2526 = vld [vmem:[%s2291 + $0x750] sm:$0xff]
  %v2527 = vld [vmem:[%s2291 + $0x758] sm:$0xff]
  %v2528 = vld [vmem:[%s2291 + $0x760] sm:$0xff]
  %v2529 = vld [vmem:[%s2291 + $0x768] sm:$0xff]
  %v2530 = vld [vmem:[%s2291 + $0x770] sm:$0xff]
  %v2531 = vld [vmem:[%s2291 + $0x778] sm:$0xff]
  %v2532 = vld [vmem:[%s2291 + $0x780] sm:$0xff]
  %v2533 = vld [vmem:[%s2291 + $0x788] sm:$0xff]
  %v2534 = vld [vmem:[%s2291 + $0x790] sm:$0xff]
  %v2535 = vld [vmem:[%s2291 + $0x798] sm:$0xff]
  %v2536 = vld [vmem:[%s2291 + $0x7a0] sm:$0xff]
  %v2537 = vld [vmem:[%s2291 + $0x7a8] sm:$0xff]
  %v2538 = vld [vmem:[%s2291 + $0x7b0] sm:$0xff]
  %v2539 = vld [vmem:[%s2291 + $0x7b8] sm:$0xff]
  %v2540 = vld [vmem:[%s2291 + $0x7c0] sm:$0xff]
  %v2541 = vld [vmem:[%s2291 + $0x7c8] sm:$0xff]
  %v2542 = vld [vmem:[%s2291 + $0x7d0] sm:$0xff]
  %v2543 = vld [vmem:[%s2291 + $0x7d8] sm:$0xff]
  %v2544 = vld [vmem:[%s2291 + $0x7e0] sm:$0xff]
  %v2545 = vld [vmem:[%s2291 + $0x7e8] sm:$0xff]
  %v2546 = vld [vmem:[%s2291 + $0x7f0] sm:$0xff]
  %v2547 = vld [vmem:[%s2291 + $0x7f8] sm:$0xff]
  %v2804 = vunpack.c.l.b16 %v2292
  %v2805 = vunpack.c.h.b16 %v2292
  %v2806 = vunpack.c.l.b16 %v2293
  %v2807 = vunpack.c.h.b16 %v2293
  %v2808 = vunpack.c.l.b16 %v2294
  %v2809 = vunpack.c.h.b16 %v2294
  %v2810 = vunpack.c.l.b16 %v2295
  %v2811 = vunpack.c.h.b16 %v2295
  %v2812 = vunpack.c.l.b16 %v2296
  %v2813 = vunpack.c.h.b16 %v2296
  %v2814 = vunpack.c.l.b16 %v2297
  %v2815 = vunpack.c.h.b16 %v2297
  %v2816 = vunpack.c.l.b16 %v2298
  %v2817 = vunpack.c.h.b16 %v2298
  %v2818 = vunpack.c.l.b16 %v2299
  %v2819 = vunpack.c.h.b16 %v2299
  %v2820 = vunpack.c.l.b16 %v2300
  %v2821 = vunpack.c.h.b16 %v2300
  %v2822 = vunpack.c.l.b16 %v2301
  %v2823 = vunpack.c.h.b16 %v2301
  %v2824 = vunpack.c.l.b16 %v2302
  %v2825 = vunpack.c.h.b16 %v2302
  %v2826 = vunpack.c.l.b16 %v2303
  %v2827 = vunpack.c.h.b16 %v2303
  %v2828 = vunpack.c.l.b16 %v2304
  %v2829 = vunpack.c.h.b16 %v2304
  %v2830 = vunpack.c.l.b16 %v2305
  %v2831 = vunpack.c.h.b16 %v2305
  %v2832 = vunpack.c.l.b16 %v2306
  %v2833 = vunpack.c.h.b16 %v2306
  %v2834 = vunpack.c.l.b16 %v2307
  %v2835 = vunpack.c.h.b16 %v2307
  %v2836 = vunpack.c.l.b16 %v2308
  %v2837 = vunpack.c.h.b16 %v2308
  %v2838 = vunpack.c.l.b16 %v2309
  %v2839 = vunpack.c.h.b16 %v2309
  %v2840 = vunpack.c.l.b16 %v2310
  %v2841 = vunpack.c.h.b16 %v2310
  %v2842 = vunpack.c.l.b16 %v2311
  %v2843 = vunpack.c.h.b16 %v2311
  %v2844 = vunpack.c.l.b16 %v2312
  %v2845 = vunpack.c.h.b16 %v2312
  %v2846 = vunpack.c.l.b16 %v2313
  %v2847 = vunpack.c.h.b16 %v2313
  %v2848 = vunpack.c.l.b16 %v2314
  %v2849 = vunpack.c.h.b16 %v2314
  %v2850 = vunpack.c.l.b16 %v2315
  %v2851 = vunpack.c.h.b16 %v2315
  %v2852 = vunpack.c.l.b16 %v2316
  %v2853 = vunpack.c.h.b16 %v2316
  %v2854 = vunpack.c.l.b16 %v2317
  %v2855 = vunpack.c.h.b16 %v2317
  %v2856 = vunpack.c.l.b16 %v2318
  %v2857 = vunpack.c.h.b16 %v2318
  %v2858 = vunpack.c.l.b16 %v2319
  %v2859 = vunpack.c.h.b16 %v2319
  %v2860 = vunpack.c.l.b16 %v2320
  %v2861 = vunpack.c.h.b16 %v2320
  %v2862 = vunpack.c.l.b16 %v2321
  %v2863 = vunpack.c.h.b16 %v2321
  %v2864 = vunpack.c.l.b16 %v2322
  %v2865 = vunpack.c.h.b16 %v2322
  %v2866 = vunpack.c.l.b16 %v2323
  %v2867 = vunpack.c.h.b16 %v2323
  %v2868 = vunpack.c.l.b16 %v2324
  %v2869 = vunpack.c.h.b16 %v2324
  %v2870 = vunpack.c.l.b16 %v2325
  %v2871 = vunpack.c.h.b16 %v2325
  %v2872 = vunpack.c.l.b16 %v2326
  %v2873 = vunpack.c.h.b16 %v2326
  %v2874 = vunpack.c.l.b16 %v2327
  %v2875 = vunpack.c.h.b16 %v2327
  %v2876 = vunpack.c.l.b16 %v2328
  %v2877 = vunpack.c.h.b16 %v2328
  %v2878 = vunpack.c.l.b16 %v2329
  %v2879 = vunpack.c.h.b16 %v2329
  %v2880 = vunpack.c.l.b16 %v2330
  %v2881 = vunpack.c.h.b16 %v2330
  %v2882 = vunpack.c.l.b16 %v2331
  %v2883 = vunpack.c.h.b16 %v2331
  %v2884 = vunpack.c.l.b16 %v2332
  %v2885 = vunpack.c.h.b16 %v2332
  %v2886 = vunpack.c.l.b16 %v2333
  %v2887 = vunpack.c.h.b16 %v2333
  %v2888 = vunpack.c.l.b16 %v2334
  %v2889 = vunpack.c.h.b16 %v2334
  %v2890 = vunpack.c.l.b16 %v2335
  %v2891 = vunpack.c.h.b16 %v2335
  %v2892 = vunpack.c.l.b16 %v2336
  %v2893 = vunpack.c.h.b16 %v2336
  %v2894 = vunpack.c.l.b16 %v2337
  %v2895 = vunpack.c.h.b16 %v2337
  %v2896 = vunpack.c.l.b16 %v2338
  %v2897 = vunpack.c.h.b16 %v2338
  %v2898 = vunpack.c.l.b16 %v2339
  %v2899 = vunpack.c.h.b16 %v2339
  %v2900 = vunpack.c.l.b16 %v2340
  %v2901 = vunpack.c.h.b16 %v2340
  %v2902 = vunpack.c.l.b16 %v2341
  %v2903 = vunpack.c.h.b16 %v2341
  %v2904 = vunpack.c.l.b16 %v2342
  %v2905 = vunpack.c.h.b16 %v2342
  %v2906 = vunpack.c.l.b16 %v2343
  %v2907 = vunpack.c.h.b16 %v2343
  %v2908 = vunpack.c.l.b16 %v2344
  %v2909 = vunpack.c.h.b16 %v2344
  %v2910 = vunpack.c.l.b16 %v2345
  %v2911 = vunpack.c.h.b16 %v2345
  %v2912 = vunpack.c.l.b16 %v2346
  %v2913 = vunpack.c.h.b16 %v2346
  %v2914 = vunpack.c.l.b16 %v2347
  %v2915 = vunpack.c.h.b16 %v2347
  %v2916 = vunpack.c.l.b16 %v2348
  %v2917 = vunpack.c.h.b16 %v2348
  %v2918 = vunpack.c.l.b16 %v2349
  %v2919 = vunpack.c.h.b16 %v2349
  %v2920 = vunpack.c.l.b16 %v2350
  %v2921 = vunpack.c.h.b16 %v2350
  %v2922 = vunpack.c.l.b16 %v2351
  %v2923 = vunpack.c.h.b16 %v2351
  %v2924 = vunpack.c.l.b16 %v2352
  %v2925 = vunpack.c.h.b16 %v2352
  %v2926 = vunpack.c.l.b16 %v2353
  %v2927 = vunpack.c.h.b16 %v2353
  %v2928 = vunpack.c.l.b16 %v2354
  %v2929 = vunpack.c.h.b16 %v2354
  %v2930 = vunpack.c.l.b16 %v2355
  %v2931 = vunpack.c.h.b16 %v2355
  %v2932 = vunpack.c.l.b16 %v2356
  %v2933 = vunpack.c.h.b16 %v2356
  %v2934 = vunpack.c.l.b16 %v2357
  %v2935 = vunpack.c.h.b16 %v2357
  %v2936 = vunpack.c.l.b16 %v2358
  %v2937 = vunpack.c.h.b16 %v2358
  %v2938 = vunpack.c.l.b16 %v2359
  %v2939 = vunpack.c.h.b16 %v2359
  %v2940 = vunpack.c.l.b16 %v2360
  %v2941 = vunpack.c.h.b16 %v2360
  %v2942 = vunpack.c.l.b16 %v2361
  %v2943 = vunpack.c.h.b16 %v2361
  %v2944 = vunpack.c.l.b16 %v2362
  %v2945 = vunpack.c.h.b16 %v2362
  %v2946 = vunpack.c.l.b16 %v2363
  %v2947 = vunpack.c.h.b16 %v2363
  %v2948 = vunpack.c.l.b16 %v2364
  %v2949 = vunpack.c.h.b16 %v2364
  %v2950 = vunpack.c.l.b16 %v2365
  %v2951 = vunpack.c.h.b16 %v2365
  %v2952 = vunpack.c.l.b16 %v2366
  %v2953 = vunpack.c.h.b16 %v2366
  %v2954 = vunpack.c.l.b16 %v2367
  %v2955 = vunpack.c.h.b16 %v2367
  %v2956 = vunpack.c.l.b16 %v2368
  %v2957 = vunpack.c.h.b16 %v2368
  %v2958 = vunpack.c.l.b16 %v2369
  %v2959 = vunpack.c.h.b16 %v2369
  %v2960 = vunpack.c.l.b16 %v2370
  %v2961 = vunpack.c.h.b16 %v2370
  %v2962 = vunpack.c.l.b16 %v2371
  %v2963 = vunpack.c.h.b16 %v2371
  %v2964 = vunpack.c.l.b16 %v2372
  %v2965 = vunpack.c.h.b16 %v2372
  %v2966 = vunpack.c.l.b16 %v2373
  %v2967 = vunpack.c.h.b16 %v2373
  %v2968 = vunpack.c.l.b16 %v2374
  %v2969 = vunpack.c.h.b16 %v2374
  %v2970 = vunpack.c.l.b16 %v2375
  %v2971 = vunpack.c.h.b16 %v2375
  %v2972 = vunpack.c.l.b16 %v2376
  %v2973 = vunpack.c.h.b16 %v2376
  %v2974 = vunpack.c.l.b16 %v2377
  %v2975 = vunpack.c.h.b16 %v2377
  %v2976 = vunpack.c.l.b16 %v2378
  %v2977 = vunpack.c.h.b16 %v2378
  %v2978 = vunpack.c.l.b16 %v2379
  %v2979 = vunpack.c.h.b16 %v2379
  %v2980 = vunpack.c.l.b16 %v2380
  %v2981 = vunpack.c.h.b16 %v2380
  %v2982 = vunpack.c.l.b16 %v2381
  %v2983 = vunpack.c.h.b16 %v2381
  %v2984 = vunpack.c.l.b16 %v2382
  %v2985 = vunpack.c.h.b16 %v2382
  %v2986 = vunpack.c.l.b16 %v2383
  %v2987 = vunpack.c.h.b16 %v2383
  %v2988 = vunpack.c.l.b16 %v2384
  %v2989 = vunpack.c.h.b16 %v2384
  %v2990 = vunpack.c.l.b16 %v2385
  %v2991 = vunpack.c.h.b16 %v2385
  %v2992 = vunpack.c.l.b16 %v2386
  %v2993 = vunpack.c.h.b16 %v2386
  %v2994 = vunpack.c.l.b16 %v2387
  %v2995 = vunpack.c.h.b16 %v2387
  %v2996 = vunpack.c.l.b16 %v2388
  %v2997 = vunpack.c.h.b16 %v2388
  %v2998 = vunpack.c.l.b16 %v2389
  %v2999 = vunpack.c.h.b16 %v2389
  %v3000 = vunpack.c.l.b16 %v2390
  %v3001 = vunpack.c.h.b16 %v2390
  %v3002 = vunpack.c.l.b16 %v2391
  %v3003 = vunpack.c.h.b16 %v2391
  %v3004 = vunpack.c.l.b16 %v2392
  %v3005 = vunpack.c.h.b16 %v2392
  %v3006 = vunpack.c.l.b16 %v2393
  %v3007 = vunpack.c.h.b16 %v2393
  %v3008 = vunpack.c.l.b16 %v2394
  %v3009 = vunpack.c.h.b16 %v2394
  %v3010 = vunpack.c.l.b16 %v2395
  %v3011 = vunpack.c.h.b16 %v2395
  %v3012 = vunpack.c.l.b16 %v2396
  %v3013 = vunpack.c.h.b16 %v2396
  %v3014 = vunpack.c.l.b16 %v2397
  %v3015 = vunpack.c.h.b16 %v2397
  %v3016 = vunpack.c.l.b16 %v2398
  %v3017 = vunpack.c.h.b16 %v2398
  %v3018 = vunpack.c.l.b16 %v2399
  %v3019 = vunpack.c.h.b16 %v2399
  %v3020 = vunpack.c.l.b16 %v2400
  %v3021 = vunpack.c.h.b16 %v2400
  %v3022 = vunpack.c.l.b16 %v2401
  %v3023 = vunpack.c.h.b16 %v2401
  %v3024 = vunpack.c.l.b16 %v2402
  %v3025 = vunpack.c.h.b16 %v2402
  %v3026 = vunpack.c.l.b16 %v2403
  %v3027 = vunpack.c.h.b16 %v2403
  %v3028 = vunpack.c.l.b16 %v2404
  %v3029 = vunpack.c.h.b16 %v2404
  %v3030 = vunpack.c.l.b16 %v2405
  %v3031 = vunpack.c.h.b16 %v2405
  %v3032 = vunpack.c.l.b16 %v2406
  %v3033 = vunpack.c.h.b16 %v2406
  %v3034 = vunpack.c.l.b16 %v2407
  %v3035 = vunpack.c.h.b16 %v2407
  %v3036 = vunpack.c.l.b16 %v2408
  %v3037 = vunpack.c.h.b16 %v2408
  %v3038 = vunpack.c.l.b16 %v2409
  %v3039 = vunpack.c.h.b16 %v2409
  %v3040 = vunpack.c.l.b16 %v2410
  %v3041 = vunpack.c.h.b16 %v2410
  %v3042 = vunpack.c.l.b16 %v2411
  %v3043 = vunpack.c.h.b16 %v2411
  %v3044 = vunpack.c.l.b16 %v2412
  %v3045 = vunpack.c.h.b16 %v2412
  %v3046 = vunpack.c.l.b16 %v2413
  %v3047 = vunpack.c.h.b16 %v2413
  %v3048 = vunpack.c.l.b16 %v2414
  %v3049 = vunpack.c.h.b16 %v2414
  %v3050 = vunpack.c.l.b16 %v2415
  %v3051 = vunpack.c.h.b16 %v2415
  %v3052 = vunpack.c.l.b16 %v2416
  %v3053 = vunpack.c.h.b16 %v2416
  %v3054 = vunpack.c.l.b16 %v2417
  %v3055 = vunpack.c.h.b16 %v2417
  %v3056 = vunpack.c.l.b16 %v2418
  %v3057 = vunpack.c.h.b16 %v2418
  %v3058 = vunpack.c.l.b16 %v2419
  %v3059 = vunpack.c.h.b16 %v2419
  %v3060 = vunpack.c.l.b16 %v2420
  %v3061 = vunpack.c.h.b16 %v2420
  %v3062 = vunpack.c.l.b16 %v2421
  %v3063 = vunpack.c.h.b16 %v2421
  %v3064 = vunpack.c.l.b16 %v2422
  %v3065 = vunpack.c.h.b16 %v2422
  %v3066 = vunpack.c.l.b16 %v2423
  %v3067 = vunpack.c.h.b16 %v2423
  %v3068 = vunpack.c.l.b16 %v2424
  %v3069 = vunpack.c.h.b16 %v2424
  %v3070 = vunpack.c.l.b16 %v2425
  %v3071 = vunpack.c.h.b16 %v2425
  %v3072 = vunpack.c.l.b16 %v2426
  %v3073 = vunpack.c.h.b16 %v2426
  %v3074 = vunpack.c.l.b16 %v2427
  %v3075 = vunpack.c.h.b16 %v2427
  %v3076 = vunpack.c.l.b16 %v2428
  %v3077 = vunpack.c.h.b16 %v2428
  %v3078 = vunpack.c.l.b16 %v2429
  %v3079 = vunpack.c.h.b16 %v2429
  %v3080 = vunpack.c.l.b16 %v2430
  %v3081 = vunpack.c.h.b16 %v2430
  %v3082 = vunpack.c.l.b16 %v2431
  %v3083 = vunpack.c.h.b16 %v2431
  %v3084 = vunpack.c.l.b16 %v2432
  %v3085 = vunpack.c.h.b16 %v2432
  %v3086 = vunpack.c.l.b16 %v2433
  %v3087 = vunpack.c.h.b16 %v2433
  %v3088 = vunpack.c.l.b16 %v2434
  %v3089 = vunpack.c.h.b16 %v2434
  %v3090 = vunpack.c.l.b16 %v2435
  %v3091 = vunpack.c.h.b16 %v2435
  %v3092 = vunpack.c.l.b16 %v2436
  %v3093 = vunpack.c.h.b16 %v2436
  %v3094 = vunpack.c.l.b16 %v2437
  %v3095 = vunpack.c.h.b16 %v2437
  %v3096 = vunpack.c.l.b16 %v2438
  %v3097 = vunpack.c.h.b16 %v2438
  %v3098 = vunpack.c.l.b16 %v2439
  %v3099 = vunpack.c.h.b16 %v2439
  %v3100 = vunpack.c.l.b16 %v2440
  %v3101 = vunpack.c.h.b16 %v2440
  %v3102 = vunpack.c.l.b16 %v2441
  %v3103 = vunpack.c.h.b16 %v2441
  %v3104 = vunpack.c.l.b16 %v2442
  %v3105 = vunpack.c.h.b16 %v2442
  %v3106 = vunpack.c.l.b16 %v2443
  %v3107 = vunpack.c.h.b16 %v2443
  %v3108 = vunpack.c.l.b16 %v2444
  %v3109 = vunpack.c.h.b16 %v2444
  %v3110 = vunpack.c.l.b16 %v2445
  %v3111 = vunpack.c.h.b16 %v2445
  %v3112 = vunpack.c.l.b16 %v2446
  %v3113 = vunpack.c.h.b16 %v2446
  %v3114 = vunpack.c.l.b16 %v2447
  %v3115 = vunpack.c.h.b16 %v2447
  %v3116 = vunpack.c.l.b16 %v2448
  %v3117 = vunpack.c.h.b16 %v2448
  %v3118 = vunpack.c.l.b16 %v2449
  %v3119 = vunpack.c.h.b16 %v2449
  %v3120 = vunpack.c.l.b16 %v2450
  %v3121 = vunpack.c.h.b16 %v2450
  %v3122 = vunpack.c.l.b16 %v2451
  %v3123 = vunpack.c.h.b16 %v2451
  %v3124 = vunpack.c.l.b16 %v2452
  %v3125 = vunpack.c.h.b16 %v2452
  %v3126 = vunpack.c.l.b16 %v2453
  %v3127 = vunpack.c.h.b16 %v2453
  %v3128 = vunpack.c.l.b16 %v2454
  %v3129 = vunpack.c.h.b16 %v2454
  %v3130 = vunpack.c.l.b16 %v2455
  %v3131 = vunpack.c.h.b16 %v2455
  %v3132 = vunpack.c.l.b16 %v2456
  %v3133 = vunpack.c.h.b16 %v2456
  %v3134 = vunpack.c.l.b16 %v2457
  %v3135 = vunpack.c.h.b16 %v2457
  %v3136 = vunpack.c.l.b16 %v2458
  %v3137 = vunpack.c.h.b16 %v2458
  %v3138 = vunpack.c.l.b16 %v2459
  %v3139 = vunpack.c.h.b16 %v2459
  %v3140 = vunpack.c.l.b16 %v2460
  %v3141 = vunpack.c.h.b16 %v2460
  %v3142 = vunpack.c.l.b16 %v2461
  %v3143 = vunpack.c.h.b16 %v2461
  %v3144 = vunpack.c.l.b16 %v2462
  %v3145 = vunpack.c.h.b16 %v2462
  %v3146 = vunpack.c.l.b16 %v2463
  %v3147 = vunpack.c.h.b16 %v2463
  %v3148 = vunpack.c.l.b16 %v2464
  %v3149 = vunpack.c.h.b16 %v2464
  %v3150 = vunpack.c.l.b16 %v2465
  %v3151 = vunpack.c.h.b16 %v2465
  %v3152 = vunpack.c.l.b16 %v2466
  %v3153 = vunpack.c.h.b16 %v2466
  %v3154 = vunpack.c.l.b16 %v2467
  %v3155 = vunpack.c.h.b16 %v2467
  %v3156 = vunpack.c.l.b16 %v2468
  %v3157 = vunpack.c.h.b16 %v2468
  %v3158 = vunpack.c.l.b16 %v2469
  %v3159 = vunpack.c.h.b16 %v2469
  %v3160 = vunpack.c.l.b16 %v2470
  %v3161 = vunpack.c.h.b16 %v2470
  %v3162 = vunpack.c.l.b16 %v2471
  %v3163 = vunpack.c.h.b16 %v2471
  %v3164 = vunpack.c.l.b16 %v2472
  %v3165 = vunpack.c.h.b16 %v2472
  %v3166 = vunpack.c.l.b16 %v2473
  %v3167 = vunpack.c.h.b16 %v2473
  %v3168 = vunpack.c.l.b16 %v2474
  %v3169 = vunpack.c.h.b16 %v2474
  %v3170 = vunpack.c.l.b16 %v2475
  %v3171 = vunpack.c.h.b16 %v2475
  %v3172 = vunpack.c.l.b16 %v2476
  %v3173 = vunpack.c.h.b16 %v2476
  %v3174 = vunpack.c.l.b16 %v2477
  %v3175 = vunpack.c.h.b16 %v2477
  %v3176 = vunpack.c.l.b16 %v2478
  %v3177 = vunpack.c.h.b16 %v2478
  %v3178 = vunpack.c.l.b16 %v2479
  %v3179 = vunpack.c.h.b16 %v2479
  %v3180 = vunpack.c.l.b16 %v2480
  %v3181 = vunpack.c.h.b16 %v2480
  %v3182 = vunpack.c.l.b16 %v2481
  %v3183 = vunpack.c.h.b16 %v2481
  %v3184 = vunpack.c.l.b16 %v2482
  %v3185 = vunpack.c.h.b16 %v2482
  %v3186 = vunpack.c.l.b16 %v2483
  %v3187 = vunpack.c.h.b16 %v2483
  %v3188 = vunpack.c.l.b16 %v2484
  %v3189 = vunpack.c.h.b16 %v2484
  %v3190 = vunpack.c.l.b16 %v2485
  %v3191 = vunpack.c.h.b16 %v2485
  %v3192 = vunpack.c.l.b16 %v2486
  %v3193 = vunpack.c.h.b16 %v2486
  %v3194 = vunpack.c.l.b16 %v2487
  %v3195 = vunpack.c.h.b16 %v2487
  %v3196 = vunpack.c.l.b16 %v2488
  %v3197 = vunpack.c.h.b16 %v2488
  %v3198 = vunpack.c.l.b16 %v2489
  %v3199 = vunpack.c.h.b16 %v2489
  %v3200 = vunpack.c.l.b16 %v2490
  %v3201 = vunpack.c.h.b16 %v2490
  %v3202 = vunpack.c.l.b16 %v2491
  %v3203 = vunpack.c.h.b16 %v2491
  %v3204 = vunpack.c.l.b16 %v2492
  %v3205 = vunpack.c.h.b16 %v2492
  %v3206 = vunpack.c.l.b16 %v2493
  %v3207 = vunpack.c.h.b16 %v2493
  %v3208 = vunpack.c.l.b16 %v2494
  %v3209 = vunpack.c.h.b16 %v2494
  %v3210 = vunpack.c.l.b16 %v2495
  %v3211 = vunpack.c.h.b16 %v2495
  %v3212 = vunpack.c.l.b16 %v2496
  %v3213 = vunpack.c.h.b16 %v2496
  %v3214 = vunpack.c.l.b16 %v2497
  %v3215 = vunpack.c.h.b16 %v2497
  %v3216 = vunpack.c.l.b16 %v2498
  %v3217 = vunpack.c.h.b16 %v2498
  %v3218 = vunpack.c.l.b16 %v2499
  %v3219 = vunpack.c.h.b16 %v2499
  %v3220 = vunpack.c.l.b16 %v2500
  %v3221 = vunpack.c.h.b16 %v2500
  %v3222 = vunpack.c.l.b16 %v2501
  %v3223 = vunpack.c.h.b16 %v2501
  %v3224 = vunpack.c.l.b16 %v2502
  %v3225 = vunpack.c.h.b16 %v2502
  %v3226 = vunpack.c.l.b16 %v2503
  %v3227 = vunpack.c.h.b16 %v2503
  %v3228 = vunpack.c.l.b16 %v2504
  %v3229 = vunpack.c.h.b16 %v2504
  %v3230 = vunpack.c.l.b16 %v2505
  %v3231 = vunpack.c.h.b16 %v2505
  %v3232 = vunpack.c.l.b16 %v2506
  %v3233 = vunpack.c.h.b16 %v2506
  %v3234 = vunpack.c.l.b16 %v2507
  %v3235 = vunpack.c.h.b16 %v2507
  %v3236 = vunpack.c.l.b16 %v2508
  %v3237 = vunpack.c.h.b16 %v2508
  %v3238 = vunpack.c.l.b16 %v2509
  %v3239 = vunpack.c.h.b16 %v2509
  %v3240 = vunpack.c.l.b16 %v2510
  %v3241 = vunpack.c.h.b16 %v2510
  %v3242 = vunpack.c.l.b16 %v2511
  %v3243 = vunpack.c.h.b16 %v2511
  %v3244 = vunpack.c.l.b16 %v2512
  %v3245 = vunpack.c.h.b16 %v2512
  %v3246 = vunpack.c.l.b16 %v2513
  %v3247 = vunpack.c.h.b16 %v2513
  %v3248 = vunpack.c.l.b16 %v2514
  %v3249 = vunpack.c.h.b16 %v2514
  %v3250 = vunpack.c.l.b16 %v2515
  %v3251 = vunpack.c.h.b16 %v2515
  %v3252 = vunpack.c.l.b16 %v2516
  %v3253 = vunpack.c.h.b16 %v2516
  %v3254 = vunpack.c.l.b16 %v2517
  %v3255 = vunpack.c.h.b16 %v2517
  %v3256 = vunpack.c.l.b16 %v2518
  %v3257 = vunpack.c.h.b16 %v2518
  %v3258 = vunpack.c.l.b16 %v2519
  %v3259 = vunpack.c.h.b16 %v2519
  %v3260 = vunpack.c.l.b16 %v2520
  %v3261 = vunpack.c.h.b16 %v2520
  %v3262 = vunpack.c.l.b16 %v2521
  %v3263 = vunpack.c.h.b16 %v2521
  %v3264 = vunpack.c.l.b16 %v2522
  %v3265 = vunpack.c.h.b16 %v2522
  %v3266 = vunpack.c.l.b16 %v2523
  %v3267 = vunpack.c.h.b16 %v2523
  %v3268 = vunpack.c.l.b16 %v2524
  %v3269 = vunpack.c.h.b16 %v2524
  %v3270 = vunpack.c.l.b16 %v2525
  %v3271 = vunpack.c.h.b16 %v2525
  %v3272 = vunpack.c.l.b16 %v2526
  %v3273 = vunpack.c.h.b16 %v2526
  %v3274 = vunpack.c.l.b16 %v2527
  %v3275 = vunpack.c.h.b16 %v2527
  %v3276 = vunpack.c.l.b16 %v2528
  %v3277 = vunpack.c.h.b16 %v2528
  %v3278 = vunpack.c.l.b16 %v2529
  %v3279 = vunpack.c.h.b16 %v2529
  %v3280 = vunpack.c.l.b16 %v2530
  %v3281 = vunpack.c.h.b16 %v2530
  %v3282 = vunpack.c.l.b16 %v2531
  %v3283 = vunpack.c.h.b16 %v2531
  %v3284 = vunpack.c.l.b16 %v2532
  %v3285 = vunpack.c.h.b16 %v2532
  %v3286 = vunpack.c.l.b16 %v2533
  %v3287 = vunpack.c.h.b16 %v2533
  %v3288 = vunpack.c.l.b16 %v2534
  %v3289 = vunpack.c.h.b16 %v2534
  %v3290 = vunpack.c.l.b16 %v2535
  %v3291 = vunpack.c.h.b16 %v2535
  %v3292 = vunpack.c.l.b16 %v2536
  %v3293 = vunpack.c.h.b16 %v2536
  %v3294 = vunpack.c.l.b16 %v2537
  %v3295 = vunpack.c.h.b16 %v2537
  %v3296 = vunpack.c.l.b16 %v2538
  %v3297 = vunpack.c.h.b16 %v2538
  %v3298 = vunpack.c.l.b16 %v2539
  %v3299 = vunpack.c.h.b16 %v2539
  %v3300 = vunpack.c.l.b16 %v2540
  %v3301 = vunpack.c.h.b16 %v2540
  %v3302 = vunpack.c.l.b16 %v2541
  %v3303 = vunpack.c.h.b16 %v2541
  %v3304 = vunpack.c.l.b16 %v2542
  %v3305 = vunpack.c.h.b16 %v2542
  %v3306 = vunpack.c.l.b16 %v2543
  %v3307 = vunpack.c.h.b16 %v2543
  %v3308 = vunpack.c.l.b16 %v2544
  %v3309 = vunpack.c.h.b16 %v2544
  %v3310 = vunpack.c.l.b16 %v2545
  %v3311 = vunpack.c.h.b16 %v2545
  %v3312 = vunpack.c.l.b16 %v2546
  %v3313 = vunpack.c.h.b16 %v2546
  %v3314 = vunpack.c.l.b16 %v2547
  %v3315 = vunpack.c.h.b16 %v2547
  %v3316 = vpack.c.b16 %v2812, %v2804
  %v3317 = vpack.c.b16 %v2813, %v2805
  %v3318 = vpack.c.b16 %v2814, %v2806
  %v3319 = vpack.c.b16 %v2815, %v2807
  %v3320 = vpack.c.b16 %v2816, %v2808
  %v3321 = vpack.c.b16 %v2817, %v2809
  %v3322 = vpack.c.b16 %v2818, %v2810
  %v3323 = vpack.c.b16 %v2819, %v2811
  %v3324 = vpack.c.b16 %v2828, %v2820
  %v3325 = vpack.c.b16 %v2829, %v2821
  %v3326 = vpack.c.b16 %v2830, %v2822
  %v3327 = vpack.c.b16 %v2831, %v2823
  %v3328 = vpack.c.b16 %v2832, %v2824
  %v3329 = vpack.c.b16 %v2833, %v2825
  %v3330 = vpack.c.b16 %v2834, %v2826
  %v3331 = vpack.c.b16 %v2835, %v2827
  %v3332 = vpack.c.b16 %v2844, %v2836
  %v3333 = vpack.c.b16 %v2845, %v2837
  %v3334 = vpack.c.b16 %v2846, %v2838
  %v3335 = vpack.c.b16 %v2847, %v2839
  %v3336 = vpack.c.b16 %v2848, %v2840
  %v3337 = vpack.c.b16 %v2849, %v2841
  %v3338 = vpack.c.b16 %v2850, %v2842
  %v3339 = vpack.c.b16 %v2851, %v2843
  %v3340 = vpack.c.b16 %v2860, %v2852
  %v3341 = vpack.c.b16 %v2861, %v2853
  %v3342 = vpack.c.b16 %v2862, %v2854
  %v3343 = vpack.c.b16 %v2863, %v2855
  %v3344 = vpack.c.b16 %v2864, %v2856
  %v3345 = vpack.c.b16 %v2865, %v2857
  %v3346 = vpack.c.b16 %v2866, %v2858
  %v3347 = vpack.c.b16 %v2867, %v2859
  %v3348 = vpack.c.b16 %v2876, %v2868
  %v3349 = vpack.c.b16 %v2877, %v2869
  %v3350 = vpack.c.b16 %v2878, %v2870
  %v3351 = vpack.c.b16 %v2879, %v2871
  %v3352 = vpack.c.b16 %v2880, %v2872
  %v3353 = vpack.c.b16 %v2881, %v2873
  %v3354 = vpack.c.b16 %v2882, %v2874
  %v3355 = vpack.c.b16 %v2883, %v2875
  %v3356 = vpack.c.b16 %v2892, %v2884
  %v3357 = vpack.c.b16 %v2893, %v2885
  %v3358 = vpack.c.b16 %v2894, %v2886
  %v3359 = vpack.c.b16 %v2895, %v2887
  %v3360 = vpack.c.b16 %v2896, %v2888
  %v3361 = vpack.c.b16 %v2897, %v2889
  %v3362 = vpack.c.b16 %v2898, %v2890
  %v3363 = vpack.c.b16 %v2899, %v2891
  %v3364 = vpack.c.b16 %v2908, %v2900
  %v3365 = vpack.c.b16 %v2909, %v2901
  %v3366 = vpack.c.b16 %v2910, %v2902
  %v3367 = vpack.c.b16 %v2911, %v2903
  %v3368 = vpack.c.b16 %v2912, %v2904
  %v3369 = vpack.c.b16 %v2913, %v2905
  %v3370 = vpack.c.b16 %v2914, %v2906
  %v3371 = vpack.c.b16 %v2915, %v2907
  %v3372 = vpack.c.b16 %v2924, %v2916
  %v3373 = vpack.c.b16 %v2925, %v2917
  %v3374 = vpack.c.b16 %v2926, %v2918
  %v3375 = vpack.c.b16 %v2927, %v2919
  %v3376 = vpack.c.b16 %v2928, %v2920
  %v3377 = vpack.c.b16 %v2929, %v2921
  %v3378 = vpack.c.b16 %v2930, %v2922
  %v3379 = vpack.c.b16 %v2931, %v2923
  %v3380 = vpack.c.b16 %v2940, %v2932
  %v3381 = vpack.c.b16 %v2941, %v2933
  %v3382 = vpack.c.b16 %v2942, %v2934
  %v3383 = vpack.c.b16 %v2943, %v2935
  %v3384 = vpack.c.b16 %v2944, %v2936
  %v3385 = vpack.c.b16 %v2945, %v2937
  %v3386 = vpack.c.b16 %v2946, %v2938
  %v3387 = vpack.c.b16 %v2947, %v2939
  %v3388 = vpack.c.b16 %v2956, %v2948
  %v3389 = vpack.c.b16 %v2957, %v2949
  %v3390 = vpack.c.b16 %v2958, %v2950
  %v3391 = vpack.c.b16 %v2959, %v2951
  %v3392 = vpack.c.b16 %v2960, %v2952
  %v3393 = vpack.c.b16 %v2961, %v2953
  %v3394 = vpack.c.b16 %v2962, %v2954
  %v3395 = vpack.c.b16 %v2963, %v2955
  %v3396 = vpack.c.b16 %v2972, %v2964
  %v3397 = vpack.c.b16 %v2973, %v2965
  %v3398 = vpack.c.b16 %v2974, %v2966
  %v3399 = vpack.c.b16 %v2975, %v2967
  %v3400 = vpack.c.b16 %v2976, %v2968
  %v3401 = vpack.c.b16 %v2977, %v2969
  %v3402 = vpack.c.b16 %v2978, %v2970
  %v3403 = vpack.c.b16 %v2979, %v2971
  %v3404 = vpack.c.b16 %v2988, %v2980
  %v3405 = vpack.c.b16 %v2989, %v2981
  %v3406 = vpack.c.b16 %v2990, %v2982
  %v3407 = vpack.c.b16 %v2991, %v2983
  %v3408 = vpack.c.b16 %v2992, %v2984
  %v3409 = vpack.c.b16 %v2993, %v2985
  %v3410 = vpack.c.b16 %v2994, %v2986
  %v3411 = vpack.c.b16 %v2995, %v2987
  %v3412 = vpack.c.b16 %v3004, %v2996
  %v3413 = vpack.c.b16 %v3005, %v2997
  %v3414 = vpack.c.b16 %v3006, %v2998
  %v3415 = vpack.c.b16 %v3007, %v2999
  %v3416 = vpack.c.b16 %v3008, %v3000
  %v3417 = vpack.c.b16 %v3009, %v3001
  %v3418 = vpack.c.b16 %v3010, %v3002
  %v3419 = vpack.c.b16 %v3011, %v3003
  %v3420 = vpack.c.b16 %v3020, %v3012
  %v3421 = vpack.c.b16 %v3021, %v3013
  %v3422 = vpack.c.b16 %v3022, %v3014
  %v3423 = vpack.c.b16 %v3023, %v3015
  %v3424 = vpack.c.b16 %v3024, %v3016
  %v3425 = vpack.c.b16 %v3025, %v3017
  %v3426 = vpack.c.b16 %v3026, %v3018
  %v3427 = vpack.c.b16 %v3027, %v3019
  %v3428 = vpack.c.b16 %v3036, %v3028
  %v3429 = vpack.c.b16 %v3037, %v3029
  %v3430 = vpack.c.b16 %v3038, %v3030
  %v3431 = vpack.c.b16 %v3039, %v3031
  %v3432 = vpack.c.b16 %v3040, %v3032
  %v3433 = vpack.c.b16 %v3041, %v3033
  %v3434 = vpack.c.b16 %v3042, %v3034
  %v3435 = vpack.c.b16 %v3043, %v3035
  %v3436 = vpack.c.b16 %v3052, %v3044
  %v3437 = vpack.c.b16 %v3053, %v3045
  %v3438 = vpack.c.b16 %v3054, %v3046
  %v3439 = vpack.c.b16 %v3055, %v3047
  %v3440 = vpack.c.b16 %v3056, %v3048
  %v3441 = vpack.c.b16 %v3057, %v3049
  %v3442 = vpack.c.b16 %v3058, %v3050
  %v3443 = vpack.c.b16 %v3059, %v3051
  %v3444 = vpack.c.b16 %v3068, %v3060
  %v3445 = vpack.c.b16 %v3069, %v3061
  %v3446 = vpack.c.b16 %v3070, %v3062
  %v3447 = vpack.c.b16 %v3071, %v3063
  %v3448 = vpack.c.b16 %v3072, %v3064
  %v3449 = vpack.c.b16 %v3073, %v3065
  %v3450 = vpack.c.b16 %v3074, %v3066
  %v3451 = vpack.c.b16 %v3075, %v3067
  %v3452 = vpack.c.b16 %v3084, %v3076
  %v3453 = vpack.c.b16 %v3085, %v3077
  %v3454 = vpack.c.b16 %v3086, %v3078
  %v3455 = vpack.c.b16 %v3087, %v3079
  %v3456 = vpack.c.b16 %v3088, %v3080
  %v3457 = vpack.c.b16 %v3089, %v3081
  %v3458 = vpack.c.b16 %v3090, %v3082
  %v3459 = vpack.c.b16 %v3091, %v3083
  %v3460 = vpack.c.b16 %v3100, %v3092
  %v3461 = vpack.c.b16 %v3101, %v3093
  %v3462 = vpack.c.b16 %v3102, %v3094
  %v3463 = vpack.c.b16 %v3103, %v3095
  %v3464 = vpack.c.b16 %v3104, %v3096
  %v3465 = vpack.c.b16 %v3105, %v3097
  %v3466 = vpack.c.b16 %v3106, %v3098
  %v3467 = vpack.c.b16 %v3107, %v3099
  %v3468 = vpack.c.b16 %v3116, %v3108
  %v3469 = vpack.c.b16 %v3117, %v3109
  %v3470 = vpack.c.b16 %v3118, %v3110
  %v3471 = vpack.c.b16 %v3119, %v3111
  %v3472 = vpack.c.b16 %v3120, %v3112
  %v3473 = vpack.c.b16 %v3121, %v3113
  %v3474 = vpack.c.b16 %v3122, %v3114
  %v3475 = vpack.c.b16 %v3123, %v3115
  %v3476 = vpack.c.b16 %v3132, %v3124
  %v3477 = vpack.c.b16 %v3133, %v3125
  %v3478 = vpack.c.b16 %v3134, %v3126
  %v3479 = vpack.c.b16 %v3135, %v3127
  %v3480 = vpack.c.b16 %v3136, %v3128
  %v3481 = vpack.c.b16 %v3137, %v3129
  %v3482 = vpack.c.b16 %v3138, %v3130
  %v3483 = vpack.c.b16 %v3139, %v3131
  %v3484 = vpack.c.b16 %v3148, %v3140
  %v3485 = vpack.c.b16 %v3149, %v3141
  %v3486 = vpack.c.b16 %v3150, %v3142
  %v3487 = vpack.c.b16 %v3151, %v3143
  %v3488 = vpack.c.b16 %v3152, %v3144
  %v3489 = vpack.c.b16 %v3153, %v3145
  %v3490 = vpack.c.b16 %v3154, %v3146
  %v3491 = vpack.c.b16 %v3155, %v3147
  %v3492 = vpack.c.b16 %v3164, %v3156
  %v3493 = vpack.c.b16 %v3165, %v3157
  %v3494 = vpack.c.b16 %v3166, %v3158
  %v3495 = vpack.c.b16 %v3167, %v3159
  %v3496 = vpack.c.b16 %v3168, %v3160
  %v3497 = vpack.c.b16 %v3169, %v3161
  %v3498 = vpack.c.b16 %v3170, %v3162
  %v3499 = vpack.c.b16 %v3171, %v3163
  %v3500 = vpack.c.b16 %v3180, %v3172
  %v3501 = vpack.c.b16 %v3181, %v3173
  %v3502 = vpack.c.b16 %v3182, %v3174
  %v3503 = vpack.c.b16 %v3183, %v3175
  %v3504 = vpack.c.b16 %v3184, %v3176
  %v3505 = vpack.c.b16 %v3185, %v3177
  %v3506 = vpack.c.b16 %v3186, %v3178
  %v3507 = vpack.c.b16 %v3187, %v3179
  %v3508 = vpack.c.b16 %v3196, %v3188
  %v3509 = vpack.c.b16 %v3197, %v3189
  %v3510 = vpack.c.b16 %v3198, %v3190
  %v3511 = vpack.c.b16 %v3199, %v3191
  %v3512 = vpack.c.b16 %v3200, %v3192
  %v3513 = vpack.c.b16 %v3201, %v3193
  %v3514 = vpack.c.b16 %v3202, %v3194
  %v3515 = vpack.c.b16 %v3203, %v3195
  %v3516 = vpack.c.b16 %v3212, %v3204
  %v3517 = vpack.c.b16 %v3213, %v3205
  %v3518 = vpack.c.b16 %v3214, %v3206
  %v3519 = vpack.c.b16 %v3215, %v3207
  %v3520 = vpack.c.b16 %v3216, %v3208
  %v3521 = vpack.c.b16 %v3217, %v3209
  %v3522 = vpack.c.b16 %v3218, %v3210
  %v3523 = vpack.c.b16 %v3219, %v3211
  %v3524 = vpack.c.b16 %v3228, %v3220
  %v3525 = vpack.c.b16 %v3229, %v3221
  %v3526 = vpack.c.b16 %v3230, %v3222
  %v3527 = vpack.c.b16 %v3231, %v3223
  %v3528 = vpack.c.b16 %v3232, %v3224
  %v3529 = vpack.c.b16 %v3233, %v3225
  %v3530 = vpack.c.b16 %v3234, %v3226
  %v3531 = vpack.c.b16 %v3235, %v3227
  %v3532 = vpack.c.b16 %v3244, %v3236
  %v3533 = vpack.c.b16 %v3245, %v3237
  %v3534 = vpack.c.b16 %v3246, %v3238
  %v3535 = vpack.c.b16 %v3247, %v3239
  %v3536 = vpack.c.b16 %v3248, %v3240
  %v3537 = vpack.c.b16 %v3249, %v3241
  %v3538 = vpack.c.b16 %v3250, %v3242
  %v3539 = vpack.c.b16 %v3251, %v3243
  %v3540 = vpack.c.b16 %v3260, %v3252
  %v3541 = vpack.c.b16 %v3261, %v3253
  %v3542 = vpack.c.b16 %v3262, %v3254
  %v3543 = vpack.c.b16 %v3263, %v3255
  %v3544 = vpack.c.b16 %v3264, %v3256
  %v3545 = vpack.c.b16 %v3265, %v3257
  %v3546 = vpack.c.b16 %v3266, %v3258
  %v3547 = vpack.c.b16 %v3267, %v3259
  %v3548 = vpack.c.b16 %v3276, %v3268
  %v3549 = vpack.c.b16 %v3277, %v3269
  %v3550 = vpack.c.b16 %v3278, %v3270
  %v3551 = vpack.c.b16 %v3279, %v3271
  %v3552 = vpack.c.b16 %v3280, %v3272
  %v3553 = vpack.c.b16 %v3281, %v3273
  %v3554 = vpack.c.b16 %v3282, %v3274
  %v3555 = vpack.c.b16 %v3283, %v3275
  %v3556 = vpack.c.b16 %v3292, %v3284
  %v3557 = vpack.c.b16 %v3293, %v3285
  %v3558 = vpack.c.b16 %v3294, %v3286
  %v3559 = vpack.c.b16 %v3295, %v3287
  %v3560 = vpack.c.b16 %v3296, %v3288
  %v3561 = vpack.c.b16 %v3297, %v3289
  %v3562 = vpack.c.b16 %v3298, %v3290
  %v3563 = vpack.c.b16 %v3299, %v3291
  %v3564 = vpack.c.b16 %v3308, %v3300
  %v3565 = vpack.c.b16 %v3309, %v3301
  %v3566 = vpack.c.b16 %v3310, %v3302
  %v3567 = vpack.c.b16 %v3311, %v3303
  %v3568 = vpack.c.b16 %v3312, %v3304
  %v3569 = vpack.c.b16 %v3313, %v3305
  %v3570 = vpack.c.b16 %v3314, %v3306
  %v3571 = vpack.c.b16 %v3315, %v3307
  %3828 = vmatprep.subr.bf16.mxu0 %v3317
  %3829 = vmatpush1.bf16.msra.mxu0 %v3316
  %3830 = vmatprep.subr.bf16.mxu0 %v3325
  %3831 = vmatpush1.bf16.msra.mxu0 %v3324
  %3832 = vmatprep.subr.bf16.mxu0 %v3333
  %3833 = vmatpush1.bf16.msra.mxu0 %v3332
  %3834 = vmatprep.subr.bf16.mxu0 %v3341
  %3835 = vmatpush1.bf16.msra.mxu0 %v3340
  %3836 = vmatprep.subr.bf16.mxu0 %v3349
  %3837 = vmatpush1.bf16.msra.mxu0 %v3348
  %3838 = vmatprep.subr.bf16.mxu0 %v3357
  %3839 = vmatpush1.bf16.msra.mxu0 %v3356
  %3840 = vmatprep.subr.bf16.mxu0 %v3365
  %3841 = vmatpush1.bf16.msra.mxu0 %v3364
  %3842 = vmatprep.subr.bf16.mxu0 %v3373
  %3843 = vmatpush1.bf16.msra.mxu0 %v3372
  %3844 = vmatprep.subr.bf16.mxu0 %v3381
  %3845 = vmatpush1.bf16.msra.mxu0 %v3380
  %3846 = vmatprep.subr.bf16.mxu0 %v3389
  %3847 = vmatpush1.bf16.msra.mxu0 %v3388
  %3848 = vmatprep.subr.bf16.mxu0 %v3397
  %3849 = vmatpush1.bf16.msra.mxu0 %v3396
  %3850 = vmatprep.subr.bf16.mxu0 %v3405
  %3851 = vmatpush1.bf16.msra.mxu0 %v3404
  %3852 = vmatprep.subr.bf16.mxu0 %v3413
  %3853 = vmatpush1.bf16.msra.mxu0 %v3412
  %3854 = vmatprep.subr.bf16.mxu0 %v3421
  %3855 = vmatpush1.bf16.msra.mxu0 %v3420
  %3856 = vmatprep.subr.bf16.mxu0 %v3429
  %3857 = vmatpush1.bf16.msra.mxu0 %v3428
  %3858 = vmatprep.subr.bf16.mxu0 %v3437
  %3859 = vmatpush1.bf16.msra.mxu0 %v3436
  %3860 = vmatprep.mubr.bf16.mxu0 %v1991
  %3861 = vmatmul.mubr.bf16.gmra.mrb[0].mxu0 %v1990
  %v3862 = vpop.f32.mrb[0].mxu0
  %v3863 = vadd.f32 0.0, %v3862
  %v3864 = vpop.f32.mrb[0].mxu0
  %v3865 = vadd.f32 0.0, %v3864
  %v3866 = vpop.f32.mrb[0].mxu0
  %v3867 = vadd.f32 0.0, %v3866
  %v3868 = vpop.f32.mrb[0].mxu0
  %v3869 = vadd.f32 0.0, %v3868
  %3870 = vmatprep.mubr.bf16.mxu0 %v1995
  %3871 = vmatmul.mubr.bf16.gmra.mrb[0].mxu0 %v1994
  %v3872 = vpop.f32.mrb[0].mxu0
  %v3873 = vadd.f32 0.0, %v3872
  %v3874 = vpop.f32.mrb[0].mxu0
  %v3875 = vadd.f32 0.0, %v3874
  %v3876 = vpop.f32.mrb[0].mxu0
  %v3877 = vadd.f32 0.0, %v3876
  %v3878 = vpop.f32.mrb[0].mxu0
  %v3879 = vadd.f32 0.0, %v3878
  %3880 = vmatprep.mubr.bf16.mxu0 %v1999
  %3881 = vmatmul.mubr.bf16.gmra.mrb[0].mxu0 %v1998
  %v3882 = vpop.f32.mrb[0].mxu0
  %v3883 = vadd.f32 0.0, %v3882
  %v3884 = vpop.f32.mrb[0].mxu0
  %v3885 = vadd.f32 0.0, %v3884
  %v3886 = vpop.f32.mrb[0].mxu0
  %v3887 = vadd.f32 0.0, %v3886
  %v3888 = vpop.f32.mrb[0].mxu0
  %v3889 = vadd.f32 0.0, %v3888
  %3890 = vmatprep.mubr.bf16.mxu0 %v2003
  %3891 = vmatmul.mubr.bf16.gmra.mrb[0].mxu0 %v2002
  %v3892 = vpop.f32.mrb[0].mxu0
  %v3893 = vadd.f32 0.0, %v3892
  %v3894 = vpop.f32.mrb[0].mxu0
  %v3895 = vadd.f32 0.0, %v3894
  %v3896 = vpop.f32.mrb[0].mxu0
  %v3897 = vpop.f32.mrb[0].mxu0
  %3898 = vdwg.mxu0
  %3899 = vmatprep.subr.bf16.mxu0 %v3445
  %3900 = vmatpush1.bf16.msra.mxu0 %v3444
  %3901 = vmatprep.subr.bf16.mxu0 %v3453
  %3902 = vmatpush1.bf16.msra.mxu0 %v3452
  %3903 = vmatprep.subr.bf16.mxu0 %v3461
  %3904 = vmatpush1.bf16.msra.mxu0 %v3460
  %3905 = vmatprep.subr.bf16.mxu0 %v3469
  %3906 = vmatpush1.bf16.msra.mxu0 %v3468
  %3907 = vmatprep.subr.bf16.mxu0 %v3477
  %3908 = vmatpush1.bf16.msra.mxu0 %v3476
  %3909 = vmatprep.subr.bf16.mxu0 %v3485
  %3910 = vmatpush1.bf16.msra.mxu0 %v3484
  %3911 = vmatprep.subr.bf16.mxu0 %v3493
  %3912 = vmatpush1.bf16.msra.mxu0 %v3492
  %3913 = vmatprep.subr.bf16.mxu0 %v3501
  %3914 = vmatpush1.bf16.msra.mxu0 %v3500
  %3915 = vmatprep.subr.bf16.mxu0 %v3509
  %3916 = vmatpush1.bf16.msra.mxu0 %v3508
  %3917 = vmatprep.subr.bf16.mxu0 %v3517
  %3918 = vmatpush1.bf16.msra.mxu0 %v3516
  %3919 = vmatprep.subr.bf16.mxu0 %v3525
  %3920 = vmatpush1.bf16.msra.mxu0 %v3524
  %3921 = vmatprep.subr.bf16.mxu0 %v3533
  %3922 = vmatpush1.bf16.msra.mxu0 %v3532
  %3923 = vmatprep.subr.bf16.mxu0 %v3541
  %3924 = vmatpush1.bf16.msra.mxu0 %v3540
  %3925 = vmatprep.subr.bf16.mxu0 %v3549
  %3926 = vmatpush1.bf16.msra.mxu0 %v3548
  %3927 = vmatprep.subr.bf16.mxu0 %v3557
  %3928 = vmatpush1.bf16.msra.mxu0 %v3556
  %3929 = vmatprep.subr.bf16.mxu0 %v3565
  %3930 = vmatpush1.bf16.msra.mxu0 %v3564
  %3931 = vmatprep.mubr.bf16.mxu0 %v1993
  %3932 = vmatmul.mubr.bf16.gmra.mrb[0].mxu0 %v1992
  %v3933 = vpop.f32.mrb[0].mxu0
  %v3934 = vadd.f32 %v3863, %v3933
  %v3935 = vpop.f32.mrb[0].mxu0
  %v3936 = vadd.f32 %v3865, %v3935
  %v3937 = vpop.f32.mrb[0].mxu0
  %v3938 = vadd.f32 %v3867, %v3937
  %v3939 = vpop.f32.mrb[0].mxu0
  %v3940 = vadd.f32 %v3869, %v3939
  %3941 = vmatprep.mubr.bf16.mxu0 %v1997
  %3942 = vmatmul.mubr.bf16.gmra.mrb[0].mxu0 %v1996
  %v3943 = vpop.f32.mrb[0].mxu0
  %v3944 = vadd.f32 %v3873, %v3943
  %v3945 = vpop.f32.mrb[0].mxu0
  %v3946 = vadd.f32 %v3875, %v3945
  %v3947 = vpop.f32.mrb[0].mxu0
  %v3948 = vadd.f32 %v3877, %v3947
  %v3949 = vpop.f32.mrb[0].mxu0
  %v3950 = vadd.f32 %v3879, %v3949
  %3951 = vmatprep.mubr.bf16.mxu0 %v2001
  %3952 = vmatmul.mubr.bf16.gmra.mrb[0].mxu0 %v2000
  %v3953 = vpop.f32.mrb[0].mxu0
  %v3954 = vadd.f32 %v3883, %v3953
  %v3955 = vpop.f32.mrb[0].mxu0
  %v3956 = vadd.f32 %v3885, %v3955
  %v3957 = vpop.f32.mrb[0].mxu0
  %v3958 = vadd.f32 %v3887, %v3957
  %v3959 = vpop.f32.mrb[0].mxu0
  %v3960 = vadd.f32 %v3889, %v3959
  %3961 = vmatprep.mubr.bf16.mxu0 %v2005
  %3962 = vmatmul.mubr.bf16.gmra.mrb[0].mxu0 %v2004
  %v3963 = vpop.f32.mrb[0].mxu0
  %v3964 = vadd.f32 %v3893, %v3963
  %v3965 = vpop.f32.mrb[0].mxu0
  %v3966 = vadd.f32 %v3895, %v3965
  %v3967 = vpop.f32.mrb[0].mxu0
  %v3968 = vpop.f32.mrb[0].mxu0
  %3969 = vdwg.mxu0
  %3970 = vmatprep.subr.bf16.mxu0 %v3319
  %3971 = vmatpush1.bf16.msra.mxu0 %v3318
  %3972 = vmatprep.subr.bf16.mxu0 %v3327
  %3973 = vmatpush1.bf16.msra.mxu0 %v3326
  %3974 = vmatprep.subr.bf16.mxu0 %v3335
  %3975 = vmatpush1.bf16.msra.mxu0 %v3334
  %3976 = vmatprep.subr.bf16.mxu0 %v3343
  %3977 = vmatpush1.bf16.msra.mxu0 %v3342
  %3978 = vmatprep.subr.bf16.mxu0 %v3351
  %3979 = vmatpush1.bf16.msra.mxu0 %v3350
  %3980 = vmatprep.subr.bf16.mxu0 %v3359
  %3981 = vmatpush1.bf16.msra.mxu0 %v3358
  %3982 = vmatprep.subr.bf16.mxu0 %v3367
  %3983 = vmatpush1.bf16.msra.mxu0 %v3366
  %3984 = vmatprep.subr.bf16.mxu0 %v3375
  %3985 = vmatpush1.bf16.msra.mxu0 %v3374
  %3986 = vmatprep.subr.bf16.mxu0 %v3383
  %3987 = vmatpush1.bf16.msra.mxu0 %v3382
  %3988 = vmatprep.subr.bf16.mxu0 %v3391
  %3989 = vmatpush1.bf16.msra.mxu0 %v3390
  %3990 = vmatprep.subr.bf16.mxu0 %v3399
  %3991 = vmatpush1.bf16.msra.mxu0 %v3398
  %3992 = vmatprep.subr.bf16.mxu0 %v3407
  %3993 = vmatpush1.bf16.msra.mxu0 %v3406
  %3994 = vmatprep.subr.bf16.mxu0 %v3415
  %3995 = vmatpush1.bf16.msra.mxu0 %v3414
  %3996 = vmatprep.subr.bf16.mxu0 %v3423
  %3997 = vmatpush1.bf16.msra.mxu0 %v3422
  %3998 = vmatprep.subr.bf16.mxu0 %v3431
  %3999 = vmatpush1.bf16.msra.mxu0 %v3430
  %4000 = vmatprep.subr.bf16.mxu0 %v3439
  %4001 = vmatpush1.bf16.msra.mxu0 %v3438
  %4002 = vmatprep.mubr.bf16.mxu0 %v1991
  %4003 = vmatmul.mubr.bf16.gmra.mrb[0].mxu0 %v1990
  %v4004 = vpop.f32.mrb[0].mxu0
  %v4005 = vadd.f32 0.0, %v4004
  %v4006 = vpop.f32.mrb[0].mxu0
  %v4007 = vadd.f32 0.0, %v4006
  %v4008 = vpop.f32.mrb[0].mxu0
  %v4009 = vadd.f32 0.0, %v4008
  %v4010 = vpop.f32.mrb[0].mxu0
  %v4011 = vadd.f32 0.0, %v4010
  %4012 = vmatprep.mubr.bf16.mxu0 %v1995
  %4013 = vmatmul.mubr.bf16.gmra.mrb[0].mxu0 %v1994
  %v4014 = vpop.f32.mrb[0].mxu0
  %v4015 = vadd.f32 0.0, %v4014
  %v4016 = vpop.f32.mrb[0].mxu0
  %v4017 = vadd.f32 0.0, %v4016
  %v4018 = vpop.f32.mrb[0].mxu0
  %v4019 = vadd.f32 0.0, %v4018
  %v4020 = vpop.f32.mrb[0].mxu0
  %v4021 = vadd.f32 0.0, %v4020
  %4022 = vmatprep.mubr.bf16.mxu0 %v1999
  %4023 = vmatmul.mubr.bf16.gmra.mrb[0].mxu0 %v1998
  %v4024 = vpop.f32.mrb[0].mxu0
  %v4025 = vadd.f32 0.0, %v4024
  %v4026 = vpop.f32.mrb[0].mxu0
  %v4027 = vadd.f32 0.0, %v4026
  %v4028 = vpop.f32.mrb[0].mxu0
  %v4029 = vadd.f32 0.0, %v4028
  %v4030 = vpop.f32.mrb[0].mxu0
  %v4031 = vadd.f32 0.0, %v4030
  %4032 = vmatprep.mubr.bf16.mxu0 %v2003
  %4033 = vmatmul.mubr.bf16.gmra.mrb[0].mxu0 %v2002
  %v4034 = vpop.f32.mrb[0].mxu0
  %v4035 = vadd.f32 0.0, %v4034
  %v4036 = vpop.f32.mrb[0].mxu0
  %v4037 = vadd.f32 0.0, %v4036
  %v4038 = vpop.f32.mrb[0].mxu0
  %v4039 = vpop.f32.mrb[0].mxu0
  %4040 = vdwg.mxu0
  %4041 = vmatprep.subr.bf16.mxu0 %v3447
  %4042 = vmatpush1.bf16.msra.mxu0 %v3446
  %4043 = vmatprep.subr.bf16.mxu0 %v3455
  %4044 = vmatpush1.bf16.msra.mxu0 %v3454
  %4045 = vmatprep.subr.bf16.mxu0 %v3463
  %4046 = vmatpush1.bf16.msra.mxu0 %v3462
  %4047 = vmatprep.subr.bf16.mxu0 %v3471
  %4048 = vmatpush1.bf16.msra.mxu0 %v3470
  %4049 = vmatprep.subr.bf16.mxu0 %v3479
  %4050 = vmatpush1.bf16.msra.mxu0 %v3478
  %4051 = vmatprep.subr.bf16.mxu0 %v3487
  %4052 = vmatpush1.bf16.msra.mxu0 %v3486
  %4053 = vmatprep.subr.bf16.mxu0 %v3495
  %4054 = vmatpush1.bf16.msra.mxu0 %v3494
  %4055 = vmatprep.subr.bf16.mxu0 %v3503
  %4056 = vmatpush1.bf16.msra.mxu0 %v3502
  %4057 = vmatprep.subr.bf16.mxu0 %v3511
  %4058 = vmatpush1.bf16.msra.mxu0 %v3510
  %4059 = vmatprep.subr.bf16.mxu0 %v3519
  %4060 = vmatpush1.bf16.msra.mxu0 %v3518
  %4061 = vmatprep.subr.bf16.mxu0 %v3527
  %4062 = vmatpush1.bf16.msra.mxu0 %v3526
  %4063 = vmatprep.subr.bf16.mxu0 %v3535
  %4064 = vmatpush1.bf16.msra.mxu0 %v3534
  %4065 = vmatprep.subr.bf16.mxu0 %v3543
  %4066 = vmatpush1.bf16.msra.mxu0 %v3542
  %4067 = vmatprep.subr.bf16.mxu0 %v3551
  %4068 = vmatpush1.bf16.msra.mxu0 %v3550
  %4069 = vmatprep.subr.bf16.mxu0 %v3559
  %4070 = vmatpush1.bf16.msra.mxu0 %v3558
  %4071 = vmatprep.subr.bf16.mxu0 %v3567
  %4072 = vmatpush1.bf16.msra.mxu0 %v3566
  %4073 = vmatprep.mubr.bf16.mxu0 %v1993
  %4074 = vmatmul.mubr.bf16.gmra.mrb[0].mxu0 %v1992
  %v4075 = vpop.f32.mrb[0].mxu0
  %v4076 = vadd.f32 %v4005, %v4075
  %v4077 = vpop.f32.mrb[0].mxu0
  %v4078 = vadd.f32 %v4007, %v4077
  %v4079 = vpop.f32.mrb[0].mxu0
  %v4080 = vadd.f32 %v4009, %v4079
  %v4081 = vpop.f32.mrb[0].mxu0
  %v4082 = vadd.f32 %v4011, %v4081
  %4083 = vmatprep.mubr.bf16.mxu0 %v1997
  %4084 = vmatmul.mubr.bf16.gmra.mrb[0].mxu0 %v1996
  %v4085 = vpop.f32.mrb[0].mxu0
  %v4086 = vadd.f32 %v4015, %v4085
  %v4087 = vpop.f32.mrb[0].mxu0
  %v4088 = vadd.f32 %v4017, %v4087
  %v4089 = vpop.f32.mrb[0].mxu0
  %v4090 = vadd.f32 %v4019, %v4089
  %v4091 = vpop.f32.mrb[0].mxu0
  %v4092 = vadd.f32 %v4021, %v4091
  %4093 = vmatprep.mubr.bf16.mxu0 %v2001
  %4094 = vmatmul.mubr.bf16.gmra.mrb[0].mxu0 %v2000
  %v4095 = vpop.f32.mrb[0].mxu0
  %v4096 = vadd.f32 %v4025, %v4095
  %v4097 = vpop.f32.mrb[0].mxu0
  %v4098 = vadd.f32 %v4027, %v4097
  %v4099 = vpop.f32.mrb[0].mxu0
  %v4100 = vadd.f32 %v4029, %v4099
  %v4101 = vpop.f32.mrb[0].mxu0
  %v4102 = vadd.f32 %v4031, %v4101
  %4103 = vmatprep.mubr.bf16.mxu0 %v2005
  %4104 = vmatmul.mubr.bf16.gmra.mrb[0].mxu0 %v2004
  %v4105 = vpop.f32.mrb[0].mxu0
  %v4106 = vadd.f32 %v4035, %v4105
  %v4107 = vpop.f32.mrb[0].mxu0
  %v4108 = vadd.f32 %v4037, %v4107
  %v4109 = vpop.f32.mrb[0].mxu0
  %v4110 = vpop.f32.mrb[0].mxu0
  %4111 = vdwg.mxu0
  %4112 = vmatprep.subr.bf16.mxu0 %v3321
  %4113 = vmatpush1.bf16.msra.mxu0 %v3320
  %4114 = vmatprep.subr.bf16.mxu0 %v3329
  %4115 = vmatpush1.bf16.msra.mxu0 %v3328
  %4116 = vmatprep.subr.bf16.mxu0 %v3337
  %4117 = vmatpush1.bf16.msra.mxu0 %v3336
  %4118 = vmatprep.subr.bf16.mxu0 %v3345
  %4119 = vmatpush1.bf16.msra.mxu0 %v3344
  %4120 = vmatprep.subr.bf16.mxu0 %v3353
  %4121 = vmatpush1.bf16.msra.mxu0 %v3352
  %4122 = vmatprep.subr.bf16.mxu0 %v3361
  %4123 = vmatpush1.bf16.msra.mxu0 %v3360
  %4124 = vmatprep.subr.bf16.mxu0 %v3369
  %4125 = vmatpush1.bf16.msra.mxu0 %v3368
  %4126 = vmatprep.subr.bf16.mxu0 %v3377
  %4127 = vmatpush1.bf16.msra.mxu0 %v3376
  %4128 = vmatprep.subr.bf16.mxu0 %v3385
  %4129 = vmatpush1.bf16.msra.mxu0 %v3384
  %4130 = vmatprep.subr.bf16.mxu0 %v3393
  %4131 = vmatpush1.bf16.msra.mxu0 %v3392
  %4132 = vmatprep.subr.bf16.mxu0 %v3401
  %4133 = vmatpush1.bf16.msra.mxu0 %v3400
  %4134 = vmatprep.subr.bf16.mxu0 %v3409
  %4135 = vmatpush1.bf16.msra.mxu0 %v3408
  %4136 = vmatprep.subr.bf16.mxu0 %v3417
  %4137 = vmatpush1.bf16.msra.mxu0 %v3416
  %4138 = vmatprep.subr.bf16.mxu0 %v3425
  %4139 = vmatpush1.bf16.msra.mxu0 %v3424
  %4140 = vmatprep.subr.bf16.mxu0 %v3433
  %4141 = vmatpush1.bf16.msra.mxu0 %v3432
  %4142 = vmatprep.subr.bf16.mxu0 %v3441
  %4143 = vmatpush1.bf16.msra.mxu0 %v3440
  %4144 = vmatprep.mubr.bf16.mxu0 %v1991
  %4145 = vmatmul.mubr.bf16.gmra.mrb[0].mxu0 %v1990
  %v4146 = vpop.f32.mrb[0].mxu0
  %v4147 = vadd.f32 0.0, %v4146
  %v4148 = vpop.f32.mrb[0].mxu0
  %v4149 = vadd.f32 0.0, %v4148
  %v4150 = vpop.f32.mrb[0].mxu0
  %v4151 = vadd.f32 0.0, %v4150
  %v4152 = vpop.f32.mrb[0].mxu0
  %v4153 = vadd.f32 0.0, %v4152
  %4154 = vmatprep.mubr.bf16.mxu0 %v1995
  %4155 = vmatmul.mubr.bf16.gmra.mrb[0].mxu0 %v1994
  %v4156 = vpop.f32.mrb[0].mxu0
  %v4157 = vadd.f32 0.0, %v4156
  %v4158 = vpop.f32.mrb[0].mxu0
  %v4159 = vadd.f32 0.0, %v4158
  %v4160 = vpop.f32.mrb[0].mxu0
  %v4161 = vadd.f32 0.0, %v4160
  %v4162 = vpop.f32.mrb[0].mxu0
  %v4163 = vadd.f32 0.0, %v4162
  %4164 = vmatprep.mubr.bf16.mxu0 %v1999
  %4165 = vmatmul.mubr.bf16.gmra.mrb[0].mxu0 %v1998
  %v4166 = vpop.f32.mrb[0].mxu0
  %v4167 = vadd.f32 0.0, %v4166
  %v4168 = vpop.f32.mrb[0].mxu0
  %v4169 = vadd.f32 0.0, %v4168
  %v4170 = vpop.f32.mrb[0].mxu0
  %v4171 = vadd.f32 0.0, %v4170
  %v4172 = vpop.f32.mrb[0].mxu0
  %v4173 = vadd.f32 0.0, %v4172
  %4174 = vmatprep.mubr.bf16.mxu0 %v2003
  %4175 = vmatmul.mubr.bf16.gmra.mrb[0].mxu0 %v2002
  %v4176 = vpop.f32.mrb[0].mxu0
  %v4177 = vadd.f32 0.0, %v4176
  %v4178 = vpop.f32.mrb[0].mxu0
  %v4179 = vadd.f32 0.0, %v4178
  %v4180 = vpop.f32.mrb[0].mxu0
  %v4181 = vpop.f32.mrb[0].mxu0
  %4182 = vdwg.mxu0
  %4183 = vmatprep.subr.bf16.mxu0 %v3449
  %4184 = vmatpush1.bf16.msra.mxu0 %v3448
  %4185 = vmatprep.subr.bf16.mxu0 %v3457
  %4186 = vmatpush1.bf16.msra.mxu0 %v3456
  %4187 = vmatprep.subr.bf16.mxu0 %v3465
  %4188 = vmatpush1.bf16.msra.mxu0 %v3464
  %4189 = vmatprep.subr.bf16.mxu0 %v3473
  %4190 = vmatpush1.bf16.msra.mxu0 %v3472
  %4191 = vmatprep.subr.bf16.mxu0 %v3481
  %4192 = vmatpush1.bf16.msra.mxu0 %v3480
  %4193 = vmatprep.subr.bf16.mxu0 %v3489
  %4194 = vmatpush1.bf16.msra.mxu0 %v3488
  %4195 = vmatprep.subr.bf16.mxu0 %v3497
  %4196 = vmatpush1.bf16.msra.mxu0 %v3496
  %4197 = vmatprep.subr.bf16.mxu0 %v3505
  %4198 = vmatpush1.bf16.msra.mxu0 %v3504
  %4199 = vmatprep.subr.bf16.mxu0 %v3513
  %4200 = vmatpush1.bf16.msra.mxu0 %v3512
  %4201 = vmatprep.subr.bf16.mxu0 %v3521
  %4202 = vmatpush1.bf16.msra.mxu0 %v3520
  %4203 = vmatprep.subr.bf16.mxu0 %v3529
  %4204 = vmatpush1.bf16.msra.mxu0 %v3528
  %4205 = vmatprep.subr.bf16.mxu0 %v3537
  %4206 = vmatpush1.bf16.msra.mxu0 %v3536
  %4207 = vmatprep.subr.bf16.mxu0 %v3545
  %4208 = vmatpush1.bf16.msra.mxu0 %v3544
  %4209 = vmatprep.subr.bf16.mxu0 %v3553
  %4210 = vmatpush1.bf16.msra.mxu0 %v3552
  %4211 = vmatprep.subr.bf16.mxu0 %v3561
  %4212 = vmatpush1.bf16.msra.mxu0 %v3560
  %4213 = vmatprep.subr.bf16.mxu0 %v3569
  %4214 = vmatpush1.bf16.msra.mxu0 %v3568
  %4215 = vmatprep.mubr.bf16.mxu0 %v1993
  %4216 = vmatmul.mubr.bf16.gmra.mrb[0].mxu0 %v1992
  %v4217 = vpop.f32.mrb[0].mxu0
  %v4218 = vadd.f32 %v4147, %v4217
  %v4219 = vpop.f32.mrb[0].mxu0
  %v4220 = vadd.f32 %v4149, %v4219
  %v4221 = vpop.f32.mrb[0].mxu0
  %v4222 = vadd.f32 %v4151, %v4221
  %v4223 = vpop.f32.mrb[0].mxu0
  %v4224 = vadd.f32 %v4153, %v4223
  %4225 = vmatprep.mubr.bf16.mxu0 %v1997
  %4226 = vmatmul.mubr.bf16.gmra.mrb[0].mxu0 %v1996
  %v4227 = vpop.f32.mrb[0].mxu0
  %v4228 = vadd.f32 %v4157, %v4227
  %v4229 = vpop.f32.mrb[0].mxu0
  %v4230 = vadd.f32 %v4159, %v4229
  %v4231 = vpop.f32.mrb[0].mxu0
  %v4232 = vadd.f32 %v4161, %v4231
  %v4233 = vpop.f32.mrb[0].mxu0
  %v4234 = vadd.f32 %v4163, %v4233
  %4235 = vmatprep.mubr.bf16.mxu0 %v2001
  %4236 = vmatmul.mubr.bf16.gmra.mrb[0].mxu0 %v2000
  %v4237 = vpop.f32.mrb[0].mxu0
  %v4238 = vadd.f32 %v4167, %v4237
  %v4239 = vpop.f32.mrb[0].mxu0
  %v4240 = vadd.f32 %v4169, %v4239
  %v4241 = vpop.f32.mrb[0].mxu0
  %v4242 = vadd.f32 %v4171, %v4241
  %v4243 = vpop.f32.mrb[0].mxu0
  %v4244 = vadd.f32 %v4173, %v4243
  %4245 = vmatprep.mubr.bf16.mxu0 %v2005
  %4246 = vmatmul.mubr.bf16.gmra.mrb[0].mxu0 %v2004
  %v4247 = vpop.f32.mrb[0].mxu0
  %v4248 = vadd.f32 %v4177, %v4247
  %v4249 = vpop.f32.mrb[0].mxu0
  %v4250 = vadd.f32 %v4179, %v4249
  %v4251 = vpop.f32.mrb[0].mxu0
  %v4252 = vpop.f32.mrb[0].mxu0
  %4253 = vdwg.mxu0
  %4254 = vmatprep.subr.bf16.mxu0 %v3323
  %4255 = vmatpush1.bf16.msra.mxu0 %v3322
  %4256 = vmatprep.subr.bf16.mxu0 %v3331
  %4257 = vmatpush1.bf16.msra.mxu0 %v3330
  %4258 = vmatprep.subr.bf16.mxu0 %v3339
  %4259 = vmatpush1.bf16.msra.mxu0 %v3338
  %4260 = vmatprep.subr.bf16.mxu0 %v3347
  %4261 = vmatpush1.bf16.msra.mxu0 %v3346
  %4262 = vmatprep.subr.bf16.mxu0 %v3355
  %4263 = vmatpush1.bf16.msra.mxu0 %v3354
  %4264 = vmatprep.subr.bf16.mxu0 %v3363
  %4265 = vmatpush1.bf16.msra.mxu0 %v3362
  %4266 = vmatprep.subr.bf16.mxu0 %v3371
  %4267 = vmatpush1.bf16.msra.mxu0 %v3370
  %4268 = vmatprep.subr.bf16.mxu0 %v3379
  %4269 = vmatpush1.bf16.msra.mxu0 %v3378
  %4270 = vmatprep.subr.bf16.mxu0 %v3387
  %4271 = vmatpush1.bf16.msra.mxu0 %v3386
  %4272 = vmatprep.subr.bf16.mxu0 %v3395
  %4273 = vmatpush1.bf16.msra.mxu0 %v3394
  %4274 = vmatprep.subr.bf16.mxu0 %v3403
  %4275 = vmatpush1.bf16.msra.mxu0 %v3402
  %4276 = vmatprep.subr.bf16.mxu0 %v3411
  %4277 = vmatpush1.bf16.msra.mxu0 %v3410
  %4278 = vmatprep.subr.bf16.mxu0 %v3419
  %4279 = vmatpush1.bf16.msra.mxu0 %v3418
  %4280 = vmatprep.subr.bf16.mxu0 %v3427
  %4281 = vmatpush1.bf16.msra.mxu0 %v3426
  %4282 = vmatprep.subr.bf16.mxu0 %v3435
  %4283 = vmatpush1.bf16.msra.mxu0 %v3434
  %4284 = vmatprep.subr.bf16.mxu0 %v3443
  %4285 = vmatpush1.bf16.msra.mxu0 %v3442
  %4286 = vmatprep.mubr.bf16.mxu0 %v1991
  %4287 = vmatmul.mubr.bf16.gmra.mrb[0].mxu0 %v1990
  %v4288 = vpop.f32.mrb[0].mxu0
  %v4289 = vadd.f32 0.0, %v4288
  %v4290 = vpop.f32.mrb[0].mxu0
  %v4291 = vadd.f32 0.0, %v4290
  %v4292 = vpop.f32.mrb[0].mxu0
  %v4293 = vadd.f32 0.0, %v4292
  %v4294 = vpop.f32.mrb[0].mxu0
  %v4295 = vadd.f32 0.0, %v4294
  %4296 = vmatprep.mubr.bf16.mxu0 %v1995
  %4297 = vmatmul.mubr.bf16.gmra.mrb[0].mxu0 %v1994
  %v4298 = vpop.f32.mrb[0].mxu0
  %v4299 = vadd.f32 0.0, %v4298
  %v4300 = vpop.f32.mrb[0].mxu0
  %v4301 = vadd.f32 0.0, %v4300
  %v4302 = vpop.f32.mrb[0].mxu0
  %v4303 = vadd.f32 0.0, %v4302
  %v4304 = vpop.f32.mrb[0].mxu0
  %v4305 = vadd.f32 0.0, %v4304
  %4306 = vmatprep.mubr.bf16.mxu0 %v1999
  %4307 = vmatmul.mubr.bf16.gmra.mrb[0].mxu0 %v1998
  %v4308 = vpop.f32.mrb[0].mxu0
  %v4309 = vadd.f32 0.0, %v4308
  %v4310 = vpop.f32.mrb[0].mxu0
  %v4311 = vadd.f32 0.0, %v4310
  %v4312 = vpop.f32.mrb[0].mxu0
  %v4313 = vadd.f32 0.0, %v4312
  %v4314 = vpop.f32.mrb[0].mxu0
  %v4315 = vadd.f32 0.0, %v4314
  %4316 = vmatprep.mubr.bf16.mxu0 %v2003
  %4317 = vmatmul.mubr.bf16.gmra.mrb[0].mxu0 %v2002
  %v4318 = vpop.f32.mrb[0].mxu0
  %v4319 = vadd.f32 0.0, %v4318
  %v4320 = vpop.f32.mrb[0].mxu0
  %v4321 = vadd.f32 0.0, %v4320
  %v4322 = vpop.f32.mrb[0].mxu0
  %v4323 = vpop.f32.mrb[0].mxu0
  %4324 = vdwg.mxu0
  %4325 = vmatprep.subr.bf16.mxu0 %v3451
  %4326 = vmatpush1.bf16.msra.mxu0 %v3450
  %4327 = vmatprep.subr.bf16.mxu0 %v3459
  %4328 = vmatpush1.bf16.msra.mxu0 %v3458
  %4329 = vmatprep.subr.bf16.mxu0 %v3467
  %4330 = vmatpush1.bf16.msra.mxu0 %v3466
  %4331 = vmatprep.subr.bf16.mxu0 %v3475
  %4332 = vmatpush1.bf16.msra.mxu0 %v3474
  %4333 = vmatprep.subr.bf16.mxu0 %v3483
  %4334 = vmatpush1.bf16.msra.mxu0 %v3482
  %4335 = vmatprep.subr.bf16.mxu0 %v3491
  %4336 = vmatpush1.bf16.msra.mxu0 %v3490
  %4337 = vmatprep.subr.bf16.mxu0 %v3499
  %4338 = vmatpush1.bf16.msra.mxu0 %v3498
  %4339 = vmatprep.subr.bf16.mxu0 %v3507
  %4340 = vmatpush1.bf16.msra.mxu0 %v3506
  %4341 = vmatprep.subr.bf16.mxu0 %v3515
  %4342 = vmatpush1.bf16.msra.mxu0 %v3514
  %4343 = vmatprep.subr.bf16.mxu0 %v3523
  %4344 = vmatpush1.bf16.msra.mxu0 %v3522
  %4345 = vmatprep.subr.bf16.mxu0 %v3531
  %4346 = vmatpush1.bf16.msra.mxu0 %v3530
  %4347 = vmatprep.subr.bf16.mxu0 %v3539
  %4348 = vmatpush1.bf16.msra.mxu0 %v3538
  %4349 = vmatprep.subr.bf16.mxu0 %v3547
  %4350 = vmatpush1.bf16.msra.mxu0 %v3546
  %4351 = vmatprep.subr.bf16.mxu0 %v3555
  %4352 = vmatpush1.bf16.msra.mxu0 %v3554
  %4353 = vmatprep.subr.bf16.mxu0 %v3563
  %4354 = vmatpush1.bf16.msra.mxu0 %v3562
  %4355 = vmatprep.subr.bf16.mxu0 %v3571
  %4356 = vmatpush1.bf16.msra.mxu0 %v3570
  %4357 = vmatprep.mubr.bf16.mxu0 %v1993
  %4358 = vmatmul.mubr.bf16.gmra.mrb[0].mxu0 %v1992
  %v4359 = vpop.f32.mrb[0].mxu0
  %v4360 = vadd.f32 %v4289, %v4359
  %v4361 = vpop.f32.mrb[0].mxu0
  %v4362 = vadd.f32 %v4291, %v4361
  %v4363 = vpop.f32.mrb[0].mxu0
  %v4364 = vadd.f32 %v4293, %v4363
  %v4365 = vpop.f32.mrb[0].mxu0
  %v4366 = vadd.f32 %v4295, %v4365
  %4367 = vmatprep.mubr.bf16.mxu0 %v1997
  %4368 = vmatmul.mubr.bf16.gmra.mrb[0].mxu0 %v1996
  %v4369 = vpop.f32.mrb[0].mxu0
  %v4370 = vadd.f32 %v4299, %v4369
  %v4371 = vpop.f32.mrb[0].mxu0
  %v4372 = vadd.f32 %v4301, %v4371
  %v4373 = vpop.f32.mrb[0].mxu0
  %v4374 = vadd.f32 %v4303, %v4373
  %v4375 = vpop.f32.mrb[0].mxu0
  %v4376 = vadd.f32 %v4305, %v4375
  %4377 = vmatprep.mubr.bf16.mxu0 %v2001
  %4378 = vmatmul.mubr.bf16.gmra.mrb[0].mxu0 %v2000
  %v4379 = vpop.f32.mrb[0].mxu0
  %v4380 = vadd.f32 %v4309, %v4379
  %v4381 = vpop.f32.mrb[0].mxu0
  %v4382 = vadd.f32 %v4311, %v4381
  %v4383 = vpop.f32.mrb[0].mxu0
  %v4384 = vadd.f32 %v4313, %v4383
  %v4385 = vpop.f32.mrb[0].mxu0
  %v4386 = vadd.f32 %v4315, %v4385
  %4387 = vmatprep.mubr.bf16.mxu0 %v2005
  %4388 = vmatmul.mubr.bf16.gmra.mrb[0].mxu0 %v2004
  %v4389 = vpop.f32.mrb[0].mxu0
  %v4390 = vadd.f32 %v4319, %v4389
  %v4391 = vpop.f32.mrb[0].mxu0
  %v4392 = vadd.f32 %v4321, %v4391
  %v4393 = vpop.f32.mrb[0].mxu0
  %v4394 = vpop.f32.mrb[0].mxu0
  %4395 = vdwg.mxu0
  %v4652 = vunpack.c.l.b16 %v2035
  %v4653 = vunpack.c.h.b16 %v2035
  %v4654 = vunpack.c.l.b16 %v2036
  %v4655 = vunpack.c.h.b16 %v2036
  %v4656 = vunpack.c.l.b16 %v2037
  %v4657 = vunpack.c.h.b16 %v2037
  %v4658 = vunpack.c.l.b16 %v2038
  %v4659 = vunpack.c.h.b16 %v2038
  %v4660 = vunpack.c.l.b16 %v2039
  %v4661 = vunpack.c.h.b16 %v2039
  %v4662 = vunpack.c.l.b16 %v2040
  %v4663 = vunpack.c.h.b16 %v2040
  %v4664 = vunpack.c.l.b16 %v2041
  %v4665 = vunpack.c.h.b16 %v2041
  %v4666 = vunpack.c.l.b16 %v2042
  %v4667 = vunpack.c.h.b16 %v2042
  %v4668 = vunpack.c.l.b16 %v2043
  %v4669 = vunpack.c.h.b16 %v2043
  %v4670 = vunpack.c.l.b16 %v2044
  %v4671 = vunpack.c.h.b16 %v2044
  %v4672 = vunpack.c.l.b16 %v2045
  %v4673 = vunpack.c.h.b16 %v2045
  %v4674 = vunpack.c.l.b16 %v2046
  %v4675 = vunpack.c.h.b16 %v2046
  %v4676 = vunpack.c.l.b16 %v2047
  %v4677 = vunpack.c.h.b16 %v2047
  %v4678 = vunpack.c.l.b16 %v2048
  %v4679 = vunpack.c.h.b16 %v2048
  %v4680 = vunpack.c.l.b16 %v2049
  %v4681 = vunpack.c.h.b16 %v2049
  %v4682 = vunpack.c.l.b16 %v2050
  %v4683 = vunpack.c.h.b16 %v2050
  %v4684 = vunpack.c.l.b16 %v2051
  %v4685 = vunpack.c.h.b16 %v2051
  %v4686 = vunpack.c.l.b16 %v2052
  %v4687 = vunpack.c.h.b16 %v2052
  %v4688 = vunpack.c.l.b16 %v2053
  %v4689 = vunpack.c.h.b16 %v2053
  %v4690 = vunpack.c.l.b16 %v2054
  %v4691 = vunpack.c.h.b16 %v2054
  %v4692 = vunpack.c.l.b16 %v2055
  %v4693 = vunpack.c.h.b16 %v2055
  %v4694 = vunpack.c.l.b16 %v2056
  %v4695 = vunpack.c.h.b16 %v2056
  %v4696 = vunpack.c.l.b16 %v2057
  %v4697 = vunpack.c.h.b16 %v2057
  %v4698 = vunpack.c.l.b16 %v2058
  %v4699 = vunpack.c.h.b16 %v2058
  %v4700 = vunpack.c.l.b16 %v2059
  %v4701 = vunpack.c.h.b16 %v2059
  %v4702 = vunpack.c.l.b16 %v2060
  %v4703 = vunpack.c.h.b16 %v2060
  %v4704 = vunpack.c.l.b16 %v2061
  %v4705 = vunpack.c.h.b16 %v2061
  %v4706 = vunpack.c.l.b16 %v2062
  %v4707 = vunpack.c.h.b16 %v2062
  %v4708 = vunpack.c.l.b16 %v2063
  %v4709 = vunpack.c.h.b16 %v2063
  %v4710 = vunpack.c.l.b16 %v2064
  %v4711 = vunpack.c.h.b16 %v2064
  %v4712 = vunpack.c.l.b16 %v2065
  %v4713 = vunpack.c.h.b16 %v2065
  %v4714 = vunpack.c.l.b16 %v2066
  %v4715 = vunpack.c.h.b16 %v2066
  %v4716 = vunpack.c.l.b16 %v2067
  %v4717 = vunpack.c.h.b16 %v2067
  %v4718 = vunpack.c.l.b16 %v2068
  %v4719 = vunpack.c.h.b16 %v2068
  %v4720 = vunpack.c.l.b16 %v2069
  %v4721 = vunpack.c.h.b16 %v2069
  %v4722 = vunpack.c.l.b16 %v2070
  %v4723 = vunpack.c.h.b16 %v2070
  %v4724 = vunpack.c.l.b16 %v2071
  %v4725 = vunpack.c.h.b16 %v2071
  %v4726 = vunpack.c.l.b16 %v2072
  %v4727 = vunpack.c.h.b16 %v2072
  %v4728 = vunpack.c.l.b16 %v2073
  %v4729 = vunpack.c.h.b16 %v2073
  %v4730 = vunpack.c.l.b16 %v2074
  %v4731 = vunpack.c.h.b16 %v2074
  %v4732 = vunpack.c.l.b16 %v2075
  %v4733 = vunpack.c.h.b16 %v2075
  %v4734 = vunpack.c.l.b16 %v2076
  %v4735 = vunpack.c.h.b16 %v2076
  %v4736 = vunpack.c.l.b16 %v2077
  %v4737 = vunpack.c.h.b16 %v2077
  %v4738 = vunpack.c.l.b16 %v2078
  %v4739 = vunpack.c.h.b16 %v2078
  %v4740 = vunpack.c.l.b16 %v2079
  %v4741 = vunpack.c.h.b16 %v2079
  %v4742 = vunpack.c.l.b16 %v2080
  %v4743 = vunpack.c.h.b16 %v2080
  %v4744 = vunpack.c.l.b16 %v2081
  %v4745 = vunpack.c.h.b16 %v2081
  %v4746 = vunpack.c.l.b16 %v2082
  %v4747 = vunpack.c.h.b16 %v2082
  %v4748 = vunpack.c.l.b16 %v2083
  %v4749 = vunpack.c.h.b16 %v2083
  %v4750 = vunpack.c.l.b16 %v2084
  %v4751 = vunpack.c.h.b16 %v2084
  %v4752 = vunpack.c.l.b16 %v2085
  %v4753 = vunpack.c.h.b16 %v2085
  %v4754 = vunpack.c.l.b16 %v2086
  %v4755 = vunpack.c.h.b16 %v2086
  %v4756 = vunpack.c.l.b16 %v2087
  %v4757 = vunpack.c.h.b16 %v2087
  %v4758 = vunpack.c.l.b16 %v2088
  %v4759 = vunpack.c.h.b16 %v2088
  %v4760 = vunpack.c.l.b16 %v2089
  %v4761 = vunpack.c.h.b16 %v2089
  %v4762 = vunpack.c.l.b16 %v2090
  %v4763 = vunpack.c.h.b16 %v2090
  %v4764 = vunpack.c.l.b16 %v2091
  %v4765 = vunpack.c.h.b16 %v2091
  %v4766 = vunpack.c.l.b16 %v2092
  %v4767 = vunpack.c.h.b16 %v2092
  %v4768 = vunpack.c.l.b16 %v2093
  %v4769 = vunpack.c.h.b16 %v2093
  %v4770 = vunpack.c.l.b16 %v2094
  %v4771 = vunpack.c.h.b16 %v2094
  %v4772 = vunpack.c.l.b16 %v2095
  %v4773 = vunpack.c.h.b16 %v2095
  %v4774 = vunpack.c.l.b16 %v2096
  %v4775 = vunpack.c.h.b16 %v2096
  %v4776 = vunpack.c.l.b16 %v2097
  %v4777 = vunpack.c.h.b16 %v2097
  %v4778 = vunpack.c.l.b16 %v2098
  %v4779 = vunpack.c.h.b16 %v2098
  %v4780 = vunpack.c.l.b16 %v2099
  %v4781 = vunpack.c.h.b16 %v2099
  %v4782 = vunpack.c.l.b16 %v2100
  %v4783 = vunpack.c.h.b16 %v2100
  %v4784 = vunpack.c.l.b16 %v2101
  %v4785 = vunpack.c.h.b16 %v2101
  %v4786 = vunpack.c.l.b16 %v2102
  %v4787 = vunpack.c.h.b16 %v2102
  %v4788 = vunpack.c.l.b16 %v2103
  %v4789 = vunpack.c.h.b16 %v2103
  %v4790 = vunpack.c.l.b16 %v2104
  %v4791 = vunpack.c.h.b16 %v2104
  %v4792 = vunpack.c.l.b16 %v2105
  %v4793 = vunpack.c.h.b16 %v2105
  %v4794 = vunpack.c.l.b16 %v2106
  %v4795 = vunpack.c.h.b16 %v2106
  %v4796 = vunpack.c.l.b16 %v2107
  %v4797 = vunpack.c.h.b16 %v2107
  %v4798 = vunpack.c.l.b16 %v2108
  %v4799 = vunpack.c.h.b16 %v2108
  %v4800 = vunpack.c.l.b16 %v2109
  %v4801 = vunpack.c.h.b16 %v2109
  %v4802 = vunpack.c.l.b16 %v2110
  %v4803 = vunpack.c.h.b16 %v2110
  %v4804 = vunpack.c.l.b16 %v2111
  %v4805 = vunpack.c.h.b16 %v2111
  %v4806 = vunpack.c.l.b16 %v2112
  %v4807 = vunpack.c.h.b16 %v2112
  %v4808 = vunpack.c.l.b16 %v2113
  %v4809 = vunpack.c.h.b16 %v2113
  %v4810 = vunpack.c.l.b16 %v2114
  %v4811 = vunpack.c.h.b16 %v2114
  %v4812 = vunpack.c.l.b16 %v2115
  %v4813 = vunpack.c.h.b16 %v2115
  %v4814 = vunpack.c.l.b16 %v2116
  %v4815 = vunpack.c.h.b16 %v2116
  %v4816 = vunpack.c.l.b16 %v2117
  %v4817 = vunpack.c.h.b16 %v2117
  %v4818 = vunpack.c.l.b16 %v2118
  %v4819 = vunpack.c.h.b16 %v2118
  %v4820 = vunpack.c.l.b16 %v2119
  %v4821 = vunpack.c.h.b16 %v2119
  %v4822 = vunpack.c.l.b16 %v2120
  %v4823 = vunpack.c.h.b16 %v2120
  %v4824 = vunpack.c.l.b16 %v2121
  %v4825 = vunpack.c.h.b16 %v2121
  %v4826 = vunpack.c.l.b16 %v2122
  %v4827 = vunpack.c.h.b16 %v2122
  %v4828 = vunpack.c.l.b16 %v2123
  %v4829 = vunpack.c.h.b16 %v2123
  %v4830 = vunpack.c.l.b16 %v2124
  %v4831 = vunpack.c.h.b16 %v2124
  %v4832 = vunpack.c.l.b16 %v2125
  %v4833 = vunpack.c.h.b16 %v2125
  %v4834 = vunpack.c.l.b16 %v2126
  %v4835 = vunpack.c.h.b16 %v2126
  %v4836 = vunpack.c.l.b16 %v2127
  %v4837 = vunpack.c.h.b16 %v2127
  %v4838 = vunpack.c.l.b16 %v2128
  %v4839 = vunpack.c.h.b16 %v2128
  %v4840 = vunpack.c.l.b16 %v2129
  %v4841 = vunpack.c.h.b16 %v2129
  %v4842 = vunpack.c.l.b16 %v2130
  %v4843 = vunpack.c.h.b16 %v2130
  %v4844 = vunpack.c.l.b16 %v2131
  %v4845 = vunpack.c.h.b16 %v2131
  %v4846 = vunpack.c.l.b16 %v2132
  %v4847 = vunpack.c.h.b16 %v2132
  %v4848 = vunpack.c.l.b16 %v2133
  %v4849 = vunpack.c.h.b16 %v2133
  %v4850 = vunpack.c.l.b16 %v2134
  %v4851 = vunpack.c.h.b16 %v2134
  %v4852 = vunpack.c.l.b16 %v2135
  %v4853 = vunpack.c.h.b16 %v2135
  %v4854 = vunpack.c.l.b16 %v2136
  %v4855 = vunpack.c.h.b16 %v2136
  %v4856 = vunpack.c.l.b16 %v2137
  %v4857 = vunpack.c.h.b16 %v2137
  %v4858 = vunpack.c.l.b16 %v2138
  %v4859 = vunpack.c.h.b16 %v2138
  %v4860 = vunpack.c.l.b16 %v2139
  %v4861 = vunpack.c.h.b16 %v2139
  %v4862 = vunpack.c.l.b16 %v2140
  %v4863 = vunpack.c.h.b16 %v2140
  %v4864 = vunpack.c.l.b16 %v2141
  %v4865 = vunpack.c.h.b16 %v2141
  %v4866 = vunpack.c.l.b16 %v2142
  %v4867 = vunpack.c.h.b16 %v2142
  %v4868 = vunpack.c.l.b16 %v2143
  %v4869 = vunpack.c.h.b16 %v2143
  %v4870 = vunpack.c.l.b16 %v2144
  %v4871 = vunpack.c.h.b16 %v2144
  %v4872 = vunpack.c.l.b16 %v2145
  %v4873 = vunpack.c.h.b16 %v2145
  %v4874 = vunpack.c.l.b16 %v2146
  %v4875 = vunpack.c.h.b16 %v2146
  %v4876 = vunpack.c.l.b16 %v2147
  %v4877 = vunpack.c.h.b16 %v2147
  %v4878 = vunpack.c.l.b16 %v2148
  %v4879 = vunpack.c.h.b16 %v2148
  %v4880 = vunpack.c.l.b16 %v2149
  %v4881 = vunpack.c.h.b16 %v2149
  %v4882 = vunpack.c.l.b16 %v2150
  %v4883 = vunpack.c.h.b16 %v2150
  %v4884 = vunpack.c.l.b16 %v2151
  %v4885 = vunpack.c.h.b16 %v2151
  %v4886 = vunpack.c.l.b16 %v2152
  %v4887 = vunpack.c.h.b16 %v2152
  %v4888 = vunpack.c.l.b16 %v2153
  %v4889 = vunpack.c.h.b16 %v2153
  %v4890 = vunpack.c.l.b16 %v2154
  %v4891 = vunpack.c.h.b16 %v2154
  %v4892 = vunpack.c.l.b16 %v2155
  %v4893 = vunpack.c.h.b16 %v2155
  %v4894 = vunpack.c.l.b16 %v2156
  %v4895 = vunpack.c.h.b16 %v2156
  %v4896 = vunpack.c.l.b16 %v2157
  %v4897 = vunpack.c.h.b16 %v2157
  %v4898 = vunpack.c.l.b16 %v2158
  %v4899 = vunpack.c.h.b16 %v2158
  %v4900 = vunpack.c.l.b16 %v2159
  %v4901 = vunpack.c.h.b16 %v2159
  %v4902 = vunpack.c.l.b16 %v2160
  %v4903 = vunpack.c.h.b16 %v2160
  %v4904 = vunpack.c.l.b16 %v2161
  %v4905 = vunpack.c.h.b16 %v2161
  %v4906 = vunpack.c.l.b16 %v2162
  %v4907 = vunpack.c.h.b16 %v2162
  %v4908 = vunpack.c.l.b16 %v2163
  %v4909 = vunpack.c.h.b16 %v2163
  %v4910 = vunpack.c.l.b16 %v2164
  %v4911 = vunpack.c.h.b16 %v2164
  %v4912 = vunpack.c.l.b16 %v2165
  %v4913 = vunpack.c.h.b16 %v2165
  %v4914 = vunpack.c.l.b16 %v2166
  %v4915 = vunpack.c.h.b16 %v2166
  %v4916 = vunpack.c.l.b16 %v2167
  %v4917 = vunpack.c.h.b16 %v2167
  %v4918 = vunpack.c.l.b16 %v2168
  %v4919 = vunpack.c.h.b16 %v2168
  %v4920 = vunpack.c.l.b16 %v2169
  %v4921 = vunpack.c.h.b16 %v2169
  %v4922 = vunpack.c.l.b16 %v2170
  %v4923 = vunpack.c.h.b16 %v2170
  %v4924 = vunpack.c.l.b16 %v2171
  %v4925 = vunpack.c.h.b16 %v2171
  %v4926 = vunpack.c.l.b16 %v2172
  %v4927 = vunpack.c.h.b16 %v2172
  %v4928 = vunpack.c.l.b16 %v2173
  %v4929 = vunpack.c.h.b16 %v2173
  %v4930 = vunpack.c.l.b16 %v2174
  %v4931 = vunpack.c.h.b16 %v2174
  %v4932 = vunpack.c.l.b16 %v2175
  %v4933 = vunpack.c.h.b16 %v2175
  %v4934 = vunpack.c.l.b16 %v2176
  %v4935 = vunpack.c.h.b16 %v2176
  %v4936 = vunpack.c.l.b16 %v2177
  %v4937 = vunpack.c.h.b16 %v2177
  %v4938 = vunpack.c.l.b16 %v2178
  %v4939 = vunpack.c.h.b16 %v2178
  %v4940 = vunpack.c.l.b16 %v2179
  %v4941 = vunpack.c.h.b16 %v2179
  %v4942 = vunpack.c.l.b16 %v2180
  %v4943 = vunpack.c.h.b16 %v2180
  %v4944 = vunpack.c.l.b16 %v2181
  %v4945 = vunpack.c.h.b16 %v2181
  %v4946 = vunpack.c.l.b16 %v2182
  %v4947 = vunpack.c.h.b16 %v2182
  %v4948 = vunpack.c.l.b16 %v2183
  %v4949 = vunpack.c.h.b16 %v2183
  %v4950 = vunpack.c.l.b16 %v2184
  %v4951 = vunpack.c.h.b16 %v2184
  %v4952 = vunpack.c.l.b16 %v2185
  %v4953 = vunpack.c.h.b16 %v2185
  %v4954 = vunpack.c.l.b16 %v2186
  %v4955 = vunpack.c.h.b16 %v2186
  %v4956 = vunpack.c.l.b16 %v2187
  %v4957 = vunpack.c.h.b16 %v2187
  %v4958 = vunpack.c.l.b16 %v2188
  %v4959 = vunpack.c.h.b16 %v2188
  %v4960 = vunpack.c.l.b16 %v2189
  %v4961 = vunpack.c.h.b16 %v2189
  %v4962 = vunpack.c.l.b16 %v2190
  %v4963 = vunpack.c.h.b16 %v2190
  %v4964 = vunpack.c.l.b16 %v2191
  %v4965 = vunpack.c.h.b16 %v2191
  %v4966 = vunpack.c.l.b16 %v2192
  %v4967 = vunpack.c.h.b16 %v2192
  %v4968 = vunpack.c.l.b16 %v2193
  %v4969 = vunpack.c.h.b16 %v2193
  %v4970 = vunpack.c.l.b16 %v2194
  %v4971 = vunpack.c.h.b16 %v2194
  %v4972 = vunpack.c.l.b16 %v2195
  %v4973 = vunpack.c.h.b16 %v2195
  %v4974 = vunpack.c.l.b16 %v2196
  %v4975 = vunpack.c.h.b16 %v2196
  %v4976 = vunpack.c.l.b16 %v2197
  %v4977 = vunpack.c.h.b16 %v2197
  %v4978 = vunpack.c.l.b16 %v2198
  %v4979 = vunpack.c.h.b16 %v2198
  %v4980 = vunpack.c.l.b16 %v2199
  %v4981 = vunpack.c.h.b16 %v2199
  %v4982 = vunpack.c.l.b16 %v2200
  %v4983 = vunpack.c.h.b16 %v2200
  %v4984 = vunpack.c.l.b16 %v2201
  %v4985 = vunpack.c.h.b16 %v2201
  %v4986 = vunpack.c.l.b16 %v2202
  %v4987 = vunpack.c.h.b16 %v2202
  %v4988 = vunpack.c.l.b16 %v2203
  %v4989 = vunpack.c.h.b16 %v2203
  %v4990 = vunpack.c.l.b16 %v2204
  %v4991 = vunpack.c.h.b16 %v2204
  %v4992 = vunpack.c.l.b16 %v2205
  %v4993 = vunpack.c.h.b16 %v2205
  %v4994 = vunpack.c.l.b16 %v2206
  %v4995 = vunpack.c.h.b16 %v2206
  %v4996 = vunpack.c.l.b16 %v2207
  %v4997 = vunpack.c.h.b16 %v2207
  %v4998 = vunpack.c.l.b16 %v2208
  %v4999 = vunpack.c.h.b16 %v2208
  %v5000 = vunpack.c.l.b16 %v2209
  %v5001 = vunpack.c.h.b16 %v2209
  %v5002 = vunpack.c.l.b16 %v2210
  %v5003 = vunpack.c.h.b16 %v2210
  %v5004 = vunpack.c.l.b16 %v2211
  %v5005 = vunpack.c.h.b16 %v2211
  %v5006 = vunpack.c.l.b16 %v2212
  %v5007 = vunpack.c.h.b16 %v2212
  %v5008 = vunpack.c.l.b16 %v2213
  %v5009 = vunpack.c.h.b16 %v2213
  %v5010 = vunpack.c.l.b16 %v2214
  %v5011 = vunpack.c.h.b16 %v2214
  %v5012 = vunpack.c.l.b16 %v2215
  %v5013 = vunpack.c.h.b16 %v2215
  %v5014 = vunpack.c.l.b16 %v2216
  %v5015 = vunpack.c.h.b16 %v2216
  %v5016 = vunpack.c.l.b16 %v2217
  %v5017 = vunpack.c.h.b16 %v2217
  %v5018 = vunpack.c.l.b16 %v2218
  %v5019 = vunpack.c.h.b16 %v2218
  %v5020 = vunpack.c.l.b16 %v2219
  %v5021 = vunpack.c.h.b16 %v2219
  %v5022 = vunpack.c.l.b16 %v2220
  %v5023 = vunpack.c.h.b16 %v2220
  %v5024 = vunpack.c.l.b16 %v2221
  %v5025 = vunpack.c.h.b16 %v2221
  %v5026 = vunpack.c.l.b16 %v2222
  %v5027 = vunpack.c.h.b16 %v2222
  %v5028 = vunpack.c.l.b16 %v2223
  %v5029 = vunpack.c.h.b16 %v2223
  %v5030 = vunpack.c.l.b16 %v2224
  %v5031 = vunpack.c.h.b16 %v2224
  %v5032 = vunpack.c.l.b16 %v2225
  %v5033 = vunpack.c.h.b16 %v2225
  %v5034 = vunpack.c.l.b16 %v2226
  %v5035 = vunpack.c.h.b16 %v2226
  %v5036 = vunpack.c.l.b16 %v2227
  %v5037 = vunpack.c.h.b16 %v2227
  %v5038 = vunpack.c.l.b16 %v2228
  %v5039 = vunpack.c.h.b16 %v2228
  %v5040 = vunpack.c.l.b16 %v2229
  %v5041 = vunpack.c.h.b16 %v2229
  %v5042 = vunpack.c.l.b16 %v2230
  %v5043 = vunpack.c.h.b16 %v2230
  %v5044 = vunpack.c.l.b16 %v2231
  %v5045 = vunpack.c.h.b16 %v2231
  %v5046 = vunpack.c.l.b16 %v2232
  %v5047 = vunpack.c.h.b16 %v2232
  %v5048 = vunpack.c.l.b16 %v2233
  %v5049 = vunpack.c.h.b16 %v2233
  %v5050 = vunpack.c.l.b16 %v2234
  %v5051 = vunpack.c.h.b16 %v2234
  %v5052 = vunpack.c.l.b16 %v2235
  %v5053 = vunpack.c.h.b16 %v2235
  %v5054 = vunpack.c.l.b16 %v2236
  %v5055 = vunpack.c.h.b16 %v2236
  %v5056 = vunpack.c.l.b16 %v2237
  %v5057 = vunpack.c.h.b16 %v2237
  %v5058 = vunpack.c.l.b16 %v2238
  %v5059 = vunpack.c.h.b16 %v2238
  %v5060 = vunpack.c.l.b16 %v2239
  %v5061 = vunpack.c.h.b16 %v2239
  %v5062 = vunpack.c.l.b16 %v2240
  %v5063 = vunpack.c.h.b16 %v2240
  %v5064 = vunpack.c.l.b16 %v2241
  %v5065 = vunpack.c.h.b16 %v2241
  %v5066 = vunpack.c.l.b16 %v2242
  %v5067 = vunpack.c.h.b16 %v2242
  %v5068 = vunpack.c.l.b16 %v2243
  %v5069 = vunpack.c.h.b16 %v2243
  %v5070 = vunpack.c.l.b16 %v2244
  %v5071 = vunpack.c.h.b16 %v2244
  %v5072 = vunpack.c.l.b16 %v2245
  %v5073 = vunpack.c.h.b16 %v2245
  %v5074 = vunpack.c.l.b16 %v2246
  %v5075 = vunpack.c.h.b16 %v2246
  %v5076 = vunpack.c.l.b16 %v2247
  %v5077 = vunpack.c.h.b16 %v2247
  %v5078 = vunpack.c.l.b16 %v2248
  %v5079 = vunpack.c.h.b16 %v2248
  %v5080 = vunpack.c.l.b16 %v2249
  %v5081 = vunpack.c.h.b16 %v2249
  %v5082 = vunpack.c.l.b16 %v2250
  %v5083 = vunpack.c.h.b16 %v2250
  %v5084 = vunpack.c.l.b16 %v2251
  %v5085 = vunpack.c.h.b16 %v2251
  %v5086 = vunpack.c.l.b16 %v2252
  %v5087 = vunpack.c.h.b16 %v2252
  %v5088 = vunpack.c.l.b16 %v2253
  %v5089 = vunpack.c.h.b16 %v2253
  %v5090 = vunpack.c.l.b16 %v2254
  %v5091 = vunpack.c.h.b16 %v2254
  %v5092 = vunpack.c.l.b16 %v2255
  %v5093 = vunpack.c.h.b16 %v2255
  %v5094 = vunpack.c.l.b16 %v2256
  %v5095 = vunpack.c.h.b16 %v2256
  %v5096 = vunpack.c.l.b16 %v2257
  %v5097 = vunpack.c.h.b16 %v2257
  %v5098 = vunpack.c.l.b16 %v2258
  %v5099 = vunpack.c.h.b16 %v2258
  %v5100 = vunpack.c.l.b16 %v2259
  %v5101 = vunpack.c.h.b16 %v2259
  %v5102 = vunpack.c.l.b16 %v2260
  %v5103 = vunpack.c.h.b16 %v2260
  %v5104 = vunpack.c.l.b16 %v2261
  %v5105 = vunpack.c.h.b16 %v2261
  %v5106 = vunpack.c.l.b16 %v2262
  %v5107 = vunpack.c.h.b16 %v2262
  %v5108 = vunpack.c.l.b16 %v2263
  %v5109 = vunpack.c.h.b16 %v2263
  %v5110 = vunpack.c.l.b16 %v2264
  %v5111 = vunpack.c.h.b16 %v2264
  %v5112 = vunpack.c.l.b16 %v2265
  %v5113 = vunpack.c.h.b16 %v2265
  %v5114 = vunpack.c.l.b16 %v2266
  %v5115 = vunpack.c.h.b16 %v2266
  %v5116 = vunpack.c.l.b16 %v2267
  %v5117 = vunpack.c.h.b16 %v2267
  %v5118 = vunpack.c.l.b16 %v2268
  %v5119 = vunpack.c.h.b16 %v2268
  %v5120 = vunpack.c.l.b16 %v2269
  %v5121 = vunpack.c.h.b16 %v2269
  %v5122 = vunpack.c.l.b16 %v2270
  %v5123 = vunpack.c.h.b16 %v2270
  %v5124 = vunpack.c.l.b16 %v2271
  %v5125 = vunpack.c.h.b16 %v2271
  %v5126 = vunpack.c.l.b16 %v2272
  %v5127 = vunpack.c.h.b16 %v2272
  %v5128 = vunpack.c.l.b16 %v2273
  %v5129 = vunpack.c.h.b16 %v2273
  %v5130 = vunpack.c.l.b16 %v2274
  %v5131 = vunpack.c.h.b16 %v2274
  %v5132 = vunpack.c.l.b16 %v2275
  %v5133 = vunpack.c.h.b16 %v2275
  %v5134 = vunpack.c.l.b16 %v2276
  %v5135 = vunpack.c.h.b16 %v2276
  %v5136 = vunpack.c.l.b16 %v2277
  %v5137 = vunpack.c.h.b16 %v2277
  %v5138 = vunpack.c.l.b16 %v2278
  %v5139 = vunpack.c.h.b16 %v2278
  %v5140 = vunpack.c.l.b16 %v2279
  %v5141 = vunpack.c.h.b16 %v2279
  %v5142 = vunpack.c.l.b16 %v2280
  %v5143 = vunpack.c.h.b16 %v2280
  %v5144 = vunpack.c.l.b16 %v2281
  %v5145 = vunpack.c.h.b16 %v2281
  %v5146 = vunpack.c.l.b16 %v2282
  %v5147 = vunpack.c.h.b16 %v2282
  %v5148 = vunpack.c.l.b16 %v2283
  %v5149 = vunpack.c.h.b16 %v2283
  %v5150 = vunpack.c.l.b16 %v2284
  %v5151 = vunpack.c.h.b16 %v2284
  %v5152 = vunpack.c.l.b16 %v2285
  %v5153 = vunpack.c.h.b16 %v2285
  %v5154 = vunpack.c.l.b16 %v2286
  %v5155 = vunpack.c.h.b16 %v2286
  %v5156 = vunpack.c.l.b16 %v2287
  %v5157 = vunpack.c.h.b16 %v2287
  %v5158 = vunpack.c.l.b16 %v2288
  %v5159 = vunpack.c.h.b16 %v2288
  %v5160 = vunpack.c.l.b16 %v2289
  %v5161 = vunpack.c.h.b16 %v2289
  %v5162 = vunpack.c.l.b16 %v2290
  %v5163 = vunpack.c.h.b16 %v2290
  %v5164 = vpack.c.b16 %v4660, %v4652
  %v5165 = vpack.c.b16 %v4661, %v4653
  %v5166 = vpack.c.b16 %v4662, %v4654
  %v5167 = vpack.c.b16 %v4663, %v4655
  %v5168 = vpack.c.b16 %v4664, %v4656
  %v5169 = vpack.c.b16 %v4665, %v4657
  %v5170 = vpack.c.b16 %v4666, %v4658
  %v5171 = vpack.c.b16 %v4667, %v4659
  %v5172 = vpack.c.b16 %v4676, %v4668
  %v5173 = vpack.c.b16 %v4677, %v4669
  %v5174 = vpack.c.b16 %v4678, %v4670
  %v5175 = vpack.c.b16 %v4679, %v4671
  %v5176 = vpack.c.b16 %v4680, %v4672
  %v5177 = vpack.c.b16 %v4681, %v4673
  %v5178 = vpack.c.b16 %v4682, %v4674
  %v5179 = vpack.c.b16 %v4683, %v4675
  %v5180 = vpack.c.b16 %v4692, %v4684
  %v5181 = vpack.c.b16 %v4693, %v4685
  %v5182 = vpack.c.b16 %v4694, %v4686
  %v5183 = vpack.c.b16 %v4695, %v4687
  %v5184 = vpack.c.b16 %v4696, %v4688
  %v5185 = vpack.c.b16 %v4697, %v4689
  %v5186 = vpack.c.b16 %v4698, %v4690
  %v5187 = vpack.c.b16 %v4699, %v4691
  %v5188 = vpack.c.b16 %v4708, %v4700
  %v5189 = vpack.c.b16 %v4709, %v4701
  %v5190 = vpack.c.b16 %v4710, %v4702
  %v5191 = vpack.c.b16 %v4711, %v4703
  %v5192 = vpack.c.b16 %v4712, %v4704
  %v5193 = vpack.c.b16 %v4713, %v4705
  %v5194 = vpack.c.b16 %v4714, %v4706
  %v5195 = vpack.c.b16 %v4715, %v4707
  %v5196 = vpack.c.b16 %v4724, %v4716
  %v5197 = vpack.c.b16 %v4725, %v4717
  %v5198 = vpack.c.b16 %v4726, %v4718
  %v5199 = vpack.c.b16 %v4727, %v4719
  %v5200 = vpack.c.b16 %v4728, %v4720
  %v5201 = vpack.c.b16 %v4729, %v4721
  %v5202 = vpack.c.b16 %v4730, %v4722
  %v5203 = vpack.c.b16 %v4731, %v4723
  %v5204 = vpack.c.b16 %v4740, %v4732
  %v5205 = vpack.c.b16 %v4741, %v4733
  %v5206 = vpack.c.b16 %v4742, %v4734
  %v5207 = vpack.c.b16 %v4743, %v4735
  %v5208 = vpack.c.b16 %v4744, %v4736
  %v5209 = vpack.c.b16 %v4745, %v4737
  %v5210 = vpack.c.b16 %v4746, %v4738
  %v5211 = vpack.c.b16 %v4747, %v4739
  %v5212 = vpack.c.b16 %v4756, %v4748
  %v5213 = vpack.c.b16 %v4757, %v4749
  %v5214 = vpack.c.b16 %v4758, %v4750
  %v5215 = vpack.c.b16 %v4759, %v4751
  %v5216 = vpack.c.b16 %v4760, %v4752
  %v5217 = vpack.c.b16 %v4761, %v4753
  %v5218 = vpack.c.b16 %v4762, %v4754
  %v5219 = vpack.c.b16 %v4763, %v4755
  %v5220 = vpack.c.b16 %v4772, %v4764
  %v5221 = vpack.c.b16 %v4773, %v4765
  %v5222 = vpack.c.b16 %v4774, %v4766
  %v5223 = vpack.c.b16 %v4775, %v4767
  %v5224 = vpack.c.b16 %v4776, %v4768
  %v5225 = vpack.c.b16 %v4777, %v4769
  %v5226 = vpack.c.b16 %v4778, %v4770
  %v5227 = vpack.c.b16 %v4779, %v4771
  %v5228 = vpack.c.b16 %v4788, %v4780
  %v5229 = vpack.c.b16 %v4789, %v4781
  %v5230 = vpack.c.b16 %v4790, %v4782
  %v5231 = vpack.c.b16 %v4791, %v4783
  %v5232 = vpack.c.b16 %v4792, %v4784
  %v5233 = vpack.c.b16 %v4793, %v4785
  %v5234 = vpack.c.b16 %v4794, %v4786
  %v5235 = vpack.c.b16 %v4795, %v4787
  %v5236 = vpack.c.b16 %v4804, %v4796
  %v5237 = vpack.c.b16 %v4805, %v4797
  %v5238 = vpack.c.b16 %v4806, %v4798
  %v5239 = vpack.c.b16 %v4807, %v4799
  %v5240 = vpack.c.b16 %v4808, %v4800
  %v5241 = vpack.c.b16 %v4809, %v4801
  %v5242 = vpack.c.b16 %v4810, %v4802
  %v5243 = vpack.c.b16 %v4811, %v4803
  %v5244 = vpack.c.b16 %v4820, %v4812
  %v5245 = vpack.c.b16 %v4821, %v4813
  %v5246 = vpack.c.b16 %v4822, %v4814
  %v5247 = vpack.c.b16 %v4823, %v4815
  %v5248 = vpack.c.b16 %v4824, %v4816
  %v5249 = vpack.c.b16 %v4825, %v4817
  %v5250 = vpack.c.b16 %v4826, %v4818
  %v5251 = vpack.c.b16 %v4827, %v4819
  %v5252 = vpack.c.b16 %v4836, %v4828
  %v5253 = vpack.c.b16 %v4837, %v4829
  %v5254 = vpack.c.b16 %v4838, %v4830
  %v5255 = vpack.c.b16 %v4839, %v4831
  %v5256 = vpack.c.b16 %v4840, %v4832
  %v5257 = vpack.c.b16 %v4841, %v4833
  %v5258 = vpack.c.b16 %v4842, %v4834
  %v5259 = vpack.c.b16 %v4843, %v4835
  %v5260 = vpack.c.b16 %v4852, %v4844
  %v5261 = vpack.c.b16 %v4853, %v4845
  %v5262 = vpack.c.b16 %v4854, %v4846
  %v5263 = vpack.c.b16 %v4855, %v4847
  %v5264 = vpack.c.b16 %v4856, %v4848
  %v5265 = vpack.c.b16 %v4857, %v4849
  %v5266 = vpack.c.b16 %v4858, %v4850
  %v5267 = vpack.c.b16 %v4859, %v4851
  %v5268 = vpack.c.b16 %v4868, %v4860
  %v5269 = vpack.c.b16 %v4869, %v4861
  %v5270 = vpack.c.b16 %v4870, %v4862
  %v5271 = vpack.c.b16 %v4871, %v4863
  %v5272 = vpack.c.b16 %v4872, %v4864
  %v5273 = vpack.c.b16 %v4873, %v4865
  %v5274 = vpack.c.b16 %v4874, %v4866
  %v5275 = vpack.c.b16 %v4875, %v4867
  %v5276 = vpack.c.b16 %v4884, %v4876
  %v5277 = vpack.c.b16 %v4885, %v4877
  %v5278 = vpack.c.b16 %v4886, %v4878
  %v5279 = vpack.c.b16 %v4887, %v4879
  %v5280 = vpack.c.b16 %v4888, %v4880
  %v5281 = vpack.c.b16 %v4889, %v4881
  %v5282 = vpack.c.b16 %v4890, %v4882
  %v5283 = vpack.c.b16 %v4891, %v4883
  %v5284 = vpack.c.b16 %v4900, %v4892
  %v5285 = vpack.c.b16 %v4901, %v4893
  %v5286 = vpack.c.b16 %v4902, %v4894
  %v5287 = vpack.c.b16 %v4903, %v4895
  %v5288 = vpack.c.b16 %v4904, %v4896
  %v5289 = vpack.c.b16 %v4905, %v4897
  %v5290 = vpack.c.b16 %v4906, %v4898
  %v5291 = vpack.c.b16 %v4907, %v4899
  %v5292 = vpack.c.b16 %v4916, %v4908
  %v5293 = vpack.c.b16 %v4917, %v4909
  %v5294 = vpack.c.b16 %v4918, %v4910
  %v5295 = vpack.c.b16 %v4919, %v4911
  %v5296 = vpack.c.b16 %v4920, %v4912
  %v5297 = vpack.c.b16 %v4921, %v4913
  %v5298 = vpack.c.b16 %v4922, %v4914
  %v5299 = vpack.c.b16 %v4923, %v4915
  %v5300 = vpack.c.b16 %v4932, %v4924
  %v5301 = vpack.c.b16 %v4933, %v4925
  %v5302 = vpack.c.b16 %v4934, %v4926
  %v5303 = vpack.c.b16 %v4935, %v4927
  %v5304 = vpack.c.b16 %v4936, %v4928
  %v5305 = vpack.c.b16 %v4937, %v4929
  %v5306 = vpack.c.b16 %v4938, %v4930
  %v5307 = vpack.c.b16 %v4939, %v4931
  %v5308 = vpack.c.b16 %v4948, %v4940
  %v5309 = vpack.c.b16 %v4949, %v4941
  %v5310 = vpack.c.b16 %v4950, %v4942
  %v5311 = vpack.c.b16 %v4951, %v4943
  %v5312 = vpack.c.b16 %v4952, %v4944
  %v5313 = vpack.c.b16 %v4953, %v4945
  %v5314 = vpack.c.b16 %v4954, %v4946
  %v5315 = vpack.c.b16 %v4955, %v4947
  %v5316 = vpack.c.b16 %v4964, %v4956
  %v5317 = vpack.c.b16 %v4965, %v4957
  %v5318 = vpack.c.b16 %v4966, %v4958
  %v5319 = vpack.c.b16 %v4967, %v4959
  %v5320 = vpack.c.b16 %v4968, %v4960
  %v5321 = vpack.c.b16 %v4969, %v4961
  %v5322 = vpack.c.b16 %v4970, %v4962
  %v5323 = vpack.c.b16 %v4971, %v4963
  %v5324 = vpack.c.b16 %v4980, %v4972
  %v5325 = vpack.c.b16 %v4981, %v4973
  %v5326 = vpack.c.b16 %v4982, %v4974
  %v5327 = vpack.c.b16 %v4983, %v4975
  %v5328 = vpack.c.b16 %v4984, %v4976
  %v5329 = vpack.c.b16 %v4985, %v4977
  %v5330 = vpack.c.b16 %v4986, %v4978
  %v5331 = vpack.c.b16 %v4987, %v4979
  %v5332 = vpack.c.b16 %v4996, %v4988
  %v5333 = vpack.c.b16 %v4997, %v4989
  %v5334 = vpack.c.b16 %v4998, %v4990
  %v5335 = vpack.c.b16 %v4999, %v4991
  %v5336 = vpack.c.b16 %v5000, %v4992
  %v5337 = vpack.c.b16 %v5001, %v4993
  %v5338 = vpack.c.b16 %v5002, %v4994
  %v5339 = vpack.c.b16 %v5003, %v4995
  %v5340 = vpack.c.b16 %v5012, %v5004
  %v5341 = vpack.c.b16 %v5013, %v5005
  %v5342 = vpack.c.b16 %v5014, %v5006
  %v5343 = vpack.c.b16 %v5015, %v5007
  %v5344 = vpack.c.b16 %v5016, %v5008
  %v5345 = vpack.c.b16 %v5017, %v5009
  %v5346 = vpack.c.b16 %v5018, %v5010
  %v5347 = vpack.c.b16 %v5019, %v5011
  %v5348 = vpack.c.b16 %v5028, %v5020
  %v5349 = vpack.c.b16 %v5029, %v5021
  %v5350 = vpack.c.b16 %v5030, %v5022
  %v5351 = vpack.c.b16 %v5031, %v5023
  %v5352 = vpack.c.b16 %v5032, %v5024
  %v5353 = vpack.c.b16 %v5033, %v5025
  %v5354 = vpack.c.b16 %v5034, %v5026
  %v5355 = vpack.c.b16 %v5035, %v5027
  %v5356 = vpack.c.b16 %v5044, %v5036
  %v5357 = vpack.c.b16 %v5045, %v5037
  %v5358 = vpack.c.b16 %v5046, %v5038
  %v5359 = vpack.c.b16 %v5047, %v5039
  %v5360 = vpack.c.b16 %v5048, %v5040
  %v5361 = vpack.c.b16 %v5049, %v5041
  %v5362 = vpack.c.b16 %v5050, %v5042
  %v5363 = vpack.c.b16 %v5051, %v5043
  %v5364 = vpack.c.b16 %v5060, %v5052
  %v5365 = vpack.c.b16 %v5061, %v5053
  %v5366 = vpack.c.b16 %v5062, %v5054
  %v5367 = vpack.c.b16 %v5063, %v5055
  %v5368 = vpack.c.b16 %v5064, %v5056
  %v5369 = vpack.c.b16 %v5065, %v5057
  %v5370 = vpack.c.b16 %v5066, %v5058
  %v5371 = vpack.c.b16 %v5067, %v5059
  %v5372 = vpack.c.b16 %v5076, %v5068
  %v5373 = vpack.c.b16 %v5077, %v5069
  %v5374 = vpack.c.b16 %v5078, %v5070
  %v5375 = vpack.c.b16 %v5079, %v5071
  %v5376 = vpack.c.b16 %v5080, %v5072
  %v5377 = vpack.c.b16 %v5081, %v5073
  %v5378 = vpack.c.b16 %v5082, %v5074
  %v5379 = vpack.c.b16 %v5083, %v5075
  %v5380 = vpack.c.b16 %v5092, %v5084
  %v5381 = vpack.c.b16 %v5093, %v5085
  %v5382 = vpack.c.b16 %v5094, %v5086
  %v5383 = vpack.c.b16 %v5095, %v5087
  %v5384 = vpack.c.b16 %v5096, %v5088
  %v5385 = vpack.c.b16 %v5097, %v5089
  %v5386 = vpack.c.b16 %v5098, %v5090
  %v5387 = vpack.c.b16 %v5099, %v5091
  %v5388 = vpack.c.b16 %v5108, %v5100
  %v5389 = vpack.c.b16 %v5109, %v5101
  %v5390 = vpack.c.b16 %v5110, %v5102
  %v5391 = vpack.c.b16 %v5111, %v5103
  %v5392 = vpack.c.b16 %v5112, %v5104
  %v5393 = vpack.c.b16 %v5113, %v5105
  %v5394 = vpack.c.b16 %v5114, %v5106
  %v5395 = vpack.c.b16 %v5115, %v5107
  %v5396 = vpack.c.b16 %v5124, %v5116
  %v5397 = vpack.c.b16 %v5125, %v5117
  %v5398 = vpack.c.b16 %v5126, %v5118
  %v5399 = vpack.c.b16 %v5127, %v5119
  %v5400 = vpack.c.b16 %v5128, %v5120
  %v5401 = vpack.c.b16 %v5129, %v5121
  %v5402 = vpack.c.b16 %v5130, %v5122
  %v5403 = vpack.c.b16 %v5131, %v5123
  %v5404 = vpack.c.b16 %v5140, %v5132
  %v5405 = vpack.c.b16 %v5141, %v5133
  %v5406 = vpack.c.b16 %v5142, %v5134
  %v5407 = vpack.c.b16 %v5143, %v5135
  %v5408 = vpack.c.b16 %v5144, %v5136
  %v5409 = vpack.c.b16 %v5145, %v5137
  %v5410 = vpack.c.b16 %v5146, %v5138
  %v5411 = vpack.c.b16 %v5147, %v5139
  %v5412 = vpack.c.b16 %v5156, %v5148
  %v5413 = vpack.c.b16 %v5157, %v5149
  %v5414 = vpack.c.b16 %v5158, %v5150
  %v5415 = vpack.c.b16 %v5159, %v5151
  %v5416 = vpack.c.b16 %v5160, %v5152
  %v5417 = vpack.c.b16 %v5161, %v5153
  %v5418 = vpack.c.b16 %v5162, %v5154
  %v5419 = vpack.c.b16 %v5163, %v5155
  %5676 = vmatprep.subr.bf16.mxu0 %v5165
  %5677 = vmatpush1.bf16.msra.mxu0 %v5164
  %5678 = vmatprep.subr.bf16.mxu0 %v5173
  %5679 = vmatpush1.bf16.msra.mxu0 %v5172
  %5680 = vmatprep.subr.bf16.mxu0 %v5181
  %5681 = vmatpush1.bf16.msra.mxu0 %v5180
  %5682 = vmatprep.subr.bf16.mxu0 %v5189
  %5683 = vmatpush1.bf16.msra.mxu0 %v5188
  %5684 = vmatprep.subr.bf16.mxu0 %v5197
  %5685 = vmatpush1.bf16.msra.mxu0 %v5196
  %5686 = vmatprep.subr.bf16.mxu0 %v5205
  %5687 = vmatpush1.bf16.msra.mxu0 %v5204
  %5688 = vmatprep.subr.bf16.mxu0 %v5213
  %5689 = vmatpush1.bf16.msra.mxu0 %v5212
  %5690 = vmatprep.subr.bf16.mxu0 %v5221
  %5691 = vmatpush1.bf16.msra.mxu0 %v5220
  %5692 = vmatprep.subr.bf16.mxu0 %v5229
  %5693 = vmatpush1.bf16.msra.mxu0 %v5228
  %5694 = vmatprep.subr.bf16.mxu0 %v5237
  %5695 = vmatpush1.bf16.msra.mxu0 %v5236
  %5696 = vmatprep.subr.bf16.mxu0 %v5245
  %5697 = vmatpush1.bf16.msra.mxu0 %v5244
  %5698 = vmatprep.subr.bf16.mxu0 %v5253
  %5699 = vmatpush1.bf16.msra.mxu0 %v5252
  %5700 = vmatprep.subr.bf16.mxu0 %v5261
  %5701 = vmatpush1.bf16.msra.mxu0 %v5260
  %5702 = vmatprep.subr.bf16.mxu0 %v5269
  %5703 = vmatpush1.bf16.msra.mxu0 %v5268
  %5704 = vmatprep.subr.bf16.mxu0 %v5277
  %5705 = vmatpush1.bf16.msra.mxu0 %v5276
  %5706 = vmatprep.subr.bf16.mxu0 %v5285
  %5707 = vmatpush1.bf16.msra.mxu0 %v5284
  %5708 = vmatprep.mubr.bf16.mxu0 %v1975
  %5709 = vmatmul.mubr.bf16.gmra.mrb[0].mxu0 %v1974
  %v5710 = vpop.f32.mrb[0].mxu0
  %v5711 = vadd.f32 %v3934, %v5710
  %v5712 = vpop.f32.mrb[0].mxu0
  %v5713 = vadd.f32 %v3936, %v5712
  %v5714 = vpop.f32.mrb[0].mxu0
  %v5715 = vadd.f32 %v3938, %v5714
  %v5716 = vpop.f32.mrb[0].mxu0
  %v5717 = vadd.f32 %v3940, %v5716
  %5718 = vmatprep.mubr.bf16.mxu0 %v1979
  %5719 = vmatmul.mubr.bf16.gmra.mrb[0].mxu0 %v1978
  %v5720 = vpop.f32.mrb[0].mxu0
  %v5721 = vadd.f32 %v3944, %v5720
  %v5722 = vpop.f32.mrb[0].mxu0
  %v5723 = vadd.f32 %v3946, %v5722
  %v5724 = vpop.f32.mrb[0].mxu0
  %v5725 = vadd.f32 %v3948, %v5724
  %v5726 = vpop.f32.mrb[0].mxu0
  %v5727 = vadd.f32 %v3950, %v5726
  %5728 = vmatprep.mubr.bf16.mxu0 %v1983
  %5729 = vmatmul.mubr.bf16.gmra.mrb[0].mxu0 %v1982
  %v5730 = vpop.f32.mrb[0].mxu0
  %v5731 = vadd.f32 %v3954, %v5730
  %v5732 = vpop.f32.mrb[0].mxu0
  %v5733 = vadd.f32 %v3956, %v5732
  %v5734 = vpop.f32.mrb[0].mxu0
  %v5735 = vadd.f32 %v3958, %v5734
  %v5736 = vpop.f32.mrb[0].mxu0
  %v5737 = vadd.f32 %v3960, %v5736
  %5738 = vmatprep.mubr.bf16.mxu0 %v1987
  %5739 = vmatmul.mubr.bf16.gmra.mrb[0].mxu0 %v1986
  %v5740 = vpop.f32.mrb[0].mxu0
  %v5741 = vadd.f32 %v3964, %v5740
  %v5742 = vpop.f32.mrb[0].mxu0
  %v5743 = vadd.f32 %v3966, %v5742
  %v5744 = vpop.f32.mrb[0].mxu0
  %v5745 = vpop.f32.mrb[0].mxu0
  %5746 = vdwg.mxu0
  %5747 = vmatprep.subr.bf16.mxu0 %v5293
  %5748 = vmatpush1.bf16.msra.mxu0 %v5292
  %5749 = vmatprep.subr.bf16.mxu0 %v5301
  %5750 = vmatpush1.bf16.msra.mxu0 %v5300
  %5751 = vmatprep.subr.bf16.mxu0 %v5309
  %5752 = vmatpush1.bf16.msra.mxu0 %v5308
  %5753 = vmatprep.subr.bf16.mxu0 %v5317
  %5754 = vmatpush1.bf16.msra.mxu0 %v5316
  %5755 = vmatprep.subr.bf16.mxu0 %v5325
  %5756 = vmatpush1.bf16.msra.mxu0 %v5324
  %5757 = vmatprep.subr.bf16.mxu0 %v5333
  %5758 = vmatpush1.bf16.msra.mxu0 %v5332
  %5759 = vmatprep.subr.bf16.mxu0 %v5341
  %5760 = vmatpush1.bf16.msra.mxu0 %v5340
  %5761 = vmatprep.subr.bf16.mxu0 %v5349
  %5762 = vmatpush1.bf16.msra.mxu0 %v5348
  %5763 = vmatprep.subr.bf16.mxu0 %v5357
  %5764 = vmatpush1.bf16.msra.mxu0 %v5356
  %5765 = vmatprep.subr.bf16.mxu0 %v5365
  %5766 = vmatpush1.bf16.msra.mxu0 %v5364
  %5767 = vmatprep.subr.bf16.mxu0 %v5373
  %5768 = vmatpush1.bf16.msra.mxu0 %v5372
  %5769 = vmatprep.subr.bf16.mxu0 %v5381
  %5770 = vmatpush1.bf16.msra.mxu0 %v5380
  %5771 = vmatprep.subr.bf16.mxu0 %v5389
  %5772 = vmatpush1.bf16.msra.mxu0 %v5388
  %5773 = vmatprep.subr.bf16.mxu0 %v5397
  %5774 = vmatpush1.bf16.msra.mxu0 %v5396
  %5775 = vmatprep.subr.bf16.mxu0 %v5405
  %5776 = vmatpush1.bf16.msra.mxu0 %v5404
  %5777 = vmatprep.subr.bf16.mxu0 %v5413
  %5778 = vmatpush1.bf16.msra.mxu0 %v5412
  %5779 = vmatprep.mubr.bf16.mxu0 %v1977
  %5780 = vmatmul.mubr.bf16.gmra.mrb[0].mxu0 %v1976
  %v5781 = vpop.f32.mrb[0].mxu0
  %v5782 = vadd.f32 %v5711, %v5781
  %v5783 = vpop.f32.mrb[0].mxu0
  %v5784 = vadd.f32 %v5713, %v5783
  %v5785 = vpop.f32.mrb[0].mxu0
  %v5786 = vadd.f32 %v5715, %v5785
  %v5787 = vpop.f32.mrb[0].mxu0
  %v5788 = vadd.f32 %v5717, %v5787
  %5789 = vmatprep.mubr.bf16.mxu0 %v1981
  %5790 = vmatmul.mubr.bf16.gmra.mrb[0].mxu0 %v1980
  %v5791 = vpop.f32.mrb[0].mxu0
  %v5792 = vadd.f32 %v5721, %v5791
  %v5793 = vpop.f32.mrb[0].mxu0
  %v5794 = vadd.f32 %v5723, %v5793
  %v5795 = vpop.f32.mrb[0].mxu0
  %v5796 = vadd.f32 %v5725, %v5795
  %v5797 = vpop.f32.mrb[0].mxu0
  %v5798 = vadd.f32 %v5727, %v5797
  %5799 = vmatprep.mubr.bf16.mxu0 %v1985
  %5800 = vmatmul.mubr.bf16.gmra.mrb[0].mxu0 %v1984
  %v5801 = vpop.f32.mrb[0].mxu0
  %v5802 = vadd.f32 %v5731, %v5801
  %v5803 = vpop.f32.mrb[0].mxu0
  %v5804 = vadd.f32 %v5733, %v5803
  %v5805 = vpop.f32.mrb[0].mxu0
  %v5806 = vadd.f32 %v5735, %v5805
  %v5807 = vpop.f32.mrb[0].mxu0
  %v5808 = vadd.f32 %v5737, %v5807
  %5809 = vmatprep.mubr.bf16.mxu0 %v1989
  %5810 = vmatmul.mubr.bf16.gmra.mrb[0].mxu0 %v1988
  %v5811 = vpop.f32.mrb[0].mxu0
  %v5812 = vadd.f32 %v5741, %v5811
  %v5813 = vpop.f32.mrb[0].mxu0
  %v5814 = vadd.f32 %v5743, %v5813
  %v5815 = vpop.f32.mrb[0].mxu0
  %v5816 = vpop.f32.mrb[0].mxu0
  %5817 = vdwg.mxu0
  %5818 = vmatprep.subr.bf16.mxu0 %v5167
  %5819 = vmatpush1.bf16.msra.mxu0 %v5166
  %5820 = vmatprep.subr.bf16.mxu0 %v5175
  %5821 = vmatpush1.bf16.msra.mxu0 %v5174
  %5822 = vmatprep.subr.bf16.mxu0 %v5183
  %5823 = vmatpush1.bf16.msra.mxu0 %v5182
  %5824 = vmatprep.subr.bf16.mxu0 %v5191
  %5825 = vmatpush1.bf16.msra.mxu0 %v5190
  %5826 = vmatprep.subr.bf16.mxu0 %v5199
  %5827 = vmatpush1.bf16.msra.mxu0 %v5198
  %5828 = vmatprep.subr.bf16.mxu0 %v5207
  %5829 = vmatpush1.bf16.msra.mxu0 %v5206
  %5830 = vmatprep.subr.bf16.mxu0 %v5215
  %5831 = vmatpush1.bf16.msra.mxu0 %v5214
  %5832 = vmatprep.subr.bf16.mxu0 %v5223
  %5833 = vmatpush1.bf16.msra.mxu0 %v5222
  %5834 = vmatprep.subr.bf16.mxu0 %v5231
  %5835 = vmatpush1.bf16.msra.mxu0 %v5230
  %5836 = vmatprep.subr.bf16.mxu0 %v5239
  %5837 = vmatpush1.bf16.msra.mxu0 %v5238
  %5838 = vmatprep.subr.bf16.mxu0 %v5247
  %5839 = vmatpush1.bf16.msra.mxu0 %v5246
  %5840 = vmatprep.subr.bf16.mxu0 %v5255
  %5841 = vmatpush1.bf16.msra.mxu0 %v5254
  %5842 = vmatprep.subr.bf16.mxu0 %v5263
  %5843 = vmatpush1.bf16.msra.mxu0 %v5262
  %5844 = vmatprep.subr.bf16.mxu0 %v5271
  %5845 = vmatpush1.bf16.msra.mxu0 %v5270
  %5846 = vmatprep.subr.bf16.mxu0 %v5279
  %5847 = vmatpush1.bf16.msra.mxu0 %v5278
  %5848 = vmatprep.subr.bf16.mxu0 %v5287
  %5849 = vmatpush1.bf16.msra.mxu0 %v5286
  %5850 = vmatprep.mubr.bf16.mxu0 %v1975
  %5851 = vmatmul.mubr.bf16.gmra.mrb[0].mxu0 %v1974
  %v5852 = vpop.f32.mrb[0].mxu0
  %v5853 = vadd.f32 %v4076, %v5852
  %v5854 = vpop.f32.mrb[0].mxu0
  %v5855 = vadd.f32 %v4078, %v5854
  %v5856 = vpop.f32.mrb[0].mxu0
  %v5857 = vadd.f32 %v4080, %v5856
  %v5858 = vpop.f32.mrb[0].mxu0
  %v5859 = vadd.f32 %v4082, %v5858
  %5860 = vmatprep.mubr.bf16.mxu0 %v1979
  %5861 = vmatmul.mubr.bf16.gmra.mrb[0].mxu0 %v1978
  %v5862 = vpop.f32.mrb[0].mxu0
  %v5863 = vadd.f32 %v4086, %v5862
  %v5864 = vpop.f32.mrb[0].mxu0
  %v5865 = vadd.f32 %v4088, %v5864
  %v5866 = vpop.f32.mrb[0].mxu0
  %v5867 = vadd.f32 %v4090, %v5866
  %v5868 = vpop.f32.mrb[0].mxu0
  %v5869 = vadd.f32 %v4092, %v5868
  %5870 = vmatprep.mubr.bf16.mxu0 %v1983
  %5871 = vmatmul.mubr.bf16.gmra.mrb[0].mxu0 %v1982
  %v5872 = vpop.f32.mrb[0].mxu0
  %v5873 = vadd.f32 %v4096, %v5872
  %v5874 = vpop.f32.mrb[0].mxu0
  %v5875 = vadd.f32 %v4098, %v5874
  %v5876 = vpop.f32.mrb[0].mxu0
  %v5877 = vadd.f32 %v4100, %v5876
  %v5878 = vpop.f32.mrb[0].mxu0
  %v5879 = vadd.f32 %v4102, %v5878
  %5880 = vmatprep.mubr.bf16.mxu0 %v1987
  %5881 = vmatmul.mubr.bf16.gmra.mrb[0].mxu0 %v1986
  %v5882 = vpop.f32.mrb[0].mxu0
  %v5883 = vadd.f32 %v4106, %v5882
  %v5884 = vpop.f32.mrb[0].mxu0
  %v5885 = vadd.f32 %v4108, %v5884
  %v5886 = vpop.f32.mrb[0].mxu0
  %v5887 = vpop.f32.mrb[0].mxu0
  %5888 = vdwg.mxu0
  %5889 = vmatprep.subr.bf16.mxu0 %v5295
  %5890 = vmatpush1.bf16.msra.mxu0 %v5294
  %5891 = vmatprep.subr.bf16.mxu0 %v5303
  %5892 = vmatpush1.bf16.msra.mxu0 %v5302
  %5893 = vmatprep.subr.bf16.mxu0 %v5311
  %5894 = vmatpush1.bf16.msra.mxu0 %v5310
  %5895 = vmatprep.subr.bf16.mxu0 %v5319
  %5896 = vmatpush1.bf16.msra.mxu0 %v5318
  %5897 = vmatprep.subr.bf16.mxu0 %v5327
  %5898 = vmatpush1.bf16.msra.mxu0 %v5326
  %5899 = vmatprep.subr.bf16.mxu0 %v5335
  %5900 = vmatpush1.bf16.msra.mxu0 %v5334
  %5901 = vmatprep.subr.bf16.mxu0 %v5343
  %5902 = vmatpush1.bf16.msra.mxu0 %v5342
  %5903 = vmatprep.subr.bf16.mxu0 %v5351
  %5904 = vmatpush1.bf16.msra.mxu0 %v5350
  %5905 = vmatprep.subr.bf16.mxu0 %v5359
  %5906 = vmatpush1.bf16.msra.mxu0 %v5358
  %5907 = vmatprep.subr.bf16.mxu0 %v5367
  %5908 = vmatpush1.bf16.msra.mxu0 %v5366
  %5909 = vmatprep.subr.bf16.mxu0 %v5375
  %5910 = vmatpush1.bf16.msra.mxu0 %v5374
  %5911 = vmatprep.subr.bf16.mxu0 %v5383
  %5912 = vmatpush1.bf16.msra.mxu0 %v5382
  %5913 = vmatprep.subr.bf16.mxu0 %v5391
  %5914 = vmatpush1.bf16.msra.mxu0 %v5390
  %5915 = vmatprep.subr.bf16.mxu0 %v5399
  %5916 = vmatpush1.bf16.msra.mxu0 %v5398
  %5917 = vmatprep.subr.bf16.mxu0 %v5407
  %5918 = vmatpush1.bf16.msra.mxu0 %v5406
  %5919 = vmatprep.subr.bf16.mxu0 %v5415
  %5920 = vmatpush1.bf16.msra.mxu0 %v5414
  %5921 = vmatprep.mubr.bf16.mxu0 %v1977
  %5922 = vmatmul.mubr.bf16.gmra.mrb[0].mxu0 %v1976
  %v5923 = vpop.f32.mrb[0].mxu0
  %v5924 = vadd.f32 %v5853, %v5923
  %v5925 = vpop.f32.mrb[0].mxu0
  %v5926 = vadd.f32 %v5855, %v5925
  %v5927 = vpop.f32.mrb[0].mxu0
  %v5928 = vadd.f32 %v5857, %v5927
  %v5929 = vpop.f32.mrb[0].mxu0
  %v5930 = vadd.f32 %v5859, %v5929
  %5931 = vmatprep.mubr.bf16.mxu0 %v1981
  %5932 = vmatmul.mubr.bf16.gmra.mrb[0].mxu0 %v1980
  %v5933 = vpop.f32.mrb[0].mxu0
  %v5934 = vadd.f32 %v5863, %v5933
  %v5935 = vpop.f32.mrb[0].mxu0
  %v5936 = vadd.f32 %v5865, %v5935
  %v5937 = vpop.f32.mrb[0].mxu0
  %v5938 = vadd.f32 %v5867, %v5937
  %v5939 = vpop.f32.mrb[0].mxu0
  %v5940 = vadd.f32 %v5869, %v5939
  %5941 = vmatprep.mubr.bf16.mxu0 %v1985
  %5942 = vmatmul.mubr.bf16.gmra.mrb[0].mxu0 %v1984
  %v5943 = vpop.f32.mrb[0].mxu0
  %v5944 = vadd.f32 %v5873, %v5943
  %v5945 = vpop.f32.mrb[0].mxu0
  %v5946 = vadd.f32 %v5875, %v5945
  %v5947 = vpop.f32.mrb[0].mxu0
  %v5948 = vadd.f32 %v5877, %v5947
  %v5949 = vpop.f32.mrb[0].mxu0
  %v5950 = vadd.f32 %v5879, %v5949
  %5951 = vmatprep.mubr.bf16.mxu0 %v1989
  %5952 = vmatmul.mubr.bf16.gmra.mrb[0].mxu0 %v1988
  %v5953 = vpop.f32.mrb[0].mxu0
  %v5954 = vadd.f32 %v5883, %v5953
  %v5955 = vpop.f32.mrb[0].mxu0
  %v5956 = vadd.f32 %v5885, %v5955
  %v5957 = vpop.f32.mrb[0].mxu0
  %v5958 = vpop.f32.mrb[0].mxu0
  %5959 = vdwg.mxu0
  %5960 = vmatprep.subr.bf16.mxu0 %v5169
  %5961 = vmatpush1.bf16.msra.mxu0 %v5168
  %5962 = vmatprep.subr.bf16.mxu0 %v5177
  %5963 = vmatpush1.bf16.msra.mxu0 %v5176
  %5964 = vmatprep.subr.bf16.mxu0 %v5185
  %5965 = vmatpush1.bf16.msra.mxu0 %v5184
  %5966 = vmatprep.subr.bf16.mxu0 %v5193
  %5967 = vmatpush1.bf16.msra.mxu0 %v5192
  %5968 = vmatprep.subr.bf16.mxu0 %v5201
  %5969 = vmatpush1.bf16.msra.mxu0 %v5200
  %5970 = vmatprep.subr.bf16.mxu0 %v5209
  %5971 = vmatpush1.bf16.msra.mxu0 %v5208
  %5972 = vmatprep.subr.bf16.mxu0 %v5217
  %5973 = vmatpush1.bf16.msra.mxu0 %v5216
  %5974 = vmatprep.subr.bf16.mxu0 %v5225
  %5975 = vmatpush1.bf16.msra.mxu0 %v5224
  %5976 = vmatprep.subr.bf16.mxu0 %v5233
  %5977 = vmatpush1.bf16.msra.mxu0 %v5232
  %5978 = vmatprep.subr.bf16.mxu0 %v5241
  %5979 = vmatpush1.bf16.msra.mxu0 %v5240
  %5980 = vmatprep.subr.bf16.mxu0 %v5249
  %5981 = vmatpush1.bf16.msra.mxu0 %v5248
  %5982 = vmatprep.subr.bf16.mxu0 %v5257
  %5983 = vmatpush1.bf16.msra.mxu0 %v5256
  %5984 = vmatprep.subr.bf16.mxu0 %v5265
  %5985 = vmatpush1.bf16.msra.mxu0 %v5264
  %5986 = vmatprep.subr.bf16.mxu0 %v5273
  %5987 = vmatpush1.bf16.msra.mxu0 %v5272
  %5988 = vmatprep.subr.bf16.mxu0 %v5281
  %5989 = vmatpush1.bf16.msra.mxu0 %v5280
  %5990 = vmatprep.subr.bf16.mxu0 %v5289
  %5991 = vmatpush1.bf16.msra.mxu0 %v5288
  %5992 = vmatprep.mubr.bf16.mxu0 %v1975
  %5993 = vmatmul.mubr.bf16.gmra.mrb[0].mxu0 %v1974
  %v5994 = vpop.f32.mrb[0].mxu0
  %v5995 = vadd.f32 %v4218, %v5994
  %v5996 = vpop.f32.mrb[0].mxu0
  %v5997 = vadd.f32 %v4220, %v5996
  %v5998 = vpop.f32.mrb[0].mxu0
  %v5999 = vadd.f32 %v4222, %v5998
  %v6000 = vpop.f32.mrb[0].mxu0
  %v6001 = vadd.f32 %v4224, %v6000
  %6002 = vmatprep.mubr.bf16.mxu0 %v1979
  %6003 = vmatmul.mubr.bf16.gmra.mrb[0].mxu0 %v1978
  %v6004 = vpop.f32.mrb[0].mxu0
  %v6005 = vadd.f32 %v4228, %v6004
  %v6006 = vpop.f32.mrb[0].mxu0
  %v6007 = vadd.f32 %v4230, %v6006
  %v6008 = vpop.f32.mrb[0].mxu0
  %v6009 = vadd.f32 %v4232, %v6008
  %v6010 = vpop.f32.mrb[0].mxu0
  %v6011 = vadd.f32 %v4234, %v6010
  %6012 = vmatprep.mubr.bf16.mxu0 %v1983
  %6013 = vmatmul.mubr.bf16.gmra.mrb[0].mxu0 %v1982
  %v6014 = vpop.f32.mrb[0].mxu0
  %v6015 = vadd.f32 %v4238, %v6014
  %v6016 = vpop.f32.mrb[0].mxu0
  %v6017 = vadd.f32 %v4240, %v6016
  %v6018 = vpop.f32.mrb[0].mxu0
  %v6019 = vadd.f32 %v4242, %v6018
  %v6020 = vpop.f32.mrb[0].mxu0
  %v6021 = vadd.f32 %v4244, %v6020
  %6022 = vmatprep.mubr.bf16.mxu0 %v1987
  %6023 = vmatmul.mubr.bf16.gmra.mrb[0].mxu0 %v1986
  %v6024 = vpop.f32.mrb[0].mxu0
  %v6025 = vadd.f32 %v4248, %v6024
  %v6026 = vpop.f32.mrb[0].mxu0
  %v6027 = vadd.f32 %v4250, %v6026
  %v6028 = vpop.f32.mrb[0].mxu0
  %v6029 = vpop.f32.mrb[0].mxu0
  %6030 = vdwg.mxu0
  %6031 = vmatprep.subr.bf16.mxu0 %v5297
  %6032 = vmatpush1.bf16.msra.mxu0 %v5296
  %6033 = vmatprep.subr.bf16.mxu0 %v5305
  %6034 = vmatpush1.bf16.msra.mxu0 %v5304
  %6035 = vmatprep.subr.bf16.mxu0 %v5313
  %6036 = vmatpush1.bf16.msra.mxu0 %v5312
  %6037 = vmatprep.subr.bf16.mxu0 %v5321
  %6038 = vmatpush1.bf16.msra.mxu0 %v5320
  %6039 = vmatprep.subr.bf16.mxu0 %v5329
  %6040 = vmatpush1.bf16.msra.mxu0 %v5328
  %6041 = vmatprep.subr.bf16.mxu0 %v5337
  %6042 = vmatpush1.bf16.msra.mxu0 %v5336
  %6043 = vmatprep.subr.bf16.mxu0 %v5345
  %6044 = vmatpush1.bf16.msra.mxu0 %v5344
  %6045 = vmatprep.subr.bf16.mxu0 %v5353
  %6046 = vmatpush1.bf16.msra.mxu0 %v5352
  %6047 = vmatprep.subr.bf16.mxu0 %v5361
  %6048 = vmatpush1.bf16.msra.mxu0 %v5360
  %6049 = vmatprep.subr.bf16.mxu0 %v5369
  %6050 = vmatpush1.bf16.msra.mxu0 %v5368
  %6051 = vmatprep.subr.bf16.mxu0 %v5377
  %6052 = vmatpush1.bf16.msra.mxu0 %v5376
  %6053 = vmatprep.subr.bf16.mxu0 %v5385
  %6054 = vmatpush1.bf16.msra.mxu0 %v5384
  %6055 = vmatprep.subr.bf16.mxu0 %v5393
  %6056 = vmatpush1.bf16.msra.mxu0 %v5392
  %6057 = vmatprep.subr.bf16.mxu0 %v5401
  %6058 = vmatpush1.bf16.msra.mxu0 %v5400
  %6059 = vmatprep.subr.bf16.mxu0 %v5409
  %6060 = vmatpush1.bf16.msra.mxu0 %v5408
  %6061 = vmatprep.subr.bf16.mxu0 %v5417
  %6062 = vmatpush1.bf16.msra.mxu0 %v5416
  %6063 = vmatprep.mubr.bf16.mxu0 %v1977
  %6064 = vmatmul.mubr.bf16.gmra.mrb[0].mxu0 %v1976
  %v6065 = vpop.f32.mrb[0].mxu0
  %v6066 = vadd.f32 %v5995, %v6065
  %v6067 = vpop.f32.mrb[0].mxu0
  %v6068 = vadd.f32 %v5997, %v6067
  %v6069 = vpop.f32.mrb[0].mxu0
  %v6070 = vadd.f32 %v5999, %v6069
  %v6071 = vpop.f32.mrb[0].mxu0
  %v6072 = vadd.f32 %v6001, %v6071
  %6073 = vmatprep.mubr.bf16.mxu0 %v1981
  %6074 = vmatmul.mubr.bf16.gmra.mrb[0].mxu0 %v1980
  %v6075 = vpop.f32.mrb[0].mxu0
  %v6076 = vadd.f32 %v6005, %v6075
  %v6077 = vpop.f32.mrb[0].mxu0
  %v6078 = vadd.f32 %v6007, %v6077
  %v6079 = vpop.f32.mrb[0].mxu0
  %v6080 = vadd.f32 %v6009, %v6079
  %v6081 = vpop.f32.mrb[0].mxu0
  %v6082 = vadd.f32 %v6011, %v6081
  %6083 = vmatprep.mubr.bf16.mxu0 %v1985
  %6084 = vmatmul.mubr.bf16.gmra.mrb[0].mxu0 %v1984
  %v6085 = vpop.f32.mrb[0].mxu0
  %v6086 = vadd.f32 %v6015, %v6085
  %v6087 = vpop.f32.mrb[0].mxu0
  %v6088 = vadd.f32 %v6017, %v6087
  %v6089 = vpop.f32.mrb[0].mxu0
  %v6090 = vadd.f32 %v6019, %v6089
  %v6091 = vpop.f32.mrb[0].mxu0
  %v6092 = vadd.f32 %v6021, %v6091
  %6093 = vmatprep.mubr.bf16.mxu0 %v1989
  %6094 = vmatmul.mubr.bf16.gmra.mrb[0].mxu0 %v1988
  %v6095 = vpop.f32.mrb[0].mxu0
  %v6096 = vadd.f32 %v6025, %v6095
  %v6097 = vpop.f32.mrb[0].mxu0
  %v6098 = vadd.f32 %v6027, %v6097
  %v6099 = vpop.f32.mrb[0].mxu0
  %v6100 = vpop.f32.mrb[0].mxu0
  %6101 = vdwg.mxu0
  %6102 = vmatprep.subr.bf16.mxu0 %v5171
  %6103 = vmatpush1.bf16.msra.mxu0 %v5170
  %6104 = vmatprep.subr.bf16.mxu0 %v5179
  %6105 = vmatpush1.bf16.msra.mxu0 %v5178
  %6106 = vmatprep.subr.bf16.mxu0 %v5187
  %6107 = vmatpush1.bf16.msra.mxu0 %v5186
  %6108 = vmatprep.subr.bf16.mxu0 %v5195
  %6109 = vmatpush1.bf16.msra.mxu0 %v5194
  %6110 = vmatprep.subr.bf16.mxu0 %v5203
  %6111 = vmatpush1.bf16.msra.mxu0 %v5202
  %6112 = vmatprep.subr.bf16.mxu0 %v5211
  %6113 = vmatpush1.bf16.msra.mxu0 %v5210
  %6114 = vmatprep.subr.bf16.mxu0 %v5219
  %6115 = vmatpush1.bf16.msra.mxu0 %v5218
  %6116 = vmatprep.subr.bf16.mxu0 %v5227
  %6117 = vmatpush1.bf16.msra.mxu0 %v5226
  %6118 = vmatprep.subr.bf16.mxu0 %v5235
  %6119 = vmatpush1.bf16.msra.mxu0 %v5234
  %6120 = vmatprep.subr.bf16.mxu0 %v5243
  %6121 = vmatpush1.bf16.msra.mxu0 %v5242
  %6122 = vmatprep.subr.bf16.mxu0 %v5251
  %6123 = vmatpush1.bf16.msra.mxu0 %v5250
  %6124 = vmatprep.subr.bf16.mxu0 %v5259
  %6125 = vmatpush1.bf16.msra.mxu0 %v5258
  %6126 = vmatprep.subr.bf16.mxu0 %v5267
  %6127 = vmatpush1.bf16.msra.mxu0 %v5266
  %6128 = vmatprep.subr.bf16.mxu0 %v5275
  %6129 = vmatpush1.bf16.msra.mxu0 %v5274
  %6130 = vmatprep.subr.bf16.mxu0 %v5283
  %6131 = vmatpush1.bf16.msra.mxu0 %v5282
  %6132 = vmatprep.subr.bf16.mxu0 %v5291
  %6133 = vmatpush1.bf16.msra.mxu0 %v5290
  %6134 = vmatprep.mubr.bf16.mxu0 %v1975
  %6135 = vmatmul.mubr.bf16.gmra.mrb[0].mxu0 %v1974
  %v6136 = vpop.f32.mrb[0].mxu0
  %v6137 = vadd.f32 %v4360, %v6136
  %v6138 = vpop.f32.mrb[0].mxu0
  %v6139 = vadd.f32 %v4362, %v6138
  %v6140 = vpop.f32.mrb[0].mxu0
  %v6141 = vadd.f32 %v4364, %v6140
  %v6142 = vpop.f32.mrb[0].mxu0
  %v6143 = vadd.f32 %v4366, %v6142
  %6144 = vmatprep.mubr.bf16.mxu0 %v1979
  %6145 = vmatmul.mubr.bf16.gmra.mrb[0].mxu0 %v1978
  %v6146 = vpop.f32.mrb[0].mxu0
  %v6147 = vadd.f32 %v4370, %v6146
  %v6148 = vpop.f32.mrb[0].mxu0
  %v6149 = vadd.f32 %v4372, %v6148
  %v6150 = vpop.f32.mrb[0].mxu0
  %v6151 = vadd.f32 %v4374, %v6150
  %v6152 = vpop.f32.mrb[0].mxu0
  %v6153 = vadd.f32 %v4376, %v6152
  %6154 = vmatprep.mubr.bf16.mxu0 %v1983
  %6155 = vmatmul.mubr.bf16.gmra.mrb[0].mxu0 %v1982
  %v6156 = vpop.f32.mrb[0].mxu0
  %v6157 = vadd.f32 %v4380, %v6156
  %v6158 = vpop.f32.mrb[0].mxu0
  %v6159 = vadd.f32 %v4382, %v6158
  %v6160 = vpop.f32.mrb[0].mxu0
  %v6161 = vadd.f32 %v4384, %v6160
  %v6162 = vpop.f32.mrb[0].mxu0
  %v6163 = vadd.f32 %v4386, %v6162
  %6164 = vmatprep.mubr.bf16.mxu0 %v1987
  %6165 = vmatmul.mubr.bf16.gmra.mrb[0].mxu0 %v1986
  %v6166 = vpop.f32.mrb[0].mxu0
  %v6167 = vadd.f32 %v4390, %v6166
  %v6168 = vpop.f32.mrb[0].mxu0
  %v6169 = vadd.f32 %v4392, %v6168
  %v6170 = vpop.f32.mrb[0].mxu0
  %v6171 = vpop.f32.mrb[0].mxu0
  %6172 = vdwg.mxu0
  %6173 = vmatprep.subr.bf16.mxu0 %v5299
  %6174 = vmatpush1.bf16.msra.mxu0 %v5298
  %6175 = vmatprep.subr.bf16.mxu0 %v5307
  %6176 = vmatpush1.bf16.msra.mxu0 %v5306
  %6177 = vmatprep.subr.bf16.mxu0 %v5315
  %6178 = vmatpush1.bf16.msra.mxu0 %v5314
  %6179 = vmatprep.subr.bf16.mxu0 %v5323
  %6180 = vmatpush1.bf16.msra.mxu0 %v5322
  %6181 = vmatprep.subr.bf16.mxu0 %v5331
  %6182 = vmatpush1.bf16.msra.mxu0 %v5330
  %6183 = vmatprep.subr.bf16.mxu0 %v5339
  %6184 = vmatpush1.bf16.msra.mxu0 %v5338
  %6185 = vmatprep.subr.bf16.mxu0 %v5347
  %6186 = vmatpush1.bf16.msra.mxu0 %v5346
  %6187 = vmatprep.subr.bf16.mxu0 %v5355
  %6188 = vmatpush1.bf16.msra.mxu0 %v5354
  %6189 = vmatprep.subr.bf16.mxu0 %v5363
  %6190 = vmatpush1.bf16.msra.mxu0 %v5362
  %6191 = vmatprep.subr.bf16.mxu0 %v5371
  %6192 = vmatpush1.bf16.msra.mxu0 %v5370
  %6193 = vmatprep.subr.bf16.mxu0 %v5379
  %6194 = vmatpush1.bf16.msra.mxu0 %v5378
  %6195 = vmatprep.subr.bf16.mxu0 %v5387
  %6196 = vmatpush1.bf16.msra.mxu0 %v5386
  %6197 = vmatprep.subr.bf16.mxu0 %v5395
  %6198 = vmatpush1.bf16.msra.mxu0 %v5394
  %6199 = vmatprep.subr.bf16.mxu0 %v5403
  %6200 = vmatpush1.bf16.msra.mxu0 %v5402
  %6201 = vmatprep.subr.bf16.mxu0 %v5411
  %6202 = vmatpush1.bf16.msra.mxu0 %v5410
  %6203 = vmatprep.subr.bf16.mxu0 %v5419
  %6204 = vmatpush1.bf16.msra.mxu0 %v5418
  %6205 = vmatprep.mubr.bf16.mxu0 %v1977
  %6206 = vmatmul.mubr.bf16.gmra.mrb[0].mxu0 %v1976
  %v6207 = vpop.f32.mrb[0].mxu0
  %v6208 = vadd.f32 %v6137, %v6207
  %v6209 = vpop.f32.mrb[0].mxu0
  %v6210 = vadd.f32 %v6139, %v6209
  %v6211 = vpop.f32.mrb[0].mxu0
  %v6212 = vadd.f32 %v6141, %v6211
  %v6213 = vpop.f32.mrb[0].mxu0
  %v6214 = vadd.f32 %v6143, %v6213
  %6215 = vmatprep.mubr.bf16.mxu0 %v1981
  %6216 = vmatmul.mubr.bf16.gmra.mrb[0].mxu0 %v1980
  %v6217 = vpop.f32.mrb[0].mxu0
  %v6218 = vadd.f32 %v6147, %v6217
  %v6219 = vpop.f32.mrb[0].mxu0
  %v6220 = vadd.f32 %v6149, %v6219
  %v6221 = vpop.f32.mrb[0].mxu0
  %v6222 = vadd.f32 %v6151, %v6221
  %v6223 = vpop.f32.mrb[0].mxu0
  %v6224 = vadd.f32 %v6153, %v6223
  %6225 = vmatprep.mubr.bf16.mxu0 %v1985
  %6226 = vmatmul.mubr.bf16.gmra.mrb[0].mxu0 %v1984
  %v6227 = vpop.f32.mrb[0].mxu0
  %v6228 = vadd.f32 %v6157, %v6227
  %v6229 = vpop.f32.mrb[0].mxu0
  %v6230 = vadd.f32 %v6159, %v6229
  %v6231 = vpop.f32.mrb[0].mxu0
  %v6232 = vadd.f32 %v6161, %v6231
  %v6233 = vpop.f32.mrb[0].mxu0
  %v6234 = vadd.f32 %v6163, %v6233
  %6235 = vmatprep.mubr.bf16.mxu0 %v1989
  %6236 = vmatmul.mubr.bf16.gmra.mrb[0].mxu0 %v1988
  %v6237 = vpop.f32.mrb[0].mxu0
  %v6238 = vadd.f32 %v6167, %v6237
  %v6239 = vpop.f32.mrb[0].mxu0
  %v6240 = vadd.f32 %v6169, %v6239
  %v6241 = vpop.f32.mrb[0].mxu0
  %v6242 = vpop.f32.mrb[0].mxu0
  %6243 = vdwg.mxu0
  %s6244 = scalar_lea.vmem %s3, 4096
  %v6245 = vld [vmem:[%s6244] sm:$0xff]
  %v6246 = vld [vmem:[%s6244 + $0x8] sm:$0xff]
  %v6247 = vld [vmem:[%s6244 + $0x10] sm:$0xff]
  %v6248 = vld [vmem:[%s6244 + $0x18] sm:$0xff]
  %v6249 = vld [vmem:[%s6244 + $0x20] sm:$0xff]
  %v6250 = vld [vmem:[%s6244 + $0x28] sm:$0xff]
  %v6251 = vld [vmem:[%s6244 + $0x30] sm:$0xff]
  %v6252 = vld [vmem:[%s6244 + $0x38] sm:$0xff]
  %v6253 = vld [vmem:[%s6244 + $0x40] sm:$0xff]
  %v6254 = vld [vmem:[%s6244 + $0x48] sm:$0xff]
  %v6255 = vld [vmem:[%s6244 + $0x50] sm:$0xff]
  %v6256 = vld [vmem:[%s6244 + $0x58] sm:$0xff]
  %v6257 = vld [vmem:[%s6244 + $0x60] sm:$0xff]
  %v6258 = vld [vmem:[%s6244 + $0x68] sm:$0xff]
  %v6259 = vld [vmem:[%s6244 + $0x70] sm:$0xff]
  %v6260 = vld [vmem:[%s6244 + $0x78] sm:$0xff]
  %v6261 = vld [vmem:[%s6244 + $0x80] sm:$0xff]
  %v6262 = vld [vmem:[%s6244 + $0x88] sm:$0xff]
  %v6263 = vld [vmem:[%s6244 + $0x90] sm:$0xff]
  %v6264 = vld [vmem:[%s6244 + $0x98] sm:$0xff]
  %v6265 = vld [vmem:[%s6244 + $0xa0] sm:$0xff]
  %v6266 = vld [vmem:[%s6244 + $0xa8] sm:$0xff]
  %v6267 = vld [vmem:[%s6244 + $0xb0] sm:$0xff]
  %v6268 = vld [vmem:[%s6244 + $0xb8] sm:$0xff]
  %v6269 = vld [vmem:[%s6244 + $0xc0] sm:$0xff]
  %v6270 = vld [vmem:[%s6244 + $0xc8] sm:$0xff]
  %v6271 = vld [vmem:[%s6244 + $0xd0] sm:$0xff]
  %v6272 = vld [vmem:[%s6244 + $0xd8] sm:$0xff]
  %v6273 = vld [vmem:[%s6244 + $0xe0] sm:$0xff]
  %v6274 = vld [vmem:[%s6244 + $0xe8] sm:$0xff]
  %v6275 = vld [vmem:[%s6244 + $0xf0] sm:$0xff]
  %v6276 = vld [vmem:[%s6244 + $0xf8] sm:$0xff]
  %v6277 = vld [vmem:[%s6244 + $0x100] sm:$0xff]
  %v6278 = vld [vmem:[%s6244 + $0x108] sm:$0xff]
  %v6279 = vld [vmem:[%s6244 + $0x110] sm:$0xff]
  %v6280 = vld [vmem:[%s6244 + $0x118] sm:$0xff]
  %v6281 = vld [vmem:[%s6244 + $0x120] sm:$0xff]
  %v6282 = vld [vmem:[%s6244 + $0x128] sm:$0xff]
  %v6283 = vld [vmem:[%s6244 + $0x130] sm:$0xff]
  %v6284 = vld [vmem:[%s6244 + $0x138] sm:$0xff]
  %v6285 = vld [vmem:[%s6244 + $0x140] sm:$0xff]
  %v6286 = vld [vmem:[%s6244 + $0x148] sm:$0xff]
  %v6287 = vld [vmem:[%s6244 + $0x150] sm:$0xff]
  %v6288 = vld [vmem:[%s6244 + $0x158] sm:$0xff]
  %v6289 = vld [vmem:[%s6244 + $0x160] sm:$0xff]
  %v6290 = vld [vmem:[%s6244 + $0x168] sm:$0xff]
  %v6291 = vld [vmem:[%s6244 + $0x170] sm:$0xff]
  %v6292 = vld [vmem:[%s6244 + $0x178] sm:$0xff]
  %v6293 = vld [vmem:[%s6244 + $0x180] sm:$0xff]
  %v6294 = vld [vmem:[%s6244 + $0x188] sm:$0xff]
  %v6295 = vld [vmem:[%s6244 + $0x190] sm:$0xff]
  %v6296 = vld [vmem:[%s6244 + $0x198] sm:$0xff]
  %v6297 = vld [vmem:[%s6244 + $0x1a0] sm:$0xff]
  %v6298 = vld [vmem:[%s6244 + $0x1a8] sm:$0xff]
  %v6299 = vld [vmem:[%s6244 + $0x1b0] sm:$0xff]
  %v6300 = vld [vmem:[%s6244 + $0x1b8] sm:$0xff]
  %v6301 = vld [vmem:[%s6244 + $0x1c0] sm:$0xff]
  %v6302 = vld [vmem:[%s6244 + $0x1c8] sm:$0xff]
  %v6303 = vld [vmem:[%s6244 + $0x1d0] sm:$0xff]
  %v6304 = vld [vmem:[%s6244 + $0x1d8] sm:$0xff]
  %v6305 = vld [vmem:[%s6244 + $0x1e0] sm:$0xff]
  %v6306 = vld [vmem:[%s6244 + $0x1e8] sm:$0xff]
  %v6307 = vld [vmem:[%s6244 + $0x1f0] sm:$0xff]
  %v6308 = vld [vmem:[%s6244 + $0x1f8] sm:$0xff]
  %v6309 = vld [vmem:[%s6244 + $0x200] sm:$0xff]
  %v6310 = vld [vmem:[%s6244 + $0x208] sm:$0xff]
  %v6311 = vld [vmem:[%s6244 + $0x210] sm:$0xff]
  %v6312 = vld [vmem:[%s6244 + $0x218] sm:$0xff]
  %v6313 = vld [vmem:[%s6244 + $0x220] sm:$0xff]
  %v6314 = vld [vmem:[%s6244 + $0x228] sm:$0xff]
  %v6315 = vld [vmem:[%s6244 + $0x230] sm:$0xff]
  %v6316 = vld [vmem:[%s6244 + $0x238] sm:$0xff]
  %v6317 = vld [vmem:[%s6244 + $0x240] sm:$0xff]
  %v6318 = vld [vmem:[%s6244 + $0x248] sm:$0xff]
  %v6319 = vld [vmem:[%s6244 + $0x250] sm:$0xff]
  %v6320 = vld [vmem:[%s6244 + $0x258] sm:$0xff]
  %v6321 = vld [vmem:[%s6244 + $0x260] sm:$0xff]
  %v6322 = vld [vmem:[%s6244 + $0x268] sm:$0xff]
  %v6323 = vld [vmem:[%s6244 + $0x270] sm:$0xff]
  %v6324 = vld [vmem:[%s6244 + $0x278] sm:$0xff]
  %v6325 = vld [vmem:[%s6244 + $0x280] sm:$0xff]
  %v6326 = vld [vmem:[%s6244 + $0x288] sm:$0xff]
  %v6327 = vld [vmem:[%s6244 + $0x290] sm:$0xff]
  %v6328 = vld [vmem:[%s6244 + $0x298] sm:$0xff]
  %v6329 = vld [vmem:[%s6244 + $0x2a0] sm:$0xff]
  %v6330 = vld [vmem:[%s6244 + $0x2a8] sm:$0xff]
  %v6331 = vld [vmem:[%s6244 + $0x2b0] sm:$0xff]
  %v6332 = vld [vmem:[%s6244 + $0x2b8] sm:$0xff]
  %v6333 = vld [vmem:[%s6244 + $0x2c0] sm:$0xff]
  %v6334 = vld [vmem:[%s6244 + $0x2c8] sm:$0xff]
  %v6335 = vld [vmem:[%s6244 + $0x2d0] sm:$0xff]
  %v6336 = vld [vmem:[%s6244 + $0x2d8] sm:$0xff]
  %v6337 = vld [vmem:[%s6244 + $0x2e0] sm:$0xff]
  %v6338 = vld [vmem:[%s6244 + $0x2e8] sm:$0xff]
  %v6339 = vld [vmem:[%s6244 + $0x2f0] sm:$0xff]
  %v6340 = vld [vmem:[%s6244 + $0x2f8] sm:$0xff]
  %v6341 = vld [vmem:[%s6244 + $0x300] sm:$0xff]
  %v6342 = vld [vmem:[%s6244 + $0x308] sm:$0xff]
  %v6343 = vld [vmem:[%s6244 + $0x310] sm:$0xff]
  %v6344 = vld [vmem:[%s6244 + $0x318] sm:$0xff]
  %v6345 = vld [vmem:[%s6244 + $0x320] sm:$0xff]
  %v6346 = vld [vmem:[%s6244 + $0x328] sm:$0xff]
  %v6347 = vld [vmem:[%s6244 + $0x330] sm:$0xff]
  %v6348 = vld [vmem:[%s6244 + $0x338] sm:$0xff]
  %v6349 = vld [vmem:[%s6244 + $0x340] sm:$0xff]
  %v6350 = vld [vmem:[%s6244 + $0x348] sm:$0xff]
  %v6351 = vld [vmem:[%s6244 + $0x350] sm:$0xff]
  %v6352 = vld [vmem:[%s6244 + $0x358] sm:$0xff]
  %v6353 = vld [vmem:[%s6244 + $0x360] sm:$0xff]
  %v6354 = vld [vmem:[%s6244 + $0x368] sm:$0xff]
  %v6355 = vld [vmem:[%s6244 + $0x370] sm:$0xff]
  %v6356 = vld [vmem:[%s6244 + $0x378] sm:$0xff]
  %v6357 = vld [vmem:[%s6244 + $0x380] sm:$0xff]
  %v6358 = vld [vmem:[%s6244 + $0x388] sm:$0xff]
  %v6359 = vld [vmem:[%s6244 + $0x390] sm:$0xff]
  %v6360 = vld [vmem:[%s6244 + $0x398] sm:$0xff]
  %v6361 = vld [vmem:[%s6244 + $0x3a0] sm:$0xff]
  %v6362 = vld [vmem:[%s6244 + $0x3a8] sm:$0xff]
  %v6363 = vld [vmem:[%s6244 + $0x3b0] sm:$0xff]
  %v6364 = vld [vmem:[%s6244 + $0x3b8] sm:$0xff]
  %v6365 = vld [vmem:[%s6244 + $0x3c0] sm:$0xff]
  %v6366 = vld [vmem:[%s6244 + $0x3c8] sm:$0xff]
  %v6367 = vld [vmem:[%s6244 + $0x3d0] sm:$0xff]
  %v6368 = vld [vmem:[%s6244 + $0x3d8] sm:$0xff]
  %v6369 = vld [vmem:[%s6244 + $0x3e0] sm:$0xff]
  %v6370 = vld [vmem:[%s6244 + $0x3e8] sm:$0xff]
  %v6371 = vld [vmem:[%s6244 + $0x3f0] sm:$0xff]
  %v6372 = vld [vmem:[%s6244 + $0x3f8] sm:$0xff]
  %v6373 = vld [vmem:[%s6244 + $0x400] sm:$0xff]
  %v6374 = vld [vmem:[%s6244 + $0x408] sm:$0xff]
  %v6375 = vld [vmem:[%s6244 + $0x410] sm:$0xff]
  %v6376 = vld [vmem:[%s6244 + $0x418] sm:$0xff]
  %v6377 = vld [vmem:[%s6244 + $0x420] sm:$0xff]
  %v6378 = vld [vmem:[%s6244 + $0x428] sm:$0xff]
  %v6379 = vld [vmem:[%s6244 + $0x430] sm:$0xff]
  %v6380 = vld [vmem:[%s6244 + $0x438] sm:$0xff]
  %v6381 = vld [vmem:[%s6244 + $0x440] sm:$0xff]
  %v6382 = vld [vmem:[%s6244 + $0x448] sm:$0xff]
  %v6383 = vld [vmem:[%s6244 + $0x450] sm:$0xff]
  %v6384 = vld [vmem:[%s6244 + $0x458] sm:$0xff]
  %v6385 = vld [vmem:[%s6244 + $0x460] sm:$0xff]
  %v6386 = vld [vmem:[%s6244 + $0x468] sm:$0xff]
  %v6387 = vld [vmem:[%s6244 + $0x470] sm:$0xff]
  %v6388 = vld [vmem:[%s6244 + $0x478] sm:$0xff]
  %v6389 = vld [vmem:[%s6244 + $0x480] sm:$0xff]
  %v6390 = vld [vmem:[%s6244 + $0x488] sm:$0xff]
  %v6391 = vld [vmem:[%s6244 + $0x490] sm:$0xff]
  %v6392 = vld [vmem:[%s6244 + $0x498] sm:$0xff]
  %v6393 = vld [vmem:[%s6244 + $0x4a0] sm:$0xff]
  %v6394 = vld [vmem:[%s6244 + $0x4a8] sm:$0xff]
  %v6395 = vld [vmem:[%s6244 + $0x4b0] sm:$0xff]
  %v6396 = vld [vmem:[%s6244 + $0x4b8] sm:$0xff]
  %v6397 = vld [vmem:[%s6244 + $0x4c0] sm:$0xff]
  %v6398 = vld [vmem:[%s6244 + $0x4c8] sm:$0xff]
  %v6399 = vld [vmem:[%s6244 + $0x4d0] sm:$0xff]
  %v6400 = vld [vmem:[%s6244 + $0x4d8] sm:$0xff]
  %v6401 = vld [vmem:[%s6244 + $0x4e0] sm:$0xff]
  %v6402 = vld [vmem:[%s6244 + $0x4e8] sm:$0xff]
  %v6403 = vld [vmem:[%s6244 + $0x4f0] sm:$0xff]
  %v6404 = vld [vmem:[%s6244 + $0x4f8] sm:$0xff]
  %v6405 = vld [vmem:[%s6244 + $0x500] sm:$0xff]
  %v6406 = vld [vmem:[%s6244 + $0x508] sm:$0xff]
  %v6407 = vld [vmem:[%s6244 + $0x510] sm:$0xff]
  %v6408 = vld [vmem:[%s6244 + $0x518] sm:$0xff]
  %v6409 = vld [vmem:[%s6244 + $0x520] sm:$0xff]
  %v6410 = vld [vmem:[%s6244 + $0x528] sm:$0xff]
  %v6411 = vld [vmem:[%s6244 + $0x530] sm:$0xff]
  %v6412 = vld [vmem:[%s6244 + $0x538] sm:$0xff]
  %v6413 = vld [vmem:[%s6244 + $0x540] sm:$0xff]
  %v6414 = vld [vmem:[%s6244 + $0x548] sm:$0xff]
  %v6415 = vld [vmem:[%s6244 + $0x550] sm:$0xff]
  %v6416 = vld [vmem:[%s6244 + $0x558] sm:$0xff]
  %v6417 = vld [vmem:[%s6244 + $0x560] sm:$0xff]
  %v6418 = vld [vmem:[%s6244 + $0x568] sm:$0xff]
  %v6419 = vld [vmem:[%s6244 + $0x570] sm:$0xff]
  %v6420 = vld [vmem:[%s6244 + $0x578] sm:$0xff]
  %v6421 = vld [vmem:[%s6244 + $0x580] sm:$0xff]
  %v6422 = vld [vmem:[%s6244 + $0x588] sm:$0xff]
  %v6423 = vld [vmem:[%s6244 + $0x590] sm:$0xff]
  %v6424 = vld [vmem:[%s6244 + $0x598] sm:$0xff]
  %v6425 = vld [vmem:[%s6244 + $0x5a0] sm:$0xff]
  %v6426 = vld [vmem:[%s6244 + $0x5a8] sm:$0xff]
  %v6427 = vld [vmem:[%s6244 + $0x5b0] sm:$0xff]
  %v6428 = vld [vmem:[%s6244 + $0x5b8] sm:$0xff]
  %v6429 = vld [vmem:[%s6244 + $0x5c0] sm:$0xff]
  %v6430 = vld [vmem:[%s6244 + $0x5c8] sm:$0xff]
  %v6431 = vld [vmem:[%s6244 + $0x5d0] sm:$0xff]
  %v6432 = vld [vmem:[%s6244 + $0x5d8] sm:$0xff]
  %v6433 = vld [vmem:[%s6244 + $0x5e0] sm:$0xff]
  %v6434 = vld [vmem:[%s6244 + $0x5e8] sm:$0xff]
  %v6435 = vld [vmem:[%s6244 + $0x5f0] sm:$0xff]
  %v6436 = vld [vmem:[%s6244 + $0x5f8] sm:$0xff]
  %v6437 = vld [vmem:[%s6244 + $0x600] sm:$0xff]
  %v6438 = vld [vmem:[%s6244 + $0x608] sm:$0xff]
  %v6439 = vld [vmem:[%s6244 + $0x610] sm:$0xff]
  %v6440 = vld [vmem:[%s6244 + $0x618] sm:$0xff]
  %v6441 = vld [vmem:[%s6244 + $0x620] sm:$0xff]
  %v6442 = vld [vmem:[%s6244 + $0x628] sm:$0xff]
  %v6443 = vld [vmem:[%s6244 + $0x630] sm:$0xff]
  %v6444 = vld [vmem:[%s6244 + $0x638] sm:$0xff]
  %v6445 = vld [vmem:[%s6244 + $0x640] sm:$0xff]
  %v6446 = vld [vmem:[%s6244 + $0x648] sm:$0xff]
  %v6447 = vld [vmem:[%s6244 + $0x650] sm:$0xff]
  %v6448 = vld [vmem:[%s6244 + $0x658] sm:$0xff]
  %v6449 = vld [vmem:[%s6244 + $0x660] sm:$0xff]
  %v6450 = vld [vmem:[%s6244 + $0x668] sm:$0xff]
  %v6451 = vld [vmem:[%s6244 + $0x670] sm:$0xff]
  %v6452 = vld [vmem:[%s6244 + $0x678] sm:$0xff]
  %v6453 = vld [vmem:[%s6244 + $0x680] sm:$0xff]
  %v6454 = vld [vmem:[%s6244 + $0x688] sm:$0xff]
  %v6455 = vld [vmem:[%s6244 + $0x690] sm:$0xff]
  %v6456 = vld [vmem:[%s6244 + $0x698] sm:$0xff]
  %v6457 = vld [vmem:[%s6244 + $0x6a0] sm:$0xff]
  %v6458 = vld [vmem:[%s6244 + $0x6a8] sm:$0xff]
  %v6459 = vld [vmem:[%s6244 + $0x6b0] sm:$0xff]
  %v6460 = vld [vmem:[%s6244 + $0x6b8] sm:$0xff]
  %v6461 = vld [vmem:[%s6244 + $0x6c0] sm:$0xff]
  %v6462 = vld [vmem:[%s6244 + $0x6c8] sm:$0xff]
  %v6463 = vld [vmem:[%s6244 + $0x6d0] sm:$0xff]
  %v6464 = vld [vmem:[%s6244 + $0x6d8] sm:$0xff]
  %v6465 = vld [vmem:[%s6244 + $0x6e0] sm:$0xff]
  %v6466 = vld [vmem:[%s6244 + $0x6e8] sm:$0xff]
  %v6467 = vld [vmem:[%s6244 + $0x6f0] sm:$0xff]
  %v6468 = vld [vmem:[%s6244 + $0x6f8] sm:$0xff]
  %v6469 = vld [vmem:[%s6244 + $0x700] sm:$0xff]
  %v6470 = vld [vmem:[%s6244 + $0x708] sm:$0xff]
  %v6471 = vld [vmem:[%s6244 + $0x710] sm:$0xff]
  %v6472 = vld [vmem:[%s6244 + $0x718] sm:$0xff]
  %v6473 = vld [vmem:[%s6244 + $0x720] sm:$0xff]
  %v6474 = vld [vmem:[%s6244 + $0x728] sm:$0xff]
  %v6475 = vld [vmem:[%s6244 + $0x730] sm:$0xff]
  %v6476 = vld [vmem:[%s6244 + $0x738] sm:$0xff]
  %v6477 = vld [vmem:[%s6244 + $0x740] sm:$0xff]
  %v6478 = vld [vmem:[%s6244 + $0x748] sm:$0xff]
  %v6479 = vld [vmem:[%s6244 + $0x750] sm:$0xff]
  %v6480 = vld [vmem:[%s6244 + $0x758] sm:$0xff]
  %v6481 = vld [vmem:[%s6244 + $0x760] sm:$0xff]
  %v6482 = vld [vmem:[%s6244 + $0x768] sm:$0xff]
  %v6483 = vld [vmem:[%s6244 + $0x770] sm:$0xff]
  %v6484 = vld [vmem:[%s6244 + $0x778] sm:$0xff]
  %v6485 = vld [vmem:[%s6244 + $0x780] sm:$0xff]
  %v6486 = vld [vmem:[%s6244 + $0x788] sm:$0xff]
  %v6487 = vld [vmem:[%s6244 + $0x790] sm:$0xff]
  %v6488 = vld [vmem:[%s6244 + $0x798] sm:$0xff]
  %v6489 = vld [vmem:[%s6244 + $0x7a0] sm:$0xff]
  %v6490 = vld [vmem:[%s6244 + $0x7a8] sm:$0xff]
  %v6491 = vld [vmem:[%s6244 + $0x7b0] sm:$0xff]
  %v6492 = vld [vmem:[%s6244 + $0x7b8] sm:$0xff]
  %v6493 = vld [vmem:[%s6244 + $0x7c0] sm:$0xff]
  %v6494 = vld [vmem:[%s6244 + $0x7c8] sm:$0xff]
  %v6495 = vld [vmem:[%s6244 + $0x7d0] sm:$0xff]
  %v6496 = vld [vmem:[%s6244 + $0x7d8] sm:$0xff]
  %v6497 = vld [vmem:[%s6244 + $0x7e0] sm:$0xff]
  %v6498 = vld [vmem:[%s6244 + $0x7e8] sm:$0xff]
  %v6499 = vld [vmem:[%s6244 + $0x7f0] sm:$0xff]
  %v6500 = vld [vmem:[%s6244 + $0x7f8] sm:$0xff]
  %v6757 = vunpack.c.l.b16 %v6245
  %v6758 = vunpack.c.h.b16 %v6245
  %v6759 = vunpack.c.l.b16 %v6246
  %v6760 = vunpack.c.h.b16 %v6246
  %v6761 = vunpack.c.l.b16 %v6247
  %v6762 = vunpack.c.h.b16 %v6247
  %v6763 = vunpack.c.l.b16 %v6248
  %v6764 = vunpack.c.h.b16 %v6248
  %v6765 = vunpack.c.l.b16 %v6249
  %v6766 = vunpack.c.h.b16 %v6249
  %v6767 = vunpack.c.l.b16 %v6250
  %v6768 = vunpack.c.h.b16 %v6250
  %v6769 = vunpack.c.l.b16 %v6251
  %v6770 = vunpack.c.h.b16 %v6251
  %v6771 = vunpack.c.l.b16 %v6252
  %v6772 = vunpack.c.h.b16 %v6252
  %v6773 = vunpack.c.l.b16 %v6253
  %v6774 = vunpack.c.h.b16 %v6253
  %v6775 = vunpack.c.l.b16 %v6254
  %v6776 = vunpack.c.h.b16 %v6254
  %v6777 = vunpack.c.l.b16 %v6255
  %v6778 = vunpack.c.h.b16 %v6255
  %v6779 = vunpack.c.l.b16 %v6256
  %v6780 = vunpack.c.h.b16 %v6256
  %v6781 = vunpack.c.l.b16 %v6257
  %v6782 = vunpack.c.h.b16 %v6257
  %v6783 = vunpack.c.l.b16 %v6258
  %v6784 = vunpack.c.h.b16 %v6258
  %v6785 = vunpack.c.l.b16 %v6259
  %v6786 = vunpack.c.h.b16 %v6259
  %v6787 = vunpack.c.l.b16 %v6260
  %v6788 = vunpack.c.h.b16 %v6260
  %v6789 = vunpack.c.l.b16 %v6261
  %v6790 = vunpack.c.h.b16 %v6261
  %v6791 = vunpack.c.l.b16 %v6262
  %v6792 = vunpack.c.h.b16 %v6262
  %v6793 = vunpack.c.l.b16 %v6263
  %v6794 = vunpack.c.h.b16 %v6263
  %v6795 = vunpack.c.l.b16 %v6264
  %v6796 = vunpack.c.h.b16 %v6264
  %v6797 = vunpack.c.l.b16 %v6265
  %v6798 = vunpack.c.h.b16 %v6265
  %v6799 = vunpack.c.l.b16 %v6266
  %v6800 = vunpack.c.h.b16 %v6266
  %v6801 = vunpack.c.l.b16 %v6267
  %v6802 = vunpack.c.h.b16 %v6267
  %v6803 = vunpack.c.l.b16 %v6268
  %v6804 = vunpack.c.h.b16 %v6268
  %v6805 = vunpack.c.l.b16 %v6269
  %v6806 = vunpack.c.h.b16 %v6269
  %v6807 = vunpack.c.l.b16 %v6270
  %v6808 = vunpack.c.h.b16 %v6270
  %v6809 = vunpack.c.l.b16 %v6271
  %v6810 = vunpack.c.h.b16 %v6271
  %v6811 = vunpack.c.l.b16 %v6272
  %v6812 = vunpack.c.h.b16 %v6272
  %v6813 = vunpack.c.l.b16 %v6273
  %v6814 = vunpack.c.h.b16 %v6273
  %v6815 = vunpack.c.l.b16 %v6274
  %v6816 = vunpack.c.h.b16 %v6274
  %v6817 = vunpack.c.l.b16 %v6275
  %v6818 = vunpack.c.h.b16 %v6275
  %v6819 = vunpack.c.l.b16 %v6276
  %v6820 = vunpack.c.h.b16 %v6276
  %v6821 = vunpack.c.l.b16 %v6277
  %v6822 = vunpack.c.h.b16 %v6277
  %v6823 = vunpack.c.l.b16 %v6278
  %v6824 = vunpack.c.h.b16 %v6278
  %v6825 = vunpack.c.l.b16 %v6279
  %v6826 = vunpack.c.h.b16 %v6279
  %v6827 = vunpack.c.l.b16 %v6280
  %v6828 = vunpack.c.h.b16 %v6280
  %v6829 = vunpack.c.l.b16 %v6281
  %v6830 = vunpack.c.h.b16 %v6281
  %v6831 = vunpack.c.l.b16 %v6282
  %v6832 = vunpack.c.h.b16 %v6282
  %v6833 = vunpack.c.l.b16 %v6283
  %v6834 = vunpack.c.h.b16 %v6283
  %v6835 = vunpack.c.l.b16 %v6284
  %v6836 = vunpack.c.h.b16 %v6284
  %v6837 = vunpack.c.l.b16 %v6285
  %v6838 = vunpack.c.h.b16 %v6285
  %v6839 = vunpack.c.l.b16 %v6286
  %v6840 = vunpack.c.h.b16 %v6286
  %v6841 = vunpack.c.l.b16 %v6287
  %v6842 = vunpack.c.h.b16 %v6287
  %v6843 = vunpack.c.l.b16 %v6288
  %v6844 = vunpack.c.h.b16 %v6288
  %v6845 = vunpack.c.l.b16 %v6289
  %v6846 = vunpack.c.h.b16 %v6289
  %v6847 = vunpack.c.l.b16 %v6290
  %v6848 = vunpack.c.h.b16 %v6290
  %v6849 = vunpack.c.l.b16 %v6291
  %v6850 = vunpack.c.h.b16 %v6291
  %v6851 = vunpack.c.l.b16 %v6292
  %v6852 = vunpack.c.h.b16 %v6292
  %v6853 = vunpack.c.l.b16 %v6293
  %v6854 = vunpack.c.h.b16 %v6293
  %v6855 = vunpack.c.l.b16 %v6294
  %v6856 = vunpack.c.h.b16 %v6294
  %v6857 = vunpack.c.l.b16 %v6295
  %v6858 = vunpack.c.h.b16 %v6295
  %v6859 = vunpack.c.l.b16 %v6296
  %v6860 = vunpack.c.h.b16 %v6296
  %v6861 = vunpack.c.l.b16 %v6297
  %v6862 = vunpack.c.h.b16 %v6297
  %v6863 = vunpack.c.l.b16 %v6298
  %v6864 = vunpack.c.h.b16 %v6298
  %v6865 = vunpack.c.l.b16 %v6299
  %v6866 = vunpack.c.h.b16 %v6299
  %v6867 = vunpack.c.l.b16 %v6300
  %v6868 = vunpack.c.h.b16 %v6300
  %v6869 = vunpack.c.l.b16 %v6301
  %v6870 = vunpack.c.h.b16 %v6301
  %v6871 = vunpack.c.l.b16 %v6302
  %v6872 = vunpack.c.h.b16 %v6302
  %v6873 = vunpack.c.l.b16 %v6303
  %v6874 = vunpack.c.h.b16 %v6303
  %v6875 = vunpack.c.l.b16 %v6304
  %v6876 = vunpack.c.h.b16 %v6304
  %v6877 = vunpack.c.l.b16 %v6305
  %v6878 = vunpack.c.h.b16 %v6305
  %v6879 = vunpack.c.l.b16 %v6306
  %v6880 = vunpack.c.h.b16 %v6306
  %v6881 = vunpack.c.l.b16 %v6307
  %v6882 = vunpack.c.h.b16 %v6307
  %v6883 = vunpack.c.l.b16 %v6308
  %v6884 = vunpack.c.h.b16 %v6308
  %v6885 = vunpack.c.l.b16 %v6309
  %v6886 = vunpack.c.h.b16 %v6309
  %v6887 = vunpack.c.l.b16 %v6310
  %v6888 = vunpack.c.h.b16 %v6310
  %v6889 = vunpack.c.l.b16 %v6311
  %v6890 = vunpack.c.h.b16 %v6311
  %v6891 = vunpack.c.l.b16 %v6312
  %v6892 = vunpack.c.h.b16 %v6312
  %v6893 = vunpack.c.l.b16 %v6313
  %v6894 = vunpack.c.h.b16 %v6313
  %v6895 = vunpack.c.l.b16 %v6314
  %v6896 = vunpack.c.h.b16 %v6314
  %v6897 = vunpack.c.l.b16 %v6315
  %v6898 = vunpack.c.h.b16 %v6315
  %v6899 = vunpack.c.l.b16 %v6316
  %v6900 = vunpack.c.h.b16 %v6316
  %v6901 = vunpack.c.l.b16 %v6317
  %v6902 = vunpack.c.h.b16 %v6317
  %v6903 = vunpack.c.l.b16 %v6318
  %v6904 = vunpack.c.h.b16 %v6318
  %v6905 = vunpack.c.l.b16 %v6319
  %v6906 = vunpack.c.h.b16 %v6319
  %v6907 = vunpack.c.l.b16 %v6320
  %v6908 = vunpack.c.h.b16 %v6320
  %v6909 = vunpack.c.l.b16 %v6321
  %v6910 = vunpack.c.h.b16 %v6321
  %v6911 = vunpack.c.l.b16 %v6322
  %v6912 = vunpack.c.h.b16 %v6322
  %v6913 = vunpack.c.l.b16 %v6323
  %v6914 = vunpack.c.h.b16 %v6323
  %v6915 = vunpack.c.l.b16 %v6324
  %v6916 = vunpack.c.h.b16 %v6324
  %v6917 = vunpack.c.l.b16 %v6325
  %v6918 = vunpack.c.h.b16 %v6325
  %v6919 = vunpack.c.l.b16 %v6326
  %v6920 = vunpack.c.h.b16 %v6326
  %v6921 = vunpack.c.l.b16 %v6327
  %v6922 = vunpack.c.h.b16 %v6327
  %v6923 = vunpack.c.l.b16 %v6328
  %v6924 = vunpack.c.h.b16 %v6328
  %v6925 = vunpack.c.l.b16 %v6329
  %v6926 = vunpack.c.h.b16 %v6329
  %v6927 = vunpack.c.l.b16 %v6330
  %v6928 = vunpack.c.h.b16 %v6330
  %v6929 = vunpack.c.l.b16 %v6331
  %v6930 = vunpack.c.h.b16 %v6331
  %v6931 = vunpack.c.l.b16 %v6332
  %v6932 = vunpack.c.h.b16 %v6332
  %v6933 = vunpack.c.l.b16 %v6333
  %v6934 = vunpack.c.h.b16 %v6333
  %v6935 = vunpack.c.l.b16 %v6334
  %v6936 = vunpack.c.h.b16 %v6334
  %v6937 = vunpack.c.l.b16 %v6335
  %v6938 = vunpack.c.h.b16 %v6335
  %v6939 = vunpack.c.l.b16 %v6336
  %v6940 = vunpack.c.h.b16 %v6336
  %v6941 = vunpack.c.l.b16 %v6337
  %v6942 = vunpack.c.h.b16 %v6337
  %v6943 = vunpack.c.l.b16 %v6338
  %v6944 = vunpack.c.h.b16 %v6338
  %v6945 = vunpack.c.l.b16 %v6339
  %v6946 = vunpack.c.h.b16 %v6339
  %v6947 = vunpack.c.l.b16 %v6340
  %v6948 = vunpack.c.h.b16 %v6340
  %v6949 = vunpack.c.l.b16 %v6341
  %v6950 = vunpack.c.h.b16 %v6341
  %v6951 = vunpack.c.l.b16 %v6342
  %v6952 = vunpack.c.h.b16 %v6342
  %v6953 = vunpack.c.l.b16 %v6343
  %v6954 = vunpack.c.h.b16 %v6343
  %v6955 = vunpack.c.l.b16 %v6344
  %v6956 = vunpack.c.h.b16 %v6344
  %v6957 = vunpack.c.l.b16 %v6345
  %v6958 = vunpack.c.h.b16 %v6345
  %v6959 = vunpack.c.l.b16 %v6346
  %v6960 = vunpack.c.h.b16 %v6346
  %v6961 = vunpack.c.l.b16 %v6347
  %v6962 = vunpack.c.h.b16 %v6347
  %v6963 = vunpack.c.l.b16 %v6348
  %v6964 = vunpack.c.h.b16 %v6348
  %v6965 = vunpack.c.l.b16 %v6349
  %v6966 = vunpack.c.h.b16 %v6349
  %v6967 = vunpack.c.l.b16 %v6350
  %v6968 = vunpack.c.h.b16 %v6350
  %v6969 = vunpack.c.l.b16 %v6351
  %v6970 = vunpack.c.h.b16 %v6351
  %v6971 = vunpack.c.l.b16 %v6352
  %v6972 = vunpack.c.h.b16 %v6352
  %v6973 = vunpack.c.l.b16 %v6353
  %v6974 = vunpack.c.h.b16 %v6353
  %v6975 = vunpack.c.l.b16 %v6354
  %v6976 = vunpack.c.h.b16 %v6354
  %v6977 = vunpack.c.l.b16 %v6355
  %v6978 = vunpack.c.h.b16 %v6355
  %v6979 = vunpack.c.l.b16 %v6356
  %v6980 = vunpack.c.h.b16 %v6356
  %v6981 = vunpack.c.l.b16 %v6357
  %v6982 = vunpack.c.h.b16 %v6357
  %v6983 = vunpack.c.l.b16 %v6358
  %v6984 = vunpack.c.h.b16 %v6358
  %v6985 = vunpack.c.l.b16 %v6359
  %v6986 = vunpack.c.h.b16 %v6359
  %v6987 = vunpack.c.l.b16 %v6360
  %v6988 = vunpack.c.h.b16 %v6360
  %v6989 = vunpack.c.l.b16 %v6361
  %v6990 = vunpack.c.h.b16 %v6361
  %v6991 = vunpack.c.l.b16 %v6362
  %v6992 = vunpack.c.h.b16 %v6362
  %v6993 = vunpack.c.l.b16 %v6363
  %v6994 = vunpack.c.h.b16 %v6363
  %v6995 = vunpack.c.l.b16 %v6364
  %v6996 = vunpack.c.h.b16 %v6364
  %v6997 = vunpack.c.l.b16 %v6365
  %v6998 = vunpack.c.h.b16 %v6365
  %v6999 = vunpack.c.l.b16 %v6366
  %v7000 = vunpack.c.h.b16 %v6366
  %v7001 = vunpack.c.l.b16 %v6367
  %v7002 = vunpack.c.h.b16 %v6367
  %v7003 = vunpack.c.l.b16 %v6368
  %v7004 = vunpack.c.h.b16 %v6368
  %v7005 = vunpack.c.l.b16 %v6369
  %v7006 = vunpack.c.h.b16 %v6369
  %v7007 = vunpack.c.l.b16 %v6370
  %v7008 = vunpack.c.h.b16 %v6370
  %v7009 = vunpack.c.l.b16 %v6371
  %v7010 = vunpack.c.h.b16 %v6371
  %v7011 = vunpack.c.l.b16 %v6372
  %v7012 = vunpack.c.h.b16 %v6372
  %v7013 = vunpack.c.l.b16 %v6373
  %v7014 = vunpack.c.h.b16 %v6373
  %v7015 = vunpack.c.l.b16 %v6374
  %v7016 = vunpack.c.h.b16 %v6374
  %v7017 = vunpack.c.l.b16 %v6375
  %v7018 = vunpack.c.h.b16 %v6375
  %v7019 = vunpack.c.l.b16 %v6376
  %v7020 = vunpack.c.h.b16 %v6376
  %v7021 = vunpack.c.l.b16 %v6377
  %v7022 = vunpack.c.h.b16 %v6377
  %v7023 = vunpack.c.l.b16 %v6378
  %v7024 = vunpack.c.h.b16 %v6378
  %v7025 = vunpack.c.l.b16 %v6379
  %v7026 = vunpack.c.h.b16 %v6379
  %v7027 = vunpack.c.l.b16 %v6380
  %v7028 = vunpack.c.h.b16 %v6380
  %v7029 = vunpack.c.l.b16 %v6381
  %v7030 = vunpack.c.h.b16 %v6381
  %v7031 = vunpack.c.l.b16 %v6382
  %v7032 = vunpack.c.h.b16 %v6382
  %v7033 = vunpack.c.l.b16 %v6383
  %v7034 = vunpack.c.h.b16 %v6383
  %v7035 = vunpack.c.l.b16 %v6384
  %v7036 = vunpack.c.h.b16 %v6384
  %v7037 = vunpack.c.l.b16 %v6385
  %v7038 = vunpack.c.h.b16 %v6385
  %v7039 = vunpack.c.l.b16 %v6386
  %v7040 = vunpack.c.h.b16 %v6386
  %v7041 = vunpack.c.l.b16 %v6387
  %v7042 = vunpack.c.h.b16 %v6387
  %v7043 = vunpack.c.l.b16 %v6388
  %v7044 = vunpack.c.h.b16 %v6388
  %v7045 = vunpack.c.l.b16 %v6389
  %v7046 = vunpack.c.h.b16 %v6389
  %v7047 = vunpack.c.l.b16 %v6390
  %v7048 = vunpack.c.h.b16 %v6390
  %v7049 = vunpack.c.l.b16 %v6391
  %v7050 = vunpack.c.h.b16 %v6391
  %v7051 = vunpack.c.l.b16 %v6392
  %v7052 = vunpack.c.h.b16 %v6392
  %v7053 = vunpack.c.l.b16 %v6393
  %v7054 = vunpack.c.h.b16 %v6393
  %v7055 = vunpack.c.l.b16 %v6394
  %v7056 = vunpack.c.h.b16 %v6394
  %v7057 = vunpack.c.l.b16 %v6395
  %v7058 = vunpack.c.h.b16 %v6395
  %v7059 = vunpack.c.l.b16 %v6396
  %v7060 = vunpack.c.h.b16 %v6396
  %v7061 = vunpack.c.l.b16 %v6397
  %v7062 = vunpack.c.h.b16 %v6397
  %v7063 = vunpack.c.l.b16 %v6398
  %v7064 = vunpack.c.h.b16 %v6398
  %v7065 = vunpack.c.l.b16 %v6399
  %v7066 = vunpack.c.h.b16 %v6399
  %v7067 = vunpack.c.l.b16 %v6400
  %v7068 = vunpack.c.h.b16 %v6400
  %v7069 = vunpack.c.l.b16 %v6401
  %v7070 = vunpack.c.h.b16 %v6401
  %v7071 = vunpack.c.l.b16 %v6402
  %v7072 = vunpack.c.h.b16 %v6402
  %v7073 = vunpack.c.l.b16 %v6403
  %v7074 = vunpack.c.h.b16 %v6403
  %v7075 = vunpack.c.l.b16 %v6404
  %v7076 = vunpack.c.h.b16 %v6404
  %v7077 = vunpack.c.l.b16 %v6405
  %v7078 = vunpack.c.h.b16 %v6405
  %v7079 = vunpack.c.l.b16 %v6406
  %v7080 = vunpack.c.h.b16 %v6406
  %v7081 = vunpack.c.l.b16 %v6407
  %v7082 = vunpack.c.h.b16 %v6407
  %v7083 = vunpack.c.l.b16 %v6408
  %v7084 = vunpack.c.h.b16 %v6408
  %v7085 = vunpack.c.l.b16 %v6409
  %v7086 = vunpack.c.h.b16 %v6409
  %v7087 = vunpack.c.l.b16 %v6410
  %v7088 = vunpack.c.h.b16 %v6410
  %v7089 = vunpack.c.l.b16 %v6411
  %v7090 = vunpack.c.h.b16 %v6411
  %v7091 = vunpack.c.l.b16 %v6412
  %v7092 = vunpack.c.h.b16 %v6412
  %v7093 = vunpack.c.l.b16 %v6413
  %v7094 = vunpack.c.h.b16 %v6413
  %v7095 = vunpack.c.l.b16 %v6414
  %v7096 = vunpack.c.h.b16 %v6414
  %v7097 = vunpack.c.l.b16 %v6415
  %v7098 = vunpack.c.h.b16 %v6415
  %v7099 = vunpack.c.l.b16 %v6416
  %v7100 = vunpack.c.h.b16 %v6416
  %v7101 = vunpack.c.l.b16 %v6417
  %v7102 = vunpack.c.h.b16 %v6417
  %v7103 = vunpack.c.l.b16 %v6418
  %v7104 = vunpack.c.h.b16 %v6418
  %v7105 = vunpack.c.l.b16 %v6419
  %v7106 = vunpack.c.h.b16 %v6419
  %v7107 = vunpack.c.l.b16 %v6420
  %v7108 = vunpack.c.h.b16 %v6420
  %v7109 = vunpack.c.l.b16 %v6421
  %v7110 = vunpack.c.h.b16 %v6421
  %v7111 = vunpack.c.l.b16 %v6422
  %v7112 = vunpack.c.h.b16 %v6422
  %v7113 = vunpack.c.l.b16 %v6423
  %v7114 = vunpack.c.h.b16 %v6423
  %v7115 = vunpack.c.l.b16 %v6424
  %v7116 = vunpack.c.h.b16 %v6424
  %v7117 = vunpack.c.l.b16 %v6425
  %v7118 = vunpack.c.h.b16 %v6425
  %v7119 = vunpack.c.l.b16 %v6426
  %v7120 = vunpack.c.h.b16 %v6426
  %v7121 = vunpack.c.l.b16 %v6427
  %v7122 = vunpack.c.h.b16 %v6427
  %v7123 = vunpack.c.l.b16 %v6428
  %v7124 = vunpack.c.h.b16 %v6428
  %v7125 = vunpack.c.l.b16 %v6429
  %v7126 = vunpack.c.h.b16 %v6429
  %v7127 = vunpack.c.l.b16 %v6430
  %v7128 = vunpack.c.h.b16 %v6430
  %v7129 = vunpack.c.l.b16 %v6431
  %v7130 = vunpack.c.h.b16 %v6431
  %v7131 = vunpack.c.l.b16 %v6432
  %v7132 = vunpack.c.h.b16 %v6432
  %v7133 = vunpack.c.l.b16 %v6433
  %v7134 = vunpack.c.h.b16 %v6433
  %v7135 = vunpack.c.l.b16 %v6434
  %v7136 = vunpack.c.h.b16 %v6434
  %v7137 = vunpack.c.l.b16 %v6435
  %v7138 = vunpack.c.h.b16 %v6435
  %v7139 = vunpack.c.l.b16 %v6436
  %v7140 = vunpack.c.h.b16 %v6436
  %v7141 = vunpack.c.l.b16 %v6437
  %v7142 = vunpack.c.h.b16 %v6437
  %v7143 = vunpack.c.l.b16 %v6438
  %v7144 = vunpack.c.h.b16 %v6438
  %v7145 = vunpack.c.l.b16 %v6439
  %v7146 = vunpack.c.h.b16 %v6439
  %v7147 = vunpack.c.l.b16 %v6440
  %v7148 = vunpack.c.h.b16 %v6440
  %v7149 = vunpack.c.l.b16 %v6441
  %v7150 = vunpack.c.h.b16 %v6441
  %v7151 = vunpack.c.l.b16 %v6442
  %v7152 = vunpack.c.h.b16 %v6442
  %v7153 = vunpack.c.l.b16 %v6443
  %v7154 = vunpack.c.h.b16 %v6443
  %v7155 = vunpack.c.l.b16 %v6444
  %v7156 = vunpack.c.h.b16 %v6444
  %v7157 = vunpack.c.l.b16 %v6445
  %v7158 = vunpack.c.h.b16 %v6445
  %v7159 = vunpack.c.l.b16 %v6446
  %v7160 = vunpack.c.h.b16 %v6446
  %v7161 = vunpack.c.l.b16 %v6447
  %v7162 = vunpack.c.h.b16 %v6447
  %v7163 = vunpack.c.l.b16 %v6448
  %v7164 = vunpack.c.h.b16 %v6448
  %v7165 = vunpack.c.l.b16 %v6449
  %v7166 = vunpack.c.h.b16 %v6449
  %v7167 = vunpack.c.l.b16 %v6450
  %v7168 = vunpack.c.h.b16 %v6450
  %v7169 = vunpack.c.l.b16 %v6451
  %v7170 = vunpack.c.h.b16 %v6451
  %v7171 = vunpack.c.l.b16 %v6452
  %v7172 = vunpack.c.h.b16 %v6452
  %v7173 = vunpack.c.l.b16 %v6453
  %v7174 = vunpack.c.h.b16 %v6453
  %v7175 = vunpack.c.l.b16 %v6454
  %v7176 = vunpack.c.h.b16 %v6454
  %v7177 = vunpack.c.l.b16 %v6455
  %v7178 = vunpack.c.h.b16 %v6455
  %v7179 = vunpack.c.l.b16 %v6456
  %v7180 = vunpack.c.h.b16 %v6456
  %v7181 = vunpack.c.l.b16 %v6457
  %v7182 = vunpack.c.h.b16 %v6457
  %v7183 = vunpack.c.l.b16 %v6458
  %v7184 = vunpack.c.h.b16 %v6458
  %v7185 = vunpack.c.l.b16 %v6459
  %v7186 = vunpack.c.h.b16 %v6459
  %v7187 = vunpack.c.l.b16 %v6460
  %v7188 = vunpack.c.h.b16 %v6460
  %v7189 = vunpack.c.l.b16 %v6461
  %v7190 = vunpack.c.h.b16 %v6461
  %v7191 = vunpack.c.l.b16 %v6462
  %v7192 = vunpack.c.h.b16 %v6462
  %v7193 = vunpack.c.l.b16 %v6463
  %v7194 = vunpack.c.h.b16 %v6463
  %v7195 = vunpack.c.l.b16 %v6464
  %v7196 = vunpack.c.h.b16 %v6464
  %v7197 = vunpack.c.l.b16 %v6465
  %v7198 = vunpack.c.h.b16 %v6465
  %v7199 = vunpack.c.l.b16 %v6466
  %v7200 = vunpack.c.h.b16 %v6466
  %v7201 = vunpack.c.l.b16 %v6467
  %v7202 = vunpack.c.h.b16 %v6467
  %v7203 = vunpack.c.l.b16 %v6468
  %v7204 = vunpack.c.h.b16 %v6468
  %v7205 = vunpack.c.l.b16 %v6469
  %v7206 = vunpack.c.h.b16 %v6469
  %v7207 = vunpack.c.l.b16 %v6470
  %v7208 = vunpack.c.h.b16 %v6470
  %v7209 = vunpack.c.l.b16 %v6471
  %v7210 = vunpack.c.h.b16 %v6471
  %v7211 = vunpack.c.l.b16 %v6472
  %v7212 = vunpack.c.h.b16 %v6472
  %v7213 = vunpack.c.l.b16 %v6473
  %v7214 = vunpack.c.h.b16 %v6473
  %v7215 = vunpack.c.l.b16 %v6474
  %v7216 = vunpack.c.h.b16 %v6474
  %v7217 = vunpack.c.l.b16 %v6475
  %v7218 = vunpack.c.h.b16 %v6475
  %v7219 = vunpack.c.l.b16 %v6476
  %v7220 = vunpack.c.h.b16 %v6476
  %v7221 = vunpack.c.l.b16 %v6477
  %v7222 = vunpack.c.h.b16 %v6477
  %v7223 = vunpack.c.l.b16 %v6478
  %v7224 = vunpack.c.h.b16 %v6478
  %v7225 = vunpack.c.l.b16 %v6479
  %v7226 = vunpack.c.h.b16 %v6479
  %v7227 = vunpack.c.l.b16 %v6480
  %v7228 = vunpack.c.h.b16 %v6480
  %v7229 = vunpack.c.l.b16 %v6481
  %v7230 = vunpack.c.h.b16 %v6481
  %v7231 = vunpack.c.l.b16 %v6482
  %v7232 = vunpack.c.h.b16 %v6482
  %v7233 = vunpack.c.l.b16 %v6483
  %v7234 = vunpack.c.h.b16 %v6483
  %v7235 = vunpack.c.l.b16 %v6484
  %v7236 = vunpack.c.h.b16 %v6484
  %v7237 = vunpack.c.l.b16 %v6485
  %v7238 = vunpack.c.h.b16 %v6485
  %v7239 = vunpack.c.l.b16 %v6486
  %v7240 = vunpack.c.h.b16 %v6486
  %v7241 = vunpack.c.l.b16 %v6487
  %v7242 = vunpack.c.h.b16 %v6487
  %v7243 = vunpack.c.l.b16 %v6488
  %v7244 = vunpack.c.h.b16 %v6488
  %v7245 = vunpack.c.l.b16 %v6489
  %v7246 = vunpack.c.h.b16 %v6489
  %v7247 = vunpack.c.l.b16 %v6490
  %v7248 = vunpack.c.h.b16 %v6490
  %v7249 = vunpack.c.l.b16 %v6491
  %v7250 = vunpack.c.h.b16 %v6491
  %v7251 = vunpack.c.l.b16 %v6492
  %v7252 = vunpack.c.h.b16 %v6492
  %v7253 = vunpack.c.l.b16 %v6493
  %v7254 = vunpack.c.h.b16 %v6493
  %v7255 = vunpack.c.l.b16 %v6494
  %v7256 = vunpack.c.h.b16 %v6494
  %v7257 = vunpack.c.l.b16 %v6495
  %v7258 = vunpack.c.h.b16 %v6495
  %v7259 = vunpack.c.l.b16 %v6496
  %v7260 = vunpack.c.h.b16 %v6496
  %v7261 = vunpack.c.l.b16 %v6497
  %v7262 = vunpack.c.h.b16 %v6497
  %v7263 = vunpack.c.l.b16 %v6498
  %v7264 = vunpack.c.h.b16 %v6498
  %v7265 = vunpack.c.l.b16 %v6499
  %v7266 = vunpack.c.h.b16 %v6499
  %v7267 = vunpack.c.l.b16 %v6500
  %v7268 = vunpack.c.h.b16 %v6500
  %v7269 = vpack.c.b16 %v6765, %v6757
  %v7270 = vpack.c.b16 %v6766, %v6758
  %v7271 = vpack.c.b16 %v6767, %v6759
  %v7272 = vpack.c.b16 %v6768, %v6760
  %v7273 = vpack.c.b16 %v6769, %v6761
  %v7274 = vpack.c.b16 %v6770, %v6762
  %v7275 = vpack.c.b16 %v6771, %v6763
  %v7276 = vpack.c.b16 %v6772, %v6764
  %v7277 = vpack.c.b16 %v6781, %v6773
  %v7278 = vpack.c.b16 %v6782, %v6774
  %v7279 = vpack.c.b16 %v6783, %v6775
  %v7280 = vpack.c.b16 %v6784, %v6776
  %v7281 = vpack.c.b16 %v6785, %v6777
  %v7282 = vpack.c.b16 %v6786, %v6778
  %v7283 = vpack.c.b16 %v6787, %v6779
  %v7284 = vpack.c.b16 %v6788, %v6780
  %v7285 = vpack.c.b16 %v6797, %v6789
  %v7286 = vpack.c.b16 %v6798, %v6790
  %v7287 = vpack.c.b16 %v6799, %v6791
  %v7288 = vpack.c.b16 %v6800, %v6792
  %v7289 = vpack.c.b16 %v6801, %v6793
  %v7290 = vpack.c.b16 %v6802, %v6794
  %v7291 = vpack.c.b16 %v6803, %v6795
  %v7292 = vpack.c.b16 %v6804, %v6796
  %v7293 = vpack.c.b16 %v6813, %v6805
  %v7294 = vpack.c.b16 %v6814, %v6806
  %v7295 = vpack.c.b16 %v6815, %v6807
  %v7296 = vpack.c.b16 %v6816, %v6808
  %v7297 = vpack.c.b16 %v6817, %v6809
  %v7298 = vpack.c.b16 %v6818, %v6810
  %v7299 = vpack.c.b16 %v6819, %v6811
  %v7300 = vpack.c.b16 %v6820, %v6812
  %v7301 = vpack.c.b16 %v6829, %v6821
  %v7302 = vpack.c.b16 %v6830, %v6822
  %v7303 = vpack.c.b16 %v6831, %v6823
  %v7304 = vpack.c.b16 %v6832, %v6824
  %v7305 = vpack.c.b16 %v6833, %v6825
  %v7306 = vpack.c.b16 %v6834, %v6826
  %v7307 = vpack.c.b16 %v6835, %v6827
  %v7308 = vpack.c.b16 %v6836, %v6828
  %v7309 = vpack.c.b16 %v6845, %v6837
  %v7310 = vpack.c.b16 %v6846, %v6838
  %v7311 = vpack.c.b16 %v6847, %v6839
  %v7312 = vpack.c.b16 %v6848, %v6840
  %v7313 = vpack.c.b16 %v6849, %v6841
  %v7314 = vpack.c.b16 %v6850, %v6842
  %v7315 = vpack.c.b16 %v6851, %v6843
  %v7316 = vpack.c.b16 %v6852, %v6844
  %v7317 = vpack.c.b16 %v6861, %v6853
  %v7318 = vpack.c.b16 %v6862, %v6854
  %v7319 = vpack.c.b16 %v6863, %v6855
  %v7320 = vpack.c.b16 %v6864, %v6856
  %v7321 = vpack.c.b16 %v6865, %v6857
  %v7322 = vpack.c.b16 %v6866, %v6858
  %v7323 = vpack.c.b16 %v6867, %v6859
  %v7324 = vpack.c.b16 %v6868, %v6860
  %v7325 = vpack.c.b16 %v6877, %v6869
  %v7326 = vpack.c.b16 %v6878, %v6870
  %v7327 = vpack.c.b16 %v6879, %v6871
  %v7328 = vpack.c.b16 %v6880, %v6872
  %v7329 = vpack.c.b16 %v6881, %v6873
  %v7330 = vpack.c.b16 %v6882, %v6874
  %v7331 = vpack.c.b16 %v6883, %v6875
  %v7332 = vpack.c.b16 %v6884, %v6876
  %v7333 = vpack.c.b16 %v6893, %v6885
  %v7334 = vpack.c.b16 %v6894, %v6886
  %v7335 = vpack.c.b16 %v6895, %v6887
  %v7336 = vpack.c.b16 %v6896, %v6888
  %v7337 = vpack.c.b16 %v6897, %v6889
  %v7338 = vpack.c.b16 %v6898, %v6890
  %v7339 = vpack.c.b16 %v6899, %v6891
  %v7340 = vpack.c.b16 %v6900, %v6892
  %v7341 = vpack.c.b16 %v6909, %v6901
  %v7342 = vpack.c.b16 %v6910, %v6902
  %v7343 = vpack.c.b16 %v6911, %v6903
  %v7344 = vpack.c.b16 %v6912, %v6904
  %v7345 = vpack.c.b16 %v6913, %v6905
  %v7346 = vpack.c.b16 %v6914, %v6906
  %v7347 = vpack.c.b16 %v6915, %v6907
  %v7348 = vpack.c.b16 %v6916, %v6908
  %v7349 = vpack.c.b16 %v6925, %v6917
  %v7350 = vpack.c.b16 %v6926, %v6918
  %v7351 = vpack.c.b16 %v6927, %v6919
  %v7352 = vpack.c.b16 %v6928, %v6920
  %v7353 = vpack.c.b16 %v6929, %v6921
  %v7354 = vpack.c.b16 %v6930, %v6922
  %v7355 = vpack.c.b16 %v6931, %v6923
  %v7356 = vpack.c.b16 %v6932, %v6924
  %v7357 = vpack.c.b16 %v6941, %v6933
  %v7358 = vpack.c.b16 %v6942, %v6934
  %v7359 = vpack.c.b16 %v6943, %v6935
  %v7360 = vpack.c.b16 %v6944, %v6936
  %v7361 = vpack.c.b16 %v6945, %v6937
  %v7362 = vpack.c.b16 %v6946, %v6938
  %v7363 = vpack.c.b16 %v6947, %v6939
  %v7364 = vpack.c.b16 %v6948, %v6940
  %v7365 = vpack.c.b16 %v6957, %v6949
  %v7366 = vpack.c.b16 %v6958, %v6950
  %v7367 = vpack.c.b16 %v6959, %v6951
  %v7368 = vpack.c.b16 %v6960, %v6952
  %v7369 = vpack.c.b16 %v6961, %v6953
  %v7370 = vpack.c.b16 %v6962, %v6954
  %v7371 = vpack.c.b16 %v6963, %v6955
  %v7372 = vpack.c.b16 %v6964, %v6956
  %v7373 = vpack.c.b16 %v6973, %v6965
  %v7374 = vpack.c.b16 %v6974, %v6966
  %v7375 = vpack.c.b16 %v6975, %v6967
  %v7376 = vpack.c.b16 %v6976, %v6968
  %v7377 = vpack.c.b16 %v6977, %v6969
  %v7378 = vpack.c.b16 %v6978, %v6970
  %v7379 = vpack.c.b16 %v6979, %v6971
  %v7380 = vpack.c.b16 %v6980, %v6972
  %v7381 = vpack.c.b16 %v6989, %v6981
  %v7382 = vpack.c.b16 %v6990, %v6982
  %v7383 = vpack.c.b16 %v6991, %v6983
  %v7384 = vpack.c.b16 %v6992, %v6984
  %v7385 = vpack.c.b16 %v6993, %v6985
  %v7386 = vpack.c.b16 %v6994, %v6986
  %v7387 = vpack.c.b16 %v6995, %v6987
  %v7388 = vpack.c.b16 %v6996, %v6988
  %v7389 = vpack.c.b16 %v7005, %v6997
  %v7390 = vpack.c.b16 %v7006, %v6998
  %v7391 = vpack.c.b16 %v7007, %v6999
  %v7392 = vpack.c.b16 %v7008, %v7000
  %v7393 = vpack.c.b16 %v7009, %v7001
  %v7394 = vpack.c.b16 %v7010, %v7002
  %v7395 = vpack.c.b16 %v7011, %v7003
  %v7396 = vpack.c.b16 %v7012, %v7004
  %v7397 = vpack.c.b16 %v7021, %v7013
  %v7398 = vpack.c.b16 %v7022, %v7014
  %v7399 = vpack.c.b16 %v7023, %v7015
  %v7400 = vpack.c.b16 %v7024, %v7016
  %v7401 = vpack.c.b16 %v7025, %v7017
  %v7402 = vpack.c.b16 %v7026, %v7018
  %v7403 = vpack.c.b16 %v7027, %v7019
  %v7404 = vpack.c.b16 %v7028, %v7020
  %v7405 = vpack.c.b16 %v7037, %v7029
  %v7406 = vpack.c.b16 %v7038, %v7030
  %v7407 = vpack.c.b16 %v7039, %v7031
  %v7408 = vpack.c.b16 %v7040, %v7032
  %v7409 = vpack.c.b16 %v7041, %v7033
  %v7410 = vpack.c.b16 %v7042, %v7034
  %v7411 = vpack.c.b16 %v7043, %v7035
  %v7412 = vpack.c.b16 %v7044, %v7036
  %v7413 = vpack.c.b16 %v7053, %v7045
  %v7414 = vpack.c.b16 %v7054, %v7046
  %v7415 = vpack.c.b16 %v7055, %v7047
  %v7416 = vpack.c.b16 %v7056, %v7048
  %v7417 = vpack.c.b16 %v7057, %v7049
  %v7418 = vpack.c.b16 %v7058, %v7050
  %v7419 = vpack.c.b16 %v7059, %v7051
  %v7420 = vpack.c.b16 %v7060, %v7052
  %v7421 = vpack.c.b16 %v7069, %v7061
  %v7422 = vpack.c.b16 %v7070, %v7062
  %v7423 = vpack.c.b16 %v7071, %v7063
  %v7424 = vpack.c.b16 %v7072, %v7064
  %v7425 = vpack.c.b16 %v7073, %v7065
  %v7426 = vpack.c.b16 %v7074, %v7066
  %v7427 = vpack.c.b16 %v7075, %v7067
  %v7428 = vpack.c.b16 %v7076, %v7068
  %v7429 = vpack.c.b16 %v7085, %v7077
  %v7430 = vpack.c.b16 %v7086, %v7078
  %v7431 = vpack.c.b16 %v7087, %v7079
  %v7432 = vpack.c.b16 %v7088, %v7080
  %v7433 = vpack.c.b16 %v7089, %v7081
  %v7434 = vpack.c.b16 %v7090, %v7082
  %v7435 = vpack.c.b16 %v7091, %v7083
  %v7436 = vpack.c.b16 %v7092, %v7084
  %v7437 = vpack.c.b16 %v7101, %v7093
  %v7438 = vpack.c.b16 %v7102, %v7094
  %v7439 = vpack.c.b16 %v7103, %v7095
  %v7440 = vpack.c.b16 %v7104, %v7096
  %v7441 = vpack.c.b16 %v7105, %v7097
  %v7442 = vpack.c.b16 %v7106, %v7098
  %v7443 = vpack.c.b16 %v7107, %v7099
  %v7444 = vpack.c.b16 %v7108, %v7100
  %v7445 = vpack.c.b16 %v7117, %v7109
  %v7446 = vpack.c.b16 %v7118, %v7110
  %v7447 = vpack.c.b16 %v7119, %v7111
  %v7448 = vpack.c.b16 %v7120, %v7112
  %v7449 = vpack.c.b16 %v7121, %v7113
  %v7450 = vpack.c.b16 %v7122, %v7114
  %v7451 = vpack.c.b16 %v7123, %v7115
  %v7452 = vpack.c.b16 %v7124, %v7116
  %v7453 = vpack.c.b16 %v7133, %v7125
  %v7454 = vpack.c.b16 %v7134, %v7126
  %v7455 = vpack.c.b16 %v7135, %v7127
  %v7456 = vpack.c.b16 %v7136, %v7128
  %v7457 = vpack.c.b16 %v7137, %v7129
  %v7458 = vpack.c.b16 %v7138, %v7130
  %v7459 = vpack.c.b16 %v7139, %v7131
  %v7460 = vpack.c.b16 %v7140, %v7132
  %v7461 = vpack.c.b16 %v7149, %v7141
  %v7462 = vpack.c.b16 %v7150, %v7142
  %v7463 = vpack.c.b16 %v7151, %v7143
  %v7464 = vpack.c.b16 %v7152, %v7144
  %v7465 = vpack.c.b16 %v7153, %v7145
  %v7466 = vpack.c.b16 %v7154, %v7146
  %v7467 = vpack.c.b16 %v7155, %v7147
  %v7468 = vpack.c.b16 %v7156, %v7148
  %v7469 = vpack.c.b16 %v7165, %v7157
  %v7470 = vpack.c.b16 %v7166, %v7158
  %v7471 = vpack.c.b16 %v7167, %v7159
  %v7472 = vpack.c.b16 %v7168, %v7160
  %v7473 = vpack.c.b16 %v7169, %v7161
  %v7474 = vpack.c.b16 %v7170, %v7162
  %v7475 = vpack.c.b16 %v7171, %v7163
  %v7476 = vpack.c.b16 %v7172, %v7164
  %v7477 = vpack.c.b16 %v7181, %v7173
  %v7478 = vpack.c.b16 %v7182, %v7174
  %v7479 = vpack.c.b16 %v7183, %v7175
  %v7480 = vpack.c.b16 %v7184, %v7176
  %v7481 = vpack.c.b16 %v7185, %v7177
  %v7482 = vpack.c.b16 %v7186, %v7178
  %v7483 = vpack.c.b16 %v7187, %v7179
  %v7484 = vpack.c.b16 %v7188, %v7180
  %v7485 = vpack.c.b16 %v7197, %v7189
  %v7486 = vpack.c.b16 %v7198, %v7190
  %v7487 = vpack.c.b16 %v7199, %v7191
  %v7488 = vpack.c.b16 %v7200, %v7192
  %v7489 = vpack.c.b16 %v7201, %v7193
  %v7490 = vpack.c.b16 %v7202, %v7194
  %v7491 = vpack.c.b16 %v7203, %v7195
  %v7492 = vpack.c.b16 %v7204, %v7196
  %v7493 = vpack.c.b16 %v7213, %v7205
  %v7494 = vpack.c.b16 %v7214, %v7206
  %v7495 = vpack.c.b16 %v7215, %v7207
  %v7496 = vpack.c.b16 %v7216, %v7208
  %v7497 = vpack.c.b16 %v7217, %v7209
  %v7498 = vpack.c.b16 %v7218, %v7210
  %v7499 = vpack.c.b16 %v7219, %v7211
  %v7500 = vpack.c.b16 %v7220, %v7212
  %v7501 = vpack.c.b16 %v7229, %v7221
  %v7502 = vpack.c.b16 %v7230, %v7222
  %v7503 = vpack.c.b16 %v7231, %v7223
  %v7504 = vpack.c.b16 %v7232, %v7224
  %v7505 = vpack.c.b16 %v7233, %v7225
  %v7506 = vpack.c.b16 %v7234, %v7226
  %v7507 = vpack.c.b16 %v7235, %v7227
  %v7508 = vpack.c.b16 %v7236, %v7228
  %v7509 = vpack.c.b16 %v7245, %v7237
  %v7510 = vpack.c.b16 %v7246, %v7238
  %v7511 = vpack.c.b16 %v7247, %v7239
  %v7512 = vpack.c.b16 %v7248, %v7240
  %v7513 = vpack.c.b16 %v7249, %v7241
  %v7514 = vpack.c.b16 %v7250, %v7242
  %v7515 = vpack.c.b16 %v7251, %v7243
  %v7516 = vpack.c.b16 %v7252, %v7244
  %v7517 = vpack.c.b16 %v7261, %v7253
  %v7518 = vpack.c.b16 %v7262, %v7254
  %v7519 = vpack.c.b16 %v7263, %v7255
  %v7520 = vpack.c.b16 %v7264, %v7256
  %v7521 = vpack.c.b16 %v7265, %v7257
  %v7522 = vpack.c.b16 %v7266, %v7258
  %v7523 = vpack.c.b16 %v7267, %v7259
  %v7524 = vpack.c.b16 %v7268, %v7260
  %7781 = vmatprep.subr.bf16.mxu0 %v7270
  %7782 = vmatpush1.bf16.msra.mxu0 %v7269
  %7783 = vmatprep.subr.bf16.mxu0 %v7278
  %7784 = vmatpush1.bf16.msra.mxu0 %v7277
  %7785 = vmatprep.subr.bf16.mxu0 %v7286
  %7786 = vmatpush1.bf16.msra.mxu0 %v7285
  %7787 = vmatprep.subr.bf16.mxu0 %v7294
  %7788 = vmatpush1.bf16.msra.mxu0 %v7293
  %7789 = vmatprep.subr.bf16.mxu0 %v7302
  %7790 = vmatpush1.bf16.msra.mxu0 %v7301
  %7791 = vmatprep.subr.bf16.mxu0 %v7310
  %7792 = vmatpush1.bf16.msra.mxu0 %v7309
  %7793 = vmatprep.subr.bf16.mxu0 %v7318
  %7794 = vmatpush1.bf16.msra.mxu0 %v7317
  %7795 = vmatprep.subr.bf16.mxu0 %v7326
  %7796 = vmatpush1.bf16.msra.mxu0 %v7325
  %7797 = vmatprep.subr.bf16.mxu0 %v7334
  %7798 = vmatpush1.bf16.msra.mxu0 %v7333
  %7799 = vmatprep.subr.bf16.mxu0 %v7342
  %7800 = vmatpush1.bf16.msra.mxu0 %v7341
  %7801 = vmatprep.subr.bf16.mxu0 %v7350
  %7802 = vmatpush1.bf16.msra.mxu0 %v7349
  %7803 = vmatprep.subr.bf16.mxu0 %v7358
  %7804 = vmatpush1.bf16.msra.mxu0 %v7357
  %7805 = vmatprep.subr.bf16.mxu0 %v7366
  %7806 = vmatpush1.bf16.msra.mxu0 %v7365
  %7807 = vmatprep.subr.bf16.mxu0 %v7374
  %7808 = vmatpush1.bf16.msra.mxu0 %v7373
  %7809 = vmatprep.subr.bf16.mxu0 %v7382
  %7810 = vmatpush1.bf16.msra.mxu0 %v7381
  %7811 = vmatprep.subr.bf16.mxu0 %v7390
  %7812 = vmatpush1.bf16.msra.mxu0 %v7389
  %7813 = vmatprep.mubr.bf16.mxu0 %v2007
  %7814 = vmatmul.mubr.bf16.gmra.mrb[0].mxu0 %v2006
  %v7815 = vpop.f32.mrb[0].mxu0
  %v7816 = vadd.f32 0.0, %v7815
  %v7817 = vpop.f32.mrb[0].mxu0
  %v7818 = vadd.f32 0.0, %v7817
  %v7819 = vpop.f32.mrb[0].mxu0
  %v7820 = vadd.f32 0.0, %v7819
  %v7821 = vpop.f32.mrb[0].mxu0
  %v7822 = vadd.f32 0.0, %v7821
  %7823 = vmatprep.mubr.bf16.mxu0 %v2011
  %7824 = vmatmul.mubr.bf16.gmra.mrb[0].mxu0 %v2010
  %v7825 = vpop.f32.mrb[0].mxu0
  %v7826 = vadd.f32 0.0, %v7825
  %v7827 = vpop.f32.mrb[0].mxu0
  %v7828 = vadd.f32 0.0, %v7827
  %v7829 = vpop.f32.mrb[0].mxu0
  %v7830 = vadd.f32 0.0, %v7829
  %v7831 = vpop.f32.mrb[0].mxu0
  %v7832 = vadd.f32 0.0, %v7831
  %7833 = vmatprep.mubr.bf16.mxu0 %v2015
  %7834 = vmatmul.mubr.bf16.gmra.mrb[0].mxu0 %v2014
  %v7835 = vpop.f32.mrb[0].mxu0
  %v7836 = vadd.f32 0.0, %v7835
  %v7837 = vpop.f32.mrb[0].mxu0
  %v7838 = vadd.f32 0.0, %v7837
  %v7839 = vpop.f32.mrb[0].mxu0
  %v7840 = vadd.f32 0.0, %v7839
  %v7841 = vpop.f32.mrb[0].mxu0
  %v7842 = vadd.f32 0.0, %v7841
  %7843 = vmatprep.mubr.bf16.mxu0 %v2019
  %7844 = vmatmul.mubr.bf16.gmra.mrb[0].mxu0 %v2018
  %v7845 = vpop.f32.mrb[0].mxu0
  %v7846 = vadd.f32 0.0, %v7845
  %v7847 = vpop.f32.mrb[0].mxu0
  %v7848 = vadd.f32 0.0, %v7847
  %v7849 = vpop.f32.mrb[0].mxu0
  %v7850 = vpop.f32.mrb[0].mxu0
  %7851 = vdwg.mxu0
  %7852 = vmatprep.subr.bf16.mxu0 %v7398
  %7853 = vmatpush1.bf16.msra.mxu0 %v7397
  %7854 = vmatprep.subr.bf16.mxu0 %v7406
  %7855 = vmatpush1.bf16.msra.mxu0 %v7405
  %7856 = vmatprep.subr.bf16.mxu0 %v7414
  %7857 = vmatpush1.bf16.msra.mxu0 %v7413
  %7858 = vmatprep.subr.bf16.mxu0 %v7422
  %7859 = vmatpush1.bf16.msra.mxu0 %v7421
  %7860 = vmatprep.subr.bf16.mxu0 %v7430
  %7861 = vmatpush1.bf16.msra.mxu0 %v7429
  %7862 = vmatprep.subr.bf16.mxu0 %v7438
  %7863 = vmatpush1.bf16.msra.mxu0 %v7437
  %7864 = vmatprep.subr.bf16.mxu0 %v7446
  %7865 = vmatpush1.bf16.msra.mxu0 %v7445
  %7866 = vmatprep.subr.bf16.mxu0 %v7454
  %7867 = vmatpush1.bf16.msra.mxu0 %v7453
  %7868 = vmatprep.subr.bf16.mxu0 %v7462
  %7869 = vmatpush1.bf16.msra.mxu0 %v7461
  %7870 = vmatprep.subr.bf16.mxu0 %v7470
  %7871 = vmatpush1.bf16.msra.mxu0 %v7469
  %7872 = vmatprep.subr.bf16.mxu0 %v7478
  %7873 = vmatpush1.bf16.msra.mxu0 %v7477
  %7874 = vmatprep.subr.bf16.mxu0 %v7486
  %7875 = vmatpush1.bf16.msra.mxu0 %v7485
  %7876 = vmatprep.subr.bf16.mxu0 %v7494
  %7877 = vmatpush1.bf16.msra.mxu0 %v7493
  %7878 = vmatprep.subr.bf16.mxu0 %v7502
  %7879 = vmatpush1.bf16.msra.mxu0 %v7501
  %7880 = vmatprep.subr.bf16.mxu0 %v7510
  %7881 = vmatpush1.bf16.msra.mxu0 %v7509
  %7882 = vmatprep.subr.bf16.mxu0 %v7518
  %7883 = vmatpush1.bf16.msra.mxu0 %v7517
  %7884 = vmatprep.mubr.bf16.mxu0 %v2009
  %7885 = vmatmul.mubr.bf16.gmra.mrb[0].mxu0 %v2008
  %v7886 = vpop.f32.mrb[0].mxu0
  %v7887 = vadd.f32 %v7816, %v7886
  %v7888 = vpop.f32.mrb[0].mxu0
  %v7889 = vadd.f32 %v7818, %v7888
  %v7890 = vpop.f32.mrb[0].mxu0
  %v7891 = vadd.f32 %v7820, %v7890
  %v7892 = vpop.f32.mrb[0].mxu0
  %v7893 = vadd.f32 %v7822, %v7892
  %7894 = vmatprep.mubr.bf16.mxu0 %v2013
  %7895 = vmatmul.mubr.bf16.gmra.mrb[0].mxu0 %v2012
  %v7896 = vpop.f32.mrb[0].mxu0
  %v7897 = vadd.f32 %v7826, %v7896
  %v7898 = vpop.f32.mrb[0].mxu0
  %v7899 = vadd.f32 %v7828, %v7898
  %v7900 = vpop.f32.mrb[0].mxu0
  %v7901 = vadd.f32 %v7830, %v7900
  %v7902 = vpop.f32.mrb[0].mxu0
  %v7903 = vadd.f32 %v7832, %v7902
  %7904 = vmatprep.mubr.bf16.mxu0 %v2017
  %7905 = vmatmul.mubr.bf16.gmra.mrb[0].mxu0 %v2016
  %v7906 = vpop.f32.mrb[0].mxu0
  %v7907 = vadd.f32 %v7836, %v7906
  %v7908 = vpop.f32.mrb[0].mxu0
  %v7909 = vadd.f32 %v7838, %v7908
  %v7910 = vpop.f32.mrb[0].mxu0
  %v7911 = vadd.f32 %v7840, %v7910
  %v7912 = vpop.f32.mrb[0].mxu0
  %v7913 = vadd.f32 %v7842, %v7912
  %7914 = vmatprep.mubr.bf16.mxu0 %v2021
  %7915 = vmatmul.mubr.bf16.gmra.mrb[0].mxu0 %v2020
  %v7916 = vpop.f32.mrb[0].mxu0
  %v7917 = vadd.f32 %v7846, %v7916
  %v7918 = vpop.f32.mrb[0].mxu0
  %v7919 = vadd.f32 %v7848, %v7918
  %v7920 = vpop.f32.mrb[0].mxu0
  %v7921 = vpop.f32.mrb[0].mxu0
  %7922 = vdwg.mxu0
  %7923 = vmatprep.subr.bf16.mxu0 %v7272
  %7924 = vmatpush1.bf16.msra.mxu0 %v7271
  %7925 = vmatprep.subr.bf16.mxu0 %v7280
  %7926 = vmatpush1.bf16.msra.mxu0 %v7279
  %7927 = vmatprep.subr.bf16.mxu0 %v7288
  %7928 = vmatpush1.bf16.msra.mxu0 %v7287
  %7929 = vmatprep.subr.bf16.mxu0 %v7296
  %7930 = vmatpush1.bf16.msra.mxu0 %v7295
  %7931 = vmatprep.subr.bf16.mxu0 %v7304
  %7932 = vmatpush1.bf16.msra.mxu0 %v7303
  %7933 = vmatprep.subr.bf16.mxu0 %v7312
  %7934 = vmatpush1.bf16.msra.mxu0 %v7311
  %7935 = vmatprep.subr.bf16.mxu0 %v7320
  %7936 = vmatpush1.bf16.msra.mxu0 %v7319
  %7937 = vmatprep.subr.bf16.mxu0 %v7328
  %7938 = vmatpush1.bf16.msra.mxu0 %v7327
  %7939 = vmatprep.subr.bf16.mxu0 %v7336
  %7940 = vmatpush1.bf16.msra.mxu0 %v7335
  %7941 = vmatprep.subr.bf16.mxu0 %v7344
  %7942 = vmatpush1.bf16.msra.mxu0 %v7343
  %7943 = vmatprep.subr.bf16.mxu0 %v7352
  %7944 = vmatpush1.bf16.msra.mxu0 %v7351
  %7945 = vmatprep.subr.bf16.mxu0 %v7360
  %7946 = vmatpush1.bf16.msra.mxu0 %v7359
  %7947 = vmatprep.subr.bf16.mxu0 %v7368
  %7948 = vmatpush1.bf16.msra.mxu0 %v7367
  %7949 = vmatprep.subr.bf16.mxu0 %v7376
  %7950 = vmatpush1.bf16.msra.mxu0 %v7375
  %7951 = vmatprep.subr.bf16.mxu0 %v7384
  %7952 = vmatpush1.bf16.msra.mxu0 %v7383
  %7953 = vmatprep.subr.bf16.mxu0 %v7392
  %7954 = vmatpush1.bf16.msra.mxu0 %v7391
  %7955 = vmatprep.mubr.bf16.mxu0 %v2007
  %7956 = vmatmul.mubr.bf16.gmra.mrb[0].mxu0 %v2006
  %v7957 = vpop.f32.mrb[0].mxu0
  %v7958 = vadd.f32 0.0, %v7957
  %v7959 = vpop.f32.mrb[0].mxu0
  %v7960 = vadd.f32 0.0, %v7959
  %v7961 = vpop.f32.mrb[0].mxu0
  %v7962 = vadd.f32 0.0, %v7961
  %v7963 = vpop.f32.mrb[0].mxu0
  %v7964 = vadd.f32 0.0, %v7963
  %7965 = vmatprep.mubr.bf16.mxu0 %v2011
  %7966 = vmatmul.mubr.bf16.gmra.mrb[0].mxu0 %v2010
  %v7967 = vpop.f32.mrb[0].mxu0
  %v7968 = vadd.f32 0.0, %v7967
  %v7969 = vpop.f32.mrb[0].mxu0
  %v7970 = vadd.f32 0.0, %v7969
  %v7971 = vpop.f32.mrb[0].mxu0
  %v7972 = vadd.f32 0.0, %v7971
  %v7973 = vpop.f32.mrb[0].mxu0
  %v7974 = vadd.f32 0.0, %v7973
  %7975 = vmatprep.mubr.bf16.mxu0 %v2015
  %7976 = vmatmul.mubr.bf16.gmra.mrb[0].mxu0 %v2014
  %v7977 = vpop.f32.mrb[0].mxu0
  %v7978 = vadd.f32 0.0, %v7977
  %v7979 = vpop.f32.mrb[0].mxu0
  %v7980 = vadd.f32 0.0, %v7979
  %v7981 = vpop.f32.mrb[0].mxu0
  %v7982 = vadd.f32 0.0, %v7981
  %v7983 = vpop.f32.mrb[0].mxu0
  %v7984 = vadd.f32 0.0, %v7983
  %7985 = vmatprep.mubr.bf16.mxu0 %v2019
  %7986 = vmatmul.mubr.bf16.gmra.mrb[0].mxu0 %v2018
  %v7987 = vpop.f32.mrb[0].mxu0
  %v7988 = vadd.f32 0.0, %v7987
  %v7989 = vpop.f32.mrb[0].mxu0
  %v7990 = vadd.f32 0.0, %v7989
  %v7991 = vpop.f32.mrb[0].mxu0
  %v7992 = vpop.f32.mrb[0].mxu0
  %7993 = vdwg.mxu0
  %7994 = vmatprep.subr.bf16.mxu0 %v7400
  %7995 = vmatpush1.bf16.msra.mxu0 %v7399
  %7996 = vmatprep.subr.bf16.mxu0 %v7408
  %7997 = vmatpush1.bf16.msra.mxu0 %v7407
  %7998 = vmatprep.subr.bf16.mxu0 %v7416
  %7999 = vmatpush1.bf16.msra.mxu0 %v7415
  %8000 = vmatprep.subr.bf16.mxu0 %v7424
  %8001 = vmatpush1.bf16.msra.mxu0 %v7423
  %8002 = vmatprep.subr.bf16.mxu0 %v7432
  %8003 = vmatpush1.bf16.msra.mxu0 %v7431
  %8004 = vmatprep.subr.bf16.mxu0 %v7440
  %8005 = vmatpush1.bf16.msra.mxu0 %v7439
  %8006 = vmatprep.subr.bf16.mxu0 %v7448
  %8007 = vmatpush1.bf16.msra.mxu0 %v7447
  %8008 = vmatprep.subr.bf16.mxu0 %v7456
  %8009 = vmatpush1.bf16.msra.mxu0 %v7455
  %8010 = vmatprep.subr.bf16.mxu0 %v7464
  %8011 = vmatpush1.bf16.msra.mxu0 %v7463
  %8012 = vmatprep.subr.bf16.mxu0 %v7472
  %8013 = vmatpush1.bf16.msra.mxu0 %v7471
  %8014 = vmatprep.subr.bf16.mxu0 %v7480
  %8015 = vmatpush1.bf16.msra.mxu0 %v7479
  %8016 = vmatprep.subr.bf16.mxu0 %v7488
  %8017 = vmatpush1.bf16.msra.mxu0 %v7487
  %8018 = vmatprep.subr.bf16.mxu0 %v7496
  %8019 = vmatpush1.bf16.msra.mxu0 %v7495
  %8020 = vmatprep.subr.bf16.mxu0 %v7504
  %8021 = vmatpush1.bf16.msra.mxu0 %v7503
  %8022 = vmatprep.subr.bf16.mxu0 %v7512
  %8023 = vmatpush1.bf16.msra.mxu0 %v7511
  %8024 = vmatprep.subr.bf16.mxu0 %v7520
  %8025 = vmatpush1.bf16.msra.mxu0 %v7519
  %8026 = vmatprep.mubr.bf16.mxu0 %v2009
  %8027 = vmatmul.mubr.bf16.gmra.mrb[0].mxu0 %v2008
  %v8028 = vpop.f32.mrb[0].mxu0
  %v8029 = vadd.f32 %v7958, %v8028
  %v8030 = vpop.f32.mrb[0].mxu0
  %v8031 = vadd.f32 %v7960, %v8030
  %v8032 = vpop.f32.mrb[0].mxu0
  %v8033 = vadd.f32 %v7962, %v8032
  %v8034 = vpop.f32.mrb[0].mxu0
  %v8035 = vadd.f32 %v7964, %v8034
  %8036 = vmatprep.mubr.bf16.mxu0 %v2013
  %8037 = vmatmul.mubr.bf16.gmra.mrb[0].mxu0 %v2012
  %v8038 = vpop.f32.mrb[0].mxu0
  %v8039 = vadd.f32 %v7968, %v8038
  %v8040 = vpop.f32.mrb[0].mxu0
  %v8041 = vadd.f32 %v7970, %v8040
  %v8042 = vpop.f32.mrb[0].mxu0
  %v8043 = vadd.f32 %v7972, %v8042
  %v8044 = vpop.f32.mrb[0].mxu0
  %v8045 = vadd.f32 %v7974, %v8044
  %8046 = vmatprep.mubr.bf16.mxu0 %v2017
  %8047 = vmatmul.mubr.bf16.gmra.mrb[0].mxu0 %v2016
  %v8048 = vpop.f32.mrb[0].mxu0
  %v8049 = vadd.f32 %v7978, %v8048
  %v8050 = vpop.f32.mrb[0].mxu0
  %v8051 = vadd.f32 %v7980, %v8050
  %v8052 = vpop.f32.mrb[0].mxu0
  %v8053 = vadd.f32 %v7982, %v8052
  %v8054 = vpop.f32.mrb[0].mxu0
  %v8055 = vadd.f32 %v7984, %v8054
  %8056 = vmatprep.mubr.bf16.mxu0 %v2021
  %8057 = vmatmul.mubr.bf16.gmra.mrb[0].mxu0 %v2020
  %v8058 = vpop.f32.mrb[0].mxu0
  %v8059 = vadd.f32 %v7988, %v8058
  %v8060 = vpop.f32.mrb[0].mxu0
  %v8061 = vadd.f32 %v7990, %v8060
  %v8062 = vpop.f32.mrb[0].mxu0
  %v8063 = vpop.f32.mrb[0].mxu0
  %8064 = vdwg.mxu0
  %8065 = vmatprep.subr.bf16.mxu0 %v7274
  %8066 = vmatpush1.bf16.msra.mxu0 %v7273
  %8067 = vmatprep.subr.bf16.mxu0 %v7282
  %8068 = vmatpush1.bf16.msra.mxu0 %v7281
  %8069 = vmatprep.subr.bf16.mxu0 %v7290
  %8070 = vmatpush1.bf16.msra.mxu0 %v7289
  %8071 = vmatprep.subr.bf16.mxu0 %v7298
  %8072 = vmatpush1.bf16.msra.mxu0 %v7297
  %8073 = vmatprep.subr.bf16.mxu0 %v7306
  %8074 = vmatpush1.bf16.msra.mxu0 %v7305
  %8075 = vmatprep.subr.bf16.mxu0 %v7314
  %8076 = vmatpush1.bf16.msra.mxu0 %v7313
  %8077 = vmatprep.subr.bf16.mxu0 %v7322
  %8078 = vmatpush1.bf16.msra.mxu0 %v7321
  %8079 = vmatprep.subr.bf16.mxu0 %v7330
  %8080 = vmatpush1.bf16.msra.mxu0 %v7329
  %8081 = vmatprep.subr.bf16.mxu0 %v7338
  %8082 = vmatpush1.bf16.msra.mxu0 %v7337
  %8083 = vmatprep.subr.bf16.mxu0 %v7346
  %8084 = vmatpush1.bf16.msra.mxu0 %v7345
  %8085 = vmatprep.subr.bf16.mxu0 %v7354
  %8086 = vmatpush1.bf16.msra.mxu0 %v7353
  %8087 = vmatprep.subr.bf16.mxu0 %v7362
  %8088 = vmatpush1.bf16.msra.mxu0 %v7361
  %8089 = vmatprep.subr.bf16.mxu0 %v7370
  %8090 = vmatpush1.bf16.msra.mxu0 %v7369
  %8091 = vmatprep.subr.bf16.mxu0 %v7378
  %8092 = vmatpush1.bf16.msra.mxu0 %v7377
  %8093 = vmatprep.subr.bf16.mxu0 %v7386
  %8094 = vmatpush1.bf16.msra.mxu0 %v7385
  %8095 = vmatprep.subr.bf16.mxu0 %v7394
  %8096 = vmatpush1.bf16.msra.mxu0 %v7393
  %8097 = vmatprep.mubr.bf16.mxu0 %v2007
  %8098 = vmatmul.mubr.bf16.gmra.mrb[0].mxu0 %v2006
  %v8099 = vpop.f32.mrb[0].mxu0
  %v8100 = vadd.f32 0.0, %v8099
  %v8101 = vpop.f32.mrb[0].mxu0
  %v8102 = vadd.f32 0.0, %v8101
  %v8103 = vpop.f32.mrb[0].mxu0
  %v8104 = vadd.f32 0.0, %v8103
  %v8105 = vpop.f32.mrb[0].mxu0
  %v8106 = vadd.f32 0.0, %v8105
  %8107 = vmatprep.mubr.bf16.mxu0 %v2011
  %8108 = vmatmul.mubr.bf16.gmra.mrb[0].mxu0 %v2010
  %v8109 = vpop.f32.mrb[0].mxu0
  %v8110 = vadd.f32 0.0, %v8109
  %v8111 = vpop.f32.mrb[0].mxu0
  %v8112 = vadd.f32 0.0, %v8111
  %v8113 = vpop.f32.mrb[0].mxu0
  %v8114 = vadd.f32 0.0, %v8113
  %v8115 = vpop.f32.mrb[0].mxu0
  %v8116 = vadd.f32 0.0, %v8115
  %8117 = vmatprep.mubr.bf16.mxu0 %v2015
  %8118 = vmatmul.mubr.bf16.gmra.mrb[0].mxu0 %v2014
  %v8119 = vpop.f32.mrb[0].mxu0
  %v8120 = vadd.f32 0.0, %v8119
  %v8121 = vpop.f32.mrb[0].mxu0
  %v8122 = vadd.f32 0.0, %v8121
  %v8123 = vpop.f32.mrb[0].mxu0
  %v8124 = vadd.f32 0.0, %v8123
  %v8125 = vpop.f32.mrb[0].mxu0
  %v8126 = vadd.f32 0.0, %v8125
  %8127 = vmatprep.mubr.bf16.mxu0 %v2019
  %8128 = vmatmul.mubr.bf16.gmra.mrb[0].mxu0 %v2018
  %v8129 = vpop.f32.mrb[0].mxu0
  %v8130 = vadd.f32 0.0, %v8129
  %v8131 = vpop.f32.mrb[0].mxu0
  %v8132 = vadd.f32 0.0, %v8131
  %v8133 = vpop.f32.mrb[0].mxu0
  %v8134 = vpop.f32.mrb[0].mxu0
  %8135 = vdwg.mxu0
  %8136 = vmatprep.subr.bf16.mxu0 %v7402
  %8137 = vmatpush1.bf16.msra.mxu0 %v7401
  %8138 = vmatprep.subr.bf16.mxu0 %v7410
  %8139 = vmatpush1.bf16.msra.mxu0 %v7409
  %8140 = vmatprep.subr.bf16.mxu0 %v7418
  %8141 = vmatpush1.bf16.msra.mxu0 %v7417
  %8142 = vmatprep.subr.bf16.mxu0 %v7426
  %8143 = vmatpush1.bf16.msra.mxu0 %v7425
  %8144 = vmatprep.subr.bf16.mxu0 %v7434
  %8145 = vmatpush1.bf16.msra.mxu0 %v7433
  %8146 = vmatprep.subr.bf16.mxu0 %v7442
  %8147 = vmatpush1.bf16.msra.mxu0 %v7441
  %8148 = vmatprep.subr.bf16.mxu0 %v7450
  %8149 = vmatpush1.bf16.msra.mxu0 %v7449
  %8150 = vmatprep.subr.bf16.mxu0 %v7458
  %8151 = vmatpush1.bf16.msra.mxu0 %v7457
  %8152 = vmatprep.subr.bf16.mxu0 %v7466
  %8153 = vmatpush1.bf16.msra.mxu0 %v7465
  %8154 = vmatprep.subr.bf16.mxu0 %v7474
  %8155 = vmatpush1.bf16.msra.mxu0 %v7473
  %8156 = vmatprep.subr.bf16.mxu0 %v7482
  %8157 = vmatpush1.bf16.msra.mxu0 %v7481
  %8158 = vmatprep.subr.bf16.mxu0 %v7490
  %8159 = vmatpush1.bf16.msra.mxu0 %v7489
  %8160 = vmatprep.subr.bf16.mxu0 %v7498
  %8161 = vmatpush1.bf16.msra.mxu0 %v7497
  %8162 = vmatprep.subr.bf16.mxu0 %v7506
  %8163 = vmatpush1.bf16.msra.mxu0 %v7505
  %8164 = vmatprep.subr.bf16.mxu0 %v7514
  %8165 = vmatpush1.bf16.msra.mxu0 %v7513
  %8166 = vmatprep.subr.bf16.mxu0 %v7522
  %8167 = vmatpush1.bf16.msra.mxu0 %v7521
  %8168 = vmatprep.mubr.bf16.mxu0 %v2009
  %8169 = vmatmul.mubr.bf16.gmra.mrb[0].mxu0 %v2008
  %v8170 = vpop.f32.mrb[0].mxu0
  %v8171 = vadd.f32 %v8100, %v8170
  %v8172 = vpop.f32.mrb[0].mxu0
  %v8173 = vadd.f32 %v8102, %v8172
  %v8174 = vpop.f32.mrb[0].mxu0
  %v8175 = vadd.f32 %v8104, %v8174
  %v8176 = vpop.f32.mrb[0].mxu0
  %v8177 = vadd.f32 %v8106, %v8176
  %8178 = vmatprep.mubr.bf16.mxu0 %v2013
  %8179 = vmatmul.mubr.bf16.gmra.mrb[0].mxu0 %v2012
  %v8180 = vpop.f32.mrb[0].mxu0
  %v8181 = vadd.f32 %v8110, %v8180
  %v8182 = vpop.f32.mrb[0].mxu0
  %v8183 = vadd.f32 %v8112, %v8182
  %v8184 = vpop.f32.mrb[0].mxu0
  %v8185 = vadd.f32 %v8114, %v8184
  %v8186 = vpop.f32.mrb[0].mxu0
  %v8187 = vadd.f32 %v8116, %v8186
  %8188 = vmatprep.mubr.bf16.mxu0 %v2017
  %8189 = vmatmul.mubr.bf16.gmra.mrb[0].mxu0 %v2016
  %v8190 = vpop.f32.mrb[0].mxu0
  %v8191 = vadd.f32 %v8120, %v8190
  %v8192 = vpop.f32.mrb[0].mxu0
  %v8193 = vadd.f32 %v8122, %v8192
  %v8194 = vpop.f32.mrb[0].mxu0
  %v8195 = vadd.f32 %v8124, %v8194
  %v8196 = vpop.f32.mrb[0].mxu0
  %v8197 = vadd.f32 %v8126, %v8196
  %8198 = vmatprep.mubr.bf16.mxu0 %v2021
  %8199 = vmatmul.mubr.bf16.gmra.mrb[0].mxu0 %v2020
  %v8200 = vpop.f32.mrb[0].mxu0
  %v8201 = vadd.f32 %v8130, %v8200
  %v8202 = vpop.f32.mrb[0].mxu0
  %v8203 = vadd.f32 %v8132, %v8202
  %v8204 = vpop.f32.mrb[0].mxu0
  %v8205 = vpop.f32.mrb[0].mxu0
  %8206 = vdwg.mxu0
  %8207 = vmatprep.subr.bf16.mxu0 %v7276
  %8208 = vmatpush1.bf16.msra.mxu0 %v7275
  %8209 = vmatprep.subr.bf16.mxu0 %v7284
  %8210 = vmatpush1.bf16.msra.mxu0 %v7283
  %8211 = vmatprep.subr.bf16.mxu0 %v7292
  %8212 = vmatpush1.bf16.msra.mxu0 %v7291
  %8213 = vmatprep.subr.bf16.mxu0 %v7300
  %8214 = vmatpush1.bf16.msra.mxu0 %v7299
  %8215 = vmatprep.subr.bf16.mxu0 %v7308
  %8216 = vmatpush1.bf16.msra.mxu0 %v7307
  %8217 = vmatprep.subr.bf16.mxu0 %v7316
  %8218 = vmatpush1.bf16.msra.mxu0 %v7315
  %8219 = vmatprep.subr.bf16.mxu0 %v7324
  %8220 = vmatpush1.bf16.msra.mxu0 %v7323
  %8221 = vmatprep.subr.bf16.mxu0 %v7332
  %8222 = vmatpush1.bf16.msra.mxu0 %v7331
  %8223 = vmatprep.subr.bf16.mxu0 %v7340
  %8224 = vmatpush1.bf16.msra.mxu0 %v7339
  %8225 = vmatprep.subr.bf16.mxu0 %v7348
  %8226 = vmatpush1.bf16.msra.mxu0 %v7347
  %8227 = vmatprep.subr.bf16.mxu0 %v7356
  %8228 = vmatpush1.bf16.msra.mxu0 %v7355
  %8229 = vmatprep.subr.bf16.mxu0 %v7364
  %8230 = vmatpush1.bf16.msra.mxu0 %v7363
  %8231 = vmatprep.subr.bf16.mxu0 %v7372
  %8232 = vmatpush1.bf16.msra.mxu0 %v7371
  %8233 = vmatprep.subr.bf16.mxu0 %v7380
  %8234 = vmatpush1.bf16.msra.mxu0 %v7379
  %8235 = vmatprep.subr.bf16.mxu0 %v7388
  %8236 = vmatpush1.bf16.msra.mxu0 %v7387
  %8237 = vmatprep.subr.bf16.mxu0 %v7396
  %8238 = vmatpush1.bf16.msra.mxu0 %v7395
  %8239 = vmatprep.mubr.bf16.mxu0 %v2007
  %8240 = vmatmul.mubr.bf16.gmra.mrb[0].mxu0 %v2006
  %v8241 = vpop.f32.mrb[0].mxu0
  %v8242 = vadd.f32 0.0, %v8241
  %v8243 = vpop.f32.mrb[0].mxu0
  %v8244 = vadd.f32 0.0, %v8243
  %v8245 = vpop.f32.mrb[0].mxu0
  %v8246 = vadd.f32 0.0, %v8245
  %v8247 = vpop.f32.mrb[0].mxu0
  %v8248 = vadd.f32 0.0, %v8247
  %8249 = vmatprep.mubr.bf16.mxu0 %v2011
  %8250 = vmatmul.mubr.bf16.gmra.mrb[0].mxu0 %v2010
  %v8251 = vpop.f32.mrb[0].mxu0
  %v8252 = vadd.f32 0.0, %v8251
  %v8253 = vpop.f32.mrb[0].mxu0
  %v8254 = vadd.f32 0.0, %v8253
  %v8255 = vpop.f32.mrb[0].mxu0
  %v8256 = vadd.f32 0.0, %v8255
  %v8257 = vpop.f32.mrb[0].mxu0
  %v8258 = vadd.f32 0.0, %v8257
  %8259 = vmatprep.mubr.bf16.mxu0 %v2015
  %8260 = vmatmul.mubr.bf16.gmra.mrb[0].mxu0 %v2014
  %v8261 = vpop.f32.mrb[0].mxu0
  %v8262 = vadd.f32 0.0, %v8261
  %v8263 = vpop.f32.mrb[0].mxu0
  %v8264 = vadd.f32 0.0, %v8263
  %v8265 = vpop.f32.mrb[0].mxu0
  %v8266 = vadd.f32 0.0, %v8265
  %v8267 = vpop.f32.mrb[0].mxu0
  %v8268 = vadd.f32 0.0, %v8267
  %8269 = vmatprep.mubr.bf16.mxu0 %v2019
  %8270 = vmatmul.mubr.bf16.gmra.mrb[0].mxu0 %v2018
  %v8271 = vpop.f32.mrb[0].mxu0
  %v8272 = vadd.f32 0.0, %v8271
  %v8273 = vpop.f32.mrb[0].mxu0
  %v8274 = vadd.f32 0.0, %v8273
  %v8275 = vpop.f32.mrb[0].mxu0
  %v8276 = vpop.f32.mrb[0].mxu0
  %8277 = vdwg.mxu0
  %8278 = vmatprep.subr.bf16.mxu0 %v7404
  %8279 = vmatpush1.bf16.msra.mxu0 %v7403
  %8280 = vmatprep.subr.bf16.mxu0 %v7412
  %8281 = vmatpush1.bf16.msra.mxu0 %v7411
  %8282 = vmatprep.subr.bf16.mxu0 %v7420
  %8283 = vmatpush1.bf16.msra.mxu0 %v7419
  %8284 = vmatprep.subr.bf16.mxu0 %v7428
  %8285 = vmatpush1.bf16.msra.mxu0 %v7427
  %8286 = vmatprep.subr.bf16.mxu0 %v7436
  %8287 = vmatpush1.bf16.msra.mxu0 %v7435
  %8288 = vmatprep.subr.bf16.mxu0 %v7444
  %8289 = vmatpush1.bf16.msra.mxu0 %v7443
  %8290 = vmatprep.subr.bf16.mxu0 %v7452
  %8291 = vmatpush1.bf16.msra.mxu0 %v7451
  %8292 = vmatprep.subr.bf16.mxu0 %v7460
  %8293 = vmatpush1.bf16.msra.mxu0 %v7459
  %8294 = vmatprep.subr.bf16.mxu0 %v7468
  %8295 = vmatpush1.bf16.msra.mxu0 %v7467
  %8296 = vmatprep.subr.bf16.mxu0 %v7476
  %8297 = vmatpush1.bf16.msra.mxu0 %v7475
  %8298 = vmatprep.subr.bf16.mxu0 %v7484
  %8299 = vmatpush1.bf16.msra.mxu0 %v7483
  %8300 = vmatprep.subr.bf16.mxu0 %v7492
  %8301 = vmatpush1.bf16.msra.mxu0 %v7491
  %8302 = vmatprep.subr.bf16.mxu0 %v7500
  %8303 = vmatpush1.bf16.msra.mxu0 %v7499
  %8304 = vmatprep.subr.bf16.mxu0 %v7508
  %8305 = vmatpush1.bf16.msra.mxu0 %v7507
  %8306 = vmatprep.subr.bf16.mxu0 %v7516
  %8307 = vmatpush1.bf16.msra.mxu0 %v7515
  %8308 = vmatprep.subr.bf16.mxu0 %v7524
  %8309 = vmatpush1.bf16.msra.mxu0 %v7523
  %8310 = vmatprep.mubr.bf16.mxu0 %v2009
  %8311 = vmatmul.mubr.bf16.gmra.mrb[0].mxu0 %v2008
  %v8312 = vpop.f32.mrb[0].mxu0
  %v8313 = vadd.f32 %v8242, %v8312
  %v8314 = vpop.f32.mrb[0].mxu0
  %v8315 = vadd.f32 %v8244, %v8314
  %v8316 = vpop.f32.mrb[0].mxu0
  %v8317 = vadd.f32 %v8246, %v8316
  %v8318 = vpop.f32.mrb[0].mxu0
  %v8319 = vadd.f32 %v8248, %v8318
  %8320 = vmatprep.mubr.bf16.mxu0 %v2013
  %8321 = vmatmul.mubr.bf16.gmra.mrb[0].mxu0 %v2012
  %v8322 = vpop.f32.mrb[0].mxu0
  %v8323 = vadd.f32 %v8252, %v8322
  %v8324 = vpop.f32.mrb[0].mxu0
  %v8325 = vadd.f32 %v8254, %v8324
  %v8326 = vpop.f32.mrb[0].mxu0
  %v8327 = vadd.f32 %v8256, %v8326
  %v8328 = vpop.f32.mrb[0].mxu0
  %v8329 = vadd.f32 %v8258, %v8328
  %8330 = vmatprep.mubr.bf16.mxu0 %v2017
  %8331 = vmatmul.mubr.bf16.gmra.mrb[0].mxu0 %v2016
  %v8332 = vpop.f32.mrb[0].mxu0
  %v8333 = vadd.f32 %v8262, %v8332
  %v8334 = vpop.f32.mrb[0].mxu0
  %v8335 = vadd.f32 %v8264, %v8334
  %v8336 = vpop.f32.mrb[0].mxu0
  %v8337 = vadd.f32 %v8266, %v8336
  %v8338 = vpop.f32.mrb[0].mxu0
  %v8339 = vadd.f32 %v8268, %v8338
  %8340 = vmatprep.mubr.bf16.mxu0 %v2021
  %8341 = vmatmul.mubr.bf16.gmra.mrb[0].mxu0 %v2020
  %v8342 = vpop.f32.mrb[0].mxu0
  %v8343 = vadd.f32 %v8272, %v8342
  %v8344 = vpop.f32.mrb[0].mxu0
  %v8345 = vadd.f32 %v8274, %v8344
  %v8346 = vpop.f32.mrb[0].mxu0
  %v8347 = vpop.f32.mrb[0].mxu0
  %8348 = vdwg.mxu0
  %v8349 = vadd.f32 %v5782, %v7887
  %v8350 = vadd.f32 %v5784, %v7889
  %v8351 = vadd.f32 %v5924, %v8029
  %v8352 = vadd.f32 %v5926, %v8031
  %v8353 = vadd.f32 %v6066, %v8171
  %v8354 = vadd.f32 %v6068, %v8173
  %v8355 = vadd.f32 %v6208, %v8313
  %v8356 = vadd.f32 %v6210, %v8315
  %v8357 = vadd.f32 %v5786, %v7891
  %v8358 = vadd.f32 %v5788, %v7893
  %v8359 = vadd.f32 %v5928, %v8033
  %v8360 = vadd.f32 %v5930, %v8035
  %v8361 = vadd.f32 %v6070, %v8175
  %v8362 = vadd.f32 %v6072, %v8177
  %v8363 = vadd.f32 %v6212, %v8317
  %v8364 = vadd.f32 %v6214, %v8319
  %v8365 = vadd.f32 %v5792, %v7897
  %v8366 = vadd.f32 %v5794, %v7899
  %v8367 = vadd.f32 %v5934, %v8039
  %v8368 = vadd.f32 %v5936, %v8041
  %v8369 = vadd.f32 %v6076, %v8181
  %v8370 = vadd.f32 %v6078, %v8183
  %v8371 = vadd.f32 %v6218, %v8323
  %v8372 = vadd.f32 %v6220, %v8325
  %v8373 = vadd.f32 %v5796, %v7901
  %v8374 = vadd.f32 %v5798, %v7903
  %v8375 = vadd.f32 %v5938, %v8043
  %v8376 = vadd.f32 %v5940, %v8045
  %v8377 = vadd.f32 %v6080, %v8185
  %v8378 = vadd.f32 %v6082, %v8187
  %v8379 = vadd.f32 %v6222, %v8327
  %v8380 = vadd.f32 %v6224, %v8329
  %v8381 = vadd.f32 %v5802, %v7907
  %v8382 = vadd.f32 %v5804, %v7909
  %v8383 = vadd.f32 %v5944, %v8049
  %v8384 = vadd.f32 %v5946, %v8051
  %v8385 = vadd.f32 %v6086, %v8191
  %v8386 = vadd.f32 %v6088, %v8193
  %v8387 = vadd.f32 %v6228, %v8333
  %v8388 = vadd.f32 %v6230, %v8335
  %v8389 = vadd.f32 %v5806, %v7911
  %v8390 = vadd.f32 %v5808, %v7913
  %v8391 = vadd.f32 %v5948, %v8053
  %v8392 = vadd.f32 %v5950, %v8055
  %v8393 = vadd.f32 %v6090, %v8195
  %v8394 = vadd.f32 %v6092, %v8197
  %v8395 = vadd.f32 %v6232, %v8337
  %v8396 = vadd.f32 %v6234, %v8339
  %v8397 = vadd.f32 %v5812, %v7917
  %v8398 = vadd.f32 %v5814, %v7919
  %v8399 = vadd.f32 %v5954, %v8059
  %v8400 = vadd.f32 %v5956, %v8061
  %v8401 = vadd.f32 %v6096, %v8201
  %v8402 = vadd.f32 %v6098, %v8203
  %v8403 = vadd.f32 %v6238, %v8343
  %v8404 = vadd.f32 %v6240, %v8345
  %8405 = vmatprep.subr.bf16.mxu0 %v3317
  %8406 = vmatpush1.bf16.msra.mxu0 %v3316
  %8407 = vmatprep.subr.bf16.mxu0 %v3325
  %8408 = vmatpush1.bf16.msra.mxu0 %v3324
  %8409 = vmatprep.subr.bf16.mxu0 %v3333
  %8410 = vmatpush1.bf16.msra.mxu0 %v3332
  %8411 = vmatprep.subr.bf16.mxu0 %v3341
  %8412 = vmatpush1.bf16.msra.mxu0 %v3340
  %8413 = vmatprep.subr.bf16.mxu0 %v3349
  %8414 = vmatpush1.bf16.msra.mxu0 %v3348
  %8415 = vmatprep.subr.bf16.mxu0 %v3357
  %8416 = vmatpush1.bf16.msra.mxu0 %v3356
  %8417 = vmatprep.subr.bf16.mxu0 %v3365
  %8418 = vmatpush1.bf16.msra.mxu0 %v3364
  %8419 = vmatprep.subr.bf16.mxu0 %v3373
  %8420 = vmatpush1.bf16.msra.mxu0 %v3372
  %8421 = vmatprep.subr.bf16.mxu0 %v3381
  %8422 = vmatpush1.bf16.msra.mxu0 %v3380
  %8423 = vmatprep.subr.bf16.mxu0 %v3389
  %8424 = vmatpush1.bf16.msra.mxu0 %v3388
  %8425 = vmatprep.subr.bf16.mxu0 %v3397
  %8426 = vmatpush1.bf16.msra.mxu0 %v3396
  %8427 = vmatprep.subr.bf16.mxu0 %v3405
  %8428 = vmatpush1.bf16.msra.mxu0 %v3404
  %8429 = vmatprep.subr.bf16.mxu0 %v3413
  %8430 = vmatpush1.bf16.msra.mxu0 %v3412
  %8431 = vmatprep.subr.bf16.mxu0 %v3421
  %8432 = vmatpush1.bf16.msra.mxu0 %v3420
  %8433 = vmatprep.subr.bf16.mxu0 %v3429
  %8434 = vmatpush1.bf16.msra.mxu0 %v3428
  %8435 = vmatprep.subr.bf16.mxu0 %v3437
  %8436 = vmatpush1.bf16.msra.mxu0 %v3436
  %8437 = vmatprep.mubr.bf16.mxu0 %v2007
  %8438 = vmatmul.mubr.bf16.gmra.mrb[0].mxu0 %v2006
  %v8439 = vpop.f32.mrb[0].mxu0
  %v8440 = vadd.f32 0.0, %v8439
  %v8441 = vpop.f32.mrb[0].mxu0
  %v8442 = vadd.f32 0.0, %v8441
  %v8443 = vpop.f32.mrb[0].mxu0
  %v8444 = vadd.f32 0.0, %v8443
  %v8445 = vpop.f32.mrb[0].mxu0
  %v8446 = vadd.f32 0.0, %v8445
  %8447 = vmatprep.mubr.bf16.mxu0 %v2011
  %8448 = vmatmul.mubr.bf16.gmra.mrb[0].mxu0 %v2010
  %v8449 = vpop.f32.mrb[0].mxu0
  %v8450 = vadd.f32 0.0, %v8449
  %v8451 = vpop.f32.mrb[0].mxu0
  %v8452 = vadd.f32 0.0, %v8451
  %v8453 = vpop.f32.mrb[0].mxu0
  %v8454 = vadd.f32 0.0, %v8453
  %v8455 = vpop.f32.mrb[0].mxu0
  %v8456 = vadd.f32 0.0, %v8455
  %8457 = vmatprep.mubr.bf16.mxu0 %v2015
  %8458 = vmatmul.mubr.bf16.gmra.mrb[0].mxu0 %v2014
  %v8459 = vpop.f32.mrb[0].mxu0
  %v8460 = vadd.f32 0.0, %v8459
  %v8461 = vpop.f32.mrb[0].mxu0
  %v8462 = vadd.f32 0.0, %v8461
  %v8463 = vpop.f32.mrb[0].mxu0
  %v8464 = vadd.f32 0.0, %v8463
  %v8465 = vpop.f32.mrb[0].mxu0
  %v8466 = vadd.f32 0.0, %v8465
  %8467 = vmatprep.mubr.bf16.mxu0 %v2019
  %8468 = vmatmul.mubr.bf16.gmra.mrb[0].mxu0 %v2018
  %v8469 = vpop.f32.mrb[0].mxu0
  %v8470 = vadd.f32 0.0, %v8469
  %v8471 = vpop.f32.mrb[0].mxu0
  %v8472 = vadd.f32 0.0, %v8471
  %v8473 = vpop.f32.mrb[0].mxu0
  %v8474 = vpop.f32.mrb[0].mxu0
  %8475 = vdwg.mxu0
  %8476 = vmatprep.subr.bf16.mxu0 %v3445
  %8477 = vmatpush1.bf16.msra.mxu0 %v3444
  %8478 = vmatprep.subr.bf16.mxu0 %v3453
  %8479 = vmatpush1.bf16.msra.mxu0 %v3452
  %8480 = vmatprep.subr.bf16.mxu0 %v3461
  %8481 = vmatpush1.bf16.msra.mxu0 %v3460
  %8482 = vmatprep.subr.bf16.mxu0 %v3469
  %8483 = vmatpush1.bf16.msra.mxu0 %v3468
  %8484 = vmatprep.subr.bf16.mxu0 %v3477
  %8485 = vmatpush1.bf16.msra.mxu0 %v3476
  %8486 = vmatprep.subr.bf16.mxu0 %v3485
  %8487 = vmatpush1.bf16.msra.mxu0 %v3484
  %8488 = vmatprep.subr.bf16.mxu0 %v3493
  %8489 = vmatpush1.bf16.msra.mxu0 %v3492
  %8490 = vmatprep.subr.bf16.mxu0 %v3501
  %8491 = vmatpush1.bf16.msra.mxu0 %v3500
  %8492 = vmatprep.subr.bf16.mxu0 %v3509
  %8493 = vmatpush1.bf16.msra.mxu0 %v3508
  %8494 = vmatprep.subr.bf16.mxu0 %v3517
  %8495 = vmatpush1.bf16.msra.mxu0 %v3516
  %8496 = vmatprep.subr.bf16.mxu0 %v3525
  %8497 = vmatpush1.bf16.msra.mxu0 %v3524
  %8498 = vmatprep.subr.bf16.mxu0 %v3533
  %8499 = vmatpush1.bf16.msra.mxu0 %v3532
  %8500 = vmatprep.subr.bf16.mxu0 %v3541
  %8501 = vmatpush1.bf16.msra.mxu0 %v3540
  %8502 = vmatprep.subr.bf16.mxu0 %v3549
  %8503 = vmatpush1.bf16.msra.mxu0 %v3548
  %8504 = vmatprep.subr.bf16.mxu0 %v3557
  %8505 = vmatpush1.bf16.msra.mxu0 %v3556
  %8506 = vmatprep.subr.bf16.mxu0 %v3565
  %8507 = vmatpush1.bf16.msra.mxu0 %v3564
  %8508 = vmatprep.mubr.bf16.mxu0 %v2009
  %8509 = vmatmul.mubr.bf16.gmra.mrb[0].mxu0 %v2008
  %v8510 = vpop.f32.mrb[0].mxu0
  %v8511 = vadd.f32 %v8440, %v8510
  %v8512 = vpop.f32.mrb[0].mxu0
  %v8513 = vadd.f32 %v8442, %v8512
  %v8514 = vpop.f32.mrb[0].mxu0
  %v8515 = vadd.f32 %v8444, %v8514
  %v8516 = vpop.f32.mrb[0].mxu0
  %v8517 = vadd.f32 %v8446, %v8516
  %8518 = vmatprep.mubr.bf16.mxu0 %v2013
  %8519 = vmatmul.mubr.bf16.gmra.mrb[0].mxu0 %v2012
  %v8520 = vpop.f32.mrb[0].mxu0
  %v8521 = vadd.f32 %v8450, %v8520
  %v8522 = vpop.f32.mrb[0].mxu0
  %v8523 = vadd.f32 %v8452, %v8522
  %v8524 = vpop.f32.mrb[0].mxu0
  %v8525 = vadd.f32 %v8454, %v8524
  %v8526 = vpop.f32.mrb[0].mxu0
  %v8527 = vadd.f32 %v8456, %v8526
  %8528 = vmatprep.mubr.bf16.mxu0 %v2017
  %8529 = vmatmul.mubr.bf16.gmra.mrb[0].mxu0 %v2016
  %v8530 = vpop.f32.mrb[0].mxu0
  %v8531 = vadd.f32 %v8460, %v8530
  %v8532 = vpop.f32.mrb[0].mxu0
  %v8533 = vadd.f32 %v8462, %v8532
  %v8534 = vpop.f32.mrb[0].mxu0
  %v8535 = vadd.f32 %v8464, %v8534
  %v8536 = vpop.f32.mrb[0].mxu0
  %v8537 = vadd.f32 %v8466, %v8536
  %8538 = vmatprep.mubr.bf16.mxu0 %v2021
  %8539 = vmatmul.mubr.bf16.gmra.mrb[0].mxu0 %v2020
  %v8540 = vpop.f32.mrb[0].mxu0
  %v8541 = vadd.f32 %v8470, %v8540
  %v8542 = vpop.f32.mrb[0].mxu0
  %v8543 = vadd.f32 %v8472, %v8542
  %v8544 = vpop.f32.mrb[0].mxu0
  %v8545 = vpop.f32.mrb[0].mxu0
  %8546 = vdwg.mxu0
  %8547 = vmatprep.subr.bf16.mxu0 %v3319
  %8548 = vmatpush1.bf16.msra.mxu0 %v3318
  %8549 = vmatprep.subr.bf16.mxu0 %v3327
  %8550 = vmatpush1.bf16.msra.mxu0 %v3326
  %8551 = vmatprep.subr.bf16.mxu0 %v3335
  %8552 = vmatpush1.bf16.msra.mxu0 %v3334
  %8553 = vmatprep.subr.bf16.mxu0 %v3343
  %8554 = vmatpush1.bf16.msra.mxu0 %v3342
  %8555 = vmatprep.subr.bf16.mxu0 %v3351
  %8556 = vmatpush1.bf16.msra.mxu0 %v3350
  %8557 = vmatprep.subr.bf16.mxu0 %v3359
  %8558 = vmatpush1.bf16.msra.mxu0 %v3358
  %8559 = vmatprep.subr.bf16.mxu0 %v3367
  %8560 = vmatpush1.bf16.msra.mxu0 %v3366
  %8561 = vmatprep.subr.bf16.mxu0 %v3375
  %8562 = vmatpush1.bf16.msra.mxu0 %v3374
  %8563 = vmatprep.subr.bf16.mxu0 %v3383
  %8564 = vmatpush1.bf16.msra.mxu0 %v3382
  %8565 = vmatprep.subr.bf16.mxu0 %v3391
  %8566 = vmatpush1.bf16.msra.mxu0 %v3390
  %8567 = vmatprep.subr.bf16.mxu0 %v3399
  %8568 = vmatpush1.bf16.msra.mxu0 %v3398
  %8569 = vmatprep.subr.bf16.mxu0 %v3407
  %8570 = vmatpush1.bf16.msra.mxu0 %v3406
  %8571 = vmatprep.subr.bf16.mxu0 %v3415
  %8572 = vmatpush1.bf16.msra.mxu0 %v3414
  %8573 = vmatprep.subr.bf16.mxu0 %v3423
  %8574 = vmatpush1.bf16.msra.mxu0 %v3422
  %8575 = vmatprep.subr.bf16.mxu0 %v3431
  %8576 = vmatpush1.bf16.msra.mxu0 %v3430
  %8577 = vmatprep.subr.bf16.mxu0 %v3439
  %8578 = vmatpush1.bf16.msra.mxu0 %v3438
  %8579 = vmatprep.mubr.bf16.mxu0 %v2007
  %8580 = vmatmul.mubr.bf16.gmra.mrb[0].mxu0 %v2006
  %v8581 = vpop.f32.mrb[0].mxu0
  %v8582 = vadd.f32 0.0, %v8581
  %v8583 = vpop.f32.mrb[0].mxu0
  %v8584 = vadd.f32 0.0, %v8583
  %v8585 = vpop.f32.mrb[0].mxu0
  %v8586 = vadd.f32 0.0, %v8585
  %v8587 = vpop.f32.mrb[0].mxu0
  %v8588 = vadd.f32 0.0, %v8587
  %8589 = vmatprep.mubr.bf16.mxu0 %v2011
  %8590 = vmatmul.mubr.bf16.gmra.mrb[0].mxu0 %v2010
  %v8591 = vpop.f32.mrb[0].mxu0
  %v8592 = vadd.f32 0.0, %v8591
  %v8593 = vpop.f32.mrb[0].mxu0
  %v8594 = vadd.f32 0.0, %v8593
  %v8595 = vpop.f32.mrb[0].mxu0
  %v8596 = vadd.f32 0.0, %v8595
  %v8597 = vpop.f32.mrb[0].mxu0
  %v8598 = vadd.f32 0.0, %v8597
  %8599 = vmatprep.mubr.bf16.mxu0 %v2015
  %8600 = vmatmul.mubr.bf16.gmra.mrb[0].mxu0 %v2014
  %v8601 = vpop.f32.mrb[0].mxu0
  %v8602 = vadd.f32 0.0, %v8601
  %v8603 = vpop.f32.mrb[0].mxu0
  %v8604 = vadd.f32 0.0, %v8603
  %v8605 = vpop.f32.mrb[0].mxu0
  %v8606 = vadd.f32 0.0, %v8605
  %v8607 = vpop.f32.mrb[0].mxu0
  %v8608 = vadd.f32 0.0, %v8607
  %8609 = vmatprep.mubr.bf16.mxu0 %v2019
  %8610 = vmatmul.mubr.bf16.gmra.mrb[0].mxu0 %v2018
  %v8611 = vpop.f32.mrb[0].mxu0
  %v8612 = vadd.f32 0.0, %v8611
  %v8613 = vpop.f32.mrb[0].mxu0
  %v8614 = vadd.f32 0.0, %v8613
  %v8615 = vpop.f32.mrb[0].mxu0
  %v8616 = vpop.f32.mrb[0].mxu0
  %8617 = vdwg.mxu0
  %8618 = vmatprep.subr.bf16.mxu0 %v3447
  %8619 = vmatpush1.bf16.msra.mxu0 %v3446
  %8620 = vmatprep.subr.bf16.mxu0 %v3455
  %8621 = vmatpush1.bf16.msra.mxu0 %v3454
  %8622 = vmatprep.subr.bf16.mxu0 %v3463
  %8623 = vmatpush1.bf16.msra.mxu0 %v3462
  %8624 = vmatprep.subr.bf16.mxu0 %v3471
  %8625 = vmatpush1.bf16.msra.mxu0 %v3470
  %8626 = vmatprep.subr.bf16.mxu0 %v3479
  %8627 = vmatpush1.bf16.msra.mxu0 %v3478
  %8628 = vmatprep.subr.bf16.mxu0 %v3487
  %8629 = vmatpush1.bf16.msra.mxu0 %v3486
  %8630 = vmatprep.subr.bf16.mxu0 %v3495
  %8631 = vmatpush1.bf16.msra.mxu0 %v3494
  %8632 = vmatprep.subr.bf16.mxu0 %v3503
  %8633 = vmatpush1.bf16.msra.mxu0 %v3502
  %8634 = vmatprep.subr.bf16.mxu0 %v3511
  %8635 = vmatpush1.bf16.msra.mxu0 %v3510
  %8636 = vmatprep.subr.bf16.mxu0 %v3519
  %8637 = vmatpush1.bf16.msra.mxu0 %v3518
  %8638 = vmatprep.subr.bf16.mxu0 %v3527
  %8639 = vmatpush1.bf16.msra.mxu0 %v3526
  %8640 = vmatprep.subr.bf16.mxu0 %v3535
  %8641 = vmatpush1.bf16.msra.mxu0 %v3534
  %8642 = vmatprep.subr.bf16.mxu0 %v3543
  %8643 = vmatpush1.bf16.msra.mxu0 %v3542
  %8644 = vmatprep.subr.bf16.mxu0 %v3551
  %8645 = vmatpush1.bf16.msra.mxu0 %v3550
  %8646 = vmatprep.subr.bf16.mxu0 %v3559
  %8647 = vmatpush1.bf16.msra.mxu0 %v3558
  %8648 = vmatprep.subr.bf16.mxu0 %v3567
  %8649 = vmatpush1.bf16.msra.mxu0 %v3566
  %8650 = vmatprep.mubr.bf16.mxu0 %v2009
  %8651 = vmatmul.mubr.bf16.gmra.mrb[0].mxu0 %v2008
  %v8652 = vpop.f32.mrb[0].mxu0
  %v8653 = vadd.f32 %v8582, %v8652
  %v8654 = vpop.f32.mrb[0].mxu0
  %v8655 = vadd.f32 %v8584, %v8654
  %v8656 = vpop.f32.mrb[0].mxu0
  %v8657 = vadd.f32 %v8586, %v8656
  %v8658 = vpop.f32.mrb[0].mxu0
  %v8659 = vadd.f32 %v8588, %v8658
  %8660 = vmatprep.mubr.bf16.mxu0 %v2013
  %8661 = vmatmul.mubr.bf16.gmra.mrb[0].mxu0 %v2012
  %v8662 = vpop.f32.mrb[0].mxu0
  %v8663 = vadd.f32 %v8592, %v8662
  %v8664 = vpop.f32.mrb[0].mxu0
  %v8665 = vadd.f32 %v8594, %v8664
  %v8666 = vpop.f32.mrb[0].mxu0
  %v8667 = vadd.f32 %v8596, %v8666
  %v8668 = vpop.f32.mrb[0].mxu0
  %v8669 = vadd.f32 %v8598, %v8668
  %8670 = vmatprep.mubr.bf16.mxu0 %v2017
  %8671 = vmatmul.mubr.bf16.gmra.mrb[0].mxu0 %v2016
  %v8672 = vpop.f32.mrb[0].mxu0
  %v8673 = vadd.f32 %v8602, %v8672
  %v8674 = vpop.f32.mrb[0].mxu0
  %v8675 = vadd.f32 %v8604, %v8674
  %v8676 = vpop.f32.mrb[0].mxu0
  %v8677 = vadd.f32 %v8606, %v8676
  %v8678 = vpop.f32.mrb[0].mxu0
  %v8679 = vadd.f32 %v8608, %v8678
  %8680 = vmatprep.mubr.bf16.mxu0 %v2021
  %8681 = vmatmul.mubr.bf16.gmra.mrb[0].mxu0 %v2020
  %v8682 = vpop.f32.mrb[0].mxu0
  %v8683 = vadd.f32 %v8612, %v8682
  %v8684 = vpop.f32.mrb[0].mxu0
  %v8685 = vadd.f32 %v8614, %v8684
  %v8686 = vpop.f32.mrb[0].mxu0
  %v8687 = vpop.f32.mrb[0].mxu0
  %8688 = vdwg.mxu0
  %8689 = vmatprep.subr.bf16.mxu0 %v3321
  %8690 = vmatpush1.bf16.msra.mxu0 %v3320
  %8691 = vmatprep.subr.bf16.mxu0 %v3329
  %8692 = vmatpush1.bf16.msra.mxu0 %v3328
  %8693 = vmatprep.subr.bf16.mxu0 %v3337
  %8694 = vmatpush1.bf16.msra.mxu0 %v3336
  %8695 = vmatprep.subr.bf16.mxu0 %v3345
  %8696 = vmatpush1.bf16.msra.mxu0 %v3344
  %8697 = vmatprep.subr.bf16.mxu0 %v3353
  %8698 = vmatpush1.bf16.msra.mxu0 %v3352
  %8699 = vmatprep.subr.bf16.mxu0 %v3361
  %8700 = vmatpush1.bf16.msra.mxu0 %v3360
  %8701 = vmatprep.subr.bf16.mxu0 %v3369
  %8702 = vmatpush1.bf16.msra.mxu0 %v3368
  %8703 = vmatprep.subr.bf16.mxu0 %v3377
  %8704 = vmatpush1.bf16.msra.mxu0 %v3376
  %8705 = vmatprep.subr.bf16.mxu0 %v3385
  %8706 = vmatpush1.bf16.msra.mxu0 %v3384
  %8707 = vmatprep.subr.bf16.mxu0 %v3393
  %8708 = vmatpush1.bf16.msra.mxu0 %v3392
  %8709 = vmatprep.subr.bf16.mxu0 %v3401
  %8710 = vmatpush1.bf16.msra.mxu0 %v3400
  %8711 = vmatprep.subr.bf16.mxu0 %v3409
  %8712 = vmatpush1.bf16.msra.mxu0 %v3408
  %8713 = vmatprep.subr.bf16.mxu0 %v3417
  %8714 = vmatpush1.bf16.msra.mxu0 %v3416
  %8715 = vmatprep.subr.bf16.mxu0 %v3425
  %8716 = vmatpush1.bf16.msra.mxu0 %v3424
  %8717 = vmatprep.subr.bf16.mxu0 %v3433
  %8718 = vmatpush1.bf16.msra.mxu0 %v3432
  %8719 = vmatprep.subr.bf16.mxu0 %v3441
  %8720 = vmatpush1.bf16.msra.mxu0 %v3440
  %8721 = vmatprep.mubr.bf16.mxu0 %v2007
  %8722 = vmatmul.mubr.bf16.gmra.mrb[0].mxu0 %v2006
  %v8723 = vpop.f32.mrb[0].mxu0
  %v8724 = vadd.f32 0.0, %v8723
  %v8725 = vpop.f32.mrb[0].mxu0
  %v8726 = vadd.f32 0.0, %v8725
  %v8727 = vpop.f32.mrb[0].mxu0
  %v8728 = vadd.f32 0.0, %v8727
  %v8729 = vpop.f32.mrb[0].mxu0
  %v8730 = vadd.f32 0.0, %v8729
  %8731 = vmatprep.mubr.bf16.mxu0 %v2011
  %8732 = vmatmul.mubr.bf16.gmra.mrb[0].mxu0 %v2010
  %v8733 = vpop.f32.mrb[0].mxu0
  %v8734 = vadd.f32 0.0, %v8733
  %v8735 = vpop.f32.mrb[0].mxu0
  %v8736 = vadd.f32 0.0, %v8735
  %v8737 = vpop.f32.mrb[0].mxu0
  %v8738 = vadd.f32 0.0, %v8737
  %v8739 = vpop.f32.mrb[0].mxu0
  %v8740 = vadd.f32 0.0, %v8739
  %8741 = vmatprep.mubr.bf16.mxu0 %v2015
  %8742 = vmatmul.mubr.bf16.gmra.mrb[0].mxu0 %v2014
  %v8743 = vpop.f32.mrb[0].mxu0
  %v8744 = vadd.f32 0.0, %v8743
  %v8745 = vpop.f32.mrb[0].mxu0
  %v8746 = vadd.f32 0.0, %v8745
  %v8747 = vpop.f32.mrb[0].mxu0
  %v8748 = vadd.f32 0.0, %v8747
  %v8749 = vpop.f32.mrb[0].mxu0
  %v8750 = vadd.f32 0.0, %v8749
  %8751 = vmatprep.mubr.bf16.mxu0 %v2019
  %8752 = vmatmul.mubr.bf16.gmra.mrb[0].mxu0 %v2018
  %v8753 = vpop.f32.mrb[0].mxu0
  %v8754 = vadd.f32 0.0, %v8753
  %v8755 = vpop.f32.mrb[0].mxu0
  %v8756 = vadd.f32 0.0, %v8755
  %v8757 = vpop.f32.mrb[0].mxu0
  %v8758 = vpop.f32.mrb[0].mxu0
  %8759 = vdwg.mxu0
  %8760 = vmatprep.subr.bf16.mxu0 %v3449
  %8761 = vmatpush1.bf16.msra.mxu0 %v3448
  %8762 = vmatprep.subr.bf16.mxu0 %v3457
  %8763 = vmatpush1.bf16.msra.mxu0 %v3456
  %8764 = vmatprep.subr.bf16.mxu0 %v3465
  %8765 = vmatpush1.bf16.msra.mxu0 %v3464
  %8766 = vmatprep.subr.bf16.mxu0 %v3473
  %8767 = vmatpush1.bf16.msra.mxu0 %v3472
  %8768 = vmatprep.subr.bf16.mxu0 %v3481
  %8769 = vmatpush1.bf16.msra.mxu0 %v3480
  %8770 = vmatprep.subr.bf16.mxu0 %v3489
  %8771 = vmatpush1.bf16.msra.mxu0 %v3488
  %8772 = vmatprep.subr.bf16.mxu0 %v3497
  %8773 = vmatpush1.bf16.msra.mxu0 %v3496
  %8774 = vmatprep.subr.bf16.mxu0 %v3505
  %8775 = vmatpush1.bf16.msra.mxu0 %v3504
  %8776 = vmatprep.subr.bf16.mxu0 %v3513
  %8777 = vmatpush1.bf16.msra.mxu0 %v3512
  %8778 = vmatprep.subr.bf16.mxu0 %v3521
  %8779 = vmatpush1.bf16.msra.mxu0 %v3520
  %8780 = vmatprep.subr.bf16.mxu0 %v3529
  %8781 = vmatpush1.bf16.msra.mxu0 %v3528
  %8782 = vmatprep.subr.bf16.mxu0 %v3537
  %8783 = vmatpush1.bf16.msra.mxu0 %v3536
  %8784 = vmatprep.subr.bf16.mxu0 %v3545
  %8785 = vmatpush1.bf16.msra.mxu0 %v3544
  %8786 = vmatprep.subr.bf16.mxu0 %v3553
  %8787 = vmatpush1.bf16.msra.mxu0 %v3552
  %8788 = vmatprep.subr.bf16.mxu0 %v3561
  %8789 = vmatpush1.bf16.msra.mxu0 %v3560
  %8790 = vmatprep.subr.bf16.mxu0 %v3569
  %8791 = vmatpush1.bf16.msra.mxu0 %v3568
  %8792 = vmatprep.mubr.bf16.mxu0 %v2009
  %8793 = vmatmul.mubr.bf16.gmra.mrb[0].mxu0 %v2008
  %v8794 = vpop.f32.mrb[0].mxu0
  %v8795 = vadd.f32 %v8724, %v8794
  %v8796 = vpop.f32.mrb[0].mxu0
  %v8797 = vadd.f32 %v8726, %v8796
  %v8798 = vpop.f32.mrb[0].mxu0
  %v8799 = vadd.f32 %v8728, %v8798
  %v8800 = vpop.f32.mrb[0].mxu0
  %v8801 = vadd.f32 %v8730, %v8800
  %8802 = vmatprep.mubr.bf16.mxu0 %v2013
  %8803 = vmatmul.mubr.bf16.gmra.mrb[0].mxu0 %v2012
  %v8804 = vpop.f32.mrb[0].mxu0
  %v8805 = vadd.f32 %v8734, %v8804
  %v8806 = vpop.f32.mrb[0].mxu0
  %v8807 = vadd.f32 %v8736, %v8806
  %v8808 = vpop.f32.mrb[0].mxu0
  %v8809 = vadd.f32 %v8738, %v8808
  %v8810 = vpop.f32.mrb[0].mxu0
  %v8811 = vadd.f32 %v8740, %v8810
  %8812 = vmatprep.mubr.bf16.mxu0 %v2017
  %8813 = vmatmul.mubr.bf16.gmra.mrb[0].mxu0 %v2016
  %v8814 = vpop.f32.mrb[0].mxu0
  %v8815 = vadd.f32 %v8744, %v8814
  %v8816 = vpop.f32.mrb[0].mxu0
  %v8817 = vadd.f32 %v8746, %v8816
  %v8818 = vpop.f32.mrb[0].mxu0
  %v8819 = vadd.f32 %v8748, %v8818
  %v8820 = vpop.f32.mrb[0].mxu0
  %v8821 = vadd.f32 %v8750, %v8820
  %8822 = vmatprep.mubr.bf16.mxu0 %v2021
  %8823 = vmatmul.mubr.bf16.gmra.mrb[0].mxu0 %v2020
  %v8824 = vpop.f32.mrb[0].mxu0
  %v8825 = vadd.f32 %v8754, %v8824
  %v8826 = vpop.f32.mrb[0].mxu0
  %v8827 = vadd.f32 %v8756, %v8826
  %v8828 = vpop.f32.mrb[0].mxu0
  %v8829 = vpop.f32.mrb[0].mxu0
  %8830 = vdwg.mxu0
  %8831 = vmatprep.subr.bf16.mxu0 %v3323
  %8832 = vmatpush1.bf16.msra.mxu0 %v3322
  %8833 = vmatprep.subr.bf16.mxu0 %v3331
  %8834 = vmatpush1.bf16.msra.mxu0 %v3330
  %8835 = vmatprep.subr.bf16.mxu0 %v3339
  %8836 = vmatpush1.bf16.msra.mxu0 %v3338
  %8837 = vmatprep.subr.bf16.mxu0 %v3347
  %8838 = vmatpush1.bf16.msra.mxu0 %v3346
  %8839 = vmatprep.subr.bf16.mxu0 %v3355
  %8840 = vmatpush1.bf16.msra.mxu0 %v3354
  %8841 = vmatprep.subr.bf16.mxu0 %v3363
  %8842 = vmatpush1.bf16.msra.mxu0 %v3362
  %8843 = vmatprep.subr.bf16.mxu0 %v3371
  %8844 = vmatpush1.bf16.msra.mxu0 %v3370
  %8845 = vmatprep.subr.bf16.mxu0 %v3379
  %8846 = vmatpush1.bf16.msra.mxu0 %v3378
  %8847 = vmatprep.subr.bf16.mxu0 %v3387
  %8848 = vmatpush1.bf16.msra.mxu0 %v3386
  %8849 = vmatprep.subr.bf16.mxu0 %v3395
  %8850 = vmatpush1.bf16.msra.mxu0 %v3394
  %8851 = vmatprep.subr.bf16.mxu0 %v3403
  %8852 = vmatpush1.bf16.msra.mxu0 %v3402
  %8853 = vmatprep.subr.bf16.mxu0 %v3411
  %8854 = vmatpush1.bf16.msra.mxu0 %v3410
  %8855 = vmatprep.subr.bf16.mxu0 %v3419
  %8856 = vmatpush1.bf16.msra.mxu0 %v3418
  %8857 = vmatprep.subr.bf16.mxu0 %v3427
  %8858 = vmatpush1.bf16.msra.mxu0 %v3426
  %8859 = vmatprep.subr.bf16.mxu0 %v3435
  %8860 = vmatpush1.bf16.msra.mxu0 %v3434
  %8861 = vmatprep.subr.bf16.mxu0 %v3443
  %8862 = vmatpush1.bf16.msra.mxu0 %v3442
  %8863 = vmatprep.mubr.bf16.mxu0 %v2007
  %8864 = vmatmul.mubr.bf16.gmra.mrb[0].mxu0 %v2006
  %v8865 = vpop.f32.mrb[0].mxu0
  %v8866 = vadd.f32 0.0, %v8865
  %v8867 = vpop.f32.mrb[0].mxu0
  %v8868 = vadd.f32 0.0, %v8867
  %v8869 = vpop.f32.mrb[0].mxu0
  %v8870 = vadd.f32 0.0, %v8869
  %v8871 = vpop.f32.mrb[0].mxu0
  %v8872 = vadd.f32 0.0, %v8871
  %8873 = vmatprep.mubr.bf16.mxu0 %v2011
  %8874 = vmatmul.mubr.bf16.gmra.mrb[0].mxu0 %v2010
  %v8875 = vpop.f32.mrb[0].mxu0
  %v8876 = vadd.f32 0.0, %v8875
  %v8877 = vpop.f32.mrb[0].mxu0
  %v8878 = vadd.f32 0.0, %v8877
  %v8879 = vpop.f32.mrb[0].mxu0
  %v8880 = vadd.f32 0.0, %v8879
  %v8881 = vpop.f32.mrb[0].mxu0
  %v8882 = vadd.f32 0.0, %v8881
  %8883 = vmatprep.mubr.bf16.mxu0 %v2015
  %8884 = vmatmul.mubr.bf16.gmra.mrb[0].mxu0 %v2014
  %v8885 = vpop.f32.mrb[0].mxu0
  %v8886 = vadd.f32 0.0, %v8885
  %v8887 = vpop.f32.mrb[0].mxu0
  %v8888 = vadd.f32 0.0, %v8887
  %v8889 = vpop.f32.mrb[0].mxu0
  %v8890 = vadd.f32 0.0, %v8889
  %v8891 = vpop.f32.mrb[0].mxu0
  %v8892 = vadd.f32 0.0, %v8891
  %8893 = vmatprep.mubr.bf16.mxu0 %v2019
  %8894 = vmatmul.mubr.bf16.gmra.mrb[0].mxu0 %v2018
  %v8895 = vpop.f32.mrb[0].mxu0
  %v8896 = vadd.f32 0.0, %v8895
  %v8897 = vpop.f32.mrb[0].mxu0
  %v8898 = vadd.f32 0.0, %v8897
  %v8899 = vpop.f32.mrb[0].mxu0
  %v8900 = vpop.f32.mrb[0].mxu0
  %8901 = vdwg.mxu0
  %8902 = vmatprep.subr.bf16.mxu0 %v3451
  %8903 = vmatpush1.bf16.msra.mxu0 %v3450
  %8904 = vmatprep.subr.bf16.mxu0 %v3459
  %8905 = vmatpush1.bf16.msra.mxu0 %v3458
  %8906 = vmatprep.subr.bf16.mxu0 %v3467
  %8907 = vmatpush1.bf16.msra.mxu0 %v3466
  %8908 = vmatprep.subr.bf16.mxu0 %v3475
  %8909 = vmatpush1.bf16.msra.mxu0 %v3474
  %8910 = vmatprep.subr.bf16.mxu0 %v3483
  %8911 = vmatpush1.bf16.msra.mxu0 %v3482
  %8912 = vmatprep.subr.bf16.mxu0 %v3491
  %8913 = vmatpush1.bf16.msra.mxu0 %v3490
  %8914 = vmatprep.subr.bf16.mxu0 %v3499
  %8915 = vmatpush1.bf16.msra.mxu0 %v3498
  %8916 = vmatprep.subr.bf16.mxu0 %v3507
  %8917 = vmatpush1.bf16.msra.mxu0 %v3506
  %8918 = vmatprep.subr.bf16.mxu0 %v3515
  %8919 = vmatpush1.bf16.msra.mxu0 %v3514
  %8920 = vmatprep.subr.bf16.mxu0 %v3523
  %8921 = vmatpush1.bf16.msra.mxu0 %v3522
  %8922 = vmatprep.subr.bf16.mxu0 %v3531
  %8923 = vmatpush1.bf16.msra.mxu0 %v3530
  %8924 = vmatprep.subr.bf16.mxu0 %v3539
  %8925 = vmatpush1.bf16.msra.mxu0 %v3538
  %8926 = vmatprep.subr.bf16.mxu0 %v3547
  %8927 = vmatpush1.bf16.msra.mxu0 %v3546
  %8928 = vmatprep.subr.bf16.mxu0 %v3555
  %8929 = vmatpush1.bf16.msra.mxu0 %v3554
  %8930 = vmatprep.subr.bf16.mxu0 %v3563
  %8931 = vmatpush1.bf16.msra.mxu0 %v3562
  %8932 = vmatprep.subr.bf16.mxu0 %v3571
  %8933 = vmatpush1.bf16.msra.mxu0 %v3570
  %8934 = vmatprep.mubr.bf16.mxu0 %v2009
  %8935 = vmatmul.mubr.bf16.gmra.mrb[0].mxu0 %v2008
  %v8936 = vpop.f32.mrb[0].mxu0
  %v8937 = vadd.f32 %v8866, %v8936
  %v8938 = vpop.f32.mrb[0].mxu0
  %v8939 = vadd.f32 %v8868, %v8938
  %v8940 = vpop.f32.mrb[0].mxu0
  %v8941 = vadd.f32 %v8870, %v8940
  %v8942 = vpop.f32.mrb[0].mxu0
  %v8943 = vadd.f32 %v8872, %v8942
  %8944 = vmatprep.mubr.bf16.mxu0 %v2013
  %8945 = vmatmul.mubr.bf16.gmra.mrb[0].mxu0 %v2012
  %v8946 = vpop.f32.mrb[0].mxu0
  %v8947 = vadd.f32 %v8876, %v8946
  %v8948 = vpop.f32.mrb[0].mxu0
  %v8949 = vadd.f32 %v8878, %v8948
  %v8950 = vpop.f32.mrb[0].mxu0
  %v8951 = vadd.f32 %v8880, %v8950
  %v8952 = vpop.f32.mrb[0].mxu0
  %v8953 = vadd.f32 %v8882, %v8952
  %8954 = vmatprep.mubr.bf16.mxu0 %v2017
  %8955 = vmatmul.mubr.bf16.gmra.mrb[0].mxu0 %v2016
  %v8956 = vpop.f32.mrb[0].mxu0
  %v8957 = vadd.f32 %v8886, %v8956
  %v8958 = vpop.f32.mrb[0].mxu0
  %v8959 = vadd.f32 %v8888, %v8958
  %v8960 = vpop.f32.mrb[0].mxu0
  %v8961 = vadd.f32 %v8890, %v8960
  %v8962 = vpop.f32.mrb[0].mxu0
  %v8963 = vadd.f32 %v8892, %v8962
  %8964 = vmatprep.mubr.bf16.mxu0 %v2021
  %8965 = vmatmul.mubr.bf16.gmra.mrb[0].mxu0 %v2020
  %v8966 = vpop.f32.mrb[0].mxu0
  %v8967 = vadd.f32 %v8896, %v8966
  %v8968 = vpop.f32.mrb[0].mxu0
  %v8969 = vadd.f32 %v8898, %v8968
  %v8970 = vpop.f32.mrb[0].mxu0
  %v8971 = vpop.f32.mrb[0].mxu0
  %8972 = vdwg.mxu0
  %8973 = vmatprep.subr.bf16.mxu0 %v5165
  %8974 = vmatpush1.bf16.msra.mxu0 %v5164
  %8975 = vmatprep.subr.bf16.mxu0 %v5173
  %8976 = vmatpush1.bf16.msra.mxu0 %v5172
  %8977 = vmatprep.subr.bf16.mxu0 %v5181
  %8978 = vmatpush1.bf16.msra.mxu0 %v5180
  %8979 = vmatprep.subr.bf16.mxu0 %v5189
  %8980 = vmatpush1.bf16.msra.mxu0 %v5188
  %8981 = vmatprep.subr.bf16.mxu0 %v5197
  %8982 = vmatpush1.bf16.msra.mxu0 %v5196
  %8983 = vmatprep.subr.bf16.mxu0 %v5205
  %8984 = vmatpush1.bf16.msra.mxu0 %v5204
  %8985 = vmatprep.subr.bf16.mxu0 %v5213
  %8986 = vmatpush1.bf16.msra.mxu0 %v5212
  %8987 = vmatprep.subr.bf16.mxu0 %v5221
  %8988 = vmatpush1.bf16.msra.mxu0 %v5220
  %8989 = vmatprep.subr.bf16.mxu0 %v5229
  %8990 = vmatpush1.bf16.msra.mxu0 %v5228
  %8991 = vmatprep.subr.bf16.mxu0 %v5237
  %8992 = vmatpush1.bf16.msra.mxu0 %v5236
  %8993 = vmatprep.subr.bf16.mxu0 %v5245
  %8994 = vmatpush1.bf16.msra.mxu0 %v5244
  %8995 = vmatprep.subr.bf16.mxu0 %v5253
  %8996 = vmatpush1.bf16.msra.mxu0 %v5252
  %8997 = vmatprep.subr.bf16.mxu0 %v5261
  %8998 = vmatpush1.bf16.msra.mxu0 %v5260
  %8999 = vmatprep.subr.bf16.mxu0 %v5269
  %9000 = vmatpush1.bf16.msra.mxu0 %v5268
  %9001 = vmatprep.subr.bf16.mxu0 %v5277
  %9002 = vmatpush1.bf16.msra.mxu0 %v5276
  %9003 = vmatprep.subr.bf16.mxu0 %v5285
  %9004 = vmatpush1.bf16.msra.mxu0 %v5284
  %9005 = vmatprep.mubr.bf16.mxu0 %v1991
  %9006 = vmatmul.mubr.bf16.gmra.mrb[0].mxu0 %v1990
  %v9007 = vpop.f32.mrb[0].mxu0
  %v9008 = vadd.f32 %v8511, %v9007
  %v9009 = vpop.f32.mrb[0].mxu0
  %v9010 = vadd.f32 %v8513, %v9009
  %v9011 = vpop.f32.mrb[0].mxu0
  %v9012 = vadd.f32 %v8515, %v9011
  %v9013 = vpop.f32.mrb[0].mxu0
  %v9014 = vadd.f32 %v8517, %v9013
  %9015 = vmatprep.mubr.bf16.mxu0 %v1995
  %9016 = vmatmul.mubr.bf16.gmra.mrb[0].mxu0 %v1994
  %v9017 = vpop.f32.mrb[0].mxu0
  %v9018 = vadd.f32 %v8521, %v9017
  %v9019 = vpop.f32.mrb[0].mxu0
  %v9020 = vadd.f32 %v8523, %v9019
  %v9021 = vpop.f32.mrb[0].mxu0
  %v9022 = vadd.f32 %v8525, %v9021
  %v9023 = vpop.f32.mrb[0].mxu0
  %v9024 = vadd.f32 %v8527, %v9023
  %9025 = vmatprep.mubr.bf16.mxu0 %v1999
  %9026 = vmatmul.mubr.bf16.gmra.mrb[0].mxu0 %v1998
  %v9027 = vpop.f32.mrb[0].mxu0
  %v9028 = vadd.f32 %v8531, %v9027
  %v9029 = vpop.f32.mrb[0].mxu0
  %v9030 = vadd.f32 %v8533, %v9029
  %v9031 = vpop.f32.mrb[0].mxu0
  %v9032 = vadd.f32 %v8535, %v9031
  %v9033 = vpop.f32.mrb[0].mxu0
  %v9034 = vadd.f32 %v8537, %v9033
  %9035 = vmatprep.mubr.bf16.mxu0 %v2003
  %9036 = vmatmul.mubr.bf16.gmra.mrb[0].mxu0 %v2002
  %v9037 = vpop.f32.mrb[0].mxu0
  %v9038 = vadd.f32 %v8541, %v9037
  %v9039 = vpop.f32.mrb[0].mxu0
  %v9040 = vadd.f32 %v8543, %v9039
  %v9041 = vpop.f32.mrb[0].mxu0
  %v9042 = vpop.f32.mrb[0].mxu0
  %9043 = vdwg.mxu0
  %9044 = vmatprep.subr.bf16.mxu0 %v5293
  %9045 = vmatpush1.bf16.msra.mxu0 %v5292
  %9046 = vmatprep.subr.bf16.mxu0 %v5301
  %9047 = vmatpush1.bf16.msra.mxu0 %v5300
  %9048 = vmatprep.subr.bf16.mxu0 %v5309
  %9049 = vmatpush1.bf16.msra.mxu0 %v5308
  %9050 = vmatprep.subr.bf16.mxu0 %v5317
  %9051 = vmatpush1.bf16.msra.mxu0 %v5316
  %9052 = vmatprep.subr.bf16.mxu0 %v5325
  %9053 = vmatpush1.bf16.msra.mxu0 %v5324
  %9054 = vmatprep.subr.bf16.mxu0 %v5333
  %9055 = vmatpush1.bf16.msra.mxu0 %v5332
  %9056 = vmatprep.subr.bf16.mxu0 %v5341
  %9057 = vmatpush1.bf16.msra.mxu0 %v5340
  %9058 = vmatprep.subr.bf16.mxu0 %v5349
  %9059 = vmatpush1.bf16.msra.mxu0 %v5348
  %9060 = vmatprep.subr.bf16.mxu0 %v5357
  %9061 = vmatpush1.bf16.msra.mxu0 %v5356
  %9062 = vmatprep.subr.bf16.mxu0 %v5365
  %9063 = vmatpush1.bf16.msra.mxu0 %v5364
  %9064 = vmatprep.subr.bf16.mxu0 %v5373
  %9065 = vmatpush1.bf16.msra.mxu0 %v5372
  %9066 = vmatprep.subr.bf16.mxu0 %v5381
  %9067 = vmatpush1.bf16.msra.mxu0 %v5380
  %9068 = vmatprep.subr.bf16.mxu0 %v5389
  %9069 = vmatpush1.bf16.msra.mxu0 %v5388
  %9070 = vmatprep.subr.bf16.mxu0 %v5397
  %9071 = vmatpush1.bf16.msra.mxu0 %v5396
  %9072 = vmatprep.subr.bf16.mxu0 %v5405
  %9073 = vmatpush1.bf16.msra.mxu0 %v5404
  %9074 = vmatprep.subr.bf16.mxu0 %v5413
  %9075 = vmatpush1.bf16.msra.mxu0 %v5412
  %9076 = vmatprep.mubr.bf16.mxu0 %v1993
  %9077 = vmatmul.mubr.bf16.gmra.mrb[0].mxu0 %v1992
  %v9078 = vpop.f32.mrb[0].mxu0
  %v9079 = vadd.f32 %v9008, %v9078
  %v9080 = vpop.f32.mrb[0].mxu0
  %v9081 = vadd.f32 %v9010, %v9080
  %v9082 = vpop.f32.mrb[0].mxu0
  %v9083 = vadd.f32 %v9012, %v9082
  %v9084 = vpop.f32.mrb[0].mxu0
  %v9085 = vadd.f32 %v9014, %v9084
  %9086 = vmatprep.mubr.bf16.mxu0 %v1997
  %9087 = vmatmul.mubr.bf16.gmra.mrb[0].mxu0 %v1996
  %v9088 = vpop.f32.mrb[0].mxu0
  %v9089 = vadd.f32 %v9018, %v9088
  %v9090 = vpop.f32.mrb[0].mxu0
  %v9091 = vadd.f32 %v9020, %v9090
  %v9092 = vpop.f32.mrb[0].mxu0
  %v9093 = vadd.f32 %v9022, %v9092
  %v9094 = vpop.f32.mrb[0].mxu0
  %v9095 = vadd.f32 %v9024, %v9094
  %9096 = vmatprep.mubr.bf16.mxu0 %v2001
  %9097 = vmatmul.mubr.bf16.gmra.mrb[0].mxu0 %v2000
  %v9098 = vpop.f32.mrb[0].mxu0
  %v9099 = vadd.f32 %v9028, %v9098
  %v9100 = vpop.f32.mrb[0].mxu0
  %v9101 = vadd.f32 %v9030, %v9100
  %v9102 = vpop.f32.mrb[0].mxu0
  %v9103 = vadd.f32 %v9032, %v9102
  %v9104 = vpop.f32.mrb[0].mxu0
  %v9105 = vadd.f32 %v9034, %v9104
  %9106 = vmatprep.mubr.bf16.mxu0 %v2005
  %9107 = vmatmul.mubr.bf16.gmra.mrb[0].mxu0 %v2004
  %v9108 = vpop.f32.mrb[0].mxu0
  %v9109 = vadd.f32 %v9038, %v9108
  %v9110 = vpop.f32.mrb[0].mxu0
  %v9111 = vadd.f32 %v9040, %v9110
  %v9112 = vpop.f32.mrb[0].mxu0
  %v9113 = vpop.f32.mrb[0].mxu0
  %9114 = vdwg.mxu0
  %9115 = vmatprep.subr.bf16.mxu0 %v5167
  %9116 = vmatpush1.bf16.msra.mxu0 %v5166
  %9117 = vmatprep.subr.bf16.mxu0 %v5175
  %9118 = vmatpush1.bf16.msra.mxu0 %v5174
  %9119 = vmatprep.subr.bf16.mxu0 %v5183
  %9120 = vmatpush1.bf16.msra.mxu0 %v5182
  %9121 = vmatprep.subr.bf16.mxu0 %v5191
  %9122 = vmatpush1.bf16.msra.mxu0 %v5190
  %9123 = vmatprep.subr.bf16.mxu0 %v5199
  %9124 = vmatpush1.bf16.msra.mxu0 %v5198
  %9125 = vmatprep.subr.bf16.mxu0 %v5207
  %9126 = vmatpush1.bf16.msra.mxu0 %v5206
  %9127 = vmatprep.subr.bf16.mxu0 %v5215
  %9128 = vmatpush1.bf16.msra.mxu0 %v5214
  %9129 = vmatprep.subr.bf16.mxu0 %v5223
  %9130 = vmatpush1.bf16.msra.mxu0 %v5222
  %9131 = vmatprep.subr.bf16.mxu0 %v5231
  %9132 = vmatpush1.bf16.msra.mxu0 %v5230
  %9133 = vmatprep.subr.bf16.mxu0 %v5239
  %9134 = vmatpush1.bf16.msra.mxu0 %v5238
  %9135 = vmatprep.subr.bf16.mxu0 %v5247
  %9136 = vmatpush1.bf16.msra.mxu0 %v5246
  %9137 = vmatprep.subr.bf16.mxu0 %v5255
  %9138 = vmatpush1.bf16.msra.mxu0 %v5254
  %9139 = vmatprep.subr.bf16.mxu0 %v5263
  %9140 = vmatpush1.bf16.msra.mxu0 %v5262
  %9141 = vmatprep.subr.bf16.mxu0 %v5271
  %9142 = vmatpush1.bf16.msra.mxu0 %v5270
  %9143 = vmatprep.subr.bf16.mxu0 %v5279
  %9144 = vmatpush1.bf16.msra.mxu0 %v5278
  %9145 = vmatprep.subr.bf16.mxu0 %v5287
  %9146 = vmatpush1.bf16.msra.mxu0 %v5286
  %9147 = vmatprep.mubr.bf16.mxu0 %v1991
  %9148 = vmatmul.mubr.bf16.gmra.mrb[0].mxu0 %v1990
  %v9149 = vpop.f32.mrb[0].mxu0
  %v9150 = vadd.f32 %v8653, %v9149
  %v9151 = vpop.f32.mrb[0].mxu0
  %v9152 = vadd.f32 %v8655, %v9151
  %v9153 = vpop.f32.mrb[0].mxu0
  %v9154 = vadd.f32 %v8657, %v9153
  %v9155 = vpop.f32.mrb[0].mxu0
  %v9156 = vadd.f32 %v8659, %v9155
  %9157 = vmatprep.mubr.bf16.mxu0 %v1995
  %9158 = vmatmul.mubr.bf16.gmra.mrb[0].mxu0 %v1994
  %v9159 = vpop.f32.mrb[0].mxu0
  %v9160 = vadd.f32 %v8663, %v9159
  %v9161 = vpop.f32.mrb[0].mxu0
  %v9162 = vadd.f32 %v8665, %v9161
  %v9163 = vpop.f32.mrb[0].mxu0
  %v9164 = vadd.f32 %v8667, %v9163
  %v9165 = vpop.f32.mrb[0].mxu0
  %v9166 = vadd.f32 %v8669, %v9165
  %9167 = vmatprep.mubr.bf16.mxu0 %v1999
  %9168 = vmatmul.mubr.bf16.gmra.mrb[0].mxu0 %v1998
  %v9169 = vpop.f32.mrb[0].mxu0
  %v9170 = vadd.f32 %v8673, %v9169
  %v9171 = vpop.f32.mrb[0].mxu0
  %v9172 = vadd.f32 %v8675, %v9171
  %v9173 = vpop.f32.mrb[0].mxu0
  %v9174 = vadd.f32 %v8677, %v9173
  %v9175 = vpop.f32.mrb[0].mxu0
  %v9176 = vadd.f32 %v8679, %v9175
  %9177 = vmatprep.mubr.bf16.mxu0 %v2003
  %9178 = vmatmul.mubr.bf16.gmra.mrb[0].mxu0 %v2002
  %v9179 = vpop.f32.mrb[0].mxu0
  %v9180 = vadd.f32 %v8683, %v9179
  %v9181 = vpop.f32.mrb[0].mxu0
  %v9182 = vadd.f32 %v8685, %v9181
  %v9183 = vpop.f32.mrb[0].mxu0
  %v9184 = vpop.f32.mrb[0].mxu0
  %9185 = vdwg.mxu0
  %9186 = vmatprep.subr.bf16.mxu0 %v5295
  %9187 = vmatpush1.bf16.msra.mxu0 %v5294
  %9188 = vmatprep.subr.bf16.mxu0 %v5303
  %9189 = vmatpush1.bf16.msra.mxu0 %v5302
  %9190 = vmatprep.subr.bf16.mxu0 %v5311
  %9191 = vmatpush1.bf16.msra.mxu0 %v5310
  %9192 = vmatprep.subr.bf16.mxu0 %v5319
  %9193 = vmatpush1.bf16.msra.mxu0 %v5318
  %9194 = vmatprep.subr.bf16.mxu0 %v5327
  %9195 = vmatpush1.bf16.msra.mxu0 %v5326
  %9196 = vmatprep.subr.bf16.mxu0 %v5335
  %9197 = vmatpush1.bf16.msra.mxu0 %v5334
  %9198 = vmatprep.subr.bf16.mxu0 %v5343
  %9199 = vmatpush1.bf16.msra.mxu0 %v5342
  %9200 = vmatprep.subr.bf16.mxu0 %v5351
  %9201 = vmatpush1.bf16.msra.mxu0 %v5350
  %9202 = vmatprep.subr.bf16.mxu0 %v5359
  %9203 = vmatpush1.bf16.msra.mxu0 %v5358
  %9204 = vmatprep.subr.bf16.mxu0 %v5367
  %9205 = vmatpush1.bf16.msra.mxu0 %v5366
  %9206 = vmatprep.subr.bf16.mxu0 %v5375
  %9207 = vmatpush1.bf16.msra.mxu0 %v5374
  %9208 = vmatprep.subr.bf16.mxu0 %v5383
  %9209 = vmatpush1.bf16.msra.mxu0 %v5382
  %9210 = vmatprep.subr.bf16.mxu0 %v5391
  %9211 = vmatpush1.bf16.msra.mxu0 %v5390
  %9212 = vmatprep.subr.bf16.mxu0 %v5399
  %9213 = vmatpush1.bf16.msra.mxu0 %v5398
  %9214 = vmatprep.subr.bf16.mxu0 %v5407
  %9215 = vmatpush1.bf16.msra.mxu0 %v5406
  %9216 = vmatprep.subr.bf16.mxu0 %v5415
  %9217 = vmatpush1.bf16.msra.mxu0 %v5414
  %9218 = vmatprep.mubr.bf16.mxu0 %v1993
  %9219 = vmatmul.mubr.bf16.gmra.mrb[0].mxu0 %v1992
  %v9220 = vpop.f32.mrb[0].mxu0
  %v9221 = vadd.f32 %v9150, %v9220
  %v9222 = vpop.f32.mrb[0].mxu0
  %v9223 = vadd.f32 %v9152, %v9222
  %v9224 = vpop.f32.mrb[0].mxu0
  %v9225 = vadd.f32 %v9154, %v9224
  %v9226 = vpop.f32.mrb[0].mxu0
  %v9227 = vadd.f32 %v9156, %v9226
  %9228 = vmatprep.mubr.bf16.mxu0 %v1997
  %9229 = vmatmul.mubr.bf16.gmra.mrb[0].mxu0 %v1996
  %v9230 = vpop.f32.mrb[0].mxu0
  %v9231 = vadd.f32 %v9160, %v9230
  %v9232 = vpop.f32.mrb[0].mxu0
  %v9233 = vadd.f32 %v9162, %v9232
  %v9234 = vpop.f32.mrb[0].mxu0
  %v9235 = vadd.f32 %v9164, %v9234
  %v9236 = vpop.f32.mrb[0].mxu0
  %v9237 = vadd.f32 %v9166, %v9236
  %9238 = vmatprep.mubr.bf16.mxu0 %v2001
  %9239 = vmatmul.mubr.bf16.gmra.mrb[0].mxu0 %v2000
  %v9240 = vpop.f32.mrb[0].mxu0
  %v9241 = vadd.f32 %v9170, %v9240
  %v9242 = vpop.f32.mrb[0].mxu0
  %v9243 = vadd.f32 %v9172, %v9242
  %v9244 = vpop.f32.mrb[0].mxu0
  %v9245 = vadd.f32 %v9174, %v9244
  %v9246 = vpop.f32.mrb[0].mxu0
  %v9247 = vadd.f32 %v9176, %v9246
  %9248 = vmatprep.mubr.bf16.mxu0 %v2005
  %9249 = vmatmul.mubr.bf16.gmra.mrb[0].mxu0 %v2004
  %v9250 = vpop.f32.mrb[0].mxu0
  %v9251 = vadd.f32 %v9180, %v9250
  %v9252 = vpop.f32.mrb[0].mxu0
  %v9253 = vadd.f32 %v9182, %v9252
  %v9254 = vpop.f32.mrb[0].mxu0
  %v9255 = vpop.f32.mrb[0].mxu0
  %9256 = vdwg.mxu0
  %9257 = vmatprep.subr.bf16.mxu0 %v5169
  %9258 = vmatpush1.bf16.msra.mxu0 %v5168
  %9259 = vmatprep.subr.bf16.mxu0 %v5177
  %9260 = vmatpush1.bf16.msra.mxu0 %v5176
  %9261 = vmatprep.subr.bf16.mxu0 %v5185
  %9262 = vmatpush1.bf16.msra.mxu0 %v5184
  %9263 = vmatprep.subr.bf16.mxu0 %v5193
  %9264 = vmatpush1.bf16.msra.mxu0 %v5192
  %9265 = vmatprep.subr.bf16.mxu0 %v5201
  %9266 = vmatpush1.bf16.msra.mxu0 %v5200
  %9267 = vmatprep.subr.bf16.mxu0 %v5209
  %9268 = vmatpush1.bf16.msra.mxu0 %v5208
  %9269 = vmatprep.subr.bf16.mxu0 %v5217
  %9270 = vmatpush1.bf16.msra.mxu0 %v5216
  %9271 = vmatprep.subr.bf16.mxu0 %v5225
  %9272 = vmatpush1.bf16.msra.mxu0 %v5224
  %9273 = vmatprep.subr.bf16.mxu0 %v5233
  %9274 = vmatpush1.bf16.msra.mxu0 %v5232
  %9275 = vmatprep.subr.bf16.mxu0 %v5241
  %9276 = vmatpush1.bf16.msra.mxu0 %v5240
  %9277 = vmatprep.subr.bf16.mxu0 %v5249
  %9278 = vmatpush1.bf16.msra.mxu0 %v5248
  %9279 = vmatprep.subr.bf16.mxu0 %v5257
  %9280 = vmatpush1.bf16.msra.mxu0 %v5256
  %9281 = vmatprep.subr.bf16.mxu0 %v5265
  %9282 = vmatpush1.bf16.msra.mxu0 %v5264
  %9283 = vmatprep.subr.bf16.mxu0 %v5273
  %9284 = vmatpush1.bf16.msra.mxu0 %v5272
  %9285 = vmatprep.subr.bf16.mxu0 %v5281
  %9286 = vmatpush1.bf16.msra.mxu0 %v5280
  %9287 = vmatprep.subr.bf16.mxu0 %v5289
  %9288 = vmatpush1.bf16.msra.mxu0 %v5288
  %9289 = vmatprep.mubr.bf16.mxu0 %v1991
  %9290 = vmatmul.mubr.bf16.gmra.mrb[0].mxu0 %v1990
  %v9291 = vpop.f32.mrb[0].mxu0
  %v9292 = vadd.f32 %v8795, %v9291
  %v9293 = vpop.f32.mrb[0].mxu0
  %v9294 = vadd.f32 %v8797, %v9293
  %v9295 = vpop.f32.mrb[0].mxu0
  %v9296 = vadd.f32 %v8799, %v9295
  %v9297 = vpop.f32.mrb[0].mxu0
  %v9298 = vadd.f32 %v8801, %v9297
  %9299 = vmatprep.mubr.bf16.mxu0 %v1995
  %9300 = vmatmul.mubr.bf16.gmra.mrb[0].mxu0 %v1994
  %v9301 = vpop.f32.mrb[0].mxu0
  %v9302 = vadd.f32 %v8805, %v9301
  %v9303 = vpop.f32.mrb[0].mxu0
  %v9304 = vadd.f32 %v8807, %v9303
  %v9305 = vpop.f32.mrb[0].mxu0
  %v9306 = vadd.f32 %v8809, %v9305
  %v9307 = vpop.f32.mrb[0].mxu0
  %v9308 = vadd.f32 %v8811, %v9307
  %9309 = vmatprep.mubr.bf16.mxu0 %v1999
  %9310 = vmatmul.mubr.bf16.gmra.mrb[0].mxu0 %v1998
  %v9311 = vpop.f32.mrb[0].mxu0
  %v9312 = vadd.f32 %v8815, %v9311
  %v9313 = vpop.f32.mrb[0].mxu0
  %v9314 = vadd.f32 %v8817, %v9313
  %v9315 = vpop.f32.mrb[0].mxu0
  %v9316 = vadd.f32 %v8819, %v9315
  %v9317 = vpop.f32.mrb[0].mxu0
  %v9318 = vadd.f32 %v8821, %v9317
  %9319 = vmatprep.mubr.bf16.mxu0 %v2003
  %9320 = vmatmul.mubr.bf16.gmra.mrb[0].mxu0 %v2002
  %v9321 = vpop.f32.mrb[0].mxu0
  %v9322 = vadd.f32 %v8825, %v9321
  %v9323 = vpop.f32.mrb[0].mxu0
  %v9324 = vadd.f32 %v8827, %v9323
  %v9325 = vpop.f32.mrb[0].mxu0
  %v9326 = vpop.f32.mrb[0].mxu0
  %9327 = vdwg.mxu0
  %9328 = vmatprep.subr.bf16.mxu0 %v5297
  %9329 = vmatpush1.bf16.msra.mxu0 %v5296
  %9330 = vmatprep.subr.bf16.mxu0 %v5305
  %9331 = vmatpush1.bf16.msra.mxu0 %v5304
  %9332 = vmatprep.subr.bf16.mxu0 %v5313
  %9333 = vmatpush1.bf16.msra.mxu0 %v5312
  %9334 = vmatprep.subr.bf16.mxu0 %v5321
  %9335 = vmatpush1.bf16.msra.mxu0 %v5320
  %9336 = vmatprep.subr.bf16.mxu0 %v5329
  %9337 = vmatpush1.bf16.msra.mxu0 %v5328
  %9338 = vmatprep.subr.bf16.mxu0 %v5337
  %9339 = vmatpush1.bf16.msra.mxu0 %v5336
  %9340 = vmatprep.subr.bf16.mxu0 %v5345
  %9341 = vmatpush1.bf16.msra.mxu0 %v5344
  %9342 = vmatprep.subr.bf16.mxu0 %v5353
  %9343 = vmatpush1.bf16.msra.mxu0 %v5352
  %9344 = vmatprep.subr.bf16.mxu0 %v5361
  %9345 = vmatpush1.bf16.msra.mxu0 %v5360
  %9346 = vmatprep.subr.bf16.mxu0 %v5369
  %9347 = vmatpush1.bf16.msra.mxu0 %v5368
  %9348 = vmatprep.subr.bf16.mxu0 %v5377
  %9349 = vmatpush1.bf16.msra.mxu0 %v5376
  %9350 = vmatprep.subr.bf16.mxu0 %v5385
  %9351 = vmatpush1.bf16.msra.mxu0 %v5384
  %9352 = vmatprep.subr.bf16.mxu0 %v5393
  %9353 = vmatpush1.bf16.msra.mxu0 %v5392
  %9354 = vmatprep.subr.bf16.mxu0 %v5401
  %9355 = vmatpush1.bf16.msra.mxu0 %v5400
  %9356 = vmatprep.subr.bf16.mxu0 %v5409
  %9357 = vmatpush1.bf16.msra.mxu0 %v5408
  %9358 = vmatprep.subr.bf16.mxu0 %v5417
  %9359 = vmatpush1.bf16.msra.mxu0 %v5416
  %9360 = vmatprep.mubr.bf16.mxu0 %v1993
  %9361 = vmatmul.mubr.bf16.gmra.mrb[0].mxu0 %v1992
  %v9362 = vpop.f32.mrb[0].mxu0
  %v9363 = vadd.f32 %v9292, %v9362
  %v9364 = vpop.f32.mrb[0].mxu0
  %v9365 = vadd.f32 %v9294, %v9364
  %v9366 = vpop.f32.mrb[0].mxu0
  %v9367 = vadd.f32 %v9296, %v9366
  %v9368 = vpop.f32.mrb[0].mxu0
  %v9369 = vadd.f32 %v9298, %v9368
  %9370 = vmatprep.mubr.bf16.mxu0 %v1997
  %9371 = vmatmul.mubr.bf16.gmra.mrb[0].mxu0 %v1996
  %v9372 = vpop.f32.mrb[0].mxu0
  %v9373 = vadd.f32 %v9302, %v9372
  %v9374 = vpop.f32.mrb[0].mxu0
  %v9375 = vadd.f32 %v9304, %v9374
  %v9376 = vpop.f32.mrb[0].mxu0
  %v9377 = vadd.f32 %v9306, %v9376
  %v9378 = vpop.f32.mrb[0].mxu0
  %v9379 = vadd.f32 %v9308, %v9378
  %9380 = vmatprep.mubr.bf16.mxu0 %v2001
  %9381 = vmatmul.mubr.bf16.gmra.mrb[0].mxu0 %v2000
  %v9382 = vpop.f32.mrb[0].mxu0
  %v9383 = vadd.f32 %v9312, %v9382
  %v9384 = vpop.f32.mrb[0].mxu0
  %v9385 = vadd.f32 %v9314, %v9384
  %v9386 = vpop.f32.mrb[0].mxu0
  %v9387 = vadd.f32 %v9316, %v9386
  %v9388 = vpop.f32.mrb[0].mxu0
  %v9389 = vadd.f32 %v9318, %v9388
  %9390 = vmatprep.mubr.bf16.mxu0 %v2005
  %9391 = vmatmul.mubr.bf16.gmra.mrb[0].mxu0 %v2004
  %v9392 = vpop.f32.mrb[0].mxu0
  %v9393 = vadd.f32 %v9322, %v9392
  %v9394 = vpop.f32.mrb[0].mxu0
  %v9395 = vadd.f32 %v9324, %v9394
  %v9396 = vpop.f32.mrb[0].mxu0
  %v9397 = vpop.f32.mrb[0].mxu0
  %9398 = vdwg.mxu0
  %9399 = vmatprep.subr.bf16.mxu0 %v5171
  %9400 = vmatpush1.bf16.msra.mxu0 %v5170
  %9401 = vmatprep.subr.bf16.mxu0 %v5179
  %9402 = vmatpush1.bf16.msra.mxu0 %v5178
  %9403 = vmatprep.subr.bf16.mxu0 %v5187
  %9404 = vmatpush1.bf16.msra.mxu0 %v5186
  %9405 = vmatprep.subr.bf16.mxu0 %v5195
  %9406 = vmatpush1.bf16.msra.mxu0 %v5194
  %9407 = vmatprep.subr.bf16.mxu0 %v5203
  %9408 = vmatpush1.bf16.msra.mxu0 %v5202
  %9409 = vmatprep.subr.bf16.mxu0 %v5211
  %9410 = vmatpush1.bf16.msra.mxu0 %v5210
  %9411 = vmatprep.subr.bf16.mxu0 %v5219
  %9412 = vmatpush1.bf16.msra.mxu0 %v5218
  %9413 = vmatprep.subr.bf16.mxu0 %v5227
  %9414 = vmatpush1.bf16.msra.mxu0 %v5226
  %9415 = vmatprep.subr.bf16.mxu0 %v5235
  %9416 = vmatpush1.bf16.msra.mxu0 %v5234
  %9417 = vmatprep.subr.bf16.mxu0 %v5243
  %9418 = vmatpush1.bf16.msra.mxu0 %v5242
  %9419 = vmatprep.subr.bf16.mxu0 %v5251
  %9420 = vmatpush1.bf16.msra.mxu0 %v5250
  %9421 = vmatprep.subr.bf16.mxu0 %v5259
  %9422 = vmatpush1.bf16.msra.mxu0 %v5258
  %9423 = vmatprep.subr.bf16.mxu0 %v5267
  %9424 = vmatpush1.bf16.msra.mxu0 %v5266
  %9425 = vmatprep.subr.bf16.mxu0 %v5275
  %9426 = vmatpush1.bf16.msra.mxu0 %v5274
  %9427 = vmatprep.subr.bf16.mxu0 %v5283
  %9428 = vmatpush1.bf16.msra.mxu0 %v5282
  %9429 = vmatprep.subr.bf16.mxu0 %v5291
  %9430 = vmatpush1.bf16.msra.mxu0 %v5290
  %9431 = vmatprep.mubr.bf16.mxu0 %v1991
  %9432 = vmatmul.mubr.bf16.gmra.mrb[0].mxu0 %v1990
  %v9433 = vpop.f32.mrb[0].mxu0
  %v9434 = vadd.f32 %v8937, %v9433
  %v9435 = vpop.f32.mrb[0].mxu0
  %v9436 = vadd.f32 %v8939, %v9435
  %v9437 = vpop.f32.mrb[0].mxu0
  %v9438 = vadd.f32 %v8941, %v9437
  %v9439 = vpop.f32.mrb[0].mxu0
  %v9440 = vadd.f32 %v8943, %v9439
  %9441 = vmatprep.mubr.bf16.mxu0 %v1995
  %9442 = vmatmul.mubr.bf16.gmra.mrb[0].mxu0 %v1994
  %v9443 = vpop.f32.mrb[0].mxu0
  %v9444 = vadd.f32 %v8947, %v9443
  %v9445 = vpop.f32.mrb[0].mxu0
  %v9446 = vadd.f32 %v8949, %v9445
  %v9447 = vpop.f32.mrb[0].mxu0
  %v9448 = vadd.f32 %v8951, %v9447
  %v9449 = vpop.f32.mrb[0].mxu0
  %v9450 = vadd.f32 %v8953, %v9449
  %9451 = vmatprep.mubr.bf16.mxu0 %v1999
  %9452 = vmatmul.mubr.bf16.gmra.mrb[0].mxu0 %v1998
  %v9453 = vpop.f32.mrb[0].mxu0
  %v9454 = vadd.f32 %v8957, %v9453
  %v9455 = vpop.f32.mrb[0].mxu0
  %v9456 = vadd.f32 %v8959, %v9455
  %v9457 = vpop.f32.mrb[0].mxu0
  %v9458 = vadd.f32 %v8961, %v9457
  %v9459 = vpop.f32.mrb[0].mxu0
  %v9460 = vadd.f32 %v8963, %v9459
  %9461 = vmatprep.mubr.bf16.mxu0 %v2003
  %9462 = vmatmul.mubr.bf16.gmra.mrb[0].mxu0 %v2002
  %v9463 = vpop.f32.mrb[0].mxu0
  %v9464 = vadd.f32 %v8967, %v9463
  %v9465 = vpop.f32.mrb[0].mxu0
  %v9466 = vadd.f32 %v8969, %v9465
  %v9467 = vpop.f32.mrb[0].mxu0
  %v9468 = vpop.f32.mrb[0].mxu0
  %9469 = vdwg.mxu0
  %9470 = vmatprep.subr.bf16.mxu0 %v5299
  %9471 = vmatpush1.bf16.msra.mxu0 %v5298
  %9472 = vmatprep.subr.bf16.mxu0 %v5307
  %9473 = vmatpush1.bf16.msra.mxu0 %v5306
  %9474 = vmatprep.subr.bf16.mxu0 %v5315
  %9475 = vmatpush1.bf16.msra.mxu0 %v5314
  %9476 = vmatprep.subr.bf16.mxu0 %v5323
  %9477 = vmatpush1.bf16.msra.mxu0 %v5322
  %9478 = vmatprep.subr.bf16.mxu0 %v5331
  %9479 = vmatpush1.bf16.msra.mxu0 %v5330
  %9480 = vmatprep.subr.bf16.mxu0 %v5339
  %9481 = vmatpush1.bf16.msra.mxu0 %v5338
  %9482 = vmatprep.subr.bf16.mxu0 %v5347
  %9483 = vmatpush1.bf16.msra.mxu0 %v5346
  %9484 = vmatprep.subr.bf16.mxu0 %v5355
  %9485 = vmatpush1.bf16.msra.mxu0 %v5354
  %9486 = vmatprep.subr.bf16.mxu0 %v5363
  %9487 = vmatpush1.bf16.msra.mxu0 %v5362
  %9488 = vmatprep.subr.bf16.mxu0 %v5371
  %9489 = vmatpush1.bf16.msra.mxu0 %v5370
  %9490 = vmatprep.subr.bf16.mxu0 %v5379
  %9491 = vmatpush1.bf16.msra.mxu0 %v5378
  %9492 = vmatprep.subr.bf16.mxu0 %v5387
  %9493 = vmatpush1.bf16.msra.mxu0 %v5386
  %9494 = vmatprep.subr.bf16.mxu0 %v5395
  %9495 = vmatpush1.bf16.msra.mxu0 %v5394
  %9496 = vmatprep.subr.bf16.mxu0 %v5403
  %9497 = vmatpush1.bf16.msra.mxu0 %v5402
  %9498 = vmatprep.subr.bf16.mxu0 %v5411
  %9499 = vmatpush1.bf16.msra.mxu0 %v5410
  %9500 = vmatprep.subr.bf16.mxu0 %v5419
  %9501 = vmatpush1.bf16.msra.mxu0 %v5418
  %9502 = vmatprep.mubr.bf16.mxu0 %v1993
  %9503 = vmatmul.mubr.bf16.gmra.mrb[0].mxu0 %v1992
  %v9504 = vpop.f32.mrb[0].mxu0
  %v9505 = vadd.f32 %v9434, %v9504
  %v9506 = vpop.f32.mrb[0].mxu0
  %v9507 = vadd.f32 %v9436, %v9506
  %v9508 = vpop.f32.mrb[0].mxu0
  %v9509 = vadd.f32 %v9438, %v9508
  %v9510 = vpop.f32.mrb[0].mxu0
  %v9511 = vadd.f32 %v9440, %v9510
  %9512 = vmatprep.mubr.bf16.mxu0 %v1997
  %9513 = vmatmul.mubr.bf16.gmra.mrb[0].mxu0 %v1996
  %v9514 = vpop.f32.mrb[0].mxu0
  %v9515 = vadd.f32 %v9444, %v9514
  %v9516 = vpop.f32.mrb[0].mxu0
  %v9517 = vadd.f32 %v9446, %v9516
  %v9518 = vpop.f32.mrb[0].mxu0
  %v9519 = vadd.f32 %v9448, %v9518
  %v9520 = vpop.f32.mrb[0].mxu0
  %v9521 = vadd.f32 %v9450, %v9520
  %9522 = vmatprep.mubr.bf16.mxu0 %v2001
  %9523 = vmatmul.mubr.bf16.gmra.mrb[0].mxu0 %v2000
  %v9524 = vpop.f32.mrb[0].mxu0
  %v9525 = vadd.f32 %v9454, %v9524
  %v9526 = vpop.f32.mrb[0].mxu0
  %v9527 = vadd.f32 %v9456, %v9526
  %v9528 = vpop.f32.mrb[0].mxu0
  %v9529 = vadd.f32 %v9458, %v9528
  %v9530 = vpop.f32.mrb[0].mxu0
  %v9531 = vadd.f32 %v9460, %v9530
  %9532 = vmatprep.mubr.bf16.mxu0 %v2005
  %9533 = vmatmul.mubr.bf16.gmra.mrb[0].mxu0 %v2004
  %v9534 = vpop.f32.mrb[0].mxu0
  %v9535 = vadd.f32 %v9464, %v9534
  %v9536 = vpop.f32.mrb[0].mxu0
  %v9537 = vadd.f32 %v9466, %v9536
  %v9538 = vpop.f32.mrb[0].mxu0
  %v9539 = vpop.f32.mrb[0].mxu0
  %9540 = vdwg.mxu0
  %9541 = vmatprep.subr.bf16.mxu0 %v7270
  %9542 = vmatpush1.bf16.msra.mxu0 %v7269
  %9543 = vmatprep.subr.bf16.mxu0 %v7278
  %9544 = vmatpush1.bf16.msra.mxu0 %v7277
  %9545 = vmatprep.subr.bf16.mxu0 %v7286
  %9546 = vmatpush1.bf16.msra.mxu0 %v7285
  %9547 = vmatprep.subr.bf16.mxu0 %v7294
  %9548 = vmatpush1.bf16.msra.mxu0 %v7293
  %9549 = vmatprep.subr.bf16.mxu0 %v7302
  %9550 = vmatpush1.bf16.msra.mxu0 %v7301
  %9551 = vmatprep.subr.bf16.mxu0 %v7310
  %9552 = vmatpush1.bf16.msra.mxu0 %v7309
  %9553 = vmatprep.subr.bf16.mxu0 %v7318
  %9554 = vmatpush1.bf16.msra.mxu0 %v7317
  %9555 = vmatprep.subr.bf16.mxu0 %v7326
  %9556 = vmatpush1.bf16.msra.mxu0 %v7325
  %9557 = vmatprep.subr.bf16.mxu0 %v7334
  %9558 = vmatpush1.bf16.msra.mxu0 %v7333
  %9559 = vmatprep.subr.bf16.mxu0 %v7342
  %9560 = vmatpush1.bf16.msra.mxu0 %v7341
  %9561 = vmatprep.subr.bf16.mxu0 %v7350
  %9562 = vmatpush1.bf16.msra.mxu0 %v7349
  %9563 = vmatprep.subr.bf16.mxu0 %v7358
  %9564 = vmatpush1.bf16.msra.mxu0 %v7357
  %9565 = vmatprep.subr.bf16.mxu0 %v7366
  %9566 = vmatpush1.bf16.msra.mxu0 %v7365
  %9567 = vmatprep.subr.bf16.mxu0 %v7374
  %9568 = vmatpush1.bf16.msra.mxu0 %v7373
  %9569 = vmatprep.subr.bf16.mxu0 %v7382
  %9570 = vmatpush1.bf16.msra.mxu0 %v7381
  %9571 = vmatprep.subr.bf16.mxu0 %v7390
  %9572 = vmatpush1.bf16.msra.mxu0 %v7389
  %9573 = vmatprep.mubr.bf16.mxu0 %v2023
  %9574 = vmatmul.mubr.bf16.gmra.mrb[0].mxu0 %v2022
  %v9575 = vpop.f32.mrb[0].mxu0
  %v9576 = vadd.f32 0.0, %v9575
  %v9577 = vpop.f32.mrb[0].mxu0
  %v9578 = vadd.f32 0.0, %v9577
  %v9579 = vpop.f32.mrb[0].mxu0
  %v9580 = vadd.f32 0.0, %v9579
  %v9581 = vpop.f32.mrb[0].mxu0
  %v9582 = vadd.f32 0.0, %v9581
  %9583 = vmatprep.mubr.bf16.mxu0 %v2027
  %9584 = vmatmul.mubr.bf16.gmra.mrb[0].mxu0 %v2026
  %v9585 = vpop.f32.mrb[0].mxu0
  %v9586 = vadd.f32 0.0, %v9585
  %v9587 = vpop.f32.mrb[0].mxu0
  %v9588 = vadd.f32 0.0, %v9587
  %v9589 = vpop.f32.mrb[0].mxu0
  %v9590 = vadd.f32 0.0, %v9589
  %v9591 = vpop.f32.mrb[0].mxu0
  %v9592 = vadd.f32 0.0, %v9591
  %9593 = vmatprep.mubr.bf16.mxu0 %v2031
  %9594 = vmatmul.mubr.bf16.gmra.mrb[0].mxu0 %v2030
  %v9595 = vpop.f32.mrb[0].mxu0
  %v9596 = vadd.f32 0.0, %v9595
  %v9597 = vpop.f32.mrb[0].mxu0
  %v9598 = vadd.f32 0.0, %v9597
  %v9599 = vpop.f32.mrb[0].mxu0
  %v9600 = vadd.f32 0.0, %v9599
  %v9601 = vpop.f32.mrb[0].mxu0
  %v9602 = vadd.f32 0.0, %v9601
  %9603 = vmatprep.mubr.bf16.mxu0 %v2034
  %9604 = vmatmul.mubr.bf16.gmra.mrb[0].mxu0 %v2034
  %v9605 = vpop.f32.mrb[0].mxu0
  %v9606 = vadd.f32 0.0, %v9605
  %v9607 = vpop.f32.mrb[0].mxu0
  %v9608 = vadd.f32 0.0, %v9607
  %v9609 = vpop.f32.mrb[0].mxu0
  %v9610 = vpop.f32.mrb[0].mxu0
  %9611 = vdwg.mxu0
  %9612 = vmatprep.subr.bf16.mxu0 %v7398
  %9613 = vmatpush1.bf16.msra.mxu0 %v7397
  %9614 = vmatprep.subr.bf16.mxu0 %v7406
  %9615 = vmatpush1.bf16.msra.mxu0 %v7405
  %9616 = vmatprep.subr.bf16.mxu0 %v7414
  %9617 = vmatpush1.bf16.msra.mxu0 %v7413
  %9618 = vmatprep.subr.bf16.mxu0 %v7422
  %9619 = vmatpush1.bf16.msra.mxu0 %v7421
  %9620 = vmatprep.subr.bf16.mxu0 %v7430
  %9621 = vmatpush1.bf16.msra.mxu0 %v7429
  %9622 = vmatprep.subr.bf16.mxu0 %v7438
  %9623 = vmatpush1.bf16.msra.mxu0 %v7437
  %9624 = vmatprep.subr.bf16.mxu0 %v7446
  %9625 = vmatpush1.bf16.msra.mxu0 %v7445
  %9626 = vmatprep.subr.bf16.mxu0 %v7454
  %9627 = vmatpush1.bf16.msra.mxu0 %v7453
  %9628 = vmatprep.subr.bf16.mxu0 %v7462
  %9629 = vmatpush1.bf16.msra.mxu0 %v7461
  %9630 = vmatprep.subr.bf16.mxu0 %v7470
  %9631 = vmatpush1.bf16.msra.mxu0 %v7469
  %9632 = vmatprep.subr.bf16.mxu0 %v7478
  %9633 = vmatpush1.bf16.msra.mxu0 %v7477
  %9634 = vmatprep.subr.bf16.mxu0 %v7486
  %9635 = vmatpush1.bf16.msra.mxu0 %v7485
  %9636 = vmatprep.subr.bf16.mxu0 %v7494
  %9637 = vmatpush1.bf16.msra.mxu0 %v7493
  %9638 = vmatprep.subr.bf16.mxu0 %v7502
  %9639 = vmatpush1.bf16.msra.mxu0 %v7501
  %9640 = vmatprep.subr.bf16.mxu0 %v7510
  %9641 = vmatpush1.bf16.msra.mxu0 %v7509
  %9642 = vmatprep.subr.bf16.mxu0 %v7518
  %9643 = vmatpush1.bf16.msra.mxu0 %v7517
  %9644 = vmatprep.mubr.bf16.mxu0 %v2025
  %9645 = vmatmul.mubr.bf16.gmra.mrb[0].mxu0 %v2024
  %v9646 = vpop.f32.mrb[0].mxu0
  %v9647 = vadd.f32 %v9576, %v9646
  %v9648 = vpop.f32.mrb[0].mxu0
  %v9649 = vadd.f32 %v9578, %v9648
  %v9650 = vpop.f32.mrb[0].mxu0
  %v9651 = vadd.f32 %v9580, %v9650
  %v9652 = vpop.f32.mrb[0].mxu0
  %v9653 = vadd.f32 %v9582, %v9652
  %9654 = vmatprep.mubr.bf16.mxu0 %v2029
  %9655 = vmatmul.mubr.bf16.gmra.mrb[0].mxu0 %v2028
  %v9656 = vpop.f32.mrb[0].mxu0
  %v9657 = vadd.f32 %v9586, %v9656
  %v9658 = vpop.f32.mrb[0].mxu0
  %v9659 = vadd.f32 %v9588, %v9658
  %v9660 = vpop.f32.mrb[0].mxu0
  %v9661 = vadd.f32 %v9590, %v9660
  %v9662 = vpop.f32.mrb[0].mxu0
  %v9663 = vadd.f32 %v9592, %v9662
  %9664 = vmatprep.mubr.bf16.mxu0 %v2033
  %9665 = vmatmul.mubr.bf16.gmra.mrb[0].mxu0 %v2032
  %v9666 = vpop.f32.mrb[0].mxu0
  %v9667 = vadd.f32 %v9596, %v9666
  %v9668 = vpop.f32.mrb[0].mxu0
  %v9669 = vadd.f32 %v9598, %v9668
  %v9670 = vpop.f32.mrb[0].mxu0
  %v9671 = vadd.f32 %v9600, %v9670
  %v9672 = vpop.f32.mrb[0].mxu0
  %v9673 = vadd.f32 %v9602, %v9672
  %9674 = vmatprep.mubr.bf16.mxu0 %v2034
  %9675 = vmatmul.mubr.bf16.gmra.mrb[0].mxu0 %v2034
  %v9676 = vpop.f32.mrb[0].mxu0
  %v9677 = vadd.f32 %v9606, %v9676
  %v9678 = vpop.f32.mrb[0].mxu0
  %v9679 = vadd.f32 %v9608, %v9678
  %v9680 = vpop.f32.mrb[0].mxu0
  %v9681 = vpop.f32.mrb[0].mxu0
  %9682 = vdwg.mxu0
  %9683 = vmatprep.subr.bf16.mxu0 %v7272
  %9684 = vmatpush1.bf16.msra.mxu0 %v7271
  %9685 = vmatprep.subr.bf16.mxu0 %v7280
  %9686 = vmatpush1.bf16.msra.mxu0 %v7279
  %9687 = vmatprep.subr.bf16.mxu0 %v7288
  %9688 = vmatpush1.bf16.msra.mxu0 %v7287
  %9689 = vmatprep.subr.bf16.mxu0 %v7296
  %9690 = vmatpush1.bf16.msra.mxu0 %v7295
  %9691 = vmatprep.subr.bf16.mxu0 %v7304
  %9692 = vmatpush1.bf16.msra.mxu0 %v7303
  %9693 = vmatprep.subr.bf16.mxu0 %v7312
  %9694 = vmatpush1.bf16.msra.mxu0 %v7311
  %9695 = vmatprep.subr.bf16.mxu0 %v7320
  %9696 = vmatpush1.bf16.msra.mxu0 %v7319
  %9697 = vmatprep.subr.bf16.mxu0 %v7328
  %9698 = vmatpush1.bf16.msra.mxu0 %v7327
  %9699 = vmatprep.subr.bf16.mxu0 %v7336
  %9700 = vmatpush1.bf16.msra.mxu0 %v7335
  %9701 = vmatprep.subr.bf16.mxu0 %v7344
  %9702 = vmatpush1.bf16.msra.mxu0 %v7343
  %9703 = vmatprep.subr.bf16.mxu0 %v7352
  %9704 = vmatpush1.bf16.msra.mxu0 %v7351
  %9705 = vmatprep.subr.bf16.mxu0 %v7360
  %9706 = vmatpush1.bf16.msra.mxu0 %v7359
  %9707 = vmatprep.subr.bf16.mxu0 %v7368
  %9708 = vmatpush1.bf16.msra.mxu0 %v7367
  %9709 = vmatprep.subr.bf16.mxu0 %v7376
  %9710 = vmatpush1.bf16.msra.mxu0 %v7375
  %9711 = vmatprep.subr.bf16.mxu0 %v7384
  %9712 = vmatpush1.bf16.msra.mxu0 %v7383
  %9713 = vmatprep.subr.bf16.mxu0 %v7392
  %9714 = vmatpush1.bf16.msra.mxu0 %v7391
  %9715 = vmatprep.mubr.bf16.mxu0 %v2023
  %9716 = vmatmul.mubr.bf16.gmra.mrb[0].mxu0 %v2022
  %v9717 = vpop.f32.mrb[0].mxu0
  %v9718 = vadd.f32 0.0, %v9717
  %v9719 = vpop.f32.mrb[0].mxu0
  %v9720 = vadd.f32 0.0, %v9719
  %v9721 = vpop.f32.mrb[0].mxu0
  %v9722 = vadd.f32 0.0, %v9721
  %v9723 = vpop.f32.mrb[0].mxu0
  %v9724 = vadd.f32 0.0, %v9723
  %9725 = vmatprep.mubr.bf16.mxu0 %v2027
  %9726 = vmatmul.mubr.bf16.gmra.mrb[0].mxu0 %v2026
  %v9727 = vpop.f32.mrb[0].mxu0
  %v9728 = vadd.f32 0.0, %v9727
  %v9729 = vpop.f32.mrb[0].mxu0
  %v9730 = vadd.f32 0.0, %v9729
  %v9731 = vpop.f32.mrb[0].mxu0
  %v9732 = vadd.f32 0.0, %v9731
  %v9733 = vpop.f32.mrb[0].mxu0
  %v9734 = vadd.f32 0.0, %v9733
  %9735 = vmatprep.mubr.bf16.mxu0 %v2031
  %9736 = vmatmul.mubr.bf16.gmra.mrb[0].mxu0 %v2030
  %v9737 = vpop.f32.mrb[0].mxu0
  %v9738 = vadd.f32 0.0, %v9737
  %v9739 = vpop.f32.mrb[0].mxu0
  %v9740 = vadd.f32 0.0, %v9739
  %v9741 = vpop.f32.mrb[0].mxu0
  %v9742 = vadd.f32 0.0, %v9741
  %v9743 = vpop.f32.mrb[0].mxu0
  %v9744 = vadd.f32 0.0, %v9743
  %9745 = vmatprep.mubr.bf16.mxu0 %v2034
  %9746 = vmatmul.mubr.bf16.gmra.mrb[0].mxu0 %v2034
  %v9747 = vpop.f32.mrb[0].mxu0
  %v9748 = vadd.f32 0.0, %v9747
  %v9749 = vpop.f32.mrb[0].mxu0
  %v9750 = vadd.f32 0.0, %v9749
  %v9751 = vpop.f32.mrb[0].mxu0
  %v9752 = vpop.f32.mrb[0].mxu0
  %9753 = vdwg.mxu0
  %9754 = vmatprep.subr.bf16.mxu0 %v7400
  %9755 = vmatpush1.bf16.msra.mxu0 %v7399
  %9756 = vmatprep.subr.bf16.mxu0 %v7408
  %9757 = vmatpush1.bf16.msra.mxu0 %v7407
  %9758 = vmatprep.subr.bf16.mxu0 %v7416
  %9759 = vmatpush1.bf16.msra.mxu0 %v7415
  %9760 = vmatprep.subr.bf16.mxu0 %v7424
  %9761 = vmatpush1.bf16.msra.mxu0 %v7423
  %9762 = vmatprep.subr.bf16.mxu0 %v7432
  %9763 = vmatpush1.bf16.msra.mxu0 %v7431
  %9764 = vmatprep.subr.bf16.mxu0 %v7440
  %9765 = vmatpush1.bf16.msra.mxu0 %v7439
  %9766 = vmatprep.subr.bf16.mxu0 %v7448
  %9767 = vmatpush1.bf16.msra.mxu0 %v7447
  %9768 = vmatprep.subr.bf16.mxu0 %v7456
  %9769 = vmatpush1.bf16.msra.mxu0 %v7455
  %9770 = vmatprep.subr.bf16.mxu0 %v7464
  %9771 = vmatpush1.bf16.msra.mxu0 %v7463
  %9772 = vmatprep.subr.bf16.mxu0 %v7472
  %9773 = vmatpush1.bf16.msra.mxu0 %v7471
  %9774 = vmatprep.subr.bf16.mxu0 %v7480
  %9775 = vmatpush1.bf16.msra.mxu0 %v7479
  %9776 = vmatprep.subr.bf16.mxu0 %v7488
  %9777 = vmatpush1.bf16.msra.mxu0 %v7487
  %9778 = vmatprep.subr.bf16.mxu0 %v7496
  %9779 = vmatpush1.bf16.msra.mxu0 %v7495
  %9780 = vmatprep.subr.bf16.mxu0 %v7504
  %9781 = vmatpush1.bf16.msra.mxu0 %v7503
  %9782 = vmatprep.subr.bf16.mxu0 %v7512
  %9783 = vmatpush1.bf16.msra.mxu0 %v7511
  %9784 = vmatprep.subr.bf16.mxu0 %v7520
  %9785 = vmatpush1.bf16.msra.mxu0 %v7519
  %9786 = vmatprep.mubr.bf16.mxu0 %v2025
  %9787 = vmatmul.mubr.bf16.gmra.mrb[0].mxu0 %v2024
  %v9788 = vpop.f32.mrb[0].mxu0
  %v9789 = vadd.f32 %v9718, %v9788
  %v9790 = vpop.f32.mrb[0].mxu0
  %v9791 = vadd.f32 %v9720, %v9790
  %v9792 = vpop.f32.mrb[0].mxu0
  %v9793 = vadd.f32 %v9722, %v9792
  %v9794 = vpop.f32.mrb[0].mxu0
  %v9795 = vadd.f32 %v9724, %v9794
  %9796 = vmatprep.mubr.bf16.mxu0 %v2029
  %9797 = vmatmul.mubr.bf16.gmra.mrb[0].mxu0 %v2028
  %v9798 = vpop.f32.mrb[0].mxu0
  %v9799 = vadd.f32 %v9728, %v9798
  %v9800 = vpop.f32.mrb[0].mxu0
  %v9801 = vadd.f32 %v9730, %v9800
  %v9802 = vpop.f32.mrb[0].mxu0
  %v9803 = vadd.f32 %v9732, %v9802
  %v9804 = vpop.f32.mrb[0].mxu0
  %v9805 = vadd.f32 %v9734, %v9804
  %9806 = vmatprep.mubr.bf16.mxu0 %v2033
  %9807 = vmatmul.mubr.bf16.gmra.mrb[0].mxu0 %v2032
  %v9808 = vpop.f32.mrb[0].mxu0
  %v9809 = vadd.f32 %v9738, %v9808
  %v9810 = vpop.f32.mrb[0].mxu0
  %v9811 = vadd.f32 %v9740, %v9810
  %v9812 = vpop.f32.mrb[0].mxu0
  %v9813 = vadd.f32 %v9742, %v9812
  %v9814 = vpop.f32.mrb[0].mxu0
  %v9815 = vadd.f32 %v9744, %v9814
  %9816 = vmatprep.mubr.bf16.mxu0 %v2034
  %9817 = vmatmul.mubr.bf16.gmra.mrb[0].mxu0 %v2034
  %v9818 = vpop.f32.mrb[0].mxu0
  %v9819 = vadd.f32 %v9748, %v9818
  %v9820 = vpop.f32.mrb[0].mxu0
  %v9821 = vadd.f32 %v9750, %v9820
  %v9822 = vpop.f32.mrb[0].mxu0
  %v9823 = vpop.f32.mrb[0].mxu0
  %9824 = vdwg.mxu0
  %9825 = vmatprep.subr.bf16.mxu0 %v7274
  %9826 = vmatpush1.bf16.msra.mxu0 %v7273
  %9827 = vmatprep.subr.bf16.mxu0 %v7282
  %9828 = vmatpush1.bf16.msra.mxu0 %v7281
  %9829 = vmatprep.subr.bf16.mxu0 %v7290
  %9830 = vmatpush1.bf16.msra.mxu0 %v7289
  %9831 = vmatprep.subr.bf16.mxu0 %v7298
  %9832 = vmatpush1.bf16.msra.mxu0 %v7297
  %9833 = vmatprep.subr.bf16.mxu0 %v7306
  %9834 = vmatpush1.bf16.msra.mxu0 %v7305
  %9835 = vmatprep.subr.bf16.mxu0 %v7314
  %9836 = vmatpush1.bf16.msra.mxu0 %v7313
  %9837 = vmatprep.subr.bf16.mxu0 %v7322
  %9838 = vmatpush1.bf16.msra.mxu0 %v7321
  %9839 = vmatprep.subr.bf16.mxu0 %v7330
  %9840 = vmatpush1.bf16.msra.mxu0 %v7329
  %9841 = vmatprep.subr.bf16.mxu0 %v7338
  %9842 = vmatpush1.bf16.msra.mxu0 %v7337
  %9843 = vmatprep.subr.bf16.mxu0 %v7346
  %9844 = vmatpush1.bf16.msra.mxu0 %v7345
  %9845 = vmatprep.subr.bf16.mxu0 %v7354
  %9846 = vmatpush1.bf16.msra.mxu0 %v7353
  %9847 = vmatprep.subr.bf16.mxu0 %v7362
  %9848 = vmatpush1.bf16.msra.mxu0 %v7361
  %9849 = vmatprep.subr.bf16.mxu0 %v7370
  %9850 = vmatpush1.bf16.msra.mxu0 %v7369
  %9851 = vmatprep.subr.bf16.mxu0 %v7378
  %9852 = vmatpush1.bf16.msra.mxu0 %v7377
  %9853 = vmatprep.subr.bf16.mxu0 %v7386
  %9854 = vmatpush1.bf16.msra.mxu0 %v7385
  %9855 = vmatprep.subr.bf16.mxu0 %v7394
  %9856 = vmatpush1.bf16.msra.mxu0 %v7393
  %9857 = vmatprep.mubr.bf16.mxu0 %v2023
  %9858 = vmatmul.mubr.bf16.gmra.mrb[0].mxu0 %v2022
  %v9859 = vpop.f32.mrb[0].mxu0
  %v9860 = vadd.f32 0.0, %v9859
  %v9861 = vpop.f32.mrb[0].mxu0
  %v9862 = vadd.f32 0.0, %v9861
  %v9863 = vpop.f32.mrb[0].mxu0
  %v9864 = vadd.f32 0.0, %v9863
  %v9865 = vpop.f32.mrb[0].mxu0
  %v9866 = vadd.f32 0.0, %v9865
  %9867 = vmatprep.mubr.bf16.mxu0 %v2027
  %9868 = vmatmul.mubr.bf16.gmra.mrb[0].mxu0 %v2026
  %v9869 = vpop.f32.mrb[0].mxu0
  %v9870 = vadd.f32 0.0, %v9869
  %v9871 = vpop.f32.mrb[0].mxu0
  %v9872 = vadd.f32 0.0, %v9871
  %v9873 = vpop.f32.mrb[0].mxu0
  %v9874 = vadd.f32 0.0, %v9873
  %v9875 = vpop.f32.mrb[0].mxu0
  %v9876 = vadd.f32 0.0, %v9875
  %9877 = vmatprep.mubr.bf16.mxu0 %v2031
  %9878 = vmatmul.mubr.bf16.gmra.mrb[0].mxu0 %v2030
  %v9879 = vpop.f32.mrb[0].mxu0
  %v9880 = vadd.f32 0.0, %v9879
  %v9881 = vpop.f32.mrb[0].mxu0
  %v9882 = vadd.f32 0.0, %v9881
  %v9883 = vpop.f32.mrb[0].mxu0
  %v9884 = vadd.f32 0.0, %v9883
  %v9885 = vpop.f32.mrb[0].mxu0
  %v9886 = vadd.f32 0.0, %v9885
  %9887 = vmatprep.mubr.bf16.mxu0 %v2034
  %9888 = vmatmul.mubr.bf16.gmra.mrb[0].mxu0 %v2034
  %v9889 = vpop.f32.mrb[0].mxu0
  %v9890 = vadd.f32 0.0, %v9889
  %v9891 = vpop.f32.mrb[0].mxu0
  %v9892 = vadd.f32 0.0, %v9891
  %v9893 = vpop.f32.mrb[0].mxu0
  %v9894 = vpop.f32.mrb[0].mxu0
  %9895 = vdwg.mxu0
  %9896 = vmatprep.subr.bf16.mxu0 %v7402
  %9897 = vmatpush1.bf16.msra.mxu0 %v7401
  %9898 = vmatprep.subr.bf16.mxu0 %v7410
  %9899 = vmatpush1.bf16.msra.mxu0 %v7409
  %9900 = vmatprep.subr.bf16.mxu0 %v7418
  %9901 = vmatpush1.bf16.msra.mxu0 %v7417
  %9902 = vmatprep.subr.bf16.mxu0 %v7426
  %9903 = vmatpush1.bf16.msra.mxu0 %v7425
  %9904 = vmatprep.subr.bf16.mxu0 %v7434
  %9905 = vmatpush1.bf16.msra.mxu0 %v7433
  %9906 = vmatprep.subr.bf16.mxu0 %v7442
  %9907 = vmatpush1.bf16.msra.mxu0 %v7441
  %9908 = vmatprep.subr.bf16.mxu0 %v7450
  %9909 = vmatpush1.bf16.msra.mxu0 %v7449
  %9910 = vmatprep.subr.bf16.mxu0 %v7458
  %9911 = vmatpush1.bf16.msra.mxu0 %v7457
  %9912 = vmatprep.subr.bf16.mxu0 %v7466
  %9913 = vmatpush1.bf16.msra.mxu0 %v7465
  %9914 = vmatprep.subr.bf16.mxu0 %v7474
  %9915 = vmatpush1.bf16.msra.mxu0 %v7473
  %9916 = vmatprep.subr.bf16.mxu0 %v7482
  %9917 = vmatpush1.bf16.msra.mxu0 %v7481
  %9918 = vmatprep.subr.bf16.mxu0 %v7490
  %9919 = vmatpush1.bf16.msra.mxu0 %v7489
  %9920 = vmatprep.subr.bf16.mxu0 %v7498
  %9921 = vmatpush1.bf16.msra.mxu0 %v7497
  %9922 = vmatprep.subr.bf16.mxu0 %v7506
  %9923 = vmatpush1.bf16.msra.mxu0 %v7505
  %9924 = vmatprep.subr.bf16.mxu0 %v7514
  %9925 = vmatpush1.bf16.msra.mxu0 %v7513
  %9926 = vmatprep.subr.bf16.mxu0 %v7522
  %9927 = vmatpush1.bf16.msra.mxu0 %v7521
  %9928 = vmatprep.mubr.bf16.mxu0 %v2025
  %9929 = vmatmul.mubr.bf16.gmra.mrb[0].mxu0 %v2024
  %v9930 = vpop.f32.mrb[0].mxu0
  %v9931 = vadd.f32 %v9860, %v9930
  %v9932 = vpop.f32.mrb[0].mxu0
  %v9933 = vadd.f32 %v9862, %v9932
  %v9934 = vpop.f32.mrb[0].mxu0
  %v9935 = vadd.f32 %v9864, %v9934
  %v9936 = vpop.f32.mrb[0].mxu0
  %v9937 = vadd.f32 %v9866, %v9936
  %9938 = vmatprep.mubr.bf16.mxu0 %v2029
  %9939 = vmatmul.mubr.bf16.gmra.mrb[0].mxu0 %v2028
  %v9940 = vpop.f32.mrb[0].mxu0
  %v9941 = vadd.f32 %v9870, %v9940
  %v9942 = vpop.f32.mrb[0].mxu0
  %v9943 = vadd.f32 %v9872, %v9942
  %v9944 = vpop.f32.mrb[0].mxu0
  %v9945 = vadd.f32 %v9874, %v9944
  %v9946 = vpop.f32.mrb[0].mxu0
  %v9947 = vadd.f32 %v9876, %v9946
  %9948 = vmatprep.mubr.bf16.mxu0 %v2033
  %9949 = vmatmul.mubr.bf16.gmra.mrb[0].mxu0 %v2032
  %v9950 = vpop.f32.mrb[0].mxu0
  %v9951 = vadd.f32 %v9880, %v9950
  %v9952 = vpop.f32.mrb[0].mxu0
  %v9953 = vadd.f32 %v9882, %v9952
  %v9954 = vpop.f32.mrb[0].mxu0
  %v9955 = vadd.f32 %v9884, %v9954
  %v9956 = vpop.f32.mrb[0].mxu0
  %v9957 = vadd.f32 %v9886, %v9956
  %9958 = vmatprep.mubr.bf16.mxu0 %v2034
  %9959 = vmatmul.mubr.bf16.gmra.mrb[0].mxu0 %v2034
  %v9960 = vpop.f32.mrb[0].mxu0
  %v9961 = vadd.f32 %v9890, %v9960
  %v9962 = vpop.f32.mrb[0].mxu0
  %v9963 = vadd.f32 %v9892, %v9962
  %v9964 = vpop.f32.mrb[0].mxu0
  %v9965 = vpop.f32.mrb[0].mxu0
  %9966 = vdwg.mxu0
  %9967 = vmatprep.subr.bf16.mxu0 %v7276
  %9968 = vmatpush1.bf16.msra.mxu0 %v7275
  %9969 = vmatprep.subr.bf16.mxu0 %v7284
  %9970 = vmatpush1.bf16.msra.mxu0 %v7283
  %9971 = vmatprep.subr.bf16.mxu0 %v7292
  %9972 = vmatpush1.bf16.msra.mxu0 %v7291
  %9973 = vmatprep.subr.bf16.mxu0 %v7300
  %9974 = vmatpush1.bf16.msra.mxu0 %v7299
  %9975 = vmatprep.subr.bf16.mxu0 %v7308
  %9976 = vmatpush1.bf16.msra.mxu0 %v7307
  %9977 = vmatprep.subr.bf16.mxu0 %v7316
  %9978 = vmatpush1.bf16.msra.mxu0 %v7315
  %9979 = vmatprep.subr.bf16.mxu0 %v7324
  %9980 = vmatpush1.bf16.msra.mxu0 %v7323
  %9981 = vmatprep.subr.bf16.mxu0 %v7332
  %9982 = vmatpush1.bf16.msra.mxu0 %v7331
  %9983 = vmatprep.subr.bf16.mxu0 %v7340
  %9984 = vmatpush1.bf16.msra.mxu0 %v7339
  %9985 = vmatprep.subr.bf16.mxu0 %v7348
  %9986 = vmatpush1.bf16.msra.mxu0 %v7347
  %9987 = vmatprep.subr.bf16.mxu0 %v7356
  %9988 = vmatpush1.bf16.msra.mxu0 %v7355
  %9989 = vmatprep.subr.bf16.mxu0 %v7364
  %9990 = vmatpush1.bf16.msra.mxu0 %v7363
  %9991 = vmatprep.subr.bf16.mxu0 %v7372
  %9992 = vmatpush1.bf16.msra.mxu0 %v7371
  %9993 = vmatprep.subr.bf16.mxu0 %v7380
  %9994 = vmatpush1.bf16.msra.mxu0 %v7379
  %9995 = vmatprep.subr.bf16.mxu0 %v7388
  %9996 = vmatpush1.bf16.msra.mxu0 %v7387
  %9997 = vmatprep.subr.bf16.mxu0 %v7396
  %9998 = vmatpush1.bf16.msra.mxu0 %v7395
  %9999 = vmatprep.mubr.bf16.mxu0 %v2023
  %10000 = vmatmul.mubr.bf16.gmra.mrb[0].mxu0 %v2022
  %v10001 = vpop.f32.mrb[0].mxu0
  %v10002 = vadd.f32 0.0, %v10001
  %v10003 = vpop.f32.mrb[0].mxu0
  %v10004 = vadd.f32 0.0, %v10003
  %v10005 = vpop.f32.mrb[0].mxu0
  %v10006 = vadd.f32 0.0, %v10005
  %v10007 = vpop.f32.mrb[0].mxu0
  %v10008 = vadd.f32 0.0, %v10007
  %10009 = vmatprep.mubr.bf16.mxu0 %v2027
  %10010 = vmatmul.mubr.bf16.gmra.mrb[0].mxu0 %v2026
  %v10011 = vpop.f32.mrb[0].mxu0
  %v10012 = vadd.f32 0.0, %v10011
  %v10013 = vpop.f32.mrb[0].mxu0
  %v10014 = vadd.f32 0.0, %v10013
  %v10015 = vpop.f32.mrb[0].mxu0
  %v10016 = vadd.f32 0.0, %v10015
  %v10017 = vpop.f32.mrb[0].mxu0
  %v10018 = vadd.f32 0.0, %v10017
  %10019 = vmatprep.mubr.bf16.mxu0 %v2031
  %10020 = vmatmul.mubr.bf16.gmra.mrb[0].mxu0 %v2030
  %v10021 = vpop.f32.mrb[0].mxu0
  %v10022 = vadd.f32 0.0, %v10021
  %v10023 = vpop.f32.mrb[0].mxu0
  %v10024 = vadd.f32 0.0, %v10023
  %v10025 = vpop.f32.mrb[0].mxu0
  %v10026 = vadd.f32 0.0, %v10025
  %v10027 = vpop.f32.mrb[0].mxu0
  %v10028 = vadd.f32 0.0, %v10027
  %10029 = vmatprep.mubr.bf16.mxu0 %v2034
  %10030 = vmatmul.mubr.bf16.gmra.mrb[0].mxu0 %v2034
  %v10031 = vpop.f32.mrb[0].mxu0
  %v10032 = vadd.f32 0.0, %v10031
  %v10033 = vpop.f32.mrb[0].mxu0
  %v10034 = vadd.f32 0.0, %v10033
  %v10035 = vpop.f32.mrb[0].mxu0
  %v10036 = vpop.f32.mrb[0].mxu0
  %10037 = vdwg.mxu0
  %10038 = vmatprep.subr.bf16.mxu0 %v7404
  %10039 = vmatpush1.bf16.msra.mxu0 %v7403
  %10040 = vmatprep.subr.bf16.mxu0 %v7412
  %10041 = vmatpush1.bf16.msra.mxu0 %v7411
  %10042 = vmatprep.subr.bf16.mxu0 %v7420
  %10043 = vmatpush1.bf16.msra.mxu0 %v7419
  %10044 = vmatprep.subr.bf16.mxu0 %v7428
  %10045 = vmatpush1.bf16.msra.mxu0 %v7427
  %10046 = vmatprep.subr.bf16.mxu0 %v7436
  %10047 = vmatpush1.bf16.msra.mxu0 %v7435
  %10048 = vmatprep.subr.bf16.mxu0 %v7444
  %10049 = vmatpush1.bf16.msra.mxu0 %v7443
  %10050 = vmatprep.subr.bf16.mxu0 %v7452
  %10051 = vmatpush1.bf16.msra.mxu0 %v7451
  %10052 = vmatprep.subr.bf16.mxu0 %v7460
  %10053 = vmatpush1.bf16.msra.mxu0 %v7459
  %10054 = vmatprep.subr.bf16.mxu0 %v7468
  %10055 = vmatpush1.bf16.msra.mxu0 %v7467
  %10056 = vmatprep.subr.bf16.mxu0 %v7476
  %10057 = vmatpush1.bf16.msra.mxu0 %v7475
  %10058 = vmatprep.subr.bf16.mxu0 %v7484
  %10059 = vmatpush1.bf16.msra.mxu0 %v7483
  %10060 = vmatprep.subr.bf16.mxu0 %v7492
  %10061 = vmatpush1.bf16.msra.mxu0 %v7491
  %10062 = vmatprep.subr.bf16.mxu0 %v7500
  %10063 = vmatpush1.bf16.msra.mxu0 %v7499
  %10064 = vmatprep.subr.bf16.mxu0 %v7508
  %10065 = vmatpush1.bf16.msra.mxu0 %v7507
  %10066 = vmatprep.subr.bf16.mxu0 %v7516
  %10067 = vmatpush1.bf16.msra.mxu0 %v7515
  %10068 = vmatprep.subr.bf16.mxu0 %v7524
  %10069 = vmatpush1.bf16.msra.mxu0 %v7523
  %10070 = vmatprep.mubr.bf16.mxu0 %v2025
  %10071 = vmatmul.mubr.bf16.gmra.mrb[0].mxu0 %v2024
  %v10072 = vpop.f32.mrb[0].mxu0
  %v10073 = vadd.f32 %v10002, %v10072
  %v10074 = vpop.f32.mrb[0].mxu0
  %v10075 = vadd.f32 %v10004, %v10074
  %v10076 = vpop.f32.mrb[0].mxu0
  %v10077 = vadd.f32 %v10006, %v10076
  %v10078 = vpop.f32.mrb[0].mxu0
  %v10079 = vadd.f32 %v10008, %v10078
  %10080 = vmatprep.mubr.bf16.mxu0 %v2029
  %10081 = vmatmul.mubr.bf16.gmra.mrb[0].mxu0 %v2028
  %v10082 = vpop.f32.mrb[0].mxu0
  %v10083 = vadd.f32 %v10012, %v10082
  %v10084 = vpop.f32.mrb[0].mxu0
  %v10085 = vadd.f32 %v10014, %v10084
  %v10086 = vpop.f32.mrb[0].mxu0
  %v10087 = vadd.f32 %v10016, %v10086
  %v10088 = vpop.f32.mrb[0].mxu0
  %v10089 = vadd.f32 %v10018, %v10088
  %10090 = vmatprep.mubr.bf16.mxu0 %v2033
  %10091 = vmatmul.mubr.bf16.gmra.mrb[0].mxu0 %v2032
  %v10092 = vpop.f32.mrb[0].mxu0
  %v10093 = vadd.f32 %v10022, %v10092
  %v10094 = vpop.f32.mrb[0].mxu0
  %v10095 = vadd.f32 %v10024, %v10094
  %v10096 = vpop.f32.mrb[0].mxu0
  %v10097 = vadd.f32 %v10026, %v10096
  %v10098 = vpop.f32.mrb[0].mxu0
  %v10099 = vadd.f32 %v10028, %v10098
  %10100 = vmatprep.mubr.bf16.mxu0 %v2034
  %10101 = vmatmul.mubr.bf16.gmra.mrb[0].mxu0 %v2034
  %v10102 = vpop.f32.mrb[0].mxu0
  %v10103 = vadd.f32 %v10032, %v10102
  %v10104 = vpop.f32.mrb[0].mxu0
  %v10105 = vadd.f32 %v10034, %v10104
  %v10106 = vpop.f32.mrb[0].mxu0
  %v10107 = vpop.f32.mrb[0].mxu0
  %10108 = vdwg.mxu0
  %v10109 = vadd.f32 %v9079, %v9647
  %v10110 = vadd.f32 %v9081, %v9649
  %v10111 = vadd.f32 %v9221, %v9789
  %v10112 = vadd.f32 %v9223, %v9791
  %v10113 = vadd.f32 %v9363, %v9931
  %v10114 = vadd.f32 %v9365, %v9933
  %v10115 = vadd.f32 %v9505, %v10073
  %v10116 = vadd.f32 %v9507, %v10075
  %v10117 = vadd.f32 %v9083, %v9651
  %v10118 = vadd.f32 %v9085, %v9653
  %v10119 = vadd.f32 %v9225, %v9793
  %v10120 = vadd.f32 %v9227, %v9795
  %v10121 = vadd.f32 %v9367, %v9935
  %v10122 = vadd.f32 %v9369, %v9937
  %v10123 = vadd.f32 %v9509, %v10077
  %v10124 = vadd.f32 %v9511, %v10079
  %v10125 = vadd.f32 %v9089, %v9657
  %v10126 = vadd.f32 %v9091, %v9659
  %v10127 = vadd.f32 %v9231, %v9799
  %v10128 = vadd.f32 %v9233, %v9801
  %v10129 = vadd.f32 %v9373, %v9941
  %v10130 = vadd.f32 %v9375, %v9943
  %v10131 = vadd.f32 %v9515, %v10083
  %v10132 = vadd.f32 %v9517, %v10085
  %v10133 = vadd.f32 %v9093, %v9661
  %v10134 = vadd.f32 %v9095, %v9663
  %v10135 = vadd.f32 %v9235, %v9803
  %v10136 = vadd.f32 %v9237, %v9805
  %v10137 = vadd.f32 %v9377, %v9945
  %v10138 = vadd.f32 %v9379, %v9947
  %v10139 = vadd.f32 %v9519, %v10087
  %v10140 = vadd.f32 %v9521, %v10089
  %v10141 = vadd.f32 %v9099, %v9667
  %v10142 = vadd.f32 %v9101, %v9669
  %v10143 = vadd.f32 %v9241, %v9809
  %v10144 = vadd.f32 %v9243, %v9811
  %v10145 = vadd.f32 %v9383, %v9951
  %v10146 = vadd.f32 %v9385, %v9953
  %v10147 = vadd.f32 %v9525, %v10093
  %v10148 = vadd.f32 %v9527, %v10095
  %v10149 = vadd.f32 %v9103, %v9671
  %v10150 = vadd.f32 %v9105, %v9673
  %v10151 = vadd.f32 %v9245, %v9813
  %v10152 = vadd.f32 %v9247, %v9815
  %v10153 = vadd.f32 %v9387, %v9955
  %v10154 = vadd.f32 %v9389, %v9957
  %v10155 = vadd.f32 %v9529, %v10097
  %v10156 = vadd.f32 %v9531, %v10099
  %v10157 = vadd.f32 %v9109, %v9677
  %v10158 = vadd.f32 %v9111, %v9679
  %v10159 = vadd.f32 %v9251, %v9819
  %v10160 = vadd.f32 %v9253, %v9821
  %v10161 = vadd.f32 %v9393, %v9961
  %v10162 = vadd.f32 %v9395, %v9963
  %v10163 = vadd.f32 %v9535, %v10103
  %v10164 = vadd.f32 %v9537, %v10105
  %v10165 = vmax.f32 %v8349, %v10109
  %v10166 = vmax.f32 %v8350, %v10110
  %v10167 = vmax.f32 %v8351, %v10111
  %v10168 = vmax.f32 %v8352, %v10112
  %v10169 = vmax.f32 %v8353, %v10113
  %v10170 = vmax.f32 %v8354, %v10114
  %v10171 = vmax.f32 %v8355, %v10115
  %v10172 = vmax.f32 %v8356, %v10116
  %v10173 = vmax.f32 %v8357, %v10117
  %v10174 = vmax.f32 %v8358, %v10118
  %v10175 = vmax.f32 %v8359, %v10119
  %v10176 = vmax.f32 %v8360, %v10120
  %v10177 = vmax.f32 %v8361, %v10121
  %v10178 = vmax.f32 %v8362, %v10122
  %v10179 = vmax.f32 %v8363, %v10123
  %v10180 = vmax.f32 %v8364, %v10124
  %v10181 = vmax.f32 %v8365, %v10125
  %v10182 = vmax.f32 %v8366, %v10126
  %v10183 = vmax.f32 %v8367, %v10127
  %v10184 = vmax.f32 %v8368, %v10128
  %v10185 = vmax.f32 %v8369, %v10129
  %v10186 = vmax.f32 %v8370, %v10130
  %v10187 = vmax.f32 %v8371, %v10131
  %v10188 = vmax.f32 %v8372, %v10132
  %v10189 = vmax.f32 %v8373, %v10133
  %v10190 = vmax.f32 %v8374, %v10134
  %v10191 = vmax.f32 %v8375, %v10135
  %v10192 = vmax.f32 %v8376, %v10136
  %v10193 = vmax.f32 %v8377, %v10137
  %v10194 = vmax.f32 %v8378, %v10138
  %v10195 = vmax.f32 %v8379, %v10139
  %v10196 = vmax.f32 %v8380, %v10140
  %v10197 = vmax.f32 %v8381, %v10141
  %v10198 = vmax.f32 %v8382, %v10142
  %v10199 = vmax.f32 %v8383, %v10143
  %v10200 = vmax.f32 %v8384, %v10144
  %v10201 = vmax.f32 %v8385, %v10145
  %v10202 = vmax.f32 %v8386, %v10146
  %v10203 = vmax.f32 %v8387, %v10147
  %v10204 = vmax.f32 %v8388, %v10148
  %v10205 = vmax.f32 %v8389, %v10149
  %v10206 = vmax.f32 %v8390, %v10150
  %v10207 = vmax.f32 %v8391, %v10151
  %v10208 = vmax.f32 %v8392, %v10152
  %v10209 = vmax.f32 %v8393, %v10153
  %v10210 = vmax.f32 %v8394, %v10154
  %v10211 = vmax.f32 %v8395, %v10155
  %v10212 = vmax.f32 %v8396, %v10156
  %v10213 = vmax.f32 %v8397, %v10157
  %v10214 = vmax.f32 %v8398, %v10158
  %v10215 = vmax.f32 %v8399, %v10159
  %v10216 = vmax.f32 %v8400, %v10160
  %v10217 = vmax.f32 %v8401, %v10161
  %v10218 = vmax.f32 %v8402, %v10162
  %v10219 = vmax.f32 %v8403, %v10163
  %v10220 = vmax.f32 %v8404, %v10164
  %v10221 = vmax.f32 %v10165, %v10169
  %v10222 = vmax.f32 %v10166, %v10170
  %v10223 = vmax.f32 %v10167, %v10171
  %v10224 = vmax.f32 %v10168, %v10172
  %v10225 = vmax.f32 %v10173, %v10177
  %v10226 = vmax.f32 %v10174, %v10178
  %v10227 = vmax.f32 %v10175, %v10179
  %v10228 = vmax.f32 %v10176, %v10180
  %v10229 = vmax.f32 %v10181, %v10185
  %v10230 = vmax.f32 %v10182, %v10186
  %v10231 = vmax.f32 %v10183, %v10187
  %v10232 = vmax.f32 %v10184, %v10188
  %v10233 = vmax.f32 %v10189, %v10193
  %v10234 = vmax.f32 %v10190, %v10194
  %v10235 = vmax.f32 %v10191, %v10195
  %v10236 = vmax.f32 %v10192, %v10196
  %v10237 = vmax.f32 %v10197, %v10201
  %v10238 = vmax.f32 %v10198, %v10202
  %v10239 = vmax.f32 %v10199, %v10203
  %v10240 = vmax.f32 %v10200, %v10204
  %v10241 = vmax.f32 %v10205, %v10209
  %v10242 = vmax.f32 %v10206, %v10210
  %v10243 = vmax.f32 %v10207, %v10211
  %v10244 = vmax.f32 %v10208, %v10212
  %v10245 = vmax.f32 %v10213, %v10217
  %v10246 = vmax.f32 %v10214, %v10218
  %v10247 = vmax.f32 %v10215, %v10219
  %v10248 = vmax.f32 %v10216, %v10220
  %v10249 = vld [vmem:[%s4] sm:$0xf]
  %v10251 = vlaneseq
  %v10252 = vshrl.u32 %v10251, 7
  %v10253 = vsub.s32 0, %v10252
  %v10254 = vrot.slane %v10249, %v10253
  %v10255 = vlaneseq
  %v10256 = vshrl.u32 %v10255, 7
  %v10257 = vsub.s32 1, %v10256
  %v10258 = vrot.slane %v10249, %v10257
  %v10259 = vlaneseq
  %v10260 = vshrl.u32 %v10259, 7
  %v10261 = vsub.s32 2, %v10260
  %v10262 = vrot.slane %v10249, %v10261
  %v10263 = vlaneseq
  %v10264 = vshrl.u32 %v10263, 7
  %v10265 = vsub.s32 3, %v10264
  %v10266 = vrot.slane %v10249, %v10265
  %v10271 = vadd.f32 %v10221, %v10254
  %v10272 = vadd.f32 %v10222, %v10258
  %v10273 = vadd.f32 %v10223, %v10262
  %v10274 = vadd.f32 %v10224, %v10266
  %v10275 = vadd.f32 %v10225, %v10254
  %v10276 = vadd.f32 %v10226, %v10258
  %v10277 = vadd.f32 %v10227, %v10262
  %v10278 = vadd.f32 %v10228, %v10266
  %v10279 = vadd.f32 %v10229, %v10254
  %v10280 = vadd.f32 %v10230, %v10258
  %v10281 = vadd.f32 %v10231, %v10262
  %v10282 = vadd.f32 %v10232, %v10266
  %v10283 = vadd.f32 %v10233, %v10254
  %v10284 = vadd.f32 %v10234, %v10258
  %v10285 = vadd.f32 %v10235, %v10262
  %v10286 = vadd.f32 %v10236, %v10266
  %v10287 = vadd.f32 %v10237, %v10254
  %v10288 = vadd.f32 %v10238, %v10258
  %v10289 = vadd.f32 %v10239, %v10262
  %v10290 = vadd.f32 %v10240, %v10266
  %v10291 = vadd.f32 %v10241, %v10254
  %v10292 = vadd.f32 %v10242, %v10258
  %v10293 = vadd.f32 %v10243, %v10262
  %v10294 = vadd.f32 %v10244, %v10266
  %v10295 = vadd.f32 %v10245, %v10254
  %v10296 = vadd.f32 %v10246, %v10258
  %v10297 = vadd.f32 %v10247, %v10262
  %v10298 = vadd.f32 %v10248, %v10266
  %v10299 = vmax.f32 %v10271, 0.0
  %v10300 = vmax.f32 %v10272, 0.0
  %v10301 = vmax.f32 %v10273, 0.0
  %v10302 = vmax.f32 %v10274, 0.0
  %v10303 = vmax.f32 %v10275, 0.0
  %v10304 = vmax.f32 %v10276, 0.0
  %v10305 = vmax.f32 %v10277, 0.0
  %v10306 = vmax.f32 %v10278, 0.0
  %v10307 = vmax.f32 %v10279, 0.0
  %v10308 = vmax.f32 %v10280, 0.0
  %v10309 = vmax.f32 %v10281, 0.0
  %v10310 = vmax.f32 %v10282, 0.0
  %v10311 = vmax.f32 %v10283, 0.0
  %v10312 = vmax.f32 %v10284, 0.0
  %v10313 = vmax.f32 %v10285, 0.0
  %v10314 = vmax.f32 %v10286, 0.0
  %v10315 = vmax.f32 %v10287, 0.0
  %v10316 = vmax.f32 %v10288, 0.0
  %v10317 = vmax.f32 %v10289, 0.0
  %v10318 = vmax.f32 %v10290, 0.0
  %v10319 = vmax.f32 %v10291, 0.0
  %v10320 = vmax.f32 %v10292, 0.0
  %v10321 = vmax.f32 %v10293, 0.0
  %v10322 = vmax.f32 %v10294, 0.0
  %v10323 = vmax.f32 %v10295, 0.0
  %v10324 = vmax.f32 %v10296, 0.0
  %v10325 = vmax.f32 %v10297, 0.0
  %v10326 = vmax.f32 %v10298, 0.0
  %v10327 = vpack.c.bf16 %v10299, %v10299
  %v10328 = vpack.c.bf16 %v10300, %v10300
  %v10329 = vpack.c.bf16 %v10301, %v10301
  %v10330 = vpack.c.bf16 %v10302, %v10302
  %v10331 = vld [vmem:[%s5] sm:$0xf]
  %v10332 = vld [vmem:[%s5 + $0x4] sm:$0xf]
  %v10333 = vld [vmem:[%s5 + $0x8] sm:$0xf]
  %v10334 = vld [vmem:[%s5 + $0xc] sm:$0xf]
  %v10335 = vld [vmem:[%s5 + $0x10] sm:$0xf]
  %v10336 = vld [vmem:[%s5 + $0x14] sm:$0xf]
  %v10337 = vld [vmem:[%s5 + $0x18] sm:$0xf]
  %v10338 = vld [vmem:[%s5 + $0x1c] sm:$0xf]
  %v10339 = vld [vmem:[%s5 + $0x20] sm:$0xf]
  %v10340 = vld [vmem:[%s5 + $0x24] sm:$0xf]
  %v10341 = vld [vmem:[%s5 + $0x28] sm:$0xf]
  %v10342 = vld [vmem:[%s5 + $0x2c] sm:$0xf]
  %v10343 = vld [vmem:[%s5 + $0x30] sm:$0xf]
  %v10344 = vld [vmem:[%s5 + $0x34] sm:$0xf]
  %v10345 = vld [vmem:[%s5 + $0x38] sm:$0xf]
  %v10346 = vld [vmem:[%s5 + $0x3c] sm:$0xf]
  %v10347 = vld [vmem:[%s5 + $0x40] sm:$0xf]
  %v10348 = vld [vmem:[%s5 + $0x44] sm:$0xf]
  %v10349 = vld [vmem:[%s5 + $0x48] sm:$0xf]
  %v10350 = vld [vmem:[%s5 + $0x4c] sm:$0xf]
  %v10351 = vld [vmem:[%s5 + $0x50] sm:$0xf]
  %v10352 = vld [vmem:[%s5 + $0x54] sm:$0xf]
  %v10353 = vld [vmem:[%s5 + $0x58] sm:$0xf]
  %v10354 = vld [vmem:[%s5 + $0x5c] sm:$0xf]
  %v10355 = vld [vmem:[%s5 + $0x60] sm:$0xf]
  %v10356 = vld [vmem:[%s5 + $0x64] sm:$0xf]
  %v10357 = vld [vmem:[%s5 + $0x68] sm:$0xf]
  %v10358 = vld [vmem:[%s5 + $0x6c] sm:$0xf]
  %v10359 = vld [vmem:[%s5 + $0x70] sm:$0xf]
  %v10360 = vld [vmem:[%s5 + $0x74] sm:$0xf]
  %v10361 = vld [vmem:[%s5 + $0x78] sm:$0xf]
  %v10362 = vld [vmem:[%s5 + $0x7c] sm:$0xf]
  %v10363 = vld [vmem:[%s5 + $0x80] sm:$0xf]
  %v10364 = vld [vmem:[%s5 + $0x84] sm:$0xf]
  %v10365 = vld [vmem:[%s5 + $0x88] sm:$0xf]
  %v10366 = vld [vmem:[%s5 + $0x8c] sm:$0xf]
  %v10367 = vld [vmem:[%s5 + $0x90] sm:$0xf]
  %v10368 = vld [vmem:[%s5 + $0x94] sm:$0xf]
  %v10369 = vld [vmem:[%s5 + $0x98] sm:$0xf]
  %v10370 = vld [vmem:[%s5 + $0x9c] sm:$0xf]
  %v10371 = vld [vmem:[%s5 + $0xa0] sm:$0xf]
  %v10372 = vld [vmem:[%s5 + $0xa4] sm:$0xf]
  %v10373 = vld [vmem:[%s5 + $0xa8] sm:$0xf]
  %v10374 = vld [vmem:[%s5 + $0xac] sm:$0xf]
  %v10375 = vld [vmem:[%s5 + $0xb0] sm:$0xf]
  %v10376 = vld [vmem:[%s5 + $0xb4] sm:$0xf]
  %v10377 = vld [vmem:[%s5 + $0xb8] sm:$0xf]
  %v10378 = vld [vmem:[%s5 + $0xbc] sm:$0xf]
  %v10379 = vld [vmem:[%s5 + $0xc0] sm:$0xf]
  %v10380 = vld [vmem:[%s5 + $0xc4] sm:$0xf]
  %v10381 = vld [vmem:[%s5 + $0xc8] sm:$0xf]
  %v10382 = vld [vmem:[%s5 + $0xcc] sm:$0xf]
  %v10383 = vld [vmem:[%s5 + $0xd0] sm:$0xf]
  %v10384 = vld [vmem:[%s5 + $0xd4] sm:$0xf]
  %v10385 = vld [vmem:[%s5 + $0xd8] sm:$0xf]
  %v10386 = vld [vmem:[%s5 + $0xdc] sm:$0xf]
  %v10387 = vld [vmem:[%s5 + $0xe0] sm:$0xf]
  %v10388 = vld [vmem:[%s5 + $0xe4] sm:$0xf]
  %v10389 = vld [vmem:[%s5 + $0xe8] sm:$0xf]
  %v10390 = vld [vmem:[%s5 + $0xec] sm:$0xf]
  %v10391 = vld [vmem:[%s5 + $0xf0] sm:$0xf]
  %v10392 = vld [vmem:[%s5 + $0xf4] sm:$0xf]
  %v10393 = vld [vmem:[%s5 + $0xf8] sm:$0xf]
  %v10394 = vld [vmem:[%s5 + $0xfc] sm:$0xf]
  %v10395 = vpack.c.bf16 %v10303, %v10303
  %v10396 = vpack.c.bf16 %v10304, %v10304
  %v10397 = vpack.c.bf16 %v10305, %v10305
  %v10398 = vpack.c.bf16 %v10306, %v10306
  %s10399 = scalar_lea.vmem %s5, 256
  %v10400 = vld [vmem:[%s10399] sm:$0xf]
  %v10401 = vld [vmem:[%s10399 + $0x4] sm:$0xf]
  %v10402 = vld [vmem:[%s10399 + $0x8] sm:$0xf]
  %v10403 = vld [vmem:[%s10399 + $0xc] sm:$0xf]
  %v10404 = vld [vmem:[%s10399 + $0x10] sm:$0xf]
  %v10405 = vld [vmem:[%s10399 + $0x14] sm:$0xf]
  %v10406 = vld [vmem:[%s10399 + $0x18] sm:$0xf]
  %v10407 = vld [vmem:[%s10399 + $0x1c] sm:$0xf]
  %v10408 = vld [vmem:[%s10399 + $0x20] sm:$0xf]
  %v10409 = vld [vmem:[%s10399 + $0x24] sm:$0xf]
  %v10410 = vld [vmem:[%s10399 + $0x28] sm:$0xf]
  %v10411 = vld [vmem:[%s10399 + $0x2c] sm:$0xf]
  %v10412 = vld [vmem:[%s10399 + $0x30] sm:$0xf]
  %v10413 = vld [vmem:[%s10399 + $0x34] sm:$0xf]
  %v10414 = vld [vmem:[%s10399 + $0x38] sm:$0xf]
  %v10415 = vld [vmem:[%s10399 + $0x3c] sm:$0xf]
  %v10416 = vld [vmem:[%s10399 + $0x40] sm:$0xf]
  %v10417 = vld [vmem:[%s10399 + $0x44] sm:$0xf]
  %v10418 = vld [vmem:[%s10399 + $0x48] sm:$0xf]
  %v10419 = vld [vmem:[%s10399 + $0x4c] sm:$0xf]
  %v10420 = vld [vmem:[%s10399 + $0x50] sm:$0xf]
  %v10421 = vld [vmem:[%s10399 + $0x54] sm:$0xf]
  %v10422 = vld [vmem:[%s10399 + $0x58] sm:$0xf]
  %v10423 = vld [vmem:[%s10399 + $0x5c] sm:$0xf]
  %v10424 = vld [vmem:[%s10399 + $0x60] sm:$0xf]
  %v10425 = vld [vmem:[%s10399 + $0x64] sm:$0xf]
  %v10426 = vld [vmem:[%s10399 + $0x68] sm:$0xf]
  %v10427 = vld [vmem:[%s10399 + $0x6c] sm:$0xf]
  %v10428 = vld [vmem:[%s10399 + $0x70] sm:$0xf]
  %v10429 = vld [vmem:[%s10399 + $0x74] sm:$0xf]
  %v10430 = vld [vmem:[%s10399 + $0x78] sm:$0xf]
  %v10431 = vld [vmem:[%s10399 + $0x7c] sm:$0xf]
  %v10432 = vld [vmem:[%s10399 + $0x80] sm:$0xf]
  %v10433 = vld [vmem:[%s10399 + $0x84] sm:$0xf]
  %v10434 = vld [vmem:[%s10399 + $0x88] sm:$0xf]
  %v10435 = vld [vmem:[%s10399 + $0x8c] sm:$0xf]
  %v10436 = vld [vmem:[%s10399 + $0x90] sm:$0xf]
  %v10437 = vld [vmem:[%s10399 + $0x94] sm:$0xf]
  %v10438 = vld [vmem:[%s10399 + $0x98] sm:$0xf]
  %v10439 = vld [vmem:[%s10399 + $0x9c] sm:$0xf]
  %v10440 = vld [vmem:[%s10399 + $0xa0] sm:$0xf]
  %v10441 = vld [vmem:[%s10399 + $0xa4] sm:$0xf]
  %v10442 = vld [vmem:[%s10399 + $0xa8] sm:$0xf]
  %v10443 = vld [vmem:[%s10399 + $0xac] sm:$0xf]
  %v10444 = vld [vmem:[%s10399 + $0xb0] sm:$0xf]
  %v10445 = vld [vmem:[%s10399 + $0xb4] sm:$0xf]
  %v10446 = vld [vmem:[%s10399 + $0xb8] sm:$0xf]
  %v10447 = vld [vmem:[%s10399 + $0xbc] sm:$0xf]
  %v10448 = vld [vmem:[%s10399 + $0xc0] sm:$0xf]
  %v10449 = vld [vmem:[%s10399 + $0xc4] sm:$0xf]
  %v10450 = vld [vmem:[%s10399 + $0xc8] sm:$0xf]
  %v10451 = vld [vmem:[%s10399 + $0xcc] sm:$0xf]
  %v10452 = vld [vmem:[%s10399 + $0xd0] sm:$0xf]
  %v10453 = vld [vmem:[%s10399 + $0xd4] sm:$0xf]
  %v10454 = vld [vmem:[%s10399 + $0xd8] sm:$0xf]
  %v10455 = vld [vmem:[%s10399 + $0xdc] sm:$0xf]
  %v10456 = vld [vmem:[%s10399 + $0xe0] sm:$0xf]
  %v10457 = vld [vmem:[%s10399 + $0xe4] sm:$0xf]
  %v10458 = vld [vmem:[%s10399 + $0xe8] sm:$0xf]
  %v10459 = vld [vmem:[%s10399 + $0xec] sm:$0xf]
  %v10460 = vld [vmem:[%s10399 + $0xf0] sm:$0xf]
  %v10461 = vld [vmem:[%s10399 + $0xf4] sm:$0xf]
  %v10462 = vld [vmem:[%s10399 + $0xf8] sm:$0xf]
  %v10463 = vld [vmem:[%s10399 + $0xfc] sm:$0xf]
  %v10528 = vunpack.c.l.b16 %v10400
  %v10529 = vunpack.c.l.b16 %v10401
  %v10530 = vunpack.c.l.b16 %v10402
  %v10531 = vunpack.c.l.b16 %v10403
  %v10532 = vunpack.c.l.b16 %v10404
  %v10533 = vunpack.c.l.b16 %v10405
  %v10534 = vunpack.c.l.b16 %v10406
  %v10535 = vunpack.c.l.b16 %v10407
  %v10536 = vunpack.c.l.b16 %v10408
  %v10537 = vunpack.c.l.b16 %v10409
  %v10538 = vunpack.c.l.b16 %v10410
  %v10539 = vunpack.c.l.b16 %v10411
  %v10540 = vunpack.c.l.b16 %v10412
  %v10541 = vunpack.c.l.b16 %v10413
  %v10542 = vunpack.c.l.b16 %v10414
  %v10543 = vunpack.c.l.b16 %v10415
  %v10544 = vunpack.c.l.b16 %v10416
  %v10545 = vunpack.c.l.b16 %v10417
  %v10546 = vunpack.c.l.b16 %v10418
  %v10547 = vunpack.c.l.b16 %v10419
  %v10548 = vunpack.c.l.b16 %v10420
  %v10549 = vunpack.c.l.b16 %v10421
  %v10550 = vunpack.c.l.b16 %v10422
  %v10551 = vunpack.c.l.b16 %v10423
  %v10552 = vunpack.c.l.b16 %v10424
  %v10553 = vunpack.c.l.b16 %v10425
  %v10554 = vunpack.c.l.b16 %v10426
  %v10555 = vunpack.c.l.b16 %v10427
  %v10556 = vunpack.c.l.b16 %v10428
  %v10557 = vunpack.c.l.b16 %v10429
  %v10558 = vunpack.c.l.b16 %v10430
  %v10559 = vunpack.c.l.b16 %v10431
  %v10560 = vunpack.c.l.b16 %v10432
  %v10561 = vunpack.c.l.b16 %v10433
  %v10562 = vunpack.c.l.b16 %v10434
  %v10563 = vunpack.c.l.b16 %v10435
  %v10564 = vunpack.c.l.b16 %v10436
  %v10565 = vunpack.c.l.b16 %v10437
  %v10566 = vunpack.c.l.b16 %v10438
  %v10567 = vunpack.c.l.b16 %v10439
  %v10568 = vunpack.c.l.b16 %v10440
  %v10569 = vunpack.c.l.b16 %v10441
  %v10570 = vunpack.c.l.b16 %v10442
  %v10571 = vunpack.c.l.b16 %v10443
  %v10572 = vunpack.c.l.b16 %v10444
  %v10573 = vunpack.c.l.b16 %v10445
  %v10574 = vunpack.c.l.b16 %v10446
  %v10575 = vunpack.c.l.b16 %v10447
  %v10576 = vunpack.c.l.b16 %v10448
  %v10577 = vunpack.c.l.b16 %v10449
  %v10578 = vunpack.c.l.b16 %v10450
  %v10579 = vunpack.c.l.b16 %v10451
  %v10580 = vunpack.c.l.b16 %v10452
  %v10581 = vunpack.c.l.b16 %v10453
  %v10582 = vunpack.c.l.b16 %v10454
  %v10583 = vunpack.c.l.b16 %v10455
  %v10584 = vunpack.c.l.b16 %v10456
  %v10585 = vunpack.c.l.b16 %v10457
  %v10586 = vunpack.c.l.b16 %v10458
  %v10587 = vunpack.c.l.b16 %v10459
  %v10588 = vunpack.c.l.b16 %v10460
  %v10589 = vunpack.c.l.b16 %v10461
  %v10590 = vunpack.c.l.b16 %v10462
  %v10591 = vunpack.c.l.b16 %v10463
  %v10592 = vpack.c.b16 %v10529, %v10528
  %v10593 = vpack.c.b16 %v10531, %v10530
  %v10594 = vpack.c.b16 %v10533, %v10532
  %v10595 = vpack.c.b16 %v10535, %v10534
  %v10596 = vpack.c.b16 %v10537, %v10536
  %v10597 = vpack.c.b16 %v10539, %v10538
  %v10598 = vpack.c.b16 %v10541, %v10540
  %v10599 = vpack.c.b16 %v10543, %v10542
  %v10600 = vpack.c.b16 %v10545, %v10544
  %v10601 = vpack.c.b16 %v10547, %v10546
  %v10602 = vpack.c.b16 %v10549, %v10548
  %v10603 = vpack.c.b16 %v10551, %v10550
  %v10604 = vpack.c.b16 %v10553, %v10552
  %v10605 = vpack.c.b16 %v10555, %v10554
  %v10606 = vpack.c.b16 %v10557, %v10556
  %v10607 = vpack.c.b16 %v10559, %v10558
  %v10608 = vpack.c.b16 %v10561, %v10560
  %v10609 = vpack.c.b16 %v10563, %v10562
  %v10610 = vpack.c.b16 %v10565, %v10564
  %v10611 = vpack.c.b16 %v10567, %v10566
  %v10612 = vpack.c.b16 %v10569, %v10568
  %v10613 = vpack.c.b16 %v10571, %v10570
  %v10614 = vpack.c.b16 %v10573, %v10572
  %v10615 = vpack.c.b16 %v10575, %v10574
  %v10616 = vpack.c.b16 %v10577, %v10576
  %v10617 = vpack.c.b16 %v10579, %v10578
  %v10618 = vpack.c.b16 %v10581, %v10580
  %v10619 = vpack.c.b16 %v10583, %v10582
  %v10620 = vpack.c.b16 %v10585, %v10584
  %v10621 = vpack.c.b16 %v10587, %v10586
  %v10622 = vpack.c.b16 %v10589, %v10588
  %v10623 = vpack.c.b16 %v10591, %v10590
  %10656 = vmatprep.subr.bf16.mxu0 0
  %10657 = vmatpush1.bf16.msra.mxu0 %v10592
  %10658 = vmatprep.subr.bf16.mxu0 0
  %10659 = vmatpush1.bf16.msra.mxu0 %v10593
  %10660 = vmatprep.subr.bf16.mxu0 0
  %10661 = vmatpush1.bf16.msra.mxu0 %v10594
  %10662 = vmatprep.subr.bf16.mxu0 0
  %10663 = vmatpush1.bf16.msra.mxu0 %v10595
  %10664 = vmatprep.subr.bf16.mxu0 0
  %10665 = vmatpush1.bf16.msra.mxu0 %v10596
  %10666 = vmatprep.subr.bf16.mxu0 0
  %10667 = vmatpush1.bf16.msra.mxu0 %v10597
  %10668 = vmatprep.subr.bf16.mxu0 0
  %10669 = vmatpush1.bf16.msra.mxu0 %v10598
  %10670 = vmatprep.subr.bf16.mxu0 0
  %10671 = vmatpush1.bf16.msra.mxu0 %v10599
  %10672 = vmatprep.subr.bf16.mxu0 0
  %10673 = vmatpush1.bf16.msra.mxu0 %v10600
  %10674 = vmatprep.subr.bf16.mxu0 0
  %10675 = vmatpush1.bf16.msra.mxu0 %v10601
  %10676 = vmatprep.subr.bf16.mxu0 0
  %10677 = vmatpush1.bf16.msra.mxu0 %v10602
  %10678 = vmatprep.subr.bf16.mxu0 0
  %10679 = vmatpush1.bf16.msra.mxu0 %v10603
  %10680 = vmatprep.subr.bf16.mxu0 0
  %10681 = vmatpush1.bf16.msra.mxu0 %v10604
  %10682 = vmatprep.subr.bf16.mxu0 0
  %10683 = vmatpush1.bf16.msra.mxu0 %v10605
  %10684 = vmatprep.subr.bf16.mxu0 0
  %10685 = vmatpush1.bf16.msra.mxu0 %v10606
  %10686 = vmatprep.subr.bf16.mxu0 0
  %10687 = vmatpush1.bf16.msra.mxu0 %v10607
  %10688 = vmatprep.mubr.bf16.mxu0 %v10396
  %10689 = vmatmul.mubr.bf16.gmra.mrb[0].mxu0 %v10395
  %v10690 = vpop.f32.mrb[0].mxu0
  %v10691 = vadd.f32 0.0, %v10690
  %v10692 = vpop.f32.mrb[0].mxu0
  %v10693 = vpop.f32.mrb[0].mxu0
  %v10694 = vpop.f32.mrb[0].mxu0
  %10695 = vdwg.mxu0
  %10696 = vmatprep.subr.bf16.mxu0 0
  %10697 = vmatpush1.bf16.msra.mxu0 %v10608
  %10698 = vmatprep.subr.bf16.mxu0 0
  %10699 = vmatpush1.bf16.msra.mxu0 %v10609
  %10700 = vmatprep.subr.bf16.mxu0 0
  %10701 = vmatpush1.bf16.msra.mxu0 %v10610
  %10702 = vmatprep.subr.bf16.mxu0 0
  %10703 = vmatpush1.bf16.msra.mxu0 %v10611
  %10704 = vmatprep.subr.bf16.mxu0 0
  %10705 = vmatpush1.bf16.msra.mxu0 %v10612
  %10706 = vmatprep.subr.bf16.mxu0 0
  %10707 = vmatpush1.bf16.msra.mxu0 %v10613
  %10708 = vmatprep.subr.bf16.mxu0 0
  %10709 = vmatpush1.bf16.msra.mxu0 %v10614
  %10710 = vmatprep.subr.bf16.mxu0 0
  %10711 = vmatpush1.bf16.msra.mxu0 %v10615
  %10712 = vmatprep.subr.bf16.mxu0 0
  %10713 = vmatpush1.bf16.msra.mxu0 %v10616
  %10714 = vmatprep.subr.bf16.mxu0 0
  %10715 = vmatpush1.bf16.msra.mxu0 %v10617
  %10716 = vmatprep.subr.bf16.mxu0 0
  %10717 = vmatpush1.bf16.msra.mxu0 %v10618
  %10718 = vmatprep.subr.bf16.mxu0 0
  %10719 = vmatpush1.bf16.msra.mxu0 %v10619
  %10720 = vmatprep.subr.bf16.mxu0 0
  %10721 = vmatpush1.bf16.msra.mxu0 %v10620
  %10722 = vmatprep.subr.bf16.mxu0 0
  %10723 = vmatpush1.bf16.msra.mxu0 %v10621
  %10724 = vmatprep.subr.bf16.mxu0 0
  %10725 = vmatpush1.bf16.msra.mxu0 %v10622
  %10726 = vmatprep.subr.bf16.mxu0 0
  %10727 = vmatpush1.bf16.msra.mxu0 %v10623
  %10728 = vmatprep.mubr.bf16.mxu0 %v10398
  %10729 = vmatmul.mubr.bf16.gmra.mrb[0].mxu0 %v10397
  %v10730 = vpop.f32.mrb[0].mxu0
  %v10731 = vadd.f32 %v10691, %v10730
  %v10732 = vpop.f32.mrb[0].mxu0
  %v10733 = vpop.f32.mrb[0].mxu0
  %v10734 = vpop.f32.mrb[0].mxu0
  %10735 = vdwg.mxu0
  %v10800 = vunpack.c.l.b16 %v10331
  %v10801 = vunpack.c.l.b16 %v10332
  %v10802 = vunpack.c.l.b16 %v10333
  %v10803 = vunpack.c.l.b16 %v10334
  %v10804 = vunpack.c.l.b16 %v10335
  %v10805 = vunpack.c.l.b16 %v10336
  %v10806 = vunpack.c.l.b16 %v10337
  %v10807 = vunpack.c.l.b16 %v10338
  %v10808 = vunpack.c.l.b16 %v10339
  %v10809 = vunpack.c.l.b16 %v10340
  %v10810 = vunpack.c.l.b16 %v10341
  %v10811 = vunpack.c.l.b16 %v10342
  %v10812 = vunpack.c.l.b16 %v10343
  %v10813 = vunpack.c.l.b16 %v10344
  %v10814 = vunpack.c.l.b16 %v10345
  %v10815 = vunpack.c.l.b16 %v10346
  %v10816 = vunpack.c.l.b16 %v10347
  %v10817 = vunpack.c.l.b16 %v10348
  %v10818 = vunpack.c.l.b16 %v10349
  %v10819 = vunpack.c.l.b16 %v10350
  %v10820 = vunpack.c.l.b16 %v10351
  %v10821 = vunpack.c.l.b16 %v10352
  %v10822 = vunpack.c.l.b16 %v10353
  %v10823 = vunpack.c.l.b16 %v10354
  %v10824 = vunpack.c.l.b16 %v10355
  %v10825 = vunpack.c.l.b16 %v10356
  %v10826 = vunpack.c.l.b16 %v10357
  %v10827 = vunpack.c.l.b16 %v10358
  %v10828 = vunpack.c.l.b16 %v10359
  %v10829 = vunpack.c.l.b16 %v10360
  %v10830 = vunpack.c.l.b16 %v10361
  %v10831 = vunpack.c.l.b16 %v10362
  %v10832 = vunpack.c.l.b16 %v10363
  %v10833 = vunpack.c.l.b16 %v10364
  %v10834 = vunpack.c.l.b16 %v10365
  %v10835 = vunpack.c.l.b16 %v10366
  %v10836 = vunpack.c.l.b16 %v10367
  %v10837 = vunpack.c.l.b16 %v10368
  %v10838 = vunpack.c.l.b16 %v10369
  %v10839 = vunpack.c.l.b16 %v10370
  %v10840 = vunpack.c.l.b16 %v10371
  %v10841 = vunpack.c.l.b16 %v10372
  %v10842 = vunpack.c.l.b16 %v10373
  %v10843 = vunpack.c.l.b16 %v10374
  %v10844 = vunpack.c.l.b16 %v10375
  %v10845 = vunpack.c.l.b16 %v10376
  %v10846 = vunpack.c.l.b16 %v10377
  %v10847 = vunpack.c.l.b16 %v10378
  %v10848 = vunpack.c.l.b16 %v10379
  %v10849 = vunpack.c.l.b16 %v10380
  %v10850 = vunpack.c.l.b16 %v10381
  %v10851 = vunpack.c.l.b16 %v10382
  %v10852 = vunpack.c.l.b16 %v10383
  %v10853 = vunpack.c.l.b16 %v10384
  %v10854 = vunpack.c.l.b16 %v10385
  %v10855 = vunpack.c.l.b16 %v10386
  %v10856 = vunpack.c.l.b16 %v10387
  %v10857 = vunpack.c.l.b16 %v10388
  %v10858 = vunpack.c.l.b16 %v10389
  %v10859 = vunpack.c.l.b16 %v10390
  %v10860 = vunpack.c.l.b16 %v10391
  %v10861 = vunpack.c.l.b16 %v10392
  %v10862 = vunpack.c.l.b16 %v10393
  %v10863 = vunpack.c.l.b16 %v10394
  %v10864 = vpack.c.b16 %v10801, %v10800
  %v10865 = vpack.c.b16 %v10803, %v10802
  %v10866 = vpack.c.b16 %v10805, %v10804
  %v10867 = vpack.c.b16 %v10807, %v10806
  %v10868 = vpack.c.b16 %v10809, %v10808
  %v10869 = vpack.c.b16 %v10811, %v10810
  %v10870 = vpack.c.b16 %v10813, %v10812
  %v10871 = vpack.c.b16 %v10815, %v10814
  %v10872 = vpack.c.b16 %v10817, %v10816
  %v10873 = vpack.c.b16 %v10819, %v10818
  %v10874 = vpack.c.b16 %v10821, %v10820
  %v10875 = vpack.c.b16 %v10823, %v10822
  %v10876 = vpack.c.b16 %v10825, %v10824
  %v10877 = vpack.c.b16 %v10827, %v10826
  %v10878 = vpack.c.b16 %v10829, %v10828
  %v10879 = vpack.c.b16 %v10831, %v10830
  %v10880 = vpack.c.b16 %v10833, %v10832
  %v10881 = vpack.c.b16 %v10835, %v10834
  %v10882 = vpack.c.b16 %v10837, %v10836
  %v10883 = vpack.c.b16 %v10839, %v10838
  %v10884 = vpack.c.b16 %v10841, %v10840
  %v10885 = vpack.c.b16 %v10843, %v10842
  %v10886 = vpack.c.b16 %v10845, %v10844
  %v10887 = vpack.c.b16 %v10847, %v10846
  %v10888 = vpack.c.b16 %v10849, %v10848
  %v10889 = vpack.c.b16 %v10851, %v10850
  %v10890 = vpack.c.b16 %v10853, %v10852
  %v10891 = vpack.c.b16 %v10855, %v10854
  %v10892 = vpack.c.b16 %v10857, %v10856
  %v10893 = vpack.c.b16 %v10859, %v10858
  %v10894 = vpack.c.b16 %v10861, %v10860
  %v10895 = vpack.c.b16 %v10863, %v10862
  %10928 = vmatprep.subr.bf16.mxu0 0
  %10929 = vmatpush1.bf16.msra.mxu0 %v10864
  %10930 = vmatprep.subr.bf16.mxu0 0
  %10931 = vmatpush1.bf16.msra.mxu0 %v10865
  %10932 = vmatprep.subr.bf16.mxu0 0
  %10933 = vmatpush1.bf16.msra.mxu0 %v10866
  %10934 = vmatprep.subr.bf16.mxu0 0
  %10935 = vmatpush1.bf16.msra.mxu0 %v10867
  %10936 = vmatprep.subr.bf16.mxu0 0
  %10937 = vmatpush1.bf16.msra.mxu0 %v10868
  %10938 = vmatprep.subr.bf16.mxu0 0
  %10939 = vmatpush1.bf16.msra.mxu0 %v10869
  %10940 = vmatprep.subr.bf16.mxu0 0
  %10941 = vmatpush1.bf16.msra.mxu0 %v10870
  %10942 = vmatprep.subr.bf16.mxu0 0
  %10943 = vmatpush1.bf16.msra.mxu0 %v10871
  %10944 = vmatprep.subr.bf16.mxu0 0
  %10945 = vmatpush1.bf16.msra.mxu0 %v10872
  %10946 = vmatprep.subr.bf16.mxu0 0
  %10947 = vmatpush1.bf16.msra.mxu0 %v10873
  %10948 = vmatprep.subr.bf16.mxu0 0
  %10949 = vmatpush1.bf16.msra.mxu0 %v10874
  %10950 = vmatprep.subr.bf16.mxu0 0
  %10951 = vmatpush1.bf16.msra.mxu0 %v10875
  %10952 = vmatprep.subr.bf16.mxu0 0
  %10953 = vmatpush1.bf16.msra.mxu0 %v10876
  %10954 = vmatprep.subr.bf16.mxu0 0
  %10955 = vmatpush1.bf16.msra.mxu0 %v10877
  %10956 = vmatprep.subr.bf16.mxu0 0
  %10957 = vmatpush1.bf16.msra.mxu0 %v10878
  %10958 = vmatprep.subr.bf16.mxu0 0
  %10959 = vmatpush1.bf16.msra.mxu0 %v10879
  %10960 = vmatprep.mubr.bf16.mxu0 %v10328
  %10961 = vmatmul.mubr.bf16.gmra.mrb[0].mxu0 %v10327
  %v10962 = vpop.f32.mrb[0].mxu0
  %v10963 = vadd.f32 %v10731, %v10962
  %v10964 = vpop.f32.mrb[0].mxu0
  %v10965 = vpop.f32.mrb[0].mxu0
  %v10966 = vpop.f32.mrb[0].mxu0
  %10967 = vdwg.mxu0
  %10968 = vmatprep.subr.bf16.mxu0 0
  %10969 = vmatpush1.bf16.msra.mxu0 %v10880
  %10970 = vmatprep.subr.bf16.mxu0 0
  %10971 = vmatpush1.bf16.msra.mxu0 %v10881
  %10972 = vmatprep.subr.bf16.mxu0 0
  %10973 = vmatpush1.bf16.msra.mxu0 %v10882
  %10974 = vmatprep.subr.bf16.mxu0 0
  %10975 = vmatpush1.bf16.msra.mxu0 %v10883
  %10976 = vmatprep.subr.bf16.mxu0 0
  %10977 = vmatpush1.bf16.msra.mxu0 %v10884
  %10978 = vmatprep.subr.bf16.mxu0 0
  %10979 = vmatpush1.bf16.msra.mxu0 %v10885
  %10980 = vmatprep.subr.bf16.mxu0 0
  %10981 = vmatpush1.bf16.msra.mxu0 %v10886
  %10982 = vmatprep.subr.bf16.mxu0 0
  %10983 = vmatpush1.bf16.msra.mxu0 %v10887
  %10984 = vmatprep.subr.bf16.mxu0 0
  %10985 = vmatpush1.bf16.msra.mxu0 %v10888
  %10986 = vmatprep.subr.bf16.mxu0 0
  %10987 = vmatpush1.bf16.msra.mxu0 %v10889
  %10988 = vmatprep.subr.bf16.mxu0 0
  %10989 = vmatpush1.bf16.msra.mxu0 %v10890
  %10990 = vmatprep.subr.bf16.mxu0 0
  %10991 = vmatpush1.bf16.msra.mxu0 %v10891
  %10992 = vmatprep.subr.bf16.mxu0 0
  %10993 = vmatpush1.bf16.msra.mxu0 %v10892
  %10994 = vmatprep.subr.bf16.mxu0 0
  %10995 = vmatpush1.bf16.msra.mxu0 %v10893
  %10996 = vmatprep.subr.bf16.mxu0 0
  %10997 = vmatpush1.bf16.msra.mxu0 %v10894
  %10998 = vmatprep.subr.bf16.mxu0 0
  %10999 = vmatpush1.bf16.msra.mxu0 %v10895
  %11000 = vmatprep.mubr.bf16.mxu0 %v10330
  %11001 = vmatmul.mubr.bf16.gmra.mrb[0].mxu0 %v10329
  %v11002 = vpop.f32.mrb[0].mxu0
  %v11003 = vadd.f32 %v10963, %v11002
  %v11004 = vpop.f32.mrb[0].mxu0
  %v11005 = vpop.f32.mrb[0].mxu0
  %v11006 = vpop.f32.mrb[0].mxu0
  %11007 = vdwg.mxu0
  %v11008 = vpack.c.bf16 %v10307, %v10307
  %v11009 = vpack.c.bf16 %v10308, %v10308
  %v11010 = vpack.c.bf16 %v10309, %v10309
  %v11011 = vpack.c.bf16 %v10310, %v10310
  %s11012 = scalar_lea.vmem %s5, 512
  %v11013 = vld [vmem:[%s11012] sm:$0xf]
  %v11014 = vld [vmem:[%s11012 + $0x4] sm:$0xf]
  %v11015 = vld [vmem:[%s11012 + $0x8] sm:$0xf]
  %v11016 = vld [vmem:[%s11012 + $0xc] sm:$0xf]
  %v11017 = vld [vmem:[%s11012 + $0x10] sm:$0xf]
  %v11018 = vld [vmem:[%s11012 + $0x14] sm:$0xf]
  %v11019 = vld [vmem:[%s11012 + $0x18] sm:$0xf]
  %v11020 = vld [vmem:[%s11012 + $0x1c] sm:$0xf]
  %v11021 = vld [vmem:[%s11012 + $0x20] sm:$0xf]
  %v11022 = vld [vmem:[%s11012 + $0x24] sm:$0xf]
  %v11023 = vld [vmem:[%s11012 + $0x28] sm:$0xf]
  %v11024 = vld [vmem:[%s11012 + $0x2c] sm:$0xf]
  %v11025 = vld [vmem:[%s11012 + $0x30] sm:$0xf]
  %v11026 = vld [vmem:[%s11012 + $0x34] sm:$0xf]
  %v11027 = vld [vmem:[%s11012 + $0x38] sm:$0xf]
  %v11028 = vld [vmem:[%s11012 + $0x3c] sm:$0xf]
  %v11029 = vld [vmem:[%s11012 + $0x40] sm:$0xf]
  %v11030 = vld [vmem:[%s11012 + $0x44] sm:$0xf]
  %v11031 = vld [vmem:[%s11012 + $0x48] sm:$0xf]
  %v11032 = vld [vmem:[%s11012 + $0x4c] sm:$0xf]
  %v11033 = vld [vmem:[%s11012 + $0x50] sm:$0xf]
  %v11034 = vld [vmem:[%s11012 + $0x54] sm:$0xf]
  %v11035 = vld [vmem:[%s11012 + $0x58] sm:$0xf]
  %v11036 = vld [vmem:[%s11012 + $0x5c] sm:$0xf]
  %v11037 = vld [vmem:[%s11012 + $0x60] sm:$0xf]
  %v11038 = vld [vmem:[%s11012 + $0x64] sm:$0xf]
  %v11039 = vld [vmem:[%s11012 + $0x68] sm:$0xf]
  %v11040 = vld [vmem:[%s11012 + $0x6c] sm:$0xf]
  %v11041 = vld [vmem:[%s11012 + $0x70] sm:$0xf]
  %v11042 = vld [vmem:[%s11012 + $0x74] sm:$0xf]
  %v11043 = vld [vmem:[%s11012 + $0x78] sm:$0xf]
  %v11044 = vld [vmem:[%s11012 + $0x7c] sm:$0xf]
  %v11045 = vld [vmem:[%s11012 + $0x80] sm:$0xf]
  %v11046 = vld [vmem:[%s11012 + $0x84] sm:$0xf]
  %v11047 = vld [vmem:[%s11012 + $0x88] sm:$0xf]
  %v11048 = vld [vmem:[%s11012 + $0x8c] sm:$0xf]
  %v11049 = vld [vmem:[%s11012 + $0x90] sm:$0xf]
  %v11050 = vld [vmem:[%s11012 + $0x94] sm:$0xf]
  %v11051 = vld [vmem:[%s11012 + $0x98] sm:$0xf]
  %v11052 = vld [vmem:[%s11012 + $0x9c] sm:$0xf]
  %v11053 = vld [vmem:[%s11012 + $0xa0] sm:$0xf]
  %v11054 = vld [vmem:[%s11012 + $0xa4] sm:$0xf]
  %v11055 = vld [vmem:[%s11012 + $0xa8] sm:$0xf]
  %v11056 = vld [vmem:[%s11012 + $0xac] sm:$0xf]
  %v11057 = vld [vmem:[%s11012 + $0xb0] sm:$0xf]
  %v11058 = vld [vmem:[%s11012 + $0xb4] sm:$0xf]
  %v11059 = vld [vmem:[%s11012 + $0xb8] sm:$0xf]
  %v11060 = vld [vmem:[%s11012 + $0xbc] sm:$0xf]
  %v11061 = vld [vmem:[%s11012 + $0xc0] sm:$0xf]
  %v11062 = vld [vmem:[%s11012 + $0xc4] sm:$0xf]
  %v11063 = vld [vmem:[%s11012 + $0xc8] sm:$0xf]
  %v11064 = vld [vmem:[%s11012 + $0xcc] sm:$0xf]
  %v11065 = vld [vmem:[%s11012 + $0xd0] sm:$0xf]
  %v11066 = vld [vmem:[%s11012 + $0xd4] sm:$0xf]
  %v11067 = vld [vmem:[%s11012 + $0xd8] sm:$0xf]
  %v11068 = vld [vmem:[%s11012 + $0xdc] sm:$0xf]
  %v11069 = vld [vmem:[%s11012 + $0xe0] sm:$0xf]
  %v11070 = vld [vmem:[%s11012 + $0xe4] sm:$0xf]
  %v11071 = vld [vmem:[%s11012 + $0xe8] sm:$0xf]
  %v11072 = vld [vmem:[%s11012 + $0xec] sm:$0xf]
  %v11073 = vld [vmem:[%s11012 + $0xf0] sm:$0xf]
  %v11074 = vld [vmem:[%s11012 + $0xf4] sm:$0xf]
  %v11075 = vld [vmem:[%s11012 + $0xf8] sm:$0xf]
  %v11076 = vld [vmem:[%s11012 + $0xfc] sm:$0xf]
  %v11141 = vunpack.c.l.b16 %v11013
  %v11142 = vunpack.c.l.b16 %v11014
  %v11143 = vunpack.c.l.b16 %v11015
  %v11144 = vunpack.c.l.b16 %v11016
  %v11145 = vunpack.c.l.b16 %v11017
  %v11146 = vunpack.c.l.b16 %v11018
  %v11147 = vunpack.c.l.b16 %v11019
  %v11148 = vunpack.c.l.b16 %v11020
  %v11149 = vunpack.c.l.b16 %v11021
  %v11150 = vunpack.c.l.b16 %v11022
  %v11151 = vunpack.c.l.b16 %v11023
  %v11152 = vunpack.c.l.b16 %v11024
  %v11153 = vunpack.c.l.b16 %v11025
  %v11154 = vunpack.c.l.b16 %v11026
  %v11155 = vunpack.c.l.b16 %v11027
  %v11156 = vunpack.c.l.b16 %v11028
  %v11157 = vunpack.c.l.b16 %v11029
  %v11158 = vunpack.c.l.b16 %v11030
  %v11159 = vunpack.c.l.b16 %v11031
  %v11160 = vunpack.c.l.b16 %v11032
  %v11161 = vunpack.c.l.b16 %v11033
  %v11162 = vunpack.c.l.b16 %v11034
  %v11163 = vunpack.c.l.b16 %v11035
  %v11164 = vunpack.c.l.b16 %v11036
  %v11165 = vunpack.c.l.b16 %v11037
  %v11166 = vunpack.c.l.b16 %v11038
  %v11167 = vunpack.c.l.b16 %v11039
  %v11168 = vunpack.c.l.b16 %v11040
  %v11169 = vunpack.c.l.b16 %v11041
  %v11170 = vunpack.c.l.b16 %v11042
  %v11171 = vunpack.c.l.b16 %v11043
  %v11172 = vunpack.c.l.b16 %v11044
  %v11173 = vunpack.c.l.b16 %v11045
  %v11174 = vunpack.c.l.b16 %v11046
  %v11175 = vunpack.c.l.b16 %v11047
  %v11176 = vunpack.c.l.b16 %v11048
  %v11177 = vunpack.c.l.b16 %v11049
  %v11178 = vunpack.c.l.b16 %v11050
  %v11179 = vunpack.c.l.b16 %v11051
  %v11180 = vunpack.c.l.b16 %v11052
  %v11181 = vunpack.c.l.b16 %v11053
  %v11182 = vunpack.c.l.b16 %v11054
  %v11183 = vunpack.c.l.b16 %v11055
  %v11184 = vunpack.c.l.b16 %v11056
  %v11185 = vunpack.c.l.b16 %v11057
  %v11186 = vunpack.c.l.b16 %v11058
  %v11187 = vunpack.c.l.b16 %v11059
  %v11188 = vunpack.c.l.b16 %v11060
  %v11189 = vunpack.c.l.b16 %v11061
  %v11190 = vunpack.c.l.b16 %v11062
  %v11191 = vunpack.c.l.b16 %v11063
  %v11192 = vunpack.c.l.b16 %v11064
  %v11193 = vunpack.c.l.b16 %v11065
  %v11194 = vunpack.c.l.b16 %v11066
  %v11195 = vunpack.c.l.b16 %v11067
  %v11196 = vunpack.c.l.b16 %v11068
  %v11197 = vunpack.c.l.b16 %v11069
  %v11198 = vunpack.c.l.b16 %v11070
  %v11199 = vunpack.c.l.b16 %v11071
  %v11200 = vunpack.c.l.b16 %v11072
  %v11201 = vunpack.c.l.b16 %v11073
  %v11202 = vunpack.c.l.b16 %v11074
  %v11203 = vunpack.c.l.b16 %v11075
  %v11204 = vunpack.c.l.b16 %v11076
  %v11205 = vpack.c.b16 %v11142, %v11141
  %v11206 = vpack.c.b16 %v11144, %v11143
  %v11207 = vpack.c.b16 %v11146, %v11145
  %v11208 = vpack.c.b16 %v11148, %v11147
  %v11209 = vpack.c.b16 %v11150, %v11149
  %v11210 = vpack.c.b16 %v11152, %v11151
  %v11211 = vpack.c.b16 %v11154, %v11153
  %v11212 = vpack.c.b16 %v11156, %v11155
  %v11213 = vpack.c.b16 %v11158, %v11157
  %v11214 = vpack.c.b16 %v11160, %v11159
  %v11215 = vpack.c.b16 %v11162, %v11161
  %v11216 = vpack.c.b16 %v11164, %v11163
  %v11217 = vpack.c.b16 %v11166, %v11165
  %v11218 = vpack.c.b16 %v11168, %v11167
  %v11219 = vpack.c.b16 %v11170, %v11169
  %v11220 = vpack.c.b16 %v11172, %v11171
  %v11221 = vpack.c.b16 %v11174, %v11173
  %v11222 = vpack.c.b16 %v11176, %v11175
  %v11223 = vpack.c.b16 %v11178, %v11177
  %v11224 = vpack.c.b16 %v11180, %v11179
  %v11225 = vpack.c.b16 %v11182, %v11181
  %v11226 = vpack.c.b16 %v11184, %v11183
  %v11227 = vpack.c.b16 %v11186, %v11185
  %v11228 = vpack.c.b16 %v11188, %v11187
  %v11229 = vpack.c.b16 %v11190, %v11189
  %v11230 = vpack.c.b16 %v11192, %v11191
  %v11231 = vpack.c.b16 %v11194, %v11193
  %v11232 = vpack.c.b16 %v11196, %v11195
  %v11233 = vpack.c.b16 %v11198, %v11197
  %v11234 = vpack.c.b16 %v11200, %v11199
  %v11235 = vpack.c.b16 %v11202, %v11201
  %v11236 = vpack.c.b16 %v11204, %v11203
  %11269 = vmatprep.subr.bf16.mxu0 0
  %11270 = vmatpush1.bf16.msra.mxu0 %v11205
  %11271 = vmatprep.subr.bf16.mxu0 0
  %11272 = vmatpush1.bf16.msra.mxu0 %v11206
  %11273 = vmatprep.subr.bf16.mxu0 0
  %11274 = vmatpush1.bf16.msra.mxu0 %v11207
  %11275 = vmatprep.subr.bf16.mxu0 0
  %11276 = vmatpush1.bf16.msra.mxu0 %v11208
  %11277 = vmatprep.subr.bf16.mxu0 0
  %11278 = vmatpush1.bf16.msra.mxu0 %v11209
  %11279 = vmatprep.subr.bf16.mxu0 0
  %11280 = vmatpush1.bf16.msra.mxu0 %v11210
  %11281 = vmatprep.subr.bf16.mxu0 0
  %11282 = vmatpush1.bf16.msra.mxu0 %v11211
  %11283 = vmatprep.subr.bf16.mxu0 0
  %11284 = vmatpush1.bf16.msra.mxu0 %v11212
  %11285 = vmatprep.subr.bf16.mxu0 0
  %11286 = vmatpush1.bf16.msra.mxu0 %v11213
  %11287 = vmatprep.subr.bf16.mxu0 0
  %11288 = vmatpush1.bf16.msra.mxu0 %v11214
  %11289 = vmatprep.subr.bf16.mxu0 0
  %11290 = vmatpush1.bf16.msra.mxu0 %v11215
  %11291 = vmatprep.subr.bf16.mxu0 0
  %11292 = vmatpush1.bf16.msra.mxu0 %v11216
  %11293 = vmatprep.subr.bf16.mxu0 0
  %11294 = vmatpush1.bf16.msra.mxu0 %v11217
  %11295 = vmatprep.subr.bf16.mxu0 0
  %11296 = vmatpush1.bf16.msra.mxu0 %v11218
  %11297 = vmatprep.subr.bf16.mxu0 0
  %11298 = vmatpush1.bf16.msra.mxu0 %v11219
  %11299 = vmatprep.subr.bf16.mxu0 0
  %11300 = vmatpush1.bf16.msra.mxu0 %v11220
  %11301 = vmatprep.mubr.bf16.mxu0 %v11009
  %11302 = vmatmul.mubr.bf16.gmra.mrb[0].mxu0 %v11008
  %v11303 = vpop.f32.mrb[0].mxu0
  %v11304 = vadd.f32 0.0, %v11303
  %v11305 = vpop.f32.mrb[0].mxu0
  %v11306 = vpop.f32.mrb[0].mxu0
  %v11307 = vpop.f32.mrb[0].mxu0
  %11308 = vdwg.mxu0
  %11309 = vmatprep.subr.bf16.mxu0 0
  %11310 = vmatpush1.bf16.msra.mxu0 %v11221
  %11311 = vmatprep.subr.bf16.mxu0 0
  %11312 = vmatpush1.bf16.msra.mxu0 %v11222
  %11313 = vmatprep.subr.bf16.mxu0 0
  %11314 = vmatpush1.bf16.msra.mxu0 %v11223
  %11315 = vmatprep.subr.bf16.mxu0 0
  %11316 = vmatpush1.bf16.msra.mxu0 %v11224
  %11317 = vmatprep.subr.bf16.mxu0 0
  %11318 = vmatpush1.bf16.msra.mxu0 %v11225
  %11319 = vmatprep.subr.bf16.mxu0 0
  %11320 = vmatpush1.bf16.msra.mxu0 %v11226
  %11321 = vmatprep.subr.bf16.mxu0 0
  %11322 = vmatpush1.bf16.msra.mxu0 %v11227
  %11323 = vmatprep.subr.bf16.mxu0 0
  %11324 = vmatpush1.bf16.msra.mxu0 %v11228
  %11325 = vmatprep.subr.bf16.mxu0 0
  %11326 = vmatpush1.bf16.msra.mxu0 %v11229
  %11327 = vmatprep.subr.bf16.mxu0 0
  %11328 = vmatpush1.bf16.msra.mxu0 %v11230
  %11329 = vmatprep.subr.bf16.mxu0 0
  %11330 = vmatpush1.bf16.msra.mxu0 %v11231
  %11331 = vmatprep.subr.bf16.mxu0 0
  %11332 = vmatpush1.bf16.msra.mxu0 %v11232
  %11333 = vmatprep.subr.bf16.mxu0 0
  %11334 = vmatpush1.bf16.msra.mxu0 %v11233
  %11335 = vmatprep.subr.bf16.mxu0 0
  %11336 = vmatpush1.bf16.msra.mxu0 %v11234
  %11337 = vmatprep.subr.bf16.mxu0 0
  %11338 = vmatpush1.bf16.msra.mxu0 %v11235
  %11339 = vmatprep.subr.bf16.mxu0 0
  %11340 = vmatpush1.bf16.msra.mxu0 %v11236
  %11341 = vmatprep.mubr.bf16.mxu0 %v11011
  %11342 = vmatmul.mubr.bf16.gmra.mrb[0].mxu0 %v11010
  %v11343 = vpop.f32.mrb[0].mxu0
  %v11344 = vadd.f32 %v11304, %v11343
  %v11345 = vpop.f32.mrb[0].mxu0
  %v11346 = vpop.f32.mrb[0].mxu0
  %v11347 = vpop.f32.mrb[0].mxu0
  %11348 = vdwg.mxu0
  %v11349 = vadd.f32 %v11003, %v11344
  %v11350 = vpack.c.bf16 %v10311, %v10311
  %v11351 = vpack.c.bf16 %v10312, %v10312
  %v11352 = vpack.c.bf16 %v10313, %v10313
  %v11353 = vpack.c.bf16 %v10314, %v10314
  %s11354 = scalar_lea.vmem %s5, 768
  %v11355 = vld [vmem:[%s11354] sm:$0xf]
  %v11356 = vld [vmem:[%s11354 + $0x4] sm:$0xf]
  %v11357 = vld [vmem:[%s11354 + $0x8] sm:$0xf]
  %v11358 = vld [vmem:[%s11354 + $0xc] sm:$0xf]
  %v11359 = vld [vmem:[%s11354 + $0x10] sm:$0xf]
  %v11360 = vld [vmem:[%s11354 + $0x14] sm:$0xf]
  %v11361 = vld [vmem:[%s11354 + $0x18] sm:$0xf]
  %v11362 = vld [vmem:[%s11354 + $0x1c] sm:$0xf]
  %v11363 = vld [vmem:[%s11354 + $0x20] sm:$0xf]
  %v11364 = vld [vmem:[%s11354 + $0x24] sm:$0xf]
  %v11365 = vld [vmem:[%s11354 + $0x28] sm:$0xf]
  %v11366 = vld [vmem:[%s11354 + $0x2c] sm:$0xf]
  %v11367 = vld [vmem:[%s11354 + $0x30] sm:$0xf]
  %v11368 = vld [vmem:[%s11354 + $0x34] sm:$0xf]
  %v11369 = vld [vmem:[%s11354 + $0x38] sm:$0xf]
  %v11370 = vld [vmem:[%s11354 + $0x3c] sm:$0xf]
  %v11371 = vld [vmem:[%s11354 + $0x40] sm:$0xf]
  %v11372 = vld [vmem:[%s11354 + $0x44] sm:$0xf]
  %v11373 = vld [vmem:[%s11354 + $0x48] sm:$0xf]
  %v11374 = vld [vmem:[%s11354 + $0x4c] sm:$0xf]
  %v11375 = vld [vmem:[%s11354 + $0x50] sm:$0xf]
  %v11376 = vld [vmem:[%s11354 + $0x54] sm:$0xf]
  %v11377 = vld [vmem:[%s11354 + $0x58] sm:$0xf]
  %v11378 = vld [vmem:[%s11354 + $0x5c] sm:$0xf]
  %v11379 = vld [vmem:[%s11354 + $0x60] sm:$0xf]
  %v11380 = vld [vmem:[%s11354 + $0x64] sm:$0xf]
  %v11381 = vld [vmem:[%s11354 + $0x68] sm:$0xf]
  %v11382 = vld [vmem:[%s11354 + $0x6c] sm:$0xf]
  %v11383 = vld [vmem:[%s11354 + $0x70] sm:$0xf]
  %v11384 = vld [vmem:[%s11354 + $0x74] sm:$0xf]
  %v11385 = vld [vmem:[%s11354 + $0x78] sm:$0xf]
  %v11386 = vld [vmem:[%s11354 + $0x7c] sm:$0xf]
  %v11387 = vld [vmem:[%s11354 + $0x80] sm:$0xf]
  %v11388 = vld [vmem:[%s11354 + $0x84] sm:$0xf]
  %v11389 = vld [vmem:[%s11354 + $0x88] sm:$0xf]
  %v11390 = vld [vmem:[%s11354 + $0x8c] sm:$0xf]
  %v11391 = vld [vmem:[%s11354 + $0x90] sm:$0xf]
  %v11392 = vld [vmem:[%s11354 + $0x94] sm:$0xf]
  %v11393 = vld [vmem:[%s11354 + $0x98] sm:$0xf]
  %v11394 = vld [vmem:[%s11354 + $0x9c] sm:$0xf]
  %v11395 = vld [vmem:[%s11354 + $0xa0] sm:$0xf]
  %v11396 = vld [vmem:[%s11354 + $0xa4] sm:$0xf]
  %v11397 = vld [vmem:[%s11354 + $0xa8] sm:$0xf]
  %v11398 = vld [vmem:[%s11354 + $0xac] sm:$0xf]
  %v11399 = vld [vmem:[%s11354 + $0xb0] sm:$0xf]
  %v11400 = vld [vmem:[%s11354 + $0xb4] sm:$0xf]
  %v11401 = vld [vmem:[%s11354 + $0xb8] sm:$0xf]
  %v11402 = vld [vmem:[%s11354 + $0xbc] sm:$0xf]
  %v11403 = vld [vmem:[%s11354 + $0xc0] sm:$0xf]
  %v11404 = vld [vmem:[%s11354 + $0xc4] sm:$0xf]
  %v11405 = vld [vmem:[%s11354 + $0xc8] sm:$0xf]
  %v11406 = vld [vmem:[%s11354 + $0xcc] sm:$0xf]
  %v11407 = vld [vmem:[%s11354 + $0xd0] sm:$0xf]
  %v11408 = vld [vmem:[%s11354 + $0xd4] sm:$0xf]
  %v11409 = vld [vmem:[%s11354 + $0xd8] sm:$0xf]
  %v11410 = vld [vmem:[%s11354 + $0xdc] sm:$0xf]
  %v11411 = vld [vmem:[%s11354 + $0xe0] sm:$0xf]
  %v11412 = vld [vmem:[%s11354 + $0xe4] sm:$0xf]
  %v11413 = vld [vmem:[%s11354 + $0xe8] sm:$0xf]
  %v11414 = vld [vmem:[%s11354 + $0xec] sm:$0xf]
  %v11415 = vld [vmem:[%s11354 + $0xf0] sm:$0xf]
  %v11416 = vld [vmem:[%s11354 + $0xf4] sm:$0xf]
  %v11417 = vld [vmem:[%s11354 + $0xf8] sm:$0xf]
  %v11418 = vld [vmem:[%s11354 + $0xfc] sm:$0xf]
  %v11483 = vunpack.c.l.b16 %v11355
  %v11484 = vunpack.c.l.b16 %v11356
  %v11485 = vunpack.c.l.b16 %v11357
  %v11486 = vunpack.c.l.b16 %v11358
  %v11487 = vunpack.c.l.b16 %v11359
  %v11488 = vunpack.c.l.b16 %v11360
  %v11489 = vunpack.c.l.b16 %v11361
  %v11490 = vunpack.c.l.b16 %v11362
  %v11491 = vunpack.c.l.b16 %v11363
  %v11492 = vunpack.c.l.b16 %v11364
  %v11493 = vunpack.c.l.b16 %v11365
  %v11494 = vunpack.c.l.b16 %v11366
  %v11495 = vunpack.c.l.b16 %v11367
  %v11496 = vunpack.c.l.b16 %v11368
  %v11497 = vunpack.c.l.b16 %v11369
  %v11498 = vunpack.c.l.b16 %v11370
  %v11499 = vunpack.c.l.b16 %v11371
  %v11500 = vunpack.c.l.b16 %v11372
  %v11501 = vunpack.c.l.b16 %v11373
  %v11502 = vunpack.c.l.b16 %v11374
  %v11503 = vunpack.c.l.b16 %v11375
  %v11504 = vunpack.c.l.b16 %v11376
  %v11505 = vunpack.c.l.b16 %v11377
  %v11506 = vunpack.c.l.b16 %v11378
  %v11507 = vunpack.c.l.b16 %v11379
  %v11508 = vunpack.c.l.b16 %v11380
  %v11509 = vunpack.c.l.b16 %v11381
  %v11510 = vunpack.c.l.b16 %v11382
  %v11511 = vunpack.c.l.b16 %v11383
  %v11512 = vunpack.c.l.b16 %v11384
  %v11513 = vunpack.c.l.b16 %v11385
  %v11514 = vunpack.c.l.b16 %v11386
  %v11515 = vunpack.c.l.b16 %v11387
  %v11516 = vunpack.c.l.b16 %v11388
  %v11517 = vunpack.c.l.b16 %v11389
  %v11518 = vunpack.c.l.b16 %v11390
  %v11519 = vunpack.c.l.b16 %v11391
  %v11520 = vunpack.c.l.b16 %v11392
  %v11521 = vunpack.c.l.b16 %v11393
  %v11522 = vunpack.c.l.b16 %v11394
  %v11523 = vunpack.c.l.b16 %v11395
  %v11524 = vunpack.c.l.b16 %v11396
  %v11525 = vunpack.c.l.b16 %v11397
  %v11526 = vunpack.c.l.b16 %v11398
  %v11527 = vunpack.c.l.b16 %v11399
  %v11528 = vunpack.c.l.b16 %v11400
  %v11529 = vunpack.c.l.b16 %v11401
  %v11530 = vunpack.c.l.b16 %v11402
  %v11531 = vunpack.c.l.b16 %v11403
  %v11532 = vunpack.c.l.b16 %v11404
  %v11533 = vunpack.c.l.b16 %v11405
  %v11534 = vunpack.c.l.b16 %v11406
  %v11535 = vunpack.c.l.b16 %v11407
  %v11536 = vunpack.c.l.b16 %v11408
  %v11537 = vunpack.c.l.b16 %v11409
  %v11538 = vunpack.c.l.b16 %v11410
  %v11539 = vunpack.c.l.b16 %v11411
  %v11540 = vunpack.c.l.b16 %v11412
  %v11541 = vunpack.c.l.b16 %v11413
  %v11542 = vunpack.c.l.b16 %v11414
  %v11543 = vunpack.c.l.b16 %v11415
  %v11544 = vunpack.c.l.b16 %v11416
  %v11545 = vunpack.c.l.b16 %v11417
  %v11546 = vunpack.c.l.b16 %v11418
  %v11547 = vpack.c.b16 %v11484, %v11483
  %v11548 = vpack.c.b16 %v11486, %v11485
  %v11549 = vpack.c.b16 %v11488, %v11487
  %v11550 = vpack.c.b16 %v11490, %v11489
  %v11551 = vpack.c.b16 %v11492, %v11491
  %v11552 = vpack.c.b16 %v11494, %v11493
  %v11553 = vpack.c.b16 %v11496, %v11495
  %v11554 = vpack.c.b16 %v11498, %v11497
  %v11555 = vpack.c.b16 %v11500, %v11499
  %v11556 = vpack.c.b16 %v11502, %v11501
  %v11557 = vpack.c.b16 %v11504, %v11503
  %v11558 = vpack.c.b16 %v11506, %v11505
  %v11559 = vpack.c.b16 %v11508, %v11507
  %v11560 = vpack.c.b16 %v11510, %v11509
  %v11561 = vpack.c.b16 %v11512, %v11511
  %v11562 = vpack.c.b16 %v11514, %v11513
  %v11563 = vpack.c.b16 %v11516, %v11515
  %v11564 = vpack.c.b16 %v11518, %v11517
  %v11565 = vpack.c.b16 %v11520, %v11519
  %v11566 = vpack.c.b16 %v11522, %v11521
  %v11567 = vpack.c.b16 %v11524, %v11523
  %v11568 = vpack.c.b16 %v11526, %v11525
  %v11569 = vpack.c.b16 %v11528, %v11527
  %v11570 = vpack.c.b16 %v11530, %v11529
  %v11571 = vpack.c.b16 %v11532, %v11531
  %v11572 = vpack.c.b16 %v11534, %v11533
  %v11573 = vpack.c.b16 %v11536, %v11535
  %v11574 = vpack.c.b16 %v11538, %v11537
  %v11575 = vpack.c.b16 %v11540, %v11539
  %v11576 = vpack.c.b16 %v11542, %v11541
  %v11577 = vpack.c.b16 %v11544, %v11543
  %v11578 = vpack.c.b16 %v11546, %v11545
  %11611 = vmatprep.subr.bf16.mxu0 0
  %11612 = vmatpush1.bf16.msra.mxu0 %v11547
  %11613 = vmatprep.subr.bf16.mxu0 0
  %11614 = vmatpush1.bf16.msra.mxu0 %v11548
  %11615 = vmatprep.subr.bf16.mxu0 0
  %11616 = vmatpush1.bf16.msra.mxu0 %v11549
  %11617 = vmatprep.subr.bf16.mxu0 0
  %11618 = vmatpush1.bf16.msra.mxu0 %v11550
  %11619 = vmatprep.subr.bf16.mxu0 0
  %11620 = vmatpush1.bf16.msra.mxu0 %v11551
  %11621 = vmatprep.subr.bf16.mxu0 0
  %11622 = vmatpush1.bf16.msra.mxu0 %v11552
  %11623 = vmatprep.subr.bf16.mxu0 0
  %11624 = vmatpush1.bf16.msra.mxu0 %v11553
  %11625 = vmatprep.subr.bf16.mxu0 0
  %11626 = vmatpush1.bf16.msra.mxu0 %v11554
  %11627 = vmatprep.subr.bf16.mxu0 0
  %11628 = vmatpush1.bf16.msra.mxu0 %v11555
  %11629 = vmatprep.subr.bf16.mxu0 0
  %11630 = vmatpush1.bf16.msra.mxu0 %v11556
  %11631 = vmatprep.subr.bf16.mxu0 0
  %11632 = vmatpush1.bf16.msra.mxu0 %v11557
  %11633 = vmatprep.subr.bf16.mxu0 0
  %11634 = vmatpush1.bf16.msra.mxu0 %v11558
  %11635 = vmatprep.subr.bf16.mxu0 0
  %11636 = vmatpush1.bf16.msra.mxu0 %v11559
  %11637 = vmatprep.subr.bf16.mxu0 0
  %11638 = vmatpush1.bf16.msra.mxu0 %v11560
  %11639 = vmatprep.subr.bf16.mxu0 0
  %11640 = vmatpush1.bf16.msra.mxu0 %v11561
  %11641 = vmatprep.subr.bf16.mxu0 0
  %11642 = vmatpush1.bf16.msra.mxu0 %v11562
  %11643 = vmatprep.mubr.bf16.mxu0 %v11351
  %11644 = vmatmul.mubr.bf16.gmra.mrb[0].mxu0 %v11350
  %v11645 = vpop.f32.mrb[0].mxu0
  %v11646 = vadd.f32 0.0, %v11645
  %v11647 = vpop.f32.mrb[0].mxu0
  %v11648 = vpop.f32.mrb[0].mxu0
  %v11649 = vpop.f32.mrb[0].mxu0
  %11650 = vdwg.mxu0
  %11651 = vmatprep.subr.bf16.mxu0 0
  %11652 = vmatpush1.bf16.msra.mxu0 %v11563
  %11653 = vmatprep.subr.bf16.mxu0 0
  %11654 = vmatpush1.bf16.msra.mxu0 %v11564
  %11655 = vmatprep.subr.bf16.mxu0 0
  %11656 = vmatpush1.bf16.msra.mxu0 %v11565
  %11657 = vmatprep.subr.bf16.mxu0 0
  %11658 = vmatpush1.bf16.msra.mxu0 %v11566
  %11659 = vmatprep.subr.bf16.mxu0 0
  %11660 = vmatpush1.bf16.msra.mxu0 %v11567
  %11661 = vmatprep.subr.bf16.mxu0 0
  %11662 = vmatpush1.bf16.msra.mxu0 %v11568
  %11663 = vmatprep.subr.bf16.mxu0 0
  %11664 = vmatpush1.bf16.msra.mxu0 %v11569
  %11665 = vmatprep.subr.bf16.mxu0 0
  %11666 = vmatpush1.bf16.msra.mxu0 %v11570
  %11667 = vmatprep.subr.bf16.mxu0 0
  %11668 = vmatpush1.bf16.msra.mxu0 %v11571
  %11669 = vmatprep.subr.bf16.mxu0 0
  %11670 = vmatpush1.bf16.msra.mxu0 %v11572
  %11671 = vmatprep.subr.bf16.mxu0 0
  %11672 = vmatpush1.bf16.msra.mxu0 %v11573
  %11673 = vmatprep.subr.bf16.mxu0 0
  %11674 = vmatpush1.bf16.msra.mxu0 %v11574
  %11675 = vmatprep.subr.bf16.mxu0 0
  %11676 = vmatpush1.bf16.msra.mxu0 %v11575
  %11677 = vmatprep.subr.bf16.mxu0 0
  %11678 = vmatpush1.bf16.msra.mxu0 %v11576
  %11679 = vmatprep.subr.bf16.mxu0 0
  %11680 = vmatpush1.bf16.msra.mxu0 %v11577
  %11681 = vmatprep.subr.bf16.mxu0 0
  %11682 = vmatpush1.bf16.msra.mxu0 %v11578
  %11683 = vmatprep.mubr.bf16.mxu0 %v11353
  %11684 = vmatmul.mubr.bf16.gmra.mrb[0].mxu0 %v11352
  %v11685 = vpop.f32.mrb[0].mxu0
  %v11686 = vadd.f32 %v11646, %v11685
  %v11687 = vpop.f32.mrb[0].mxu0
  %v11688 = vpop.f32.mrb[0].mxu0
  %v11689 = vpop.f32.mrb[0].mxu0
  %11690 = vdwg.mxu0
  %v11691 = vadd.f32 %v11349, %v11686
  %v11692 = vpack.c.bf16 %v10315, %v10315
  %v11693 = vpack.c.bf16 %v10316, %v10316
  %v11694 = vpack.c.bf16 %v10317, %v10317
  %v11695 = vpack.c.bf16 %v10318, %v10318
  %s11696 = scalar_lea.vmem %s5, 1024
  %v11697 = vld [vmem:[%s11696] sm:$0xf]
  %v11698 = vld [vmem:[%s11696 + $0x4] sm:$0xf]
  %v11699 = vld [vmem:[%s11696 + $0x8] sm:$0xf]
  %v11700 = vld [vmem:[%s11696 + $0xc] sm:$0xf]
  %v11701 = vld [vmem:[%s11696 + $0x10] sm:$0xf]
  %v11702 = vld [vmem:[%s11696 + $0x14] sm:$0xf]
  %v11703 = vld [vmem:[%s11696 + $0x18] sm:$0xf]
  %v11704 = vld [vmem:[%s11696 + $0x1c] sm:$0xf]
  %v11705 = vld [vmem:[%s11696 + $0x20] sm:$0xf]
  %v11706 = vld [vmem:[%s11696 + $0x24] sm:$0xf]
  %v11707 = vld [vmem:[%s11696 + $0x28] sm:$0xf]
  %v11708 = vld [vmem:[%s11696 + $0x2c] sm:$0xf]
  %v11709 = vld [vmem:[%s11696 + $0x30] sm:$0xf]
  %v11710 = vld [vmem:[%s11696 + $0x34] sm:$0xf]
  %v11711 = vld [vmem:[%s11696 + $0x38] sm:$0xf]
  %v11712 = vld [vmem:[%s11696 + $0x3c] sm:$0xf]
  %v11713 = vld [vmem:[%s11696 + $0x40] sm:$0xf]
  %v11714 = vld [vmem:[%s11696 + $0x44] sm:$0xf]
  %v11715 = vld [vmem:[%s11696 + $0x48] sm:$0xf]
  %v11716 = vld [vmem:[%s11696 + $0x4c] sm:$0xf]
  %v11717 = vld [vmem:[%s11696 + $0x50] sm:$0xf]
  %v11718 = vld [vmem:[%s11696 + $0x54] sm:$0xf]
  %v11719 = vld [vmem:[%s11696 + $0x58] sm:$0xf]
  %v11720 = vld [vmem:[%s11696 + $0x5c] sm:$0xf]
  %v11721 = vld [vmem:[%s11696 + $0x60] sm:$0xf]
  %v11722 = vld [vmem:[%s11696 + $0x64] sm:$0xf]
  %v11723 = vld [vmem:[%s11696 + $0x68] sm:$0xf]
  %v11724 = vld [vmem:[%s11696 + $0x6c] sm:$0xf]
  %v11725 = vld [vmem:[%s11696 + $0x70] sm:$0xf]
  %v11726 = vld [vmem:[%s11696 + $0x74] sm:$0xf]
  %v11727 = vld [vmem:[%s11696 + $0x78] sm:$0xf]
  %v11728 = vld [vmem:[%s11696 + $0x7c] sm:$0xf]
  %v11729 = vld [vmem:[%s11696 + $0x80] sm:$0xf]
  %v11730 = vld [vmem:[%s11696 + $0x84] sm:$0xf]
  %v11731 = vld [vmem:[%s11696 + $0x88] sm:$0xf]
  %v11732 = vld [vmem:[%s11696 + $0x8c] sm:$0xf]
  %v11733 = vld [vmem:[%s11696 + $0x90] sm:$0xf]
  %v11734 = vld [vmem:[%s11696 + $0x94] sm:$0xf]
  %v11735 = vld [vmem:[%s11696 + $0x98] sm:$0xf]
  %v11736 = vld [vmem:[%s11696 + $0x9c] sm:$0xf]
  %v11737 = vld [vmem:[%s11696 + $0xa0] sm:$0xf]
  %v11738 = vld [vmem:[%s11696 + $0xa4] sm:$0xf]
  %v11739 = vld [vmem:[%s11696 + $0xa8] sm:$0xf]
  %v11740 = vld [vmem:[%s11696 + $0xac] sm:$0xf]
  %v11741 = vld [vmem:[%s11696 + $0xb0] sm:$0xf]
  %v11742 = vld [vmem:[%s11696 + $0xb4] sm:$0xf]
  %v11743 = vld [vmem:[%s11696 + $0xb8] sm:$0xf]
  %v11744 = vld [vmem:[%s11696 + $0xbc] sm:$0xf]
  %v11745 = vld [vmem:[%s11696 + $0xc0] sm:$0xf]
  %v11746 = vld [vmem:[%s11696 + $0xc4] sm:$0xf]
  %v11747 = vld [vmem:[%s11696 + $0xc8] sm:$0xf]
  %v11748 = vld [vmem:[%s11696 + $0xcc] sm:$0xf]
  %v11749 = vld [vmem:[%s11696 + $0xd0] sm:$0xf]
  %v11750 = vld [vmem:[%s11696 + $0xd4] sm:$0xf]
  %v11751 = vld [vmem:[%s11696 + $0xd8] sm:$0xf]
  %v11752 = vld [vmem:[%s11696 + $0xdc] sm:$0xf]
  %v11753 = vld [vmem:[%s11696 + $0xe0] sm:$0xf]
  %v11754 = vld [vmem:[%s11696 + $0xe4] sm:$0xf]
  %v11755 = vld [vmem:[%s11696 + $0xe8] sm:$0xf]
  %v11756 = vld [vmem:[%s11696 + $0xec] sm:$0xf]
  %v11757 = vld [vmem:[%s11696 + $0xf0] sm:$0xf]
  %v11758 = vld [vmem:[%s11696 + $0xf4] sm:$0xf]
  %v11759 = vld [vmem:[%s11696 + $0xf8] sm:$0xf]
  %v11760 = vld [vmem:[%s11696 + $0xfc] sm:$0xf]
  %v11825 = vunpack.c.l.b16 %v11697
  %v11826 = vunpack.c.l.b16 %v11698
  %v11827 = vunpack.c.l.b16 %v11699
  %v11828 = vunpack.c.l.b16 %v11700
  %v11829 = vunpack.c.l.b16 %v11701
  %v11830 = vunpack.c.l.b16 %v11702
  %v11831 = vunpack.c.l.b16 %v11703
  %v11832 = vunpack.c.l.b16 %v11704
  %v11833 = vunpack.c.l.b16 %v11705
  %v11834 = vunpack.c.l.b16 %v11706
  %v11835 = vunpack.c.l.b16 %v11707
  %v11836 = vunpack.c.l.b16 %v11708
  %v11837 = vunpack.c.l.b16 %v11709
  %v11838 = vunpack.c.l.b16 %v11710
  %v11839 = vunpack.c.l.b16 %v11711
  %v11840 = vunpack.c.l.b16 %v11712
  %v11841 = vunpack.c.l.b16 %v11713
  %v11842 = vunpack.c.l.b16 %v11714
  %v11843 = vunpack.c.l.b16 %v11715
  %v11844 = vunpack.c.l.b16 %v11716
  %v11845 = vunpack.c.l.b16 %v11717
  %v11846 = vunpack.c.l.b16 %v11718
  %v11847 = vunpack.c.l.b16 %v11719
  %v11848 = vunpack.c.l.b16 %v11720
  %v11849 = vunpack.c.l.b16 %v11721
  %v11850 = vunpack.c.l.b16 %v11722
  %v11851 = vunpack.c.l.b16 %v11723
  %v11852 = vunpack.c.l.b16 %v11724
  %v11853 = vunpack.c.l.b16 %v11725
  %v11854 = vunpack.c.l.b16 %v11726
  %v11855 = vunpack.c.l.b16 %v11727
  %v11856 = vunpack.c.l.b16 %v11728
  %v11857 = vunpack.c.l.b16 %v11729
  %v11858 = vunpack.c.l.b16 %v11730
  %v11859 = vunpack.c.l.b16 %v11731
  %v11860 = vunpack.c.l.b16 %v11732
  %v11861 = vunpack.c.l.b16 %v11733
  %v11862 = vunpack.c.l.b16 %v11734
  %v11863 = vunpack.c.l.b16 %v11735
  %v11864 = vunpack.c.l.b16 %v11736
  %v11865 = vunpack.c.l.b16 %v11737
  %v11866 = vunpack.c.l.b16 %v11738
  %v11867 = vunpack.c.l.b16 %v11739
  %v11868 = vunpack.c.l.b16 %v11740
  %v11869 = vunpack.c.l.b16 %v11741
  %v11870 = vunpack.c.l.b16 %v11742
  %v11871 = vunpack.c.l.b16 %v11743
  %v11872 = vunpack.c.l.b16 %v11744
  %v11873 = vunpack.c.l.b16 %v11745
  %v11874 = vunpack.c.l.b16 %v11746
  %v11875 = vunpack.c.l.b16 %v11747
  %v11876 = vunpack.c.l.b16 %v11748
  %v11877 = vunpack.c.l.b16 %v11749
  %v11878 = vunpack.c.l.b16 %v11750
  %v11879 = vunpack.c.l.b16 %v11751
  %v11880 = vunpack.c.l.b16 %v11752
  %v11881 = vunpack.c.l.b16 %v11753
  %v11882 = vunpack.c.l.b16 %v11754
  %v11883 = vunpack.c.l.b16 %v11755
  %v11884 = vunpack.c.l.b16 %v11756
  %v11885 = vunpack.c.l.b16 %v11757
  %v11886 = vunpack.c.l.b16 %v11758
  %v11887 = vunpack.c.l.b16 %v11759
  %v11888 = vunpack.c.l.b16 %v11760
  %v11889 = vpack.c.b16 %v11826, %v11825
  %v11890 = vpack.c.b16 %v11828, %v11827
  %v11891 = vpack.c.b16 %v11830, %v11829
  %v11892 = vpack.c.b16 %v11832, %v11831
  %v11893 = vpack.c.b16 %v11834, %v11833
  %v11894 = vpack.c.b16 %v11836, %v11835
  %v11895 = vpack.c.b16 %v11838, %v11837
  %v11896 = vpack.c.b16 %v11840, %v11839
  %v11897 = vpack.c.b16 %v11842, %v11841
  %v11898 = vpack.c.b16 %v11844, %v11843
  %v11899 = vpack.c.b16 %v11846, %v11845
  %v11900 = vpack.c.b16 %v11848, %v11847
  %v11901 = vpack.c.b16 %v11850, %v11849
  %v11902 = vpack.c.b16 %v11852, %v11851
  %v11903 = vpack.c.b16 %v11854, %v11853
  %v11904 = vpack.c.b16 %v11856, %v11855
  %v11905 = vpack.c.b16 %v11858, %v11857
  %v11906 = vpack.c.b16 %v11860, %v11859
  %v11907 = vpack.c.b16 %v11862, %v11861
  %v11908 = vpack.c.b16 %v11864, %v11863
  %v11909 = vpack.c.b16 %v11866, %v11865
  %v11910 = vpack.c.b16 %v11868, %v11867
  %v11911 = vpack.c.b16 %v11870, %v11869
  %v11912 = vpack.c.b16 %v11872, %v11871
  %v11913 = vpack.c.b16 %v11874, %v11873
  %v11914 = vpack.c.b16 %v11876, %v11875
  %v11915 = vpack.c.b16 %v11878, %v11877
  %v11916 = vpack.c.b16 %v11880, %v11879
  %v11917 = vpack.c.b16 %v11882, %v11881
  %v11918 = vpack.c.b16 %v11884, %v11883
  %v11919 = vpack.c.b16 %v11886, %v11885
  %v11920 = vpack.c.b16 %v11888, %v11887
  %11953 = vmatprep.subr.bf16.mxu0 0
  %11954 = vmatpush1.bf16.msra.mxu0 %v11889
  %11955 = vmatprep.subr.bf16.mxu0 0
  %11956 = vmatpush1.bf16.msra.mxu0 %v11890
  %11957 = vmatprep.subr.bf16.mxu0 0
  %11958 = vmatpush1.bf16.msra.mxu0 %v11891
  %11959 = vmatprep.subr.bf16.mxu0 0
  %11960 = vmatpush1.bf16.msra.mxu0 %v11892
  %11961 = vmatprep.subr.bf16.mxu0 0
  %11962 = vmatpush1.bf16.msra.mxu0 %v11893
  %11963 = vmatprep.subr.bf16.mxu0 0
  %11964 = vmatpush1.bf16.msra.mxu0 %v11894
  %11965 = vmatprep.subr.bf16.mxu0 0
  %11966 = vmatpush1.bf16.msra.mxu0 %v11895
  %11967 = vmatprep.subr.bf16.mxu0 0
  %11968 = vmatpush1.bf16.msra.mxu0 %v11896
  %11969 = vmatprep.subr.bf16.mxu0 0
  %11970 = vmatpush1.bf16.msra.mxu0 %v11897
  %11971 = vmatprep.subr.bf16.mxu0 0
  %11972 = vmatpush1.bf16.msra.mxu0 %v11898
  %11973 = vmatprep.subr.bf16.mxu0 0
  %11974 = vmatpush1.bf16.msra.mxu0 %v11899
  %11975 = vmatprep.subr.bf16.mxu0 0
  %11976 = vmatpush1.bf16.msra.mxu0 %v11900
  %11977 = vmatprep.subr.bf16.mxu0 0
  %11978 = vmatpush1.bf16.msra.mxu0 %v11901
  %11979 = vmatprep.subr.bf16.mxu0 0
  %11980 = vmatpush1.bf16.msra.mxu0 %v11902
  %11981 = vmatprep.subr.bf16.mxu0 0
  %11982 = vmatpush1.bf16.msra.mxu0 %v11903
  %11983 = vmatprep.subr.bf16.mxu0 0
  %11984 = vmatpush1.bf16.msra.mxu0 %v11904
  %11985 = vmatprep.mubr.bf16.mxu0 %v11693
  %11986 = vmatmul.mubr.bf16.gmra.mrb[0].mxu0 %v11692
  %v11987 = vpop.f32.mrb[0].mxu0
  %v11988 = vadd.f32 0.0, %v11987
  %v11989 = vpop.f32.mrb[0].mxu0
  %v11990 = vpop.f32.mrb[0].mxu0
  %v11991 = vpop.f32.mrb[0].mxu0
  %11992 = vdwg.mxu0
  %11993 = vmatprep.subr.bf16.mxu0 0
  %11994 = vmatpush1.bf16.msra.mxu0 %v11905
  %11995 = vmatprep.subr.bf16.mxu0 0
  %11996 = vmatpush1.bf16.msra.mxu0 %v11906
  %11997 = vmatprep.subr.bf16.mxu0 0
  %11998 = vmatpush1.bf16.msra.mxu0 %v11907
  %11999 = vmatprep.subr.bf16.mxu0 0
  %12000 = vmatpush1.bf16.msra.mxu0 %v11908
  %12001 = vmatprep.subr.bf16.mxu0 0
  %12002 = vmatpush1.bf16.msra.mxu0 %v11909
  %12003 = vmatprep.subr.bf16.mxu0 0
  %12004 = vmatpush1.bf16.msra.mxu0 %v11910
  %12005 = vmatprep.subr.bf16.mxu0 0
  %12006 = vmatpush1.bf16.msra.mxu0 %v11911
  %12007 = vmatprep.subr.bf16.mxu0 0
  %12008 = vmatpush1.bf16.msra.mxu0 %v11912
  %12009 = vmatprep.subr.bf16.mxu0 0
  %12010 = vmatpush1.bf16.msra.mxu0 %v11913
  %12011 = vmatprep.subr.bf16.mxu0 0
  %12012 = vmatpush1.bf16.msra.mxu0 %v11914
  %12013 = vmatprep.subr.bf16.mxu0 0
  %12014 = vmatpush1.bf16.msra.mxu0 %v11915
  %12015 = vmatprep.subr.bf16.mxu0 0
  %12016 = vmatpush1.bf16.msra.mxu0 %v11916
  %12017 = vmatprep.subr.bf16.mxu0 0
  %12018 = vmatpush1.bf16.msra.mxu0 %v11917
  %12019 = vmatprep.subr.bf16.mxu0 0
  %12020 = vmatpush1.bf16.msra.mxu0 %v11918
  %12021 = vmatprep.subr.bf16.mxu0 0
  %12022 = vmatpush1.bf16.msra.mxu0 %v11919
  %12023 = vmatprep.subr.bf16.mxu0 0
  %12024 = vmatpush1.bf16.msra.mxu0 %v11920
  %12025 = vmatprep.mubr.bf16.mxu0 %v11695
  %12026 = vmatmul.mubr.bf16.gmra.mrb[0].mxu0 %v11694
  %v12027 = vpop.f32.mrb[0].mxu0
  %v12028 = vadd.f32 %v11988, %v12027
  %v12029 = vpop.f32.mrb[0].mxu0
  %v12030 = vpop.f32.mrb[0].mxu0
  %v12031 = vpop.f32.mrb[0].mxu0
  %12032 = vdwg.mxu0
  %v12033 = vadd.f32 %v11691, %v12028
  %v12034 = vpack.c.bf16 %v10319, %v10319
  %v12035 = vpack.c.bf16 %v10320, %v10320
  %v12036 = vpack.c.bf16 %v10321, %v10321
  %v12037 = vpack.c.bf16 %v10322, %v10322
  %s12038 = scalar_lea.vmem %s5, 1280
  %v12039 = vld [vmem:[%s12038] sm:$0xf]
  %v12040 = vld [vmem:[%s12038 + $0x4] sm:$0xf]
  %v12041 = vld [vmem:[%s12038 + $0x8] sm:$0xf]
  %v12042 = vld [vmem:[%s12038 + $0xc] sm:$0xf]
  %v12043 = vld [vmem:[%s12038 + $0x10] sm:$0xf]
  %v12044 = vld [vmem:[%s12038 + $0x14] sm:$0xf]
  %v12045 = vld [vmem:[%s12038 + $0x18] sm:$0xf]
  %v12046 = vld [vmem:[%s12038 + $0x1c] sm:$0xf]
  %v12047 = vld [vmem:[%s12038 + $0x20] sm:$0xf]
  %v12048 = vld [vmem:[%s12038 + $0x24] sm:$0xf]
  %v12049 = vld [vmem:[%s12038 + $0x28] sm:$0xf]
  %v12050 = vld [vmem:[%s12038 + $0x2c] sm:$0xf]
  %v12051 = vld [vmem:[%s12038 + $0x30] sm:$0xf]
  %v12052 = vld [vmem:[%s12038 + $0x34] sm:$0xf]
  %v12053 = vld [vmem:[%s12038 + $0x38] sm:$0xf]
  %v12054 = vld [vmem:[%s12038 + $0x3c] sm:$0xf]
  %v12055 = vld [vmem:[%s12038 + $0x40] sm:$0xf]
  %v12056 = vld [vmem:[%s12038 + $0x44] sm:$0xf]
  %v12057 = vld [vmem:[%s12038 + $0x48] sm:$0xf]
  %v12058 = vld [vmem:[%s12038 + $0x4c] sm:$0xf]
  %v12059 = vld [vmem:[%s12038 + $0x50] sm:$0xf]
  %v12060 = vld [vmem:[%s12038 + $0x54] sm:$0xf]
  %v12061 = vld [vmem:[%s12038 + $0x58] sm:$0xf]
  %v12062 = vld [vmem:[%s12038 + $0x5c] sm:$0xf]
  %v12063 = vld [vmem:[%s12038 + $0x60] sm:$0xf]
  %v12064 = vld [vmem:[%s12038 + $0x64] sm:$0xf]
  %v12065 = vld [vmem:[%s12038 + $0x68] sm:$0xf]
  %v12066 = vld [vmem:[%s12038 + $0x6c] sm:$0xf]
  %v12067 = vld [vmem:[%s12038 + $0x70] sm:$0xf]
  %v12068 = vld [vmem:[%s12038 + $0x74] sm:$0xf]
  %v12069 = vld [vmem:[%s12038 + $0x78] sm:$0xf]
  %v12070 = vld [vmem:[%s12038 + $0x7c] sm:$0xf]
  %v12071 = vld [vmem:[%s12038 + $0x80] sm:$0xf]
  %v12072 = vld [vmem:[%s12038 + $0x84] sm:$0xf]
  %v12073 = vld [vmem:[%s12038 + $0x88] sm:$0xf]
  %v12074 = vld [vmem:[%s12038 + $0x8c] sm:$0xf]
  %v12075 = vld [vmem:[%s12038 + $0x90] sm:$0xf]
  %v12076 = vld [vmem:[%s12038 + $0x94] sm:$0xf]
  %v12077 = vld [vmem:[%s12038 + $0x98] sm:$0xf]
  %v12078 = vld [vmem:[%s12038 + $0x9c] sm:$0xf]
  %v12079 = vld [vmem:[%s12038 + $0xa0] sm:$0xf]
  %v12080 = vld [vmem:[%s12038 + $0xa4] sm:$0xf]
  %v12081 = vld [vmem:[%s12038 + $0xa8] sm:$0xf]
  %v12082 = vld [vmem:[%s12038 + $0xac] sm:$0xf]
  %v12083 = vld [vmem:[%s12038 + $0xb0] sm:$0xf]
  %v12084 = vld [vmem:[%s12038 + $0xb4] sm:$0xf]
  %v12085 = vld [vmem:[%s12038 + $0xb8] sm:$0xf]
  %v12086 = vld [vmem:[%s12038 + $0xbc] sm:$0xf]
  %v12087 = vld [vmem:[%s12038 + $0xc0] sm:$0xf]
  %v12088 = vld [vmem:[%s12038 + $0xc4] sm:$0xf]
  %v12089 = vld [vmem:[%s12038 + $0xc8] sm:$0xf]
  %v12090 = vld [vmem:[%s12038 + $0xcc] sm:$0xf]
  %v12091 = vld [vmem:[%s12038 + $0xd0] sm:$0xf]
  %v12092 = vld [vmem:[%s12038 + $0xd4] sm:$0xf]
  %v12093 = vld [vmem:[%s12038 + $0xd8] sm:$0xf]
  %v12094 = vld [vmem:[%s12038 + $0xdc] sm:$0xf]
  %v12095 = vld [vmem:[%s12038 + $0xe0] sm:$0xf]
  %v12096 = vld [vmem:[%s12038 + $0xe4] sm:$0xf]
  %v12097 = vld [vmem:[%s12038 + $0xe8] sm:$0xf]
  %v12098 = vld [vmem:[%s12038 + $0xec] sm:$0xf]
  %v12099 = vld [vmem:[%s12038 + $0xf0] sm:$0xf]
  %v12100 = vld [vmem:[%s12038 + $0xf4] sm:$0xf]
  %v12101 = vld [vmem:[%s12038 + $0xf8] sm:$0xf]
  %v12102 = vld [vmem:[%s12038 + $0xfc] sm:$0xf]
  %v12167 = vunpack.c.l.b16 %v12039
  %v12168 = vunpack.c.l.b16 %v12040
  %v12169 = vunpack.c.l.b16 %v12041
  %v12170 = vunpack.c.l.b16 %v12042
  %v12171 = vunpack.c.l.b16 %v12043
  %v12172 = vunpack.c.l.b16 %v12044
  %v12173 = vunpack.c.l.b16 %v12045
  %v12174 = vunpack.c.l.b16 %v12046
  %v12175 = vunpack.c.l.b16 %v12047
  %v12176 = vunpack.c.l.b16 %v12048
  %v12177 = vunpack.c.l.b16 %v12049
  %v12178 = vunpack.c.l.b16 %v12050
  %v12179 = vunpack.c.l.b16 %v12051
  %v12180 = vunpack.c.l.b16 %v12052
  %v12181 = vunpack.c.l.b16 %v12053
  %v12182 = vunpack.c.l.b16 %v12054
  %v12183 = vunpack.c.l.b16 %v12055
  %v12184 = vunpack.c.l.b16 %v12056
  %v12185 = vunpack.c.l.b16 %v12057
  %v12186 = vunpack.c.l.b16 %v12058
  %v12187 = vunpack.c.l.b16 %v12059
  %v12188 = vunpack.c.l.b16 %v12060
  %v12189 = vunpack.c.l.b16 %v12061
  %v12190 = vunpack.c.l.b16 %v12062
  %v12191 = vunpack.c.l.b16 %v12063
  %v12192 = vunpack.c.l.b16 %v12064
  %v12193 = vunpack.c.l.b16 %v12065
  %v12194 = vunpack.c.l.b16 %v12066
  %v12195 = vunpack.c.l.b16 %v12067
  %v12196 = vunpack.c.l.b16 %v12068
  %v12197 = vunpack.c.l.b16 %v12069
  %v12198 = vunpack.c.l.b16 %v12070
  %v12199 = vunpack.c.l.b16 %v12071
  %v12200 = vunpack.c.l.b16 %v12072
  %v12201 = vunpack.c.l.b16 %v12073
  %v12202 = vunpack.c.l.b16 %v12074
  %v12203 = vunpack.c.l.b16 %v12075
  %v12204 = vunpack.c.l.b16 %v12076
  %v12205 = vunpack.c.l.b16 %v12077
  %v12206 = vunpack.c.l.b16 %v12078
  %v12207 = vunpack.c.l.b16 %v12079
  %v12208 = vunpack.c.l.b16 %v12080
  %v12209 = vunpack.c.l.b16 %v12081
  %v12210 = vunpack.c.l.b16 %v12082
  %v12211 = vunpack.c.l.b16 %v12083
  %v12212 = vunpack.c.l.b16 %v12084
  %v12213 = vunpack.c.l.b16 %v12085
  %v12214 = vunpack.c.l.b16 %v12086
  %v12215 = vunpack.c.l.b16 %v12087
  %v12216 = vunpack.c.l.b16 %v12088
  %v12217 = vunpack.c.l.b16 %v12089
  %v12218 = vunpack.c.l.b16 %v12090
  %v12219 = vunpack.c.l.b16 %v12091
  %v12220 = vunpack.c.l.b16 %v12092
  %v12221 = vunpack.c.l.b16 %v12093
  %v12222 = vunpack.c.l.b16 %v12094
  %v12223 = vunpack.c.l.b16 %v12095
  %v12224 = vunpack.c.l.b16 %v12096
  %v12225 = vunpack.c.l.b16 %v12097
  %v12226 = vunpack.c.l.b16 %v12098
  %v12227 = vunpack.c.l.b16 %v12099
  %v12228 = vunpack.c.l.b16 %v12100
  %v12229 = vunpack.c.l.b16 %v12101
  %v12230 = vunpack.c.l.b16 %v12102
  %v12231 = vpack.c.b16 %v12168, %v12167
  %v12232 = vpack.c.b16 %v12170, %v12169
  %v12233 = vpack.c.b16 %v12172, %v12171
  %v12234 = vpack.c.b16 %v12174, %v12173
  %v12235 = vpack.c.b16 %v12176, %v12175
  %v12236 = vpack.c.b16 %v12178, %v12177
  %v12237 = vpack.c.b16 %v12180, %v12179
  %v12238 = vpack.c.b16 %v12182, %v12181
  %v12239 = vpack.c.b16 %v12184, %v12183
  %v12240 = vpack.c.b16 %v12186, %v12185
  %v12241 = vpack.c.b16 %v12188, %v12187
  %v12242 = vpack.c.b16 %v12190, %v12189
  %v12243 = vpack.c.b16 %v12192, %v12191
  %v12244 = vpack.c.b16 %v12194, %v12193
  %v12245 = vpack.c.b16 %v12196, %v12195
  %v12246 = vpack.c.b16 %v12198, %v12197
  %v12247 = vpack.c.b16 %v12200, %v12199
  %v12248 = vpack.c.b16 %v12202, %v12201
  %v12249 = vpack.c.b16 %v12204, %v12203
  %v12250 = vpack.c.b16 %v12206, %v12205
  %v12251 = vpack.c.b16 %v12208, %v12207
  %v12252 = vpack.c.b16 %v12210, %v12209
  %v12253 = vpack.c.b16 %v12212, %v12211
  %v12254 = vpack.c.b16 %v12214, %v12213
  %v12255 = vpack.c.b16 %v12216, %v12215
  %v12256 = vpack.c.b16 %v12218, %v12217
  %v12257 = vpack.c.b16 %v12220, %v12219
  %v12258 = vpack.c.b16 %v12222, %v12221
  %v12259 = vpack.c.b16 %v12224, %v12223
  %v12260 = vpack.c.b16 %v12226, %v12225
  %v12261 = vpack.c.b16 %v12228, %v12227
  %v12262 = vpack.c.b16 %v12230, %v12229
  %12295 = vmatprep.subr.bf16.mxu0 0
  %12296 = vmatpush1.bf16.msra.mxu0 %v12231
  %12297 = vmatprep.subr.bf16.mxu0 0
  %12298 = vmatpush1.bf16.msra.mxu0 %v12232
  %12299 = vmatprep.subr.bf16.mxu0 0
  %12300 = vmatpush1.bf16.msra.mxu0 %v12233
  %12301 = vmatprep.subr.bf16.mxu0 0
  %12302 = vmatpush1.bf16.msra.mxu0 %v12234
  %12303 = vmatprep.subr.bf16.mxu0 0
  %12304 = vmatpush1.bf16.msra.mxu0 %v12235
  %12305 = vmatprep.subr.bf16.mxu0 0
  %12306 = vmatpush1.bf16.msra.mxu0 %v12236
  %12307 = vmatprep.subr.bf16.mxu0 0
  %12308 = vmatpush1.bf16.msra.mxu0 %v12237
  %12309 = vmatprep.subr.bf16.mxu0 0
  %12310 = vmatpush1.bf16.msra.mxu0 %v12238
  %12311 = vmatprep.subr.bf16.mxu0 0
  %12312 = vmatpush1.bf16.msra.mxu0 %v12239
  %12313 = vmatprep.subr.bf16.mxu0 0
  %12314 = vmatpush1.bf16.msra.mxu0 %v12240
  %12315 = vmatprep.subr.bf16.mxu0 0
  %12316 = vmatpush1.bf16.msra.mxu0 %v12241
  %12317 = vmatprep.subr.bf16.mxu0 0
  %12318 = vmatpush1.bf16.msra.mxu0 %v12242
  %12319 = vmatprep.subr.bf16.mxu0 0
  %12320 = vmatpush1.bf16.msra.mxu0 %v12243
  %12321 = vmatprep.subr.bf16.mxu0 0
  %12322 = vmatpush1.bf16.msra.mxu0 %v12244
  %12323 = vmatprep.subr.bf16.mxu0 0
  %12324 = vmatpush1.bf16.msra.mxu0 %v12245
  %12325 = vmatprep.subr.bf16.mxu0 0
  %12326 = vmatpush1.bf16.msra.mxu0 %v12246
  %12327 = vmatprep.mubr.bf16.mxu0 %v12035
  %12328 = vmatmul.mubr.bf16.gmra.mrb[0].mxu0 %v12034
  %v12329 = vpop.f32.mrb[0].mxu0
  %v12330 = vadd.f32 0.0, %v12329
  %v12331 = vpop.f32.mrb[0].mxu0
  %v12332 = vpop.f32.mrb[0].mxu0
  %v12333 = vpop.f32.mrb[0].mxu0
  %12334 = vdwg.mxu0
  %12335 = vmatprep.subr.bf16.mxu0 0
  %12336 = vmatpush1.bf16.msra.mxu0 %v12247
  %12337 = vmatprep.subr.bf16.mxu0 0
  %12338 = vmatpush1.bf16.msra.mxu0 %v12248
  %12339 = vmatprep.subr.bf16.mxu0 0
  %12340 = vmatpush1.bf16.msra.mxu0 %v12249
  %12341 = vmatprep.subr.bf16.mxu0 0
  %12342 = vmatpush1.bf16.msra.mxu0 %v12250
  %12343 = vmatprep.subr.bf16.mxu0 0
  %12344 = vmatpush1.bf16.msra.mxu0 %v12251
  %12345 = vmatprep.subr.bf16.mxu0 0
  %12346 = vmatpush1.bf16.msra.mxu0 %v12252
  %12347 = vmatprep.subr.bf16.mxu0 0
  %12348 = vmatpush1.bf16.msra.mxu0 %v12253
  %12349 = vmatprep.subr.bf16.mxu0 0
  %12350 = vmatpush1.bf16.msra.mxu0 %v12254
  %12351 = vmatprep.subr.bf16.mxu0 0
  %12352 = vmatpush1.bf16.msra.mxu0 %v12255
  %12353 = vmatprep.subr.bf16.mxu0 0
  %12354 = vmatpush1.bf16.msra.mxu0 %v12256
  %12355 = vmatprep.subr.bf16.mxu0 0
  %12356 = vmatpush1.bf16.msra.mxu0 %v12257
  %12357 = vmatprep.subr.bf16.mxu0 0
  %12358 = vmatpush1.bf16.msra.mxu0 %v12258
  %12359 = vmatprep.subr.bf16.mxu0 0
  %12360 = vmatpush1.bf16.msra.mxu0 %v12259
  %12361 = vmatprep.subr.bf16.mxu0 0
  %12362 = vmatpush1.bf16.msra.mxu0 %v12260
  %12363 = vmatprep.subr.bf16.mxu0 0
  %12364 = vmatpush1.bf16.msra.mxu0 %v12261
  %12365 = vmatprep.subr.bf16.mxu0 0
  %12366 = vmatpush1.bf16.msra.mxu0 %v12262
  %12367 = vmatprep.mubr.bf16.mxu0 %v12037
  %12368 = vmatmul.mubr.bf16.gmra.mrb[0].mxu0 %v12036
  %v12369 = vpop.f32.mrb[0].mxu0
  %v12370 = vadd.f32 %v12330, %v12369
  %v12371 = vpop.f32.mrb[0].mxu0
  %v12372 = vpop.f32.mrb[0].mxu0
  %v12373 = vpop.f32.mrb[0].mxu0
  %12374 = vdwg.mxu0
  %v12375 = vadd.f32 %v12033, %v12370
  %v12376 = vpack.c.bf16 %v10323, %v10323
  %v12377 = vpack.c.bf16 %v10324, %v10324
  %v12378 = vpack.c.bf16 %v10325, %v10325
  %v12379 = vpack.c.bf16 %v10326, %v10326
  %s12380 = scalar_lea.vmem %s5, 1536
  %v12381 = vld [vmem:[%s12380] sm:$0xf]
  %v12382 = vld [vmem:[%s12380 + $0x4] sm:$0xf]
  %v12383 = vld [vmem:[%s12380 + $0x8] sm:$0xf]
  %v12384 = vld [vmem:[%s12380 + $0xc] sm:$0xf]
  %v12385 = vld [vmem:[%s12380 + $0x10] sm:$0xf]
  %v12386 = vld [vmem:[%s12380 + $0x14] sm:$0xf]
  %v12387 = vld [vmem:[%s12380 + $0x18] sm:$0xf]
  %v12388 = vld [vmem:[%s12380 + $0x1c] sm:$0xf]
  %v12389 = vld [vmem:[%s12380 + $0x20] sm:$0xf]
  %v12390 = vld [vmem:[%s12380 + $0x24] sm:$0xf]
  %v12391 = vld [vmem:[%s12380 + $0x28] sm:$0xf]
  %v12392 = vld [vmem:[%s12380 + $0x2c] sm:$0xf]
  %v12393 = vld [vmem:[%s12380 + $0x30] sm:$0xf]
  %v12394 = vld [vmem:[%s12380 + $0x34] sm:$0xf]
  %v12395 = vld [vmem:[%s12380 + $0x38] sm:$0xf]
  %v12396 = vld [vmem:[%s12380 + $0x3c] sm:$0xf]
  %v12397 = vld [vmem:[%s12380 + $0x40] sm:$0xf]
  %v12398 = vld [vmem:[%s12380 + $0x44] sm:$0xf]
  %v12399 = vld [vmem:[%s12380 + $0x48] sm:$0xf]
  %v12400 = vld [vmem:[%s12380 + $0x4c] sm:$0xf]
  %v12401 = vld [vmem:[%s12380 + $0x50] sm:$0xf]
  %v12402 = vld [vmem:[%s12380 + $0x54] sm:$0xf]
  %v12403 = vld [vmem:[%s12380 + $0x58] sm:$0xf]
  %v12404 = vld [vmem:[%s12380 + $0x5c] sm:$0xf]
  %v12405 = vld [vmem:[%s12380 + $0x60] sm:$0xf]
  %v12406 = vld [vmem:[%s12380 + $0x64] sm:$0xf]
  %v12407 = vld [vmem:[%s12380 + $0x68] sm:$0xf]
  %v12408 = vld [vmem:[%s12380 + $0x6c] sm:$0xf]
  %v12409 = vld [vmem:[%s12380 + $0x70] sm:$0xf]
  %v12410 = vld [vmem:[%s12380 + $0x74] sm:$0xf]
  %v12411 = vld [vmem:[%s12380 + $0x78] sm:$0xf]
  %v12412 = vld [vmem:[%s12380 + $0x7c] sm:$0xf]
  %v12413 = vld [vmem:[%s12380 + $0x80] sm:$0xf]
  %v12414 = vld [vmem:[%s12380 + $0x84] sm:$0xf]
  %v12415 = vld [vmem:[%s12380 + $0x88] sm:$0xf]
  %v12416 = vld [vmem:[%s12380 + $0x8c] sm:$0xf]
  %v12417 = vld [vmem:[%s12380 + $0x90] sm:$0xf]
  %v12418 = vld [vmem:[%s12380 + $0x94] sm:$0xf]
  %v12419 = vld [vmem:[%s12380 + $0x98] sm:$0xf]
  %v12420 = vld [vmem:[%s12380 + $0x9c] sm:$0xf]
  %v12421 = vld [vmem:[%s12380 + $0xa0] sm:$0xf]
  %v12422 = vld [vmem:[%s12380 + $0xa4] sm:$0xf]
  %v12423 = vld [vmem:[%s12380 + $0xa8] sm:$0xf]
  %v12424 = vld [vmem:[%s12380 + $0xac] sm:$0xf]
  %v12425 = vld [vmem:[%s12380 + $0xb0] sm:$0xf]
  %v12426 = vld [vmem:[%s12380 + $0xb4] sm:$0xf]
  %v12427 = vld [vmem:[%s12380 + $0xb8] sm:$0xf]
  %v12428 = vld [vmem:[%s12380 + $0xbc] sm:$0xf]
  %v12429 = vld [vmem:[%s12380 + $0xc0] sm:$0xf]
  %v12430 = vld [vmem:[%s12380 + $0xc4] sm:$0xf]
  %v12431 = vld [vmem:[%s12380 + $0xc8] sm:$0xf]
  %v12432 = vld [vmem:[%s12380 + $0xcc] sm:$0xf]
  %v12433 = vld [vmem:[%s12380 + $0xd0] sm:$0xf]
  %v12434 = vld [vmem:[%s12380 + $0xd4] sm:$0xf]
  %v12435 = vld [vmem:[%s12380 + $0xd8] sm:$0xf]
  %v12436 = vld [vmem:[%s12380 + $0xdc] sm:$0xf]
  %v12437 = vld [vmem:[%s12380 + $0xe0] sm:$0xf]
  %v12438 = vld [vmem:[%s12380 + $0xe4] sm:$0xf]
  %v12439 = vld [vmem:[%s12380 + $0xe8] sm:$0xf]
  %v12440 = vld [vmem:[%s12380 + $0xec] sm:$0xf]
  %v12441 = vld [vmem:[%s12380 + $0xf0] sm:$0xf]
  %v12442 = vld [vmem:[%s12380 + $0xf4] sm:$0xf]
  %v12443 = vld [vmem:[%s12380 + $0xf8] sm:$0xf]
  %v12444 = vld [vmem:[%s12380 + $0xfc] sm:$0xf]
  %v12509 = vunpack.c.l.b16 %v12381
  %v12510 = vunpack.c.l.b16 %v12382
  %v12511 = vunpack.c.l.b16 %v12383
  %v12512 = vunpack.c.l.b16 %v12384
  %v12513 = vunpack.c.l.b16 %v12385
  %v12514 = vunpack.c.l.b16 %v12386
  %v12515 = vunpack.c.l.b16 %v12387
  %v12516 = vunpack.c.l.b16 %v12388
  %v12517 = vunpack.c.l.b16 %v12389
  %v12518 = vunpack.c.l.b16 %v12390
  %v12519 = vunpack.c.l.b16 %v12391
  %v12520 = vunpack.c.l.b16 %v12392
  %v12521 = vunpack.c.l.b16 %v12393
  %v12522 = vunpack.c.l.b16 %v12394
  %v12523 = vunpack.c.l.b16 %v12395
  %v12524 = vunpack.c.l.b16 %v12396
  %v12525 = vunpack.c.l.b16 %v12397
  %v12526 = vunpack.c.l.b16 %v12398
  %v12527 = vunpack.c.l.b16 %v12399
  %v12528 = vunpack.c.l.b16 %v12400
  %v12529 = vunpack.c.l.b16 %v12401
  %v12530 = vunpack.c.l.b16 %v12402
  %v12531 = vunpack.c.l.b16 %v12403
  %v12532 = vunpack.c.l.b16 %v12404
  %v12533 = vunpack.c.l.b16 %v12405
  %v12534 = vunpack.c.l.b16 %v12406
  %v12535 = vunpack.c.l.b16 %v12407
  %v12536 = vunpack.c.l.b16 %v12408
  %v12537 = vunpack.c.l.b16 %v12409
  %v12538 = vunpack.c.l.b16 %v12410
  %v12539 = vunpack.c.l.b16 %v12411
  %v12540 = vunpack.c.l.b16 %v12412
  %v12541 = vunpack.c.l.b16 %v12413
  %v12542 = vunpack.c.l.b16 %v12414
  %v12543 = vunpack.c.l.b16 %v12415
  %v12544 = vunpack.c.l.b16 %v12416
  %v12545 = vunpack.c.l.b16 %v12417
  %v12546 = vunpack.c.l.b16 %v12418
  %v12547 = vunpack.c.l.b16 %v12419
  %v12548 = vunpack.c.l.b16 %v12420
  %v12549 = vunpack.c.l.b16 %v12421
  %v12550 = vunpack.c.l.b16 %v12422
  %v12551 = vunpack.c.l.b16 %v12423
  %v12552 = vunpack.c.l.b16 %v12424
  %v12553 = vunpack.c.l.b16 %v12425
  %v12554 = vunpack.c.l.b16 %v12426
  %v12555 = vunpack.c.l.b16 %v12427
  %v12556 = vunpack.c.l.b16 %v12428
  %v12557 = vunpack.c.l.b16 %v12429
  %v12558 = vunpack.c.l.b16 %v12430
  %v12559 = vunpack.c.l.b16 %v12431
  %v12560 = vunpack.c.l.b16 %v12432
  %v12561 = vunpack.c.l.b16 %v12433
  %v12562 = vunpack.c.l.b16 %v12434
  %v12563 = vunpack.c.l.b16 %v12435
  %v12564 = vunpack.c.l.b16 %v12436
  %v12565 = vunpack.c.l.b16 %v12437
  %v12566 = vunpack.c.l.b16 %v12438
  %v12567 = vunpack.c.l.b16 %v12439
  %v12568 = vunpack.c.l.b16 %v12440
  %v12569 = vunpack.c.l.b16 %v12441
  %v12570 = vunpack.c.l.b16 %v12442
  %v12571 = vunpack.c.l.b16 %v12443
  %v12572 = vunpack.c.l.b16 %v12444
  %v12573 = vpack.c.b16 %v12510, %v12509
  %v12574 = vpack.c.b16 %v12512, %v12511
  %v12575 = vpack.c.b16 %v12514, %v12513
  %v12576 = vpack.c.b16 %v12516, %v12515
  %v12577 = vpack.c.b16 %v12518, %v12517
  %v12578 = vpack.c.b16 %v12520, %v12519
  %v12579 = vpack.c.b16 %v12522, %v12521
  %v12580 = vpack.c.b16 %v12524, %v12523
  %v12581 = vpack.c.b16 %v12526, %v12525
  %v12582 = vpack.c.b16 %v12528, %v12527
  %v12583 = vpack.c.b16 %v12530, %v12529
  %v12584 = vpack.c.b16 %v12532, %v12531
  %v12585 = vpack.c.b16 %v12534, %v12533
  %v12586 = vpack.c.b16 %v12536, %v12535
  %v12587 = vpack.c.b16 %v12538, %v12537
  %v12588 = vpack.c.b16 %v12540, %v12539
  %v12589 = vpack.c.b16 %v12542, %v12541
  %v12590 = vpack.c.b16 %v12544, %v12543
  %v12591 = vpack.c.b16 %v12546, %v12545
  %v12592 = vpack.c.b16 %v12548, %v12547
  %v12593 = vpack.c.b16 %v12550, %v12549
  %v12594 = vpack.c.b16 %v12552, %v12551
  %v12595 = vpack.c.b16 %v12554, %v12553
  %v12596 = vpack.c.b16 %v12556, %v12555
  %v12597 = vpack.c.b16 %v12558, %v12557
  %v12598 = vpack.c.b16 %v12560, %v12559
  %v12599 = vpack.c.b16 %v12562, %v12561
  %v12600 = vpack.c.b16 %v12564, %v12563
  %v12601 = vpack.c.b16 %v12566, %v12565
  %v12602 = vpack.c.b16 %v12568, %v12567
  %v12603 = vpack.c.b16 %v12570, %v12569
  %v12604 = vpack.c.b16 %v12572, %v12571
  %12637 = vmatprep.subr.bf16.mxu0 0
  %12638 = vmatpush1.bf16.msra.mxu0 %v12573
  %12639 = vmatprep.subr.bf16.mxu0 0
  %12640 = vmatpush1.bf16.msra.mxu0 %v12574
  %12641 = vmatprep.subr.bf16.mxu0 0
  %12642 = vmatpush1.bf16.msra.mxu0 %v12575
  %12643 = vmatprep.subr.bf16.mxu0 0
  %12644 = vmatpush1.bf16.msra.mxu0 %v12576
  %12645 = vmatprep.subr.bf16.mxu0 0
  %12646 = vmatpush1.bf16.msra.mxu0 %v12577
  %12647 = vmatprep.subr.bf16.mxu0 0
  %12648 = vmatpush1.bf16.msra.mxu0 %v12578
  %12649 = vmatprep.subr.bf16.mxu0 0
  %12650 = vmatpush1.bf16.msra.mxu0 %v12579
  %12651 = vmatprep.subr.bf16.mxu0 0
  %12652 = vmatpush1.bf16.msra.mxu0 %v12580
  %12653 = vmatprep.subr.bf16.mxu0 0
  %12654 = vmatpush1.bf16.msra.mxu0 %v12581
  %12655 = vmatprep.subr.bf16.mxu0 0
  %12656 = vmatpush1.bf16.msra.mxu0 %v12582
  %12657 = vmatprep.subr.bf16.mxu0 0
  %12658 = vmatpush1.bf16.msra.mxu0 %v12583
  %12659 = vmatprep.subr.bf16.mxu0 0
  %12660 = vmatpush1.bf16.msra.mxu0 %v12584
  %12661 = vmatprep.subr.bf16.mxu0 0
  %12662 = vmatpush1.bf16.msra.mxu0 %v12585
  %12663 = vmatprep.subr.bf16.mxu0 0
  %12664 = vmatpush1.bf16.msra.mxu0 %v12586
  %12665 = vmatprep.subr.bf16.mxu0 0
  %12666 = vmatpush1.bf16.msra.mxu0 %v12587
  %12667 = vmatprep.subr.bf16.mxu0 0
  %12668 = vmatpush1.bf16.msra.mxu0 %v12588
  %12669 = vmatprep.mubr.bf16.mxu0 %v12377
  %12670 = vmatmul.mubr.bf16.gmra.mrb[0].mxu0 %v12376
  %v12671 = vpop.f32.mrb[0].mxu0
  %v12672 = vadd.f32 0.0, %v12671
  %v12673 = vpop.f32.mrb[0].mxu0
  %v12674 = vpop.f32.mrb[0].mxu0
  %v12675 = vpop.f32.mrb[0].mxu0
  %12676 = vdwg.mxu0
  %12677 = vmatprep.subr.bf16.mxu0 0
  %12678 = vmatpush1.bf16.msra.mxu0 %v12589
  %12679 = vmatprep.subr.bf16.mxu0 0
  %12680 = vmatpush1.bf16.msra.mxu0 %v12590
  %12681 = vmatprep.subr.bf16.mxu0 0
  %12682 = vmatpush1.bf16.msra.mxu0 %v12591
  %12683 = vmatprep.subr.bf16.mxu0 0
  %12684 = vmatpush1.bf16.msra.mxu0 %v12592
  %12685 = vmatprep.subr.bf16.mxu0 0
  %12686 = vmatpush1.bf16.msra.mxu0 %v12593
  %12687 = vmatprep.subr.bf16.mxu0 0
  %12688 = vmatpush1.bf16.msra.mxu0 %v12594
  %12689 = vmatprep.subr.bf16.mxu0 0
  %12690 = vmatpush1.bf16.msra.mxu0 %v12595
  %12691 = vmatprep.subr.bf16.mxu0 0
  %12692 = vmatpush1.bf16.msra.mxu0 %v12596
  %12693 = vmatprep.subr.bf16.mxu0 0
  %12694 = vmatpush1.bf16.msra.mxu0 %v12597
  %12695 = vmatprep.subr.bf16.mxu0 0
  %12696 = vmatpush1.bf16.msra.mxu0 %v12598
  %12697 = vmatprep.subr.bf16.mxu0 0
  %12698 = vmatpush1.bf16.msra.mxu0 %v12599
  %12699 = vmatprep.subr.bf16.mxu0 0
  %12700 = vmatpush1.bf16.msra.mxu0 %v12600
  %12701 = vmatprep.subr.bf16.mxu0 0
  %12702 = vmatpush1.bf16.msra.mxu0 %v12601
  %12703 = vmatprep.subr.bf16.mxu0 0
  %12704 = vmatpush1.bf16.msra.mxu0 %v12602
  %12705 = vmatprep.subr.bf16.mxu0 0
  %12706 = vmatpush1.bf16.msra.mxu0 %v12603
  %12707 = vmatprep.subr.bf16.mxu0 0
  %12708 = vmatpush1.bf16.msra.mxu0 %v12604
  %12709 = vmatprep.mubr.bf16.mxu0 %v12379
  %12710 = vmatmul.mubr.bf16.gmra.mrb[0].mxu0 %v12378
  %v12711 = vpop.f32.mrb[0].mxu0
  %v12712 = vadd.f32 %v12672, %v12711
  %v12713 = vpop.f32.mrb[0].mxu0
  %v12714 = vpop.f32.mrb[0].mxu0
  %v12715 = vpop.f32.mrb[0].mxu0
  %12716 = vdwg.mxu0
  %v12717 = vadd.f32 %v12375, %v12712
  %v12718 = vld [vmem:[%s6] sm:$0x1]
  %v12720 = vlaneseq
  %v12721 = vshrl.u32 %v12720, 7
  %v12722 = vsub.s32 0, %v12721
  %v12723 = vrot.slane %v12718, %v12722
  %v12725 = vadd.f32 %v12717, %v12723
  %v12726 = vld [vmem:[%s7] sm:$0xff]
  %v12727 = vld [vmem:[%s7 + $0x8] sm:$0xff]
  %v12728 = vld [vmem:[%s7 + $0x10] sm:$0xff]
  %v12729 = vld [vmem:[%s7 + $0x18] sm:$0xff]
  %v12730 = vld [vmem:[%s7 + $0x20] sm:$0xff]
  %v12731 = vld [vmem:[%s7 + $0x28] sm:$0xff]
  %v12732 = vld [vmem:[%s7 + $0x30] sm:$0xff]
  %v12733 = vld [vmem:[%s7 + $0x38] sm:$0xff]
  %v12734 = vld [vmem:[%s7 + $0x40] sm:$0xff]
  %v12735 = vld [vmem:[%s7 + $0x48] sm:$0xff]
  %v12736 = vld [vmem:[%s7 + $0x50] sm:$0xff]
  %v12737 = vld [vmem:[%s7 + $0x58] sm:$0xff]
  %v12738 = vld [vmem:[%s7 + $0x60] sm:$0xff]
  %v12739 = vld [vmem:[%s7 + $0x68] sm:$0xff]
  %v12740 = vld [vmem:[%s7 + $0x70] sm:$0xff]
  %v12741 = vld [vmem:[%s7 + $0x78] sm:$0xff]
  %v12742 = vld [vmem:[%s8] sm:$0x1]
  %v12744 = vlaneseq
  %v12745 = vshrl.u32 %v12744, 7
  %v12746 = vsub.s32 0, %v12745
  %v12747 = vrot.slane %v12742, %v12746
  %12749 = vmatprep.subr.mxu0 0.0
  %12750 = vmatpush1.msra.mxu0 %v12726
  %12751 = vmatprep.subr.mxu0 0.0
  %12752 = vmatpush1.msra.mxu0 %v12727
  %12753 = vmatprep.subr.mxu0 0.0
  %12754 = vmatpush1.msra.mxu0 %v12728
  %12755 = vmatprep.subr.mxu0 0.0
  %12756 = vmatpush1.msra.mxu0 %v12729
  %12757 = vmatprep.subr.mxu0 0.0
  %12758 = vmatpush1.msra.mxu0 %v12730
  %12759 = vmatprep.subr.mxu0 0.0
  %12760 = vmatpush1.msra.mxu0 %v12731
  %12761 = vmatprep.subr.mxu0 0.0
  %12762 = vmatpush1.msra.mxu0 %v12732
  %12763 = vmatprep.subr.mxu0 0.0
  %12764 = vmatpush1.msra.mxu0 %v12733
  %12765 = vmatprep.subr.mxu0 0.0
  %12766 = vmatpush1.msra.mxu0 %v12734
  %12767 = vmatprep.subr.mxu0 0.0
  %12768 = vmatpush1.msra.mxu0 %v12735
  %12769 = vmatprep.subr.mxu0 0.0
  %12770 = vmatpush1.msra.mxu0 %v12736
  %12771 = vmatprep.subr.mxu0 0.0
  %12772 = vmatpush1.msra.mxu0 %v12737
  %12773 = vmatprep.subr.mxu0 0.0
  %12774 = vmatpush1.msra.mxu0 %v12738
  %12775 = vmatprep.subr.mxu0 0.0
  %12776 = vmatpush1.msra.mxu0 %v12739
  %12777 = vmatprep.subr.mxu0 0.0
  %12778 = vmatpush1.msra.mxu0 %v12740
  %12779 = vmatprep.subr.mxu0 0.0
  %12780 = vmatpush1.msra.mxu0 %v12741
  %12781 = vmatprep.subr.mxu0 0.0
  %12782 = vmatpush1.msra.mxu0 0.0
  %12783 = vmatprep.subr.mxu0 0.0
  %12784 = vmatpush1.msra.mxu0 0.0
  %12785 = vmatprep.subr.mxu0 0.0
  %12786 = vmatpush1.msra.mxu0 0.0
  %12787 = vmatprep.subr.mxu0 0.0
  %12788 = vmatpush1.msra.mxu0 0.0
  %12789 = vmatprep.subr.mxu0 0.0
  %12790 = vmatpush1.msra.mxu0 0.0
  %12791 = vmatprep.subr.mxu0 0.0
  %12792 = vmatpush1.msra.mxu0 0.0
  %12793 = vmatprep.subr.mxu0 0.0
  %12794 = vmatpush1.msra.mxu0 0.0
  %12795 = vmatprep.subr.mxu0 0.0
  %12796 = vmatpush1.msra.mxu0 0.0
  %12797 = vmatprep.subr.mxu0 0.0
  %12798 = vmatpush1.msra.mxu0 0.0
  %12799 = vmatprep.subr.mxu0 0.0
  %12800 = vmatpush1.msra.mxu0 0.0
  %12801 = vmatprep.subr.mxu0 0.0
  %12802 = vmatpush1.msra.mxu0 0.0
  %12803 = vmatprep.subr.mxu0 0.0
  %12804 = vmatpush1.msra.mxu0 0.0
  %12805 = vmatprep.subr.mxu0 0.0
  %12806 = vmatpush1.msra.mxu0 0.0
  %12807 = vmatprep.subr.mxu0 0.0
  %12808 = vmatpush1.msra.mxu0 0.0
  %12809 = vmatprep.subr.mxu0 0.0
  %12810 = vmatpush1.msra.mxu0 0.0
  %12811 = vmatprep.subr.mxu0 0.0
  %12812 = vmatpush1.msra.mxu0 0.0
  %12813 = vmatprep.mubr.f32.mxu0 0.0
  %12814 = vmatmul.mubr.f32.gmra.mrb[0].mxu0 %v12725
  %v12815 = vpop.f32.mrb[0].mxu0
  %v12816 = vadd.f32 %v12747, %v12815
  %v12817 = vpop.f32.mrb[0].mxu0
  %12818 = vdwg.mxu0
  %12819 = vmax.xlane.f32.xlu0 %v12816
  %v12820 = vpop.xlane.xlu0 %12819
  %v12821 = vsub.f32 %v12816, %v12820
  %v12822 = vmul.f32 %v12821, 1.442695
  %v12823 = vpow.pop %v12822
  %12824 = vadd.xlane.f32.xlu0 %v12823
  %v12825 = vpop.xlane.xlu0 %12824
  %v12826 = vlog2.pop %v12825
  %v12827 = vmul.f32 %v12826, 0.6931472
  %v12828 = vsub.f32 %v12821, %v12827
  %12829 = vst [vmem:[%s9] sm:$0xff] %v12828
  // Predicated region
  $region38: #{_lambda_.1} parent=0 // pred_check
    _
  $region39: #{_lambda_.1} parent=0 // pred_check_branch
    %12831 = sbr.rel (0) target = $region41
  $region40: #{_lambda_.1} parent=0 // pred_region
    _
  $region41: #{_lambda_.1} parent=0 // pred_fallthru
    _
  // Predicated region
  $region42: #{_lambda_.1} parent=0 // pred_check
    _
  $region43: #{_lambda_.1} parent=0 // pred_check_branch
    %12833 = sbr.rel (0) target = $region45
  $region44: #{_lambda_.1} parent=0 // pred_region
    _
  $region45: #{_lambda_.1} parent=0 // pred_fallthru
    _

</llo_original>
